<compile_context>
chip_gen: v5e
topology: v5e:2x2
jax: 0.10.0
libtpu: 0.0.40
codegen_flags: <defaults>
</compile_context>

<pallas_src>
import functools

import jax
import jax.numpy as jnp
import numpy as np
from jax.experimental import pallas as pl
from jax.experimental.pallas import tpu as pltpu


_SQRT_HALF = 0.7071067811865476


def _gelu_exact(v):
    # PyTorch nn.GELU() default = exact erf-based GELU.
    return 0.5 * v * (1.0 + jax.lax.erf(v * _SQRT_HALF))


def _get_rel_table(rel_pos, q_size, k_size):
    # Matches get_rel_pos (no interpolation needed: table length == 2*size-1).
    q_coords = jnp.arange(q_size)[:, None] * max(k_size / q_size, 1.0)
    k_coords = jnp.arange(k_size)[None, :] * max(q_size / k_size, 1.0)
    rel = (q_coords - k_coords) + (k_size - 1) * max(q_size / k_size, 1.0)
    return rel_pos[rel.astype(jnp.int32)]          # (q_size, k_size, head_dim)


# ----------------------- single fused transformer-block kernel -------------- #
def _fused_block_kernel(x_ref, g1_ref, b1_ref, wqkv_ref, bqkv_ref,
                        rh_ref, rw_ref, eh_ref, ew_ref,
                        wproj_ref, bproj_ref, g2_ref, b2_ref,
                        w1_ref, bm1_ref, w2_ref, bm2_ref, o_ref,
                        *, num_heads, head_dim, grid_h, grid_w, eps, scale):
    f32 = jnp.float32
    bf16 = jnp.bfloat16

    x = x_ref[0]                                            # (N, C) f32
    N, C = x.shape

    # ---------------- LayerNorm 1 ----------------
    mu = jnp.mean(x, axis=-1, keepdims=True)
    var = jnp.mean((x - mu) ** 2, axis=-1, keepdims=True)
    xn = (x - mu) * jax.lax.rsqrt(var + eps) * g1_ref[...] + b1_ref[...]

    # ---------------- fused QKV projection (bf16 MXU, f32 acc) ----------------
    qkv = jax.lax.dot_general(xn.astype(bf16), wqkv_ref[...],
                              (((1,), (0,)), ((), ())),
                              preferred_element_type=f32) + bqkv_ref[...]  # (N, 3C)

    # rel-pos tables / expanders: load + broadcast ONCE, reuse across heads
    # (broadcast_in_dim is not CSE'd by JAX, so hoist it out of the loop).
    Rh_b = rh_ref[...][:, None, :, :]                       # (H, 1, H, hd) f32
    Rw_b = rw_ref[...][None, :, :, :]                       # (1, W, W, hd) f32
    Eh = eh_ref[...]                                        # (H, N) f32 one-hot
    Ew = ew_ref[...]                                        # (W, N) f32 one-hot

    head_outs = []
    for h in range(num_heads):
        lo = h * head_dim
        # Lane slices at h*hd offsets; negligible at this head_dim / size class.
        q = qkv[:, lo:lo + head_dim]                        # (N, hd) f32
        k = qkv[:, C + lo:C + lo + head_dim]
        v = qkv[:, 2 * C + lo:2 * C + lo + head_dim]

        # QK^T (bf16 operands, f32 accumulate); scale on scores only (matches ref).
        s = jax.lax.dot_general(q.astype(bf16), k.astype(bf16),
                                (((1,), (1,)), ((), ())),
                                preferred_element_type=f32) * scale       # (N, N)

        # Decomposed relative-position bias, minimal MACs, all f32 on the VPU:
        #   rel_h[r,w,kh] = sum_c q3[r,w,c] * Rh[r,kh,c]
        #   rel_w[r,w,kw] = sum_c q3[r,w,c] * Rw[w,kw,c]
        q3 = q.reshape(grid_h, grid_w, head_dim)[:, :, None, :]  # (H, W, 1, hd)
        rel_h = jnp.sum(q3 * Rh_b, axis=-1).reshape(N, grid_h)   # (N, H) f32
        rel_w = jnp.sum(q3 * Rw_b, axis=-1).reshape(N, grid_w)   # (N, W) f32

        # Expand (N,H)/(N,W) -> (N,N) via tiny one-hot expanders (exact in f32).
        # At this overhead-bound size these matmuls are free filler; at SAM
        # scale they could be replaced by a VPU broadcast-add on a (N,H,W) view.
        s = s + jax.lax.dot_general(rel_h, Eh, (((1,), (0,)), ((), ())),
                                    preferred_element_type=f32)
        s = s + jax.lax.dot_general(rel_w, Ew, (((1,), (0,)), ((), ())),
                                    preferred_element_type=f32)

        # softmax in f32; normalization multiply uses the EUP reciprocal.
        s = s - jnp.max(s, axis=-1, keepdims=True)
        p = jnp.exp(s)
        p = p * pl.reciprocal(jnp.sum(p, axis=-1, keepdims=True), approx=True)

        head_outs.append(
            jax.lax.dot_general(p.astype(bf16), v.astype(bf16),
                                (((1,), (0,)), ((), ())),
                                preferred_element_type=f32))              # (N, hd)

    ao = jnp.concatenate(head_outs, axis=1)                 # (N, C) f32

    # ---------------- output projection + residual ----------------
    proj = jax.lax.dot_general(ao.astype(bf16), wproj_ref[...],
                               (((1,), (0,)), ((), ())),
                               preferred_element_type=f32) + bproj_ref[...]
    x1 = x + proj

    # ---------------- LayerNorm 2 + MLP(GELU) + residual ----------------
    mu2 = jnp.mean(x1, axis=-1, keepdims=True)
    var2 = jnp.mean((x1 - mu2) ** 2, axis=-1, keepdims=True)
    xn2 = (x1 - mu2) * jax.lax.rsqrt(var2 + eps) * g2_ref[...] + b2_ref[...]

    h1 = jax.lax.dot_general(xn2.astype(bf16), w1_ref[...],
                             (((1,), (0,)), ((), ())),
                             preferred_element_type=f32) + bm1_ref[...]
    h1 = _gelu_exact(h1)
    mlp = jax.lax.dot_general(h1.astype(bf16), w2_ref[...],
                              (((1,), (0,)), ((), ())),
                              preferred_element_type=f32) + bm2_ref[...]

    o_ref[0] = (x1 + mlp).astype(o_ref.dtype)


# ------------------------------ param packing ------------------------------- #
def pack_params(p, *, H, W, num_heads):
    """Done ONCE (hoisted out of the per-call path).  Only compact tables."""
    C = p["wproj"].shape[0]
    N = H * W
    bf16, f32 = jnp.bfloat16, jnp.float32

    rh = _get_rel_table(p["rel_pos_h"], H, H).astype(f32)               # (H,H,hd)
    rw = _get_rel_table(p["rel_pos_w"], W, W).astype(f32)               # (W,W,hd)

    kk = jnp.arange(N)
    eh = (jnp.arange(H)[:, None] == kk[None, :] // W).astype(f32)       # (H, N)
    ew = (jnp.arange(W)[:, None] == kk[None, :] % W).astype(f32)        # (W, N)

    row = lambda a: a.reshape(1, -1).astype(f32)
    return dict(
        ln1_g=row(p["ln1_g"]), ln1_b=row(p["ln1_b"]),
        wqkv=p["wqkv"].T.astype(bf16), bqkv=row(p["bqkv"]),
        wproj=p["wproj"].T.astype(bf16), bproj=row(p["bproj"]),
        ln2_g=row(p["ln2_g"]), ln2_b=row(p["ln2_b"]),
        w1=p["w1"].T.astype(bf16), b1=row(p["b1"]),
        w2=p["w2"].T.astype(bf16), b2=row(p["b2"]),
        rh=rh, rw=rw, eh=eh, ew=ew,
    )


# ------------------------------ forward wrapper ----------------------------- #
def relpos_encoder_forward(x, pk, *, num_heads, H, W, eps=1e-5):
    B = x.shape[0]
    C = x.shape[-1]
    hd = C // num_heads
    N = H * W
    mlp_dim = pk["w1"].shape[1]
    xt = x.reshape(B, N, C)
    scale = float(hd) ** -0.5

    def const(shape):
        # whole-array operand, constant across the grid
        return pl.BlockSpec(shape, lambda b: (0,) * len(shape))

    out = pl.pallas_call(
        functools.partial(_fused_block_kernel, num_heads=num_heads, head_dim=hd,
                          grid_h=H, grid_w=W, eps=eps, scale=scale),
        grid=(B,),
        in_specs=[
            pl.BlockSpec((1, N, C), lambda b: (b, 0, 0)),   # x
            const((1, C)), const((1, C)),                   # ln1 gamma/beta
            const((C, 3 * C)), const((1, 3 * C)),           # Wqkv, bqkv
            const((H, H, hd)), const((W, W, hd)),           # Rh, Rw tables
            const((H, N)), const((W, N)),                   # Eh, Ew expanders
            const((C, C)), const((1, C)),                   # Wproj, bproj
            const((1, C)), const((1, C)),                   # ln2 gamma/beta
            const((C, mlp_dim)), const((1, mlp_dim)),       # W1, b1
            const((mlp_dim, C)), const((1, C)),             # W2, b2
        ],
        out_specs=pl.BlockSpec((1, N, C), lambda b: (b, 0, 0)),
        out_shape=jax.ShapeDtypeStruct((B, N, C), x.dtype),
        # B is the leading parallel axis: with B>=2 both v7x TensorCores get work.
        # VMEM use is <1 MiB here, so no explicit vmem_limit_bytes is needed.
        compiler_params=pltpu.CompilerParams(dimension_semantics=("parallel",)),
    )(xt, pk["ln1_g"], pk["ln1_b"], pk["wqkv"], pk["bqkv"],
      pk["rh"], pk["rw"], pk["eh"], pk["ew"],
      pk["wproj"], pk["bproj"], pk["ln2_g"], pk["ln2_b"],
      pk["w1"], pk["b1"], pk["w2"], pk["b2"])

    return out.reshape(B, H, W, C)


# ------------------------------ pure-JAX reference -------------------------- #
def reference_forward(x, p, num_heads, eps=1e-5):
    B, H, W, C = x.shape
    hd = C // num_heads
    N = H * W

    def ln(v, g, b):
        mu = v.mean(-1, keepdims=True)
        var = ((v - mu) ** 2).mean(-1, keepdims=True)
        return (v - mu) / jnp.sqrt(var + eps) * g + b

    shortcut = x
    xn = ln(x, p["ln1_g"], p["ln1_b"])
    qkv = xn.reshape(B, N, C) @ p["wqkv"].T + p["bqkv"]
    qkv = qkv.reshape(B, N, 3, num_heads, hd).transpose(2, 0, 3, 1, 4)
    qkv = qkv.reshape(3, B * num_heads, N, hd)
    q, k, v = qkv[0], qkv[1], qkv[2]
    attn = (q * hd ** -0.5) @ jnp.swapaxes(k, -1, -2)
    Rh = _get_rel_table(p["rel_pos_h"], H, H)
    Rw = _get_rel_table(p["rel_pos_w"], W, W)
    r_q = q.reshape(B * num_heads, H, W, hd)
    rel_h = jnp.einsum("bhwc,hkc->bhwk", r_q, Rh)
    rel_w = jnp.einsum("bhwc,wkc->bhwk", r_q, Rw)
    attn = (attn.reshape(B * num_heads, H, W, H, W)
            + rel_h[:, :, :, :, None] + rel_w[:, :, :, None, :]
            ).reshape(B * num_heads, N, N)
    attn = jax.nn.softmax(attn, axis=-1)
    o = (attn @ v).reshape(B, num_heads, H, W, hd).transpose(0, 2, 3, 1, 4)
    o = o.reshape(B, H, W, C) @ p["wproj"].T + p["bproj"]
    x1 = shortcut + o
    xn2 = ln(x1, p["ln2_g"], p["ln2_b"])
    mlp = _gelu_exact(xn2 @ p["w1"].T + p["b1"]) @ p["w2"].T + p["b2"]
    return x1 + mlp


# ------------------------------ deterministic init -------------------------- #
def init_params(key, C, num_heads, mlp_dim, H, W):
    hd = C // num_heads
    ks = jax.random.split(key, 16)
    s = 0.05
    nrm = lambda k, shp: jax.random.normal(k, shp, jnp.float32)
    return dict(
        ln1_g=1.0 + 0.1 * nrm(ks[0], (C,)),
        ln1_b=0.1 * nrm(ks[1], (C,)),
        wqkv=s * nrm(ks[2], (3 * C, C)),        # PyTorch Linear weight (out, in)
        bqkv=s * nrm(ks[3], (3 * C,)),
        wproj=s * nrm(ks[4], (C, C)),
        bproj=s * nrm(ks[5], (C,)),
        rel_pos_h=s * nrm(ks[6], (2 * H - 1, hd)),
        rel_pos_w=s * nrm(ks[7], (2 * W - 1, hd)),
        ln2_g=1.0 + 0.1 * nrm(ks[8], (C,)),
        ln2_b=0.1 * nrm(ks[9], (C,)),
        w1=s * nrm(ks[10], (mlp_dim, C)),
        b1=s * nrm(ks[11], (mlp_dim,)),
        w2=s * nrm(ks[12], (C, mlp_dim)),
        b2=s * nrm(ks[13], (C,)),
    )


if __name__ == "__main__":
    B, H, W, C = 2, 8, 8, 32
    num_heads, mlp_dim = 4, 64

    key = jax.random.PRNGKey(0)
    kx, kp = jax.random.split(key)
    x = jax.random.normal(kx, (B, H, W, C), jnp.float32)
    p = init_params(kp, C, num_heads, mlp_dim, H, W)

    # Packing / table gathers hoisted out of the per-call path (done once).
    pk = pack_params(p, H=H, W=W, num_heads=num_heads)
    fwd = jax.jit(functools.partial(relpos_encoder_forward,
                                    num_heads=num_heads, H=H, W=W))

    out = jax.block_until_ready(fwd(x, pk))
    ref = jax.block_until_ready(reference_forward(x, p, num_heads))

    assert out.shape == (B, H, W, C)
    # Tolerance accounts for bf16 MXU operands + approx reciprocal (f32 ref).
    np.testing.assert_allclose(np.asarray(out), np.asarray(ref),
                               rtol=2e-2, atol=2e-2)
    print("KERNEL_OK")
</pallas_src>

<mosaic_0001>
module attributes {stable_mosaic.version = 11 : i64} {
  func.func @_fused_block_kernel(%arg0: i32, %arg1: memref<1x64x32xf32, #tpu.memory_space<vmem>>, %arg2: memref<1x32xf32, #tpu.memory_space<vmem>>, %arg3: memref<1x32xf32, #tpu.memory_space<vmem>>, %arg4: memref<32x96xbf16, #tpu.memory_space<vmem>>, %arg5: memref<1x96xf32, #tpu.memory_space<vmem>>, %arg6: memref<8x8x8xf32, #tpu.memory_space<vmem>>, %arg7: memref<8x8x8xf32, #tpu.memory_space<vmem>>, %arg8: memref<8x64xf32, #tpu.memory_space<vmem>>, %arg9: memref<8x64xf32, #tpu.memory_space<vmem>>, %arg10: memref<32x32xbf16, #tpu.memory_space<vmem>>, %arg11: memref<1x32xf32, #tpu.memory_space<vmem>>, %arg12: memref<1x32xf32, #tpu.memory_space<vmem>>, %arg13: memref<1x32xf32, #tpu.memory_space<vmem>>, %arg14: memref<32x64xbf16, #tpu.memory_space<vmem>>, %arg15: memref<1x64xf32, #tpu.memory_space<vmem>>, %arg16: memref<64x32xbf16, #tpu.memory_space<vmem>>, %arg17: memref<1x32xf32, #tpu.memory_space<vmem>>, %arg18: memref<1x64x32xf32, #tpu.memory_space<vmem>>) attributes {dimension_semantics = [#tpu.dimension_semantics<parallel>], iteration_bounds = array<i64: 2>, scalar_prefetch = 0 : i64, scratch_operands = 0 : i64, tpu.core_type = #tpu.core_type<tc>, window_params = [{transform_indices = @transform_0, window_bounds = array<i64: 1, 64, 32>}, {pipeline_mode = #tpu.pipeline_mode<synchronous>, transform_indices = @transform_1, window_bounds = array<i64: 1, 32>}, {pipeline_mode = #tpu.pipeline_mode<synchronous>, transform_indices = @transform_2, window_bounds = array<i64: 1, 32>}, {pipeline_mode = #tpu.pipeline_mode<synchronous>, transform_indices = @transform_3, window_bounds = array<i64: 32, 96>}, {pipeline_mode = #tpu.pipeline_mode<synchronous>, transform_indices = @transform_4, window_bounds = array<i64: 1, 96>}, {pipeline_mode = #tpu.pipeline_mode<synchronous>, transform_indices = @transform_5, window_bounds = array<i64: 8, 8, 8>}, {pipeline_mode = #tpu.pipeline_mode<synchronous>, transform_indices = @transform_6, window_bounds = array<i64: 8, 8, 8>}, {pipeline_mode = #tpu.pipeline_mode<synchronous>, transform_indices = @transform_7, window_bounds = array<i64: 8, 64>}, {pipeline_mode = #tpu.pipeline_mode<synchronous>, transform_indices = @transform_8, window_bounds = array<i64: 8, 64>}, {pipeline_mode = #tpu.pipeline_mode<synchronous>, transform_indices = @transform_9, window_bounds = array<i64: 32, 32>}, {pipeline_mode = #tpu.pipeline_mode<synchronous>, transform_indices = @transform_10, window_bounds = array<i64: 1, 32>}, {pipeline_mode = #tpu.pipeline_mode<synchronous>, transform_indices = @transform_11, window_bounds = array<i64: 1, 32>}, {pipeline_mode = #tpu.pipeline_mode<synchronous>, transform_indices = @transform_12, window_bounds = array<i64: 1, 32>}, {pipeline_mode = #tpu.pipeline_mode<synchronous>, transform_indices = @transform_13, window_bounds = array<i64: 32, 64>}, {pipeline_mode = #tpu.pipeline_mode<synchronous>, transform_indices = @transform_14, window_bounds = array<i64: 1, 64>}, {pipeline_mode = #tpu.pipeline_mode<synchronous>, transform_indices = @transform_15, window_bounds = array<i64: 64, 32>}, {pipeline_mode = #tpu.pipeline_mode<synchronous>, transform_indices = @transform_16, window_bounds = array<i64: 1, 32>}, {transform_indices = @transform_17, window_bounds = array<i64: 1, 64, 32>}]} {
    %c0 = arith.constant 0 : index
    %c0_0 = arith.constant 0 : index
    %c0_1 = arith.constant 0 : index
    %0 = vector.load %arg1[%c0, %c0_0, %c0_1] : memref<1x64x32xf32, #tpu.memory_space<vmem>>, vector<1x64x32xf32>
    %1 = vector.shape_cast %0 : vector<1x64x32xf32> to vector<64x32xf32>
    %cst = arith.constant dense<0.000000e+00> : vector<64xf32>
    %2 = vector.multi_reduction <add>, %1, %cst [1] : vector<64x32xf32> to vector<64xf32>
    %3 = vector.shape_cast %2 : vector<64xf32> to vector<64x1xf32>
    %cst_2 = arith.constant 3.200000e+01 : f32
    %4 = vector.broadcast %cst_2 : f32 to vector<64x1xf32>
    %5 = arith.divf %3, %4 : vector<64x1xf32>
    %6 = vector.broadcast %5 : vector<64x1xf32> to vector<64x32xf32>
    %7 = arith.subf %1, %6 : vector<64x32xf32>
    %8 = arith.mulf %7, %7 : vector<64x32xf32>
    %cst_3 = arith.constant dense<0.000000e+00> : vector<64xf32>
    %9 = vector.multi_reduction <add>, %8, %cst_3 [1] : vector<64x32xf32> to vector<64xf32>
    %10 = vector.shape_cast %9 : vector<64xf32> to vector<64x1xf32>
    %cst_4 = arith.constant 3.200000e+01 : f32
    %11 = vector.broadcast %cst_4 : f32 to vector<64x1xf32>
    %12 = arith.divf %10, %11 : vector<64x1xf32>
    %13 = vector.broadcast %5 : vector<64x1xf32> to vector<64x32xf32>
    %14 = arith.subf %1, %13 : vector<64x32xf32>
    %cst_5 = arith.constant 9.99999974E-6 : f32
    %15 = vector.broadcast %cst_5 : f32 to vector<64x1xf32>
    %16 = arith.addf %12, %15 : vector<64x1xf32>
    %17 = math.rsqrt %16 : vector<64x1xf32>
    %18 = vector.broadcast %17 : vector<64x1xf32> to vector<64x32xf32>
    %19 = arith.mulf %14, %18 : vector<64x32xf32>
    %c0_6 = arith.constant 0 : index
    %c0_7 = arith.constant 0 : index
    %20 = vector.load %arg2[%c0_6, %c0_7] : memref<1x32xf32, #tpu.memory_space<vmem>>, vector<1x32xf32>
    %21 = vector.broadcast %20 : vector<1x32xf32> to vector<64x32xf32>
    %22 = arith.mulf %19, %21 : vector<64x32xf32>
    %c0_8 = arith.constant 0 : index
    %c0_9 = arith.constant 0 : index
    %23 = vector.load %arg3[%c0_8, %c0_9] : memref<1x32xf32, #tpu.memory_space<vmem>>, vector<1x32xf32>
    %24 = vector.broadcast %23 : vector<1x32xf32> to vector<64x32xf32>
    %25 = arith.addf %22, %24 : vector<64x32xf32>
    %26 = arith.truncf %25 : vector<64x32xf32> to vector<64x32xbf16>
    %c0_10 = arith.constant 0 : index
    %c0_11 = arith.constant 0 : index
    %27 = vector.load %arg4[%c0_10, %c0_11] : memref<32x96xbf16, #tpu.memory_space<vmem>>, vector<32x96xbf16>
    %cst_12 = arith.constant dense<0.000000e+00> : vector<64x96xf32>
    %28 = tpu.matmul %26, %27, %cst_12 {dimension_numbers = #tpu.dot_dimension_numbers<[1], [0], [0], [1], [0, 0, 1, 1], [], []>} : vector<64x32xbf16>, vector<32x96xbf16>, vector<64x96xf32> -> vector<64x96xf32>
    %c0_13 = arith.constant 0 : index
    %c0_14 = arith.constant 0 : index
    %29 = vector.load %arg5[%c0_13, %c0_14] : memref<1x96xf32, #tpu.memory_space<vmem>>, vector<1x96xf32>
    %30 = vector.broadcast %29 : vector<1x96xf32> to vector<64x96xf32>
    %31 = arith.addf %28, %30 : vector<64x96xf32>
    %c0_15 = arith.constant 0 : index
    %c0_16 = arith.constant 0 : index
    %c0_17 = arith.constant 0 : index
    %32 = vector.load %arg6[%c0_15, %c0_16, %c0_17] : memref<8x8x8xf32, #tpu.memory_space<vmem>>, vector<8x8x8xf32>
    %33 = vector.shape_cast %32 : vector<8x8x8xf32> to vector<8x1x8x8xf32>
    %c0_18 = arith.constant 0 : index
    %c0_19 = arith.constant 0 : index
    %c0_20 = arith.constant 0 : index
    %34 = vector.load %arg7[%c0_18, %c0_19, %c0_20] : memref<8x8x8xf32, #tpu.memory_space<vmem>>, vector<8x8x8xf32>
    %35 = vector.shape_cast %34 : vector<8x8x8xf32> to vector<1x8x8x8xf32>
    %c0_21 = arith.constant 0 : index
    %c0_22 = arith.constant 0 : index
    %36 = vector.load %arg8[%c0_21, %c0_22] : memref<8x64xf32, #tpu.memory_space<vmem>>, vector<8x64xf32>
    %c0_23 = arith.constant 0 : index
    %c0_24 = arith.constant 0 : index
    %37 = vector.load %arg9[%c0_23, %c0_24] : memref<8x64xf32, #tpu.memory_space<vmem>>, vector<8x64xf32>
    %38 = vector.extract_strided_slice %31 {offsets = [0, 0], sizes = [64, 8], strides = [1, 1]} : vector<64x96xf32> to vector<64x8xf32>
    %39 = vector.extract_strided_slice %31 {offsets = [0, 32], sizes = [64, 8], strides = [1, 1]} : vector<64x96xf32> to vector<64x8xf32>
    %40 = vector.extract_strided_slice %31 {offsets = [0, 64], sizes = [64, 8], strides = [1, 1]} : vector<64x96xf32> to vector<64x8xf32>
    %41 = arith.truncf %38 : vector<64x8xf32> to vector<64x8xbf16>
    %42 = arith.truncf %39 : vector<64x8xf32> to vector<64x8xbf16>
    %cst_25 = arith.constant dense<0.000000e+00> : vector<64x64xf32>
    %43 = tpu.matmul %41, %42, %cst_25 {dimension_numbers = #tpu.dot_dimension_numbers<[1], [1], [0], [0], [0, 0, 1, 0], [], []>} : vector<64x8xbf16>, vector<64x8xbf16>, vector<64x64xf32> -> vector<64x64xf32>
    %cst_26 = arith.constant 0.353553385 : f32
    %44 = vector.broadcast %cst_26 : f32 to vector<64x64xf32>
    %45 = arith.mulf %43, %44 : vector<64x64xf32>
    %46 = vector.shape_cast %38 : vector<64x8xf32> to vector<8x8x8xf32>
    %47 = vector.shape_cast %46 : vector<8x8x8xf32> to vector<8x8x1x8xf32>
    %48 = vector.broadcast %47 : vector<8x8x1x8xf32> to vector<8x8x8x8xf32>
    %49 = vector.broadcast %33 : vector<8x1x8x8xf32> to vector<8x8x8x8xf32>
    %50 = arith.mulf %48, %49 : vector<8x8x8x8xf32>
    %cst_27 = arith.constant dense<0.000000e+00> : vector<8x8x8xf32>
    %51 = vector.multi_reduction <add>, %50, %cst_27 [3] : vector<8x8x8x8xf32> to vector<8x8x8xf32>
    %52 = vector.shape_cast %51 : vector<8x8x8xf32> to vector<64x8xf32>
    %53 = vector.broadcast %47 : vector<8x8x1x8xf32> to vector<8x8x8x8xf32>
    %54 = vector.broadcast %35 : vector<1x8x8x8xf32> to vector<8x8x8x8xf32>
    %55 = arith.mulf %53, %54 : vector<8x8x8x8xf32>
    %cst_28 = arith.constant dense<0.000000e+00> : vector<8x8x8xf32>
    %56 = vector.multi_reduction <add>, %55, %cst_28 [3] : vector<8x8x8x8xf32> to vector<8x8x8xf32>
    %57 = vector.shape_cast %56 : vector<8x8x8xf32> to vector<64x8xf32>
    %cst_29 = arith.constant dense<0.000000e+00> : vector<64x64xf32>
    %58 = tpu.matmul %52, %36, %cst_29 {dimension_numbers = #tpu.dot_dimension_numbers<[1], [0], [0], [1], [0, 0, 1, 1], [], []>} : vector<64x8xf32>, vector<8x64xf32>, vector<64x64xf32> -> vector<64x64xf32>
    %59 = arith.addf %45, %58 : vector<64x64xf32>
    %cst_30 = arith.constant dense<0.000000e+00> : vector<64x64xf32>
    %60 = tpu.matmul %57, %37, %cst_30 {dimension_numbers = #tpu.dot_dimension_numbers<[1], [0], [0], [1], [0, 0, 1, 1], [], []>} : vector<64x8xf32>, vector<8x64xf32>, vector<64x64xf32> -> vector<64x64xf32>
    %61 = arith.addf %59, %60 : vector<64x64xf32>
    %cst_31 = arith.constant dense<0xFF800000> : vector<64xf32>
    %62 = vector.multi_reduction <maximumf>, %61, %cst_31 [1] : vector<64x64xf32> to vector<64xf32>
    %63 = vector.shape_cast %62 : vector<64xf32> to vector<64x1xf32>
    %64 = vector.broadcast %63 : vector<64x1xf32> to vector<64x64xf32>
    %65 = arith.subf %61, %64 : vector<64x64xf32>
    %66 = math.exp %65 : vector<64x64xf32>
    %cst_32 = arith.constant dense<0.000000e+00> : vector<64xf32>
    %67 = vector.multi_reduction <add>, %66, %cst_32 [1] : vector<64x64xf32> to vector<64xf32>
    %68 = vector.shape_cast %67 : vector<64xf32> to vector<64x1xf32>
    %69 = tpu.reciprocal %68 {approx = true} : vector<64x1xf32> -> vector<64x1xf32>
    %70 = vector.broadcast %69 : vector<64x1xf32> to vector<64x64xf32>
    %71 = arith.mulf %66, %70 : vector<64x64xf32>
    %72 = arith.truncf %71 : vector<64x64xf32> to vector<64x64xbf16>
    %73 = arith.truncf %40 : vector<64x8xf32> to vector<64x8xbf16>
    %cst_33 = arith.constant dense<0.000000e+00> : vector<64x8xf32>
    %74 = tpu.matmul %72, %73, %cst_33 {dimension_numbers = #tpu.dot_dimension_numbers<[1], [0], [0], [1], [0, 0, 1, 1], [], []>} : vector<64x64xbf16>, vector<64x8xbf16>, vector<64x8xf32> -> vector<64x8xf32>
    %75 = vector.extract_strided_slice %31 {offsets = [0, 8], sizes = [64, 8], strides = [1, 1]} : vector<64x96xf32> to vector<64x8xf32>
    %76 = vector.extract_strided_slice %31 {offsets = [0, 40], sizes = [64, 8], strides = [1, 1]} : vector<64x96xf32> to vector<64x8xf32>
    %77 = vector.extract_strided_slice %31 {offsets = [0, 72], sizes = [64, 8], strides = [1, 1]} : vector<64x96xf32> to vector<64x8xf32>
    %78 = arith.truncf %75 : vector<64x8xf32> to vector<64x8xbf16>
    %79 = arith.truncf %76 : vector<64x8xf32> to vector<64x8xbf16>
    %cst_34 = arith.constant dense<0.000000e+00> : vector<64x64xf32>
    %80 = tpu.matmul %78, %79, %cst_34 {dimension_numbers = #tpu.dot_dimension_numbers<[1], [1], [0], [0], [0, 0, 1, 0], [], []>} : vector<64x8xbf16>, vector<64x8xbf16>, vector<64x64xf32> -> vector<64x64xf32>
    %cst_35 = arith.constant 0.353553385 : f32
    %81 = vector.broadcast %cst_35 : f32 to vector<64x64xf32>
    %82 = arith.mulf %80, %81 : vector<64x64xf32>
    %83 = vector.shape_cast %75 : vector<64x8xf32> to vector<8x8x8xf32>
    %84 = vector.shape_cast %83 : vector<8x8x8xf32> to vector<8x8x1x8xf32>
    %85 = vector.broadcast %84 : vector<8x8x1x8xf32> to vector<8x8x8x8xf32>
    %86 = vector.broadcast %33 : vector<8x1x8x8xf32> to vector<8x8x8x8xf32>
    %87 = arith.mulf %85, %86 : vector<8x8x8x8xf32>
    %cst_36 = arith.constant dense<0.000000e+00> : vector<8x8x8xf32>
    %88 = vector.multi_reduction <add>, %87, %cst_36 [3] : vector<8x8x8x8xf32> to vector<8x8x8xf32>
    %89 = vector.shape_cast %88 : vector<8x8x8xf32> to vector<64x8xf32>
    %90 = vector.broadcast %84 : vector<8x8x1x8xf32> to vector<8x8x8x8xf32>
    %91 = vector.broadcast %35 : vector<1x8x8x8xf32> to vector<8x8x8x8xf32>
    %92 = arith.mulf %90, %91 : vector<8x8x8x8xf32>
    %cst_37 = arith.constant dense<0.000000e+00> : vector<8x8x8xf32>
    %93 = vector.multi_reduction <add>, %92, %cst_37 [3] : vector<8x8x8x8xf32> to vector<8x8x8xf32>
    %94 = vector.shape_cast %93 : vector<8x8x8xf32> to vector<64x8xf32>
    %cst_38 = arith.constant dense<0.000000e+00> : vector<64x64xf32>
    %95 = tpu.matmul %89, %36, %cst_38 {dimension_numbers = #tpu.dot_dimension_numbers<[1], [0], [0], [1], [0, 0, 1, 1], [], []>} : vector<64x8xf32>, vector<8x64xf32>, vector<64x64xf32> -> vector<64x64xf32>
    %96 = arith.addf %82, %95 : vector<64x64xf32>
    %cst_39 = arith.constant dense<0.000000e+00> : vector<64x64xf32>
    %97 = tpu.matmul %94, %37, %cst_39 {dimension_numbers = #tpu.dot_dimension_numbers<[1], [0], [0], [1], [0, 0, 1, 1], [], []>} : vector<64x8xf32>, vector<8x64xf32>, vector<64x64xf32> -> vector<64x64xf32>
    %98 = arith.addf %96, %97 : vector<64x64xf32>
    %cst_40 = arith.constant dense<0xFF800000> : vector<64xf32>
    %99 = vector.multi_reduction <maximumf>, %98, %cst_40 [1] : vector<64x64xf32> to vector<64xf32>
    %100 = vector.shape_cast %99 : vector<64xf32> to vector<64x1xf32>
    %101 = vector.broadcast %100 : vector<64x1xf32> to vector<64x64xf32>
    %102 = arith.subf %98, %101 : vector<64x64xf32>
    %103 = math.exp %102 : vector<64x64xf32>
    %cst_41 = arith.constant dense<0.000000e+00> : vector<64xf32>
    %104 = vector.multi_reduction <add>, %103, %cst_41 [1] : vector<64x64xf32> to vector<64xf32>
    %105 = vector.shape_cast %104 : vector<64xf32> to vector<64x1xf32>
    %106 = tpu.reciprocal %105 {approx = true} : vector<64x1xf32> -> vector<64x1xf32>
    %107 = vector.broadcast %106 : vector<64x1xf32> to vector<64x64xf32>
    %108 = arith.mulf %103, %107 : vector<64x64xf32>
    %109 = arith.truncf %108 : vector<64x64xf32> to vector<64x64xbf16>
    %110 = arith.truncf %77 : vector<64x8xf32> to vector<64x8xbf16>
    %cst_42 = arith.constant dense<0.000000e+00> : vector<64x8xf32>
    %111 = tpu.matmul %109, %110, %cst_42 {dimension_numbers = #tpu.dot_dimension_numbers<[1], [0], [0], [1], [0, 0, 1, 1], [], []>} : vector<64x64xbf16>, vector<64x8xbf16>, vector<64x8xf32> -> vector<64x8xf32>
    %112 = vector.extract_strided_slice %31 {offsets = [0, 16], sizes = [64, 8], strides = [1, 1]} : vector<64x96xf32> to vector<64x8xf32>
    %113 = vector.extract_strided_slice %31 {offsets = [0, 48], sizes = [64, 8], strides = [1, 1]} : vector<64x96xf32> to vector<64x8xf32>
    %114 = vector.extract_strided_slice %31 {offsets = [0, 80], sizes = [64, 8], strides = [1, 1]} : vector<64x96xf32> to vector<64x8xf32>
    %115 = arith.truncf %112 : vector<64x8xf32> to vector<64x8xbf16>
    %116 = arith.truncf %113 : vector<64x8xf32> to vector<64x8xbf16>
    %cst_43 = arith.constant dense<0.000000e+00> : vector<64x64xf32>
    %117 = tpu.matmul %115, %116, %cst_43 {dimension_numbers = #tpu.dot_dimension_numbers<[1], [1], [0], [0], [0, 0, 1, 0], [], []>} : vector<64x8xbf16>, vector<64x8xbf16>, vector<64x64xf32> -> vector<64x64xf32>
    %cst_44 = arith.constant 0.353553385 : f32
    %118 = vector.broadcast %cst_44 : f32 to vector<64x64xf32>
    %119 = arith.mulf %117, %118 : vector<64x64xf32>
    %120 = vector.shape_cast %112 : vector<64x8xf32> to vector<8x8x8xf32>
    %121 = vector.shape_cast %120 : vector<8x8x8xf32> to vector<8x8x1x8xf32>
    %122 = vector.broadcast %121 : vector<8x8x1x8xf32> to vector<8x8x8x8xf32>
    %123 = vector.broadcast %33 : vector<8x1x8x8xf32> to vector<8x8x8x8xf32>
    %124 = arith.mulf %122, %123 : vector<8x8x8x8xf32>
    %cst_45 = arith.constant dense<0.000000e+00> : vector<8x8x8xf32>
    %125 = vector.multi_reduction <add>, %124, %cst_45 [3] : vector<8x8x8x8xf32> to vector<8x8x8xf32>
    %126 = vector.shape_cast %125 : vector<8x8x8xf32> to vector<64x8xf32>
    %127 = vector.broadcast %121 : vector<8x8x1x8xf32> to vector<8x8x8x8xf32>
    %128 = vector.broadcast %35 : vector<1x8x8x8xf32> to vector<8x8x8x8xf32>
    %129 = arith.mulf %127, %128 : vector<8x8x8x8xf32>
    %cst_46 = arith.constant dense<0.000000e+00> : vector<8x8x8xf32>
    %130 = vector.multi_reduction <add>, %129, %cst_46 [3] : vector<8x8x8x8xf32> to vector<8x8x8xf32>
    %131 = vector.shape_cast %130 : vector<8x8x8xf32> to vector<64x8xf32>
    %cst_47 = arith.constant dense<0.000000e+00> : vector<64x64xf32>
    %132 = tpu.matmul %126, %36, %cst_47 {dimension_numbers = #tpu.dot_dimension_numbers<[1], [0], [0], [1], [0, 0, 1, 1], [], []>} : vector<64x8xf32>, vector<8x64xf32>, vector<64x64xf32> -> vector<64x64xf32>
    %133 = arith.addf %119, %132 : vector<64x64xf32>
    %cst_48 = arith.constant dense<0.000000e+00> : vector<64x64xf32>
    %134 = tpu.matmul %131, %37, %cst_48 {dimension_numbers = #tpu.dot_dimension_numbers<[1], [0], [0], [1], [0, 0, 1, 1], [], []>} : vector<64x8xf32>, vector<8x64xf32>, vector<64x64xf32> -> vector<64x64xf32>
    %135 = arith.addf %133, %134 : vector<64x64xf32>
    %cst_49 = arith.constant dense<0xFF800000> : vector<64xf32>
    %136 = vector.multi_reduction <maximumf>, %135, %cst_49 [1] : vector<64x64xf32> to vector<64xf32>
    %137 = vector.shape_cast %136 : vector<64xf32> to vector<64x1xf32>
    %138 = vector.broadcast %137 : vector<64x1xf32> to vector<64x64xf32>
    %139 = arith.subf %135, %138 : vector<64x64xf32>
    %140 = math.exp %139 : vector<64x64xf32>
    %cst_50 = arith.constant dense<0.000000e+00> : vector<64xf32>
    %141 = vector.multi_reduction <add>, %140, %cst_50 [1] : vector<64x64xf32> to vector<64xf32>
    %142 = vector.shape_cast %141 : vector<64xf32> to vector<64x1xf32>
    %143 = tpu.reciprocal %142 {approx = true} : vector<64x1xf32> -> vector<64x1xf32>
    %144 = vector.broadcast %143 : vector<64x1xf32> to vector<64x64xf32>
    %145 = arith.mulf %140, %144 : vector<64x64xf32>
    %146 = arith.truncf %145 : vector<64x64xf32> to vector<64x64xbf16>
    %147 = arith.truncf %114 : vector<64x8xf32> to vector<64x8xbf16>
    %cst_51 = arith.constant dense<0.000000e+00> : vector<64x8xf32>
    %148 = tpu.matmul %146, %147, %cst_51 {dimension_numbers = #tpu.dot_dimension_numbers<[1], [0], [0], [1], [0, 0, 1, 1], [], []>} : vector<64x64xbf16>, vector<64x8xbf16>, vector<64x8xf32> -> vector<64x8xf32>
    %149 = vector.extract_strided_slice %31 {offsets = [0, 24], sizes = [64, 8], strides = [1, 1]} : vector<64x96xf32> to vector<64x8xf32>
    %150 = vector.extract_strided_slice %31 {offsets = [0, 56], sizes = [64, 8], strides = [1, 1]} : vector<64x96xf32> to vector<64x8xf32>
    %151 = vector.extract_strided_slice %31 {offsets = [0, 88], sizes = [64, 8], strides = [1, 1]} : vector<64x96xf32> to vector<64x8xf32>
    %152 = arith.truncf %149 : vector<64x8xf32> to vector<64x8xbf16>
    %153 = arith.truncf %150 : vector<64x8xf32> to vector<64x8xbf16>
    %cst_52 = arith.constant dense<0.000000e+00> : vector<64x64xf32>
    %154 = tpu.matmul %152, %153, %cst_52 {dimension_numbers = #tpu.dot_dimension_numbers<[1], [1], [0], [0], [0, 0, 1, 0], [], []>} : vector<64x8xbf16>, vector<64x8xbf16>, vector<64x64xf32> -> vector<64x64xf32>
    %cst_53 = arith.constant 0.353553385 : f32
    %155 = vector.broadcast %cst_53 : f32 to vector<64x64xf32>
    %156 = arith.mulf %154, %155 : vector<64x64xf32>
    %157 = vector.shape_cast %149 : vector<64x8xf32> to vector<8x8x8xf32>
    %158 = vector.shape_cast %157 : vector<8x8x8xf32> to vector<8x8x1x8xf32>
    %159 = vector.broadcast %158 : vector<8x8x1x8xf32> to vector<8x8x8x8xf32>
    %160 = vector.broadcast %33 : vector<8x1x8x8xf32> to vector<8x8x8x8xf32>
    %161 = arith.mulf %159, %160 : vector<8x8x8x8xf32>
    %cst_54 = arith.constant dense<0.000000e+00> : vector<8x8x8xf32>
    %162 = vector.multi_reduction <add>, %161, %cst_54 [3] : vector<8x8x8x8xf32> to vector<8x8x8xf32>
    %163 = vector.shape_cast %162 : vector<8x8x8xf32> to vector<64x8xf32>
    %164 = vector.broadcast %158 : vector<8x8x1x8xf32> to vector<8x8x8x8xf32>
    %165 = vector.broadcast %35 : vector<1x8x8x8xf32> to vector<8x8x8x8xf32>
    %166 = arith.mulf %164, %165 : vector<8x8x8x8xf32>
    %cst_55 = arith.constant dense<0.000000e+00> : vector<8x8x8xf32>
    %167 = vector.multi_reduction <add>, %166, %cst_55 [3] : vector<8x8x8x8xf32> to vector<8x8x8xf32>
    %168 = vector.shape_cast %167 : vector<8x8x8xf32> to vector<64x8xf32>
    %cst_56 = arith.constant dense<0.000000e+00> : vector<64x64xf32>
    %169 = tpu.matmul %163, %36, %cst_56 {dimension_numbers = #tpu.dot_dimension_numbers<[1], [0], [0], [1], [0, 0, 1, 1], [], []>} : vector<64x8xf32>, vector<8x64xf32>, vector<64x64xf32> -> vector<64x64xf32>
    %170 = arith.addf %156, %169 : vector<64x64xf32>
    %cst_57 = arith.constant dense<0.000000e+00> : vector<64x64xf32>
    %171 = tpu.matmul %168, %37, %cst_57 {dimension_numbers = #tpu.dot_dimension_numbers<[1], [0], [0], [1], [0, 0, 1, 1], [], []>} : vector<64x8xf32>, vector<8x64xf32>, vector<64x64xf32> -> vector<64x64xf32>
    %172 = arith.addf %170, %171 : vector<64x64xf32>
    %cst_58 = arith.constant dense<0xFF800000> : vector<64xf32>
    %173 = vector.multi_reduction <maximumf>, %172, %cst_58 [1] : vector<64x64xf32> to vector<64xf32>
    %174 = vector.shape_cast %173 : vector<64xf32> to vector<64x1xf32>
    %175 = vector.broadcast %174 : vector<64x1xf32> to vector<64x64xf32>
    %176 = arith.subf %172, %175 : vector<64x64xf32>
    %177 = math.exp %176 : vector<64x64xf32>
    %cst_59 = arith.constant dense<0.000000e+00> : vector<64xf32>
    %178 = vector.multi_reduction <add>, %177, %cst_59 [1] : vector<64x64xf32> to vector<64xf32>
    %179 = vector.shape_cast %178 : vector<64xf32> to vector<64x1xf32>
    %180 = tpu.reciprocal %179 {approx = true} : vector<64x1xf32> -> vector<64x1xf32>
    %181 = vector.broadcast %180 : vector<64x1xf32> to vector<64x64xf32>
    %182 = arith.mulf %177, %181 : vector<64x64xf32>
    %183 = arith.truncf %182 : vector<64x64xf32> to vector<64x64xbf16>
    %184 = arith.truncf %151 : vector<64x8xf32> to vector<64x8xbf16>
    %cst_60 = arith.constant dense<0.000000e+00> : vector<64x8xf32>
    %185 = tpu.matmul %183, %184, %cst_60 {dimension_numbers = #tpu.dot_dimension_numbers<[1], [0], [0], [1], [0, 0, 1, 1], [], []>} : vector<64x64xbf16>, vector<64x8xbf16>, vector<64x8xf32> -> vector<64x8xf32>
    %186 = tpu.concatenate %74, %111, %148, %185 in 1 : vector<64x8xf32>, vector<64x8xf32>, vector<64x8xf32>, vector<64x8xf32> -> vector<64x32xf32>
    %187 = arith.truncf %186 : vector<64x32xf32> to vector<64x32xbf16>
    %c0_61 = arith.constant 0 : index
    %c0_62 = arith.constant 0 : index
    %188 = vector.load %arg10[%c0_61, %c0_62] : memref<32x32xbf16, #tpu.memory_space<vmem>>, vector<32x32xbf16>
    %cst_63 = arith.constant dense<0.000000e+00> : vector<64x32xf32>
    %189 = tpu.matmul %187, %188, %cst_63 {dimension_numbers = #tpu.dot_dimension_numbers<[1], [0], [0], [1], [0, 0, 1, 1], [], []>} : vector<64x32xbf16>, vector<32x32xbf16>, vector<64x32xf32> -> vector<64x32xf32>
    %c0_64 = arith.constant 0 : index
    %c0_65 = arith.constant 0 : index
    %190 = vector.load %arg11[%c0_64, %c0_65] : memref<1x32xf32, #tpu.memory_space<vmem>>, vector<1x32xf32>
    %191 = vector.broadcast %190 : vector<1x32xf32> to vector<64x32xf32>
    %192 = arith.addf %189, %191 : vector<64x32xf32>
    %193 = arith.addf %1, %192 : vector<64x32xf32>
    %cst_66 = arith.constant dense<0.000000e+00> : vector<64xf32>
    %194 = vector.multi_reduction <add>, %193, %cst_66 [1] : vector<64x32xf32> to vector<64xf32>
    %195 = vector.shape_cast %194 : vector<64xf32> to vector<64x1xf32>
    %cst_67 = arith.constant 3.200000e+01 : f32
    %196 = vector.broadcast %cst_67 : f32 to vector<64x1xf32>
    %197 = arith.divf %195, %196 : vector<64x1xf32>
    %198 = vector.broadcast %197 : vector<64x1xf32> to vector<64x32xf32>
    %199 = arith.subf %193, %198 : vector<64x32xf32>
    %200 = arith.mulf %199, %199 : vector<64x32xf32>
    %cst_68 = arith.constant dense<0.000000e+00> : vector<64xf32>
    %201 = vector.multi_reduction <add>, %200, %cst_68 [1] : vector<64x32xf32> to vector<64xf32>
    %202 = vector.shape_cast %201 : vector<64xf32> to vector<64x1xf32>
    %cst_69 = arith.constant 3.200000e+01 : f32
    %203 = vector.broadcast %cst_69 : f32 to vector<64x1xf32>
    %204 = arith.divf %202, %203 : vector<64x1xf32>
    %205 = vector.broadcast %197 : vector<64x1xf32> to vector<64x32xf32>
    %206 = arith.subf %193, %205 : vector<64x32xf32>
    %cst_70 = arith.constant 9.99999974E-6 : f32
    %207 = vector.broadcast %cst_70 : f32 to vector<64x1xf32>
    %208 = arith.addf %204, %207 : vector<64x1xf32>
    %209 = math.rsqrt %208 : vector<64x1xf32>
    %210 = vector.broadcast %209 : vector<64x1xf32> to vector<64x32xf32>
    %211 = arith.mulf %206, %210 : vector<64x32xf32>
    %c0_71 = arith.constant 0 : index
    %c0_72 = arith.constant 0 : index
    %212 = vector.load %arg12[%c0_71, %c0_72] : memref<1x32xf32, #tpu.memory_space<vmem>>, vector<1x32xf32>
    %213 = vector.broadcast %212 : vector<1x32xf32> to vector<64x32xf32>
    %214 = arith.mulf %211, %213 : vector<64x32xf32>
    %c0_73 = arith.constant 0 : index
    %c0_74 = arith.constant 0 : index
    %215 = vector.load %arg13[%c0_73, %c0_74] : memref<1x32xf32, #tpu.memory_space<vmem>>, vector<1x32xf32>
    %216 = vector.broadcast %215 : vector<1x32xf32> to vector<64x32xf32>
    %217 = arith.addf %214, %216 : vector<64x32xf32>
    %218 = arith.truncf %217 : vector<64x32xf32> to vector<64x32xbf16>
    %c0_75 = arith.constant 0 : index
    %c0_76 = arith.constant 0 : index
    %219 = vector.load %arg14[%c0_75, %c0_76] : memref<32x64xbf16, #tpu.memory_space<vmem>>, vector<32x64xbf16>
    %cst_77 = arith.constant dense<0.000000e+00> : vector<64x64xf32>
    %220 = tpu.matmul %218, %219, %cst_77 {dimension_numbers = #tpu.dot_dimension_numbers<[1], [0], [0], [1], [0, 0, 1, 1], [], []>} : vector<64x32xbf16>, vector<32x64xbf16>, vector<64x64xf32> -> vector<64x64xf32>
    %c0_78 = arith.constant 0 : index
    %c0_79 = arith.constant 0 : index
    %221 = vector.load %arg15[%c0_78, %c0_79] : memref<1x64xf32, #tpu.memory_space<vmem>>, vector<1x64xf32>
    %222 = vector.broadcast %221 : vector<1x64xf32> to vector<64x64xf32>
    %223 = arith.addf %220, %222 : vector<64x64xf32>
    %cst_80 = arith.constant 5.000000e-01 : f32
    %224 = vector.broadcast %cst_80 : f32 to vector<64x64xf32>
    %225 = arith.mulf %224, %223 : vector<64x64xf32>
    %cst_81 = arith.constant 0.707106769 : f32
    %226 = vector.broadcast %cst_81 : f32 to vector<64x64xf32>
    %227 = arith.mulf %223, %226 : vector<64x64xf32>
    %228 = math.erf %227 : vector<64x64xf32>
    %cst_82 = arith.constant 1.000000e+00 : f32
    %229 = vector.broadcast %cst_82 : f32 to vector<64x64xf32>
    %230 = arith.addf %229, %228 : vector<64x64xf32>
    %231 = arith.mulf %225, %230 : vector<64x64xf32>
    %232 = arith.truncf %231 : vector<64x64xf32> to vector<64x64xbf16>
    %c0_83 = arith.constant 0 : index
    %c0_84 = arith.constant 0 : index
    %233 = vector.load %arg16[%c0_83, %c0_84] : memref<64x32xbf16, #tpu.memory_space<vmem>>, vector<64x32xbf16>
    %cst_85 = arith.constant dense<0.000000e+00> : vector<64x32xf32>
    %234 = tpu.matmul %232, %233, %cst_85 {dimension_numbers = #tpu.dot_dimension_numbers<[1], [0], [0], [1], [0, 0, 1, 1], [], []>} : vector<64x64xbf16>, vector<64x32xbf16>, vector<64x32xf32> -> vector<64x32xf32>
    %c0_86 = arith.constant 0 : index
    %c0_87 = arith.constant 0 : index
    %235 = vector.load %arg17[%c0_86, %c0_87] : memref<1x32xf32, #tpu.memory_space<vmem>>, vector<1x32xf32>
    %236 = vector.broadcast %235 : vector<1x32xf32> to vector<64x32xf32>
    %237 = arith.addf %234, %236 : vector<64x32xf32>
    %238 = arith.addf %193, %237 : vector<64x32xf32>
    %c0_88 = arith.constant 0 : index
    %c0_89 = arith.constant 0 : index
    %c0_90 = arith.constant 0 : index
    %239 = vector.load %arg18[%c0_88, %c0_89, %c0_90] : memref<1x64x32xf32, #tpu.memory_space<vmem>>, vector<1x64x32xf32>
    %240 = vector.shape_cast %239 : vector<1x64x32xf32> to vector<64x32xf32>
    %241 = vector.shape_cast %238 : vector<64x32xf32> to vector<1x64x32xf32>
    tpu.vector_store %arg18[%c0_88, %c0_89, %c0_90], %241 {strides = array<i32>} : memref<1x64x32xf32, #tpu.memory_space<vmem>>, vector<1x64x32xf32>,
    return
  }
  func.func @transform_0(%arg0: i32) -> (i32, i32, i32) {
    %c0_i32 = arith.constant 0 : i32
    %c0_i32_0 = arith.constant 0 : i32
    %c0_i32_1 = arith.constant 0 : i32
    return %arg0, %c0_i32, %c0_i32_0 : i32, i32, i32
  }
  func.func @transform_1(%arg0: i32) -> (i32, i32) {
    %c0_i32 = arith.constant 0 : i32
    %c0_i32_0 = arith.constant 0 : i32
    %c0_i32_1 = arith.constant 0 : i32
    return %c0_i32, %c0_i32_0 : i32, i32
  }
  func.func @transform_2(%arg0: i32) -> (i32, i32) {
    %c0_i32 = arith.constant 0 : i32
    %c0_i32_0 = arith.constant 0 : i32
    %c0_i32_1 = arith.constant 0 : i32
    return %c0_i32, %c0_i32_0 : i32, i32
  }
  func.func @transform_3(%arg0: i32) -> (i32, i32) {
    %c0_i32 = arith.constant 0 : i32
    %c0_i32_0 = arith.constant 0 : i32
    %c0_i32_1 = arith.constant 0 : i32
    return %c0_i32, %c0_i32_0 : i32, i32
  }
  func.func @transform_4(%arg0: i32) -> (i32, i32) {
    %c0_i32 = arith.constant 0 : i32
    %c0_i32_0 = arith.constant 0 : i32
    %c0_i32_1 = arith.constant 0 : i32
    return %c0_i32, %c0_i32_0 : i32, i32
  }
  func.func @transform_5(%arg0: i32) -> (i32, i32, i32) {
    %c0_i32 = arith.constant 0 : i32
    %c0_i32_0 = arith.constant 0 : i32
    %c0_i32_1 = arith.constant 0 : i32
    %c0_i32_2 = arith.constant 0 : i32
    return %c0_i32, %c0_i32_0, %c0_i32_1 : i32, i32, i32
  }
  func.func @transform_6(%arg0: i32) -> (i32, i32, i32) {
    %c0_i32 = arith.constant 0 : i32
    %c0_i32_0 = arith.constant 0 : i32
    %c0_i32_1 = arith.constant 0 : i32
    %c0_i32_2 = arith.constant 0 : i32
    return %c0_i32, %c0_i32_0, %c0_i32_1 : i32, i32, i32
  }
  func.func @transform_7(%arg0: i32) -> (i32, i32) {
    %c0_i32 = arith.constant 0 : i32
    %c0_i32_0 = arith.constant 0 : i32
    %c0_i32_1 = arith.constant 0 : i32
    return %c0_i32, %c0_i32_0 : i32, i32
  }
  func.func @transform_8(%arg0: i32) -> (i32, i32) {
    %c0_i32 = arith.constant 0 : i32
    %c0_i32_0 = arith.constant 0 : i32
    %c0_i32_1 = arith.constant 0 : i32
    return %c0_i32, %c0_i32_0 : i32, i32
  }
  func.func @transform_9(%arg0: i32) -> (i32, i32) {
    %c0_i32 = arith.constant 0 : i32
    %c0_i32_0 = arith.constant 0 : i32
    %c0_i32_1 = arith.constant 0 : i32
    return %c0_i32, %c0_i32_0 : i32, i32
  }
  func.func @transform_10(%arg0: i32) -> (i32, i32) {
    %c0_i32 = arith.constant 0 : i32
    %c0_i32_0 = arith.constant 0 : i32
    %c0_i32_1 = arith.constant 0 : i32
    return %c0_i32, %c0_i32_0 : i32, i32
  }
  func.func @transform_11(%arg0: i32) -> (i32, i32) {
    %c0_i32 = arith.constant 0 : i32
    %c0_i32_0 = arith.constant 0 : i32
    %c0_i32_1 = arith.constant 0 : i32
    return %c0_i32, %c0_i32_0 : i32, i32
  }
  func.func @transform_12(%arg0: i32) -> (i32, i32) {
    %c0_i32 = arith.constant 0 : i32
    %c0_i32_0 = arith.constant 0 : i32
    %c0_i32_1 = arith.constant 0 : i32
    return %c0_i32, %c0_i32_0 : i32, i32
  }
  func.func @transform_13(%arg0: i32) -> (i32, i32) {
    %c0_i32 = arith.constant 0 : i32
    %c0_i32_0 = arith.constant 0 : i32
    %c0_i32_1 = arith.constant 0 : i32
    return %c0_i32, %c0_i32_0 : i32, i32
  }
  func.func @transform_14(%arg0: i32) -> (i32, i32) {
    %c0_i32 = arith.constant 0 : i32
    %c0_i32_0 = arith.constant 0 : i32
    %c0_i32_1 = arith.constant 0 : i32
    return %c0_i32, %c0_i32_0 : i32, i32
  }
  func.func @transform_15(%arg0: i32) -> (i32, i32) {
    %c0_i32 = arith.constant 0 : i32
    %c0_i32_0 = arith.constant 0 : i32
    %c0_i32_1 = arith.constant 0 : i32
    return %c0_i32, %c0_i32_0 : i32, i32
  }
  func.func @transform_16(%arg0: i32) -> (i32, i32) {
    %c0_i32 = arith.constant 0 : i32
    %c0_i32_0 = arith.constant 0 : i32
    %c0_i32_1 = arith.constant 0 : i32
    return %c0_i32, %c0_i32_0 : i32, i32
  }
  func.func @transform_17(%arg0: i32) -> (i32, i32, i32) {
    %c0_i32 = arith.constant 0 : i32
    %c0_i32_0 = arith.constant 0 : i32
    %c0_i32_1 = arith.constant 0 : i32
    return %arg0, %c0_i32, %c0_i32_0 : i32, i32, i32
  }
}

</mosaic_0001>

<llo_original>
// kernel: relpos_encoder_forward.1
$region0: #{relpos_encoder_forward.1}
  #allocation0 [shape = 'u32[]', space=smem, size = 0x4, offset = 0x4, fixed_abs, tag = 'smem constant byte address 0x4 - core index']
  #allocation1 [shape = 'u32[72,128]{1,0:T(1,128)}', space=vmem, size = 0x9000, scoped, tag = 'internal scratch']
  %s0 = inlined_call_operand.hbm [shape: f32[2,64,32], index: 0, kind: input, shape index: {}]
  %s1 = inlined_call_operand.vmem [shape: f32[1,32], index: 1, kind: input, shape index: {}]
  %s2 = inlined_call_operand.vmem [shape: f32[1,32], index: 2, kind: input, shape index: {}]
  %s3 = inlined_call_operand.vmem [shape: bf16[32,96], index: 3, kind: input, shape index: {}]
  %s4 = inlined_call_operand.vmem [shape: f32[1,96], index: 4, kind: input, shape index: {}]
  %s5 = inlined_call_operand.hbm [shape: f32[8,8,8], index: 5, kind: input, shape index: {}]
  %s6 = inlined_call_operand.hbm [shape: f32[8,8,8], index: 6, kind: input, shape index: {}]
  %s7 = inlined_call_operand.hbm [shape: f32[8,64], index: 7, kind: input, shape index: {}]
  %s8 = inlined_call_operand.hbm [shape: f32[8,64], index: 8, kind: input, shape index: {}]
  %s9 = inlined_call_operand.vmem [shape: bf16[32,32], index: 9, kind: input, shape index: {}]
  %s10 = inlined_call_operand.hbm [shape: f32[1,32], index: 10, kind: input, shape index: {}]
  %s11 = inlined_call_operand.vmem [shape: f32[1,32], index: 11, kind: input, shape index: {}]
  %s12 = inlined_call_operand.vmem [shape: f32[1,32], index: 12, kind: input, shape index: {}]
  %s13 = inlined_call_operand.vmem [shape: bf16[32,64], index: 13, kind: input, shape index: {}]
  %s14 = inlined_call_operand.hbm [shape: f32[1,64], index: 14, kind: input, shape index: {}]
  %s15 = inlined_call_operand.vmem [shape: bf16[64,32], index: 15, kind: input, shape index: {}]
  %s16 = inlined_call_operand.hbm [shape: f32[1,32], index: 16, kind: input, shape index: {}]
  %s17 = inlined_call_operand.hbm [shape: f32[2,64,32], index: 17, kind: output, shape index: {}]
  %s18 = sld [smem:[#allocation0]]
  $region133: #{relpos_encoder_forward.1} parent=0
    _
  %s20 = ssub.s32 1, %s18
  %s21 = scalar_select 0, %s20, %s18
  $region1: #{relpos_encoder_forward.1} parent=0
    #allocation2 [shape = 'u8[65536]{0}', space=vmem, size = 0x10000, scoped, tag = 'input window, operand 0']
    #allocation3 [shape = 's32[2]{0}', space=sflag, size = 0x8, scoped, tag = 'scoped memory for relpos_encoder_forward.1']
    #allocation4 [shape = 's32[2]{0}', space=sflag, size = 0x8, scoped, tag = 'scoped memory for relpos_encoder_forward.1']
    #allocation5 [shape = 'u8[32768]{0}', space=vmem, size = 0x8000, scoped, tag = 'input window, operand 5, single buffered']
    #allocation6 [shape = 's32[1]{0}', space=sflag, size = 0x4, scoped, tag = 'scoped memory for relpos_encoder_forward.1']
    #allocation7 [shape = 'u8[32768]{0}', space=vmem, size = 0x8000, scoped, tag = 'input window, operand 6, single buffered']
    #allocation8 [shape = 'u8[4096]{0}', space=vmem, size = 0x1000, scoped, tag = 'input window, operand 7, single buffered']
    #allocation9 [shape = 's32[1]{0}', space=sflag, size = 0x4, scoped, tag = 'scoped memory for relpos_encoder_forward.1']
    #allocation10 [shape = 'u8[4096]{0}', space=vmem, size = 0x1000, scoped, tag = 'input window, operand 8, single buffered']
    #allocation11 [shape = 'u8[512]{0}', space=vmem, size = 0x400, scoped, tag = 'input window, operand 10, single buffered']
    #allocation12 [shape = 's32[1]{0}', space=sflag, size = 0x4, scoped, tag = 'scoped memory for relpos_encoder_forward.1']
    #allocation13 [shape = 'u8[512]{0}', space=vmem, size = 0x400, scoped, tag = 'input window, operand 14, single buffered']
    #allocation14 [shape = 'u8[512]{0}', space=vmem, size = 0x400, scoped, tag = 'input window, operand 16, single buffered']
    #allocation15 [shape = 's32[1]{0}', space=sflag, size = 0x4, scoped, tag = 'scoped memory for relpos_encoder_forward.1']
    #allocation16 [shape = 'u8[65536]{0}', space=vmem, size = 0x10000, scoped, tag = 'output window, operand 0']
    %22 = vsyncpa [#allocation3], 0
    %s23 = scalar_lea.sflag [#allocation3], 1
    %24 = vsyncpa %s23, 0
    %25 = vsyncpa [#allocation6], 0
    %26 = vsyncpa [#allocation9], 0
    %27 = vsyncpa [#allocation12], 0
    %28 = vsyncpa [#allocation15], 0
    %29 = vsyncpa [#allocation4], 0
    %s30 = scalar_lea.sflag [#allocation4], 1
    %31 = vsyncpa %s30, 0
    loop: start=0, step=1, limit=4
    $region2: #{relpos_encoder_forward.1} parent=1 // loop_pre_header
      _
    $region3: #{relpos_encoder_forward.1} parent=1 // loop_header
      %s33 = sphi 0, %s37
      %p34 = scmp.ge.s32.totalorder %s33, 4
      %s43 = sphi 0, %s45
      %s46 = sphi 0, %s43
      %s47 = sphi 0, %s46
      %s63 = sphi 0, %s47
      %s67 = sphi 0, %s67
      %s69 = sphi 0, %s67
      %s70 = sphi 0, %s69
      %s84 = sphi 0, %s70
      %s88 = sphi 0, %s88
      %s90 = sphi 0, %s88
      %s91 = sphi 0, %s90
      %s105 = sphi 0, %s91
      %s109 = sphi 0, %s109
      %s111 = sphi 0, %s109
      %s112 = sphi 0, %s111
      %s126 = sphi 0, %s112
      %s130 = sphi 0, %s130
      %s132 = sphi 0, %s130
      %s133 = sphi 0, %s132
      %s147 = sphi 0, %s133
      %s151 = sphi 0, %s151
      %s153 = sphi 0, %s151
      %s154 = sphi 0, %s153
      %s168 = sphi 0, %s154
      %s172 = sphi 0, %s172
      %s174 = sphi 0, %s172
      %s175 = sphi 0, %s174
      %s189 = sphi 0, %s175
      %s193 = sphi 0, %s193
      %s195 = sphi 0, %s193
      %s196 = sphi 0, %s195
      %s210 = sphi 0, %s196
      %s214 = sphi 0, %s214
      %s216 = sphi 0, %s214
      %s217 = sphi 0, %s216
      %s231 = sphi 0, %s217
      %s235 = sphi 0, %s235
      %s237 = sphi 0, %s235
      %s238 = sphi 0, %s237
      %s252 = sphi 0, %s238
      %s256 = sphi 0, %s256
      %s258 = sphi 0, %s256
      %s259 = sphi 0, %s258
      %s273 = sphi 0, %s259
      %s277 = sphi 0, %s277
      %s279 = sphi 0, %s277
      %s280 = sphi 0, %s279
      %s294 = sphi 0, %s280
      %s298 = sphi 0, %s298
      %s300 = sphi 0, %s298
      %s301 = sphi 0, %s300
      %s315 = sphi 0, %s301
      %s319 = sphi 0, %s319
      %s321 = sphi 0, %s319
      %s322 = sphi 0, %s321
      %s336 = sphi 0, %s322
      %s340 = sphi 0, %s340
      %s342 = sphi 0, %s340
      %s343 = sphi 0, %s342
      %s357 = sphi 0, %s343
      %s361 = sphi 0, %s361
      %s363 = sphi 0, %s361
      %s364 = sphi 0, %s363
      %s378 = sphi 0, %s364
      %s382 = sphi 0, %s382
      %s384 = sphi 0, %s382
      %s385 = sphi 0, %s384
      %s399 = sphi 0, %s385
      %s405 = sphi 0, %s407
      %s408 = sphi 0, %s405
      %s409 = sphi 0, %s408
      %s425 = sphi 0, %s409
    $region4: #{relpos_encoder_forward.1} parent=1 // loop_header_branch
      %36 = sbr.rel (%p34) target = $region8
    $region5: #{relpos_encoder_forward.1} parent=1 // loop_body
      %s38 = ssub.s32 %s33, 1
      %s39 = ssub.s32 %s33, 2
      %s40 = sadd.s32 %s33, 1
      %s41 = ssub.s32 %s33, %s40
      %p42 = scmp.eq.s32.totalorder %s41, 0
      %s44 = sadd.s32 %s43, 1
      %s45 = scalar_select %p42, %s43, %s44
      %p48 = pneg %p42
      %p49 = scmp.eq.s32.totalorder %s33, 1
      %p50 = por %p48, %p49
      %p51 = scmp.ne.s32.totalorder %s43, %s46
      %p52 = scmp.eq.s32.totalorder %s33, 0
      %p53 = por %p51, %p52
      %p54 = scmp.ne.s32.totalorder %s43, %s46
      %p55 = scmp.eq.s32.totalorder %s38, 1
      %p56 = por %p54, %p55
      %p57 = scmp.ne.s32.totalorder %s46, %s47
      %p58 = scmp.eq.s32.totalorder %s38, 0
      %p59 = por %p57, %p58
      %p60 = scmp.ne.s32.totalorder %s46, %s47
      %p61 = scmp.eq.s32.totalorder %s39, 1
      %p62 = por %p60, %p61
      %p64 = scmp.ne.s32.totalorder %s47, %s63
      %p65 = scmp.eq.s32.totalorder %s39, 0
      %p66 = por %p64, %p65
      %s68 = sadd.s32 %s67, 1
      %p71 = scmp.eq.s32.totalorder %s33, 1
      %p72 = scmp.ne.s32.totalorder %s67, %s69
      %p73 = scmp.eq.s32.totalorder %s33, 0
      %p74 = por %p72, %p73
      %p75 = scmp.ne.s32.totalorder %s67, %s69
      %p76 = scmp.eq.s32.totalorder %s38, 1
      %p77 = por %p75, %p76
      %p78 = scmp.ne.s32.totalorder %s69, %s70
      %p79 = scmp.eq.s32.totalorder %s38, 0
      %p80 = por %p78, %p79
      %p81 = scmp.ne.s32.totalorder %s69, %s70
      %p82 = scmp.eq.s32.totalorder %s39, 1
      %p83 = por %p81, %p82
      %p85 = scmp.ne.s32.totalorder %s70, %s84
      %p86 = scmp.eq.s32.totalorder %s39, 0
      %p87 = por %p85, %p86
      %s89 = sadd.s32 %s88, 1
      %p92 = scmp.eq.s32.totalorder %s33, 1
      %p93 = scmp.ne.s32.totalorder %s88, %s90
      %p94 = scmp.eq.s32.totalorder %s33, 0
      %p95 = por %p93, %p94
      %p96 = scmp.ne.s32.totalorder %s88, %s90
      %p97 = scmp.eq.s32.totalorder %s38, 1
      %p98 = por %p96, %p97
      %p99 = scmp.ne.s32.totalorder %s90, %s91
      %p100 = scmp.eq.s32.totalorder %s38, 0
      %p101 = por %p99, %p100
      %p102 = scmp.ne.s32.totalorder %s90, %s91
      %p103 = scmp.eq.s32.totalorder %s39, 1
      %p104 = por %p102, %p103
      %p106 = scmp.ne.s32.totalorder %s91, %s105
      %p107 = scmp.eq.s32.totalorder %s39, 0
      %p108 = por %p106, %p107
      %s110 = sadd.s32 %s109, 1
      %p113 = scmp.eq.s32.totalorder %s33, 1
      %p114 = scmp.ne.s32.totalorder %s109, %s111
      %p115 = scmp.eq.s32.totalorder %s33, 0
      %p116 = por %p114, %p115
      %p117 = scmp.ne.s32.totalorder %s109, %s111
      %p118 = scmp.eq.s32.totalorder %s38, 1
      %p119 = por %p117, %p118
      %p120 = scmp.ne.s32.totalorder %s111, %s112
      %p121 = scmp.eq.s32.totalorder %s38, 0
      %p122 = por %p120, %p121
      %p123 = scmp.ne.s32.totalorder %s111, %s112
      %p124 = scmp.eq.s32.totalorder %s39, 1
      %p125 = por %p123, %p124
      %p127 = scmp.ne.s32.totalorder %s112, %s126
      %p128 = scmp.eq.s32.totalorder %s39, 0
      %p129 = por %p127, %p128
      %s131 = sadd.s32 %s130, 1
      %p134 = scmp.eq.s32.totalorder %s33, 1
      %p135 = scmp.ne.s32.totalorder %s130, %s132
      %p136 = scmp.eq.s32.totalorder %s33, 0
      %p137 = por %p135, %p136
      %p138 = scmp.ne.s32.totalorder %s130, %s132
      %p139 = scmp.eq.s32.totalorder %s38, 1
      %p140 = por %p138, %p139
      %p141 = scmp.ne.s32.totalorder %s132, %s133
      %p142 = scmp.eq.s32.totalorder %s38, 0
      %p143 = por %p141, %p142
      %p144 = scmp.ne.s32.totalorder %s132, %s133
      %p145 = scmp.eq.s32.totalorder %s39, 1
      %p146 = por %p144, %p145
      %p148 = scmp.ne.s32.totalorder %s133, %s147
      %p149 = scmp.eq.s32.totalorder %s39, 0
      %p150 = por %p148, %p149
      %s152 = sadd.s32 %s151, 1
      %p155 = scmp.eq.s32.totalorder %s33, 1
      %p156 = scmp.ne.s32.totalorder %s151, %s153
      %p157 = scmp.eq.s32.totalorder %s33, 0
      %p158 = por %p156, %p157
      %p159 = scmp.ne.s32.totalorder %s151, %s153
      %p160 = scmp.eq.s32.totalorder %s38, 1
      %p161 = por %p159, %p160
      %p162 = scmp.ne.s32.totalorder %s153, %s154
      %p163 = scmp.eq.s32.totalorder %s38, 0
      %p164 = por %p162, %p163
      %p165 = scmp.ne.s32.totalorder %s153, %s154
      %p166 = scmp.eq.s32.totalorder %s39, 1
      %p167 = por %p165, %p166
      %p169 = scmp.ne.s32.totalorder %s154, %s168
      %p170 = scmp.eq.s32.totalorder %s39, 0
      %p171 = por %p169, %p170
      %s173 = sadd.s32 %s172, 1
      %p176 = scmp.eq.s32.totalorder %s33, 1
      %p177 = scmp.ne.s32.totalorder %s172, %s174
      %p178 = scmp.eq.s32.totalorder %s33, 0
      %p179 = por %p177, %p178
      %p180 = scmp.ne.s32.totalorder %s172, %s174
      %p181 = scmp.eq.s32.totalorder %s38, 1
      %p182 = por %p180, %p181
      %p183 = scmp.ne.s32.totalorder %s174, %s175
      %p184 = scmp.eq.s32.totalorder %s38, 0
      %p185 = por %p183, %p184
      %p186 = scmp.ne.s32.totalorder %s174, %s175
      %p187 = scmp.eq.s32.totalorder %s39, 1
      %p188 = por %p186, %p187
      %p190 = scmp.ne.s32.totalorder %s175, %s189
      %p191 = scmp.eq.s32.totalorder %s39, 0
      %p192 = por %p190, %p191
      %s194 = sadd.s32 %s193, 1
      %p197 = scmp.eq.s32.totalorder %s33, 1
      %p198 = scmp.ne.s32.totalorder %s193, %s195
      %p199 = scmp.eq.s32.totalorder %s33, 0
      %p200 = por %p198, %p199
      %p201 = scmp.ne.s32.totalorder %s193, %s195
      %p202 = scmp.eq.s32.totalorder %s38, 1
      %p203 = por %p201, %p202
      %p204 = scmp.ne.s32.totalorder %s195, %s196
      %p205 = scmp.eq.s32.totalorder %s38, 0
      %p206 = por %p204, %p205
      %p207 = scmp.ne.s32.totalorder %s195, %s196
      %p208 = scmp.eq.s32.totalorder %s39, 1
      %p209 = por %p207, %p208
      %p211 = scmp.ne.s32.totalorder %s196, %s210
      %p212 = scmp.eq.s32.totalorder %s39, 0
      %p213 = por %p211, %p212
      %s215 = sadd.s32 %s214, 1
      %p218 = scmp.eq.s32.totalorder %s33, 1
      %p219 = scmp.ne.s32.totalorder %s214, %s216
      %p220 = scmp.eq.s32.totalorder %s33, 0
      %p221 = por %p219, %p220
      %p222 = scmp.ne.s32.totalorder %s214, %s216
      %p223 = scmp.eq.s32.totalorder %s38, 1
      %p224 = por %p222, %p223
      %p225 = scmp.ne.s32.totalorder %s216, %s217
      %p226 = scmp.eq.s32.totalorder %s38, 0
      %p227 = por %p225, %p226
      %p228 = scmp.ne.s32.totalorder %s216, %s217
      %p229 = scmp.eq.s32.totalorder %s39, 1
      %p230 = por %p228, %p229
      %p232 = scmp.ne.s32.totalorder %s217, %s231
      %p233 = scmp.eq.s32.totalorder %s39, 0
      %p234 = por %p232, %p233
      %s236 = sadd.s32 %s235, 1
      %p239 = scmp.eq.s32.totalorder %s33, 1
      %p240 = scmp.ne.s32.totalorder %s235, %s237
      %p241 = scmp.eq.s32.totalorder %s33, 0
      %p242 = por %p240, %p241
      %p243 = scmp.ne.s32.totalorder %s235, %s237
      %p244 = scmp.eq.s32.totalorder %s38, 1
      %p245 = por %p243, %p244
      %p246 = scmp.ne.s32.totalorder %s237, %s238
      %p247 = scmp.eq.s32.totalorder %s38, 0
      %p248 = por %p246, %p247
      %p249 = scmp.ne.s32.totalorder %s237, %s238
      %p250 = scmp.eq.s32.totalorder %s39, 1
      %p251 = por %p249, %p250
      %p253 = scmp.ne.s32.totalorder %s238, %s252
      %p254 = scmp.eq.s32.totalorder %s39, 0
      %p255 = por %p253, %p254
      %s257 = sadd.s32 %s256, 1
      %p260 = scmp.eq.s32.totalorder %s33, 1
      %p261 = scmp.ne.s32.totalorder %s256, %s258
      %p262 = scmp.eq.s32.totalorder %s33, 0
      %p263 = por %p261, %p262
      %p264 = scmp.ne.s32.totalorder %s256, %s258
      %p265 = scmp.eq.s32.totalorder %s38, 1
      %p266 = por %p264, %p265
      %p267 = scmp.ne.s32.totalorder %s258, %s259
      %p268 = scmp.eq.s32.totalorder %s38, 0
      %p269 = por %p267, %p268
      %p270 = scmp.ne.s32.totalorder %s258, %s259
      %p271 = scmp.eq.s32.totalorder %s39, 1
      %p272 = por %p270, %p271
      %p274 = scmp.ne.s32.totalorder %s259, %s273
      %p275 = scmp.eq.s32.totalorder %s39, 0
      %p276 = por %p274, %p275
      %s278 = sadd.s32 %s277, 1
      %p281 = scmp.eq.s32.totalorder %s33, 1
      %p282 = scmp.ne.s32.totalorder %s277, %s279
      %p283 = scmp.eq.s32.totalorder %s33, 0
      %p284 = por %p282, %p283
      %p285 = scmp.ne.s32.totalorder %s277, %s279
      %p286 = scmp.eq.s32.totalorder %s38, 1
      %p287 = por %p285, %p286
      %p288 = scmp.ne.s32.totalorder %s279, %s280
      %p289 = scmp.eq.s32.totalorder %s38, 0
      %p290 = por %p288, %p289
      %p291 = scmp.ne.s32.totalorder %s279, %s280
      %p292 = scmp.eq.s32.totalorder %s39, 1
      %p293 = por %p291, %p292
      %p295 = scmp.ne.s32.totalorder %s280, %s294
      %p296 = scmp.eq.s32.totalorder %s39, 0
      %p297 = por %p295, %p296
      %s299 = sadd.s32 %s298, 1
      %p302 = scmp.eq.s32.totalorder %s33, 1
      %p303 = scmp.ne.s32.totalorder %s298, %s300
      %p304 = scmp.eq.s32.totalorder %s33, 0
      %p305 = por %p303, %p304
      %p306 = scmp.ne.s32.totalorder %s298, %s300
      %p307 = scmp.eq.s32.totalorder %s38, 1
      %p308 = por %p306, %p307
      %p309 = scmp.ne.s32.totalorder %s300, %s301
      %p310 = scmp.eq.s32.totalorder %s38, 0
      %p311 = por %p309, %p310
      %p312 = scmp.ne.s32.totalorder %s300, %s301
      %p313 = scmp.eq.s32.totalorder %s39, 1
      %p314 = por %p312, %p313
      %p316 = scmp.ne.s32.totalorder %s301, %s315
      %p317 = scmp.eq.s32.totalorder %s39, 0
      %p318 = por %p316, %p317
      %s320 = sadd.s32 %s319, 1
      %p323 = scmp.eq.s32.totalorder %s33, 1
      %p324 = scmp.ne.s32.totalorder %s319, %s321
      %p325 = scmp.eq.s32.totalorder %s33, 0
      %p326 = por %p324, %p325
      %p327 = scmp.ne.s32.totalorder %s319, %s321
      %p328 = scmp.eq.s32.totalorder %s38, 1
      %p329 = por %p327, %p328
      %p330 = scmp.ne.s32.totalorder %s321, %s322
      %p331 = scmp.eq.s32.totalorder %s38, 0
      %p332 = por %p330, %p331
      %p333 = scmp.ne.s32.totalorder %s321, %s322
      %p334 = scmp.eq.s32.totalorder %s39, 1
      %p335 = por %p333, %p334
      %p337 = scmp.ne.s32.totalorder %s322, %s336
      %p338 = scmp.eq.s32.totalorder %s39, 0
      %p339 = por %p337, %p338
      %s341 = sadd.s32 %s340, 1
      %p344 = scmp.eq.s32.totalorder %s33, 1
      %p345 = scmp.ne.s32.totalorder %s340, %s342
      %p346 = scmp.eq.s32.totalorder %s33, 0
      %p347 = por %p345, %p346
      %p348 = scmp.ne.s32.totalorder %s340, %s342
      %p349 = scmp.eq.s32.totalorder %s38, 1
      %p350 = por %p348, %p349
      %p351 = scmp.ne.s32.totalorder %s342, %s343
      %p352 = scmp.eq.s32.totalorder %s38, 0
      %p353 = por %p351, %p352
      %p354 = scmp.ne.s32.totalorder %s342, %s343
      %p355 = scmp.eq.s32.totalorder %s39, 1
      %p356 = por %p354, %p355
      %p358 = scmp.ne.s32.totalorder %s343, %s357
      %p359 = scmp.eq.s32.totalorder %s39, 0
      %p360 = por %p358, %p359
      %s362 = sadd.s32 %s361, 1
      %p365 = scmp.eq.s32.totalorder %s33, 1
      %p366 = scmp.ne.s32.totalorder %s361, %s363
      %p367 = scmp.eq.s32.totalorder %s33, 0
      %p368 = por %p366, %p367
      %p369 = scmp.ne.s32.totalorder %s361, %s363
      %p370 = scmp.eq.s32.totalorder %s38, 1
      %p371 = por %p369, %p370
      %p372 = scmp.ne.s32.totalorder %s363, %s364
      %p373 = scmp.eq.s32.totalorder %s38, 0
      %p374 = por %p372, %p373
      %p375 = scmp.ne.s32.totalorder %s363, %s364
      %p376 = scmp.eq.s32.totalorder %s39, 1
      %p377 = por %p375, %p376
      %p379 = scmp.ne.s32.totalorder %s364, %s378
      %p380 = scmp.eq.s32.totalorder %s39, 0
      %p381 = por %p379, %p380
      %s383 = sadd.s32 %s382, 1
      %p386 = scmp.eq.s32.totalorder %s33, 1
      %p387 = scmp.ne.s32.totalorder %s382, %s384
      %p388 = scmp.eq.s32.totalorder %s33, 0
      %p389 = por %p387, %p388
      %p390 = scmp.ne.s32.totalorder %s382, %s384
      %p391 = scmp.eq.s32.totalorder %s38, 1
      %p392 = por %p390, %p391
      %p393 = scmp.ne.s32.totalorder %s384, %s385
      %p394 = scmp.eq.s32.totalorder %s38, 0
      %p395 = por %p393, %p394
      %p396 = scmp.ne.s32.totalorder %s384, %s385
      %p397 = scmp.eq.s32.totalorder %s39, 1
      %p398 = por %p396, %p397
      %p400 = scmp.ne.s32.totalorder %s385, %s399
      %p401 = scmp.eq.s32.totalorder %s39, 0
      %p402 = por %p400, %p401
      %s403 = ssub.s32 %s33, %s40
      %p404 = scmp.eq.s32.totalorder %s403, 0
      %s406 = sadd.s32 %s405, 1
      %s407 = scalar_select %p404, %s405, %s406
      %p410 = pneg %p404
      %p411 = scmp.eq.s32.totalorder %s33, 1
      %p412 = por %p410, %p411
      %p413 = scmp.ne.s32.totalorder %s405, %s408
      %p414 = scmp.eq.s32.totalorder %s33, 0
      %p415 = por %p413, %p414
      %p416 = scmp.ne.s32.totalorder %s405, %s408
      %p417 = scmp.eq.s32.totalorder %s38, 1
      %p418 = por %p416, %p417
      %p419 = scmp.ne.s32.totalorder %s408, %s409
      %p420 = scmp.eq.s32.totalorder %s38, 0
      %p421 = por %p419, %p420
      %p422 = scmp.ne.s32.totalorder %s408, %s409
      %p423 = scmp.eq.s32.totalorder %s39, 1
      %p424 = por %p422, %p423
      %p426 = scmp.ne.s32.totalorder %s409, %s425
      %p427 = scmp.eq.s32.totalorder %s39, 0
      %p428 = por %p426, %p427
      %p429 = scmp.le.s32.totalorder 1, %s33
      %p430 = scmp.lt.s32.totalorder %s33, 3
      %p431 = pnand %p429, %p430
      %p432 = pneg %p431
      // Predicated region
      $region9: #{relpos_encoder_forward.1} parent=5 // pred_check
        _
      $region10: #{relpos_encoder_forward.1} parent=5 // pred_check_branch
        %434 = sbr.rel (%p431) target = $region12
      $region11: #{relpos_encoder_forward.1} parent=5 // pred_region
        %s435 = ssub.s32 %s33, 1
        // Predicated region
        $region13: #{relpos_encoder_forward.1} parent=11 // pred_check
          %p436 = pneg %p80
        $region14: #{relpos_encoder_forward.1} parent=11 // pred_check_branch
          %438 = sbr.rel (%p436) target = $region16
        $region15: #{relpos_encoder_forward.1} parent=11 // pred_region
          _
        $region16: #{relpos_encoder_forward.1} parent=11 // pred_fallthru
          _
        // Predicated region
        $region17: #{relpos_encoder_forward.1} parent=11 // pred_check
          %p439 = pneg %p101
        $region18: #{relpos_encoder_forward.1} parent=11 // pred_check_branch
          %441 = sbr.rel (%p439) target = $region20
        $region19: #{relpos_encoder_forward.1} parent=11 // pred_region
          _
        $region20: #{relpos_encoder_forward.1} parent=11 // pred_fallthru
          _
        // Predicated region
        $region21: #{relpos_encoder_forward.1} parent=11 // pred_check
          %p442 = pneg %p122
        $region22: #{relpos_encoder_forward.1} parent=11 // pred_check_branch
          %444 = sbr.rel (%p442) target = $region24
        $region23: #{relpos_encoder_forward.1} parent=11 // pred_region
          _
        $region24: #{relpos_encoder_forward.1} parent=11 // pred_fallthru
          _
        // Predicated region
        $region25: #{relpos_encoder_forward.1} parent=11 // pred_check
          %p445 = pneg %p143
        $region26: #{relpos_encoder_forward.1} parent=11 // pred_check_branch
          %447 = sbr.rel (%p445) target = $region28
        $region27: #{relpos_encoder_forward.1} parent=11 // pred_region
          _
        $region28: #{relpos_encoder_forward.1} parent=11 // pred_fallthru
          _
        // Predicated region
        $region29: #{relpos_encoder_forward.1} parent=11 // pred_check
          %p448 = pneg %p164
        $region30: #{relpos_encoder_forward.1} parent=11 // pred_check_branch
          %450 = sbr.rel (%p448) target = $region32
        $region31: #{relpos_encoder_forward.1} parent=11 // pred_region
          %452 = vsyncadd [#allocation6], 0
          %s453 = sshll.u32 %s5, 4
          %s454 = int_to_ptr.hbm [resolvable:$true] %s453
          %s455 = sshll.u32 [#allocation5], 4
          %s456 = int_to_ptr.vmem [resolvable:$true] %s455
          %461 = dma.hbm_to_vmem [thread:$0]  %s454, 1024, %s456, [#allocation6], 128, 128, 8
        $region32: #{relpos_encoder_forward.1} parent=11 // pred_fallthru
          _
        // Predicated region
        $region33: #{relpos_encoder_forward.1} parent=11 // pred_check
          %p462 = pneg %p185
        $region34: #{relpos_encoder_forward.1} parent=11 // pred_check_branch
          %464 = sbr.rel (%p462) target = $region36
        $region35: #{relpos_encoder_forward.1} parent=11 // pred_region
          %466 = vsyncadd [#allocation6], 0
          %s467 = sshll.u32 %s6, 4
          %s468 = int_to_ptr.hbm [resolvable:$true] %s467
          %s469 = sshll.u32 [#allocation7], 4
          %s470 = int_to_ptr.vmem [resolvable:$true] %s469
          %475 = dma.hbm_to_vmem [thread:$0]  %s468, 1024, %s470, [#allocation6], 128, 128, 8
        $region36: #{relpos_encoder_forward.1} parent=11 // pred_fallthru
          _
        // Predicated region
        $region37: #{relpos_encoder_forward.1} parent=11 // pred_check
          %p476 = pneg %p206
        $region38: #{relpos_encoder_forward.1} parent=11 // pred_check_branch
          %478 = sbr.rel (%p476) target = $region40
        $region39: #{relpos_encoder_forward.1} parent=11 // pred_region
          %480 = vsyncadd [#allocation9], 0
          %s482 = sshll.u32 %s7, 4
          %s483 = int_to_ptr.hbm [resolvable:$true] %s482
          %s484 = sshll.u32 [#allocation8], 4
          %s485 = int_to_ptr.vmem [resolvable:$true] %s484
          %487 = dma.hbm_to_vmem [thread:$0]  %s483, 128, %s485, [#allocation9]
        $region40: #{relpos_encoder_forward.1} parent=11 // pred_fallthru
          _
        // Predicated region
        $region41: #{relpos_encoder_forward.1} parent=11 // pred_check
          %p488 = pneg %p227
        $region42: #{relpos_encoder_forward.1} parent=11 // pred_check_branch
          %490 = sbr.rel (%p488) target = $region44
        $region43: #{relpos_encoder_forward.1} parent=11 // pred_region
          %492 = vsyncadd [#allocation9], 0
          %s494 = sshll.u32 %s8, 4
          %s495 = int_to_ptr.hbm [resolvable:$true] %s494
          %s496 = sshll.u32 [#allocation10], 4
          %s497 = int_to_ptr.vmem [resolvable:$true] %s496
          %499 = dma.hbm_to_vmem [thread:$0]  %s495, 128, %s497, [#allocation9]
        $region44: #{relpos_encoder_forward.1} parent=11 // pred_fallthru
          _
        // Predicated region
        $region45: #{relpos_encoder_forward.1} parent=11 // pred_check
          %p500 = pneg %p248
        $region46: #{relpos_encoder_forward.1} parent=11 // pred_check_branch
          %502 = sbr.rel (%p500) target = $region48
        $region47: #{relpos_encoder_forward.1} parent=11 // pred_region
          _
        $region48: #{relpos_encoder_forward.1} parent=11 // pred_fallthru
          _
        // Predicated region
        $region49: #{relpos_encoder_forward.1} parent=11 // pred_check
          %p503 = pneg %p269
        $region50: #{relpos_encoder_forward.1} parent=11 // pred_check_branch
          %505 = sbr.rel (%p503) target = $region52
        $region51: #{relpos_encoder_forward.1} parent=11 // pred_region
          %507 = vsyncadd [#allocation12], 0
          %s509 = sshll.u32 %s10, 4
          %s510 = int_to_ptr.hbm [resolvable:$true] %s509
          %s511 = sshll.u32 [#allocation11], 4
          %s512 = int_to_ptr.vmem [resolvable:$true] %s511
          %514 = dma.hbm_to_vmem [thread:$0]  %s510, 16, %s512, [#allocation12]
        $region52: #{relpos_encoder_forward.1} parent=11 // pred_fallthru
          _
        // Predicated region
        $region53: #{relpos_encoder_forward.1} parent=11 // pred_check
          %p515 = pneg %p290
        $region54: #{relpos_encoder_forward.1} parent=11 // pred_check_branch
          %517 = sbr.rel (%p515) target = $region56
        $region55: #{relpos_encoder_forward.1} parent=11 // pred_region
          _
        $region56: #{relpos_encoder_forward.1} parent=11 // pred_fallthru
          _
        // Predicated region
        $region57: #{relpos_encoder_forward.1} parent=11 // pred_check
          %p518 = pneg %p311
        $region58: #{relpos_encoder_forward.1} parent=11 // pred_check_branch
          %520 = sbr.rel (%p518) target = $region60
        $region59: #{relpos_encoder_forward.1} parent=11 // pred_region
          _
        $region60: #{relpos_encoder_forward.1} parent=11 // pred_fallthru
          _
        // Predicated region
        $region61: #{relpos_encoder_forward.1} parent=11 // pred_check
          %p521 = pneg %p332
        $region62: #{relpos_encoder_forward.1} parent=11 // pred_check_branch
          %523 = sbr.rel (%p521) target = $region64
        $region63: #{relpos_encoder_forward.1} parent=11 // pred_region
          _
        $region64: #{relpos_encoder_forward.1} parent=11 // pred_fallthru
          _
        // Predicated region
        $region65: #{relpos_encoder_forward.1} parent=11 // pred_check
          %p524 = pneg %p353
        $region66: #{relpos_encoder_forward.1} parent=11 // pred_check_branch
          %526 = sbr.rel (%p524) target = $region68
        $region67: #{relpos_encoder_forward.1} parent=11 // pred_region
          %528 = vsyncadd [#allocation12], 0
          %s530 = sshll.u32 %s14, 4
          %s531 = int_to_ptr.hbm [resolvable:$true] %s530
          %s532 = sshll.u32 [#allocation13], 4
          %s533 = int_to_ptr.vmem [resolvable:$true] %s532
          %535 = dma.hbm_to_vmem [thread:$0]  %s531, 16, %s533, [#allocation12]
        $region68: #{relpos_encoder_forward.1} parent=11 // pred_fallthru
          _
        // Predicated region
        $region69: #{relpos_encoder_forward.1} parent=11 // pred_check
          %p536 = pneg %p374
        $region70: #{relpos_encoder_forward.1} parent=11 // pred_check_branch
          %538 = sbr.rel (%p536) target = $region72
        $region71: #{relpos_encoder_forward.1} parent=11 // pred_region
          _
        $region72: #{relpos_encoder_forward.1} parent=11 // pred_fallthru
          _
        // Predicated region
        $region73: #{relpos_encoder_forward.1} parent=11 // pred_check
          %p539 = pneg %p395
        $region74: #{relpos_encoder_forward.1} parent=11 // pred_check_branch
          %541 = sbr.rel (%p539) target = $region76
        $region75: #{relpos_encoder_forward.1} parent=11 // pred_region
          %543 = vsyncadd [#allocation15], 0
          %s545 = sshll.u32 %s16, 4
          %s546 = int_to_ptr.hbm [resolvable:$true] %s545
          %s547 = sshll.u32 [#allocation14], 4
          %s548 = int_to_ptr.vmem [resolvable:$true] %s547
          %550 = dma.hbm_to_vmem [thread:$0]  %s546, 16, %s548, [#allocation15]
        $region76: #{relpos_encoder_forward.1} parent=11 // pred_fallthru
          _
      $region12: #{relpos_encoder_forward.1} parent=5 // pred_fallthru
        _
      %p551 = scmp.lt.s32.totalorder %s33, 2
      // Predicated region
      $region77: #{relpos_encoder_forward.1} parent=5 // pred_check
        %p552 = pneg %p551
      $region78: #{relpos_encoder_forward.1} parent=5 // pred_check_branch
        %554 = sbr.rel (%p552) target = $region80
      $region79: #{relpos_encoder_forward.1} parent=5 // pred_region
        // Predicated region
        $region81: #{relpos_encoder_forward.1} parent=79 // pred_check
          %p555 = pneg %p53
        $region82: #{relpos_encoder_forward.1} parent=79 // pred_check_branch
          %557 = sbr.rel (%p555) target = $region84
        $region83: #{relpos_encoder_forward.1} parent=79 // pred_region
          %s558 = sand.u32 %s43, 1
          %s559 = scalar_lea.sflag [#allocation3], %s558
          %s560 = sand.u32 %s43, 1
          %s561 = smul.addr %s560, 64
          %s562 = scalar_lea.vmem [#allocation2], %s561
          %564 = vsyncadd %s559, 0
          %s565 = smul.addr %s33, 8
          %s566 = smul.addr %s565, 8
          %s567 = scalar_lea.hbm %s0, %s566
          %s568 = sshll.u32 %s567, 4
          %s569 = int_to_ptr.hbm [resolvable:$true] %s568
          %s570 = sshll.u32 %s562, 4
          %s571 = int_to_ptr.vmem [resolvable:$true] %s570
          %576 = dma.hbm_to_vmem [thread:$0]  %s569, 1024, %s571, %s559, 128, 128, 8
        $region84: #{relpos_encoder_forward.1} parent=79 // pred_fallthru
          _
      $region80: #{relpos_encoder_forward.1} parent=5 // pred_fallthru
        _
      %p577 = scmp.le.s32.totalorder 1, %s33
      %p578 = scmp.lt.s32.totalorder %s33, 3
      %p579 = pnand %p577, %p578
      %p580 = pneg %p579
      // Predicated region
      $region85: #{relpos_encoder_forward.1} parent=5 // pred_check
        _
      $region86: #{relpos_encoder_forward.1} parent=5 // pred_check_branch
        %582 = sbr.rel (%p579) target = $region88
      $region87: #{relpos_encoder_forward.1} parent=5 // pred_region
        %s583 = ssub.s32 %s33, 1
        %s584 = sand.u32 %s46, 1
        %s585 = scalar_lea.sflag [#allocation3], %s584
        %s586 = sand.u32 %s46, 1
        %s587 = smul.addr %s586, 64
        %s588 = scalar_lea.vmem [#allocation2], %s587
        // Predicated region
        $region89: #{relpos_encoder_forward.1} parent=87 // pred_check
          %p589 = pneg %p59
        $region90: #{relpos_encoder_forward.1} parent=87 // pred_check_branch
          %591 = sbr.rel (%p589) target = $region92
        $region91: #{relpos_encoder_forward.1} parent=87 // pred_region
          %593 = dma.done %s585, 1024
        $region92: #{relpos_encoder_forward.1} parent=87 // pred_fallthru
          _
        // Predicated region
        $region93: #{relpos_encoder_forward.1} parent=87 // pred_check
          %p594 = pneg %p164
        $region94: #{relpos_encoder_forward.1} parent=87 // pred_check_branch
          %596 = sbr.rel (%p594) target = $region96
        $region95: #{relpos_encoder_forward.1} parent=87 // pred_region
          %598 = dma.done [#allocation6], 1024
        $region96: #{relpos_encoder_forward.1} parent=87 // pred_fallthru
          _
        // Predicated region
        $region97: #{relpos_encoder_forward.1} parent=87 // pred_check
          %p599 = pneg %p185
        $region98: #{relpos_encoder_forward.1} parent=87 // pred_check_branch
          %601 = sbr.rel (%p599) target = $region100
        $region99: #{relpos_encoder_forward.1} parent=87 // pred_region
          %603 = dma.done [#allocation6], 1024
        $region100: #{relpos_encoder_forward.1} parent=87 // pred_fallthru
          _
        // Predicated region
        $region101: #{relpos_encoder_forward.1} parent=87 // pred_check
          %p604 = pneg %p206
        $region102: #{relpos_encoder_forward.1} parent=87 // pred_check_branch
          %606 = sbr.rel (%p604) target = $region104
        $region103: #{relpos_encoder_forward.1} parent=87 // pred_region
          %608 = dma.done [#allocation9], 128
        $region104: #{relpos_encoder_forward.1} parent=87 // pred_fallthru
          _
        // Predicated region
        $region105: #{relpos_encoder_forward.1} parent=87 // pred_check
          %p609 = pneg %p227
        $region106: #{relpos_encoder_forward.1} parent=87 // pred_check_branch
          %611 = sbr.rel (%p609) target = $region108
        $region107: #{relpos_encoder_forward.1} parent=87 // pred_region
          %613 = dma.done [#allocation9], 128
        $region108: #{relpos_encoder_forward.1} parent=87 // pred_fallthru
          _
        // Predicated region
        $region109: #{relpos_encoder_forward.1} parent=87 // pred_check
          %p614 = pneg %p269
        $region110: #{relpos_encoder_forward.1} parent=87 // pred_check_branch
          %616 = sbr.rel (%p614) target = $region112
        $region111: #{relpos_encoder_forward.1} parent=87 // pred_region
          %618 = dma.done [#allocation12], 16
        $region112: #{relpos_encoder_forward.1} parent=87 // pred_fallthru
          _
        // Predicated region
        $region113: #{relpos_encoder_forward.1} parent=87 // pred_check
          %p619 = pneg %p353
        $region114: #{relpos_encoder_forward.1} parent=87 // pred_check_branch
          %621 = sbr.rel (%p619) target = $region116
        $region115: #{relpos_encoder_forward.1} parent=87 // pred_region
          %623 = dma.done [#allocation12], 16
        $region116: #{relpos_encoder_forward.1} parent=87 // pred_fallthru
          _
        // Predicated region
        $region117: #{relpos_encoder_forward.1} parent=87 // pred_check
          %p624 = pneg %p395
        $region118: #{relpos_encoder_forward.1} parent=87 // pred_check_branch
          %626 = sbr.rel (%p624) target = $region120
        $region119: #{relpos_encoder_forward.1} parent=87 // pred_region
          %628 = dma.done [#allocation15], 16
        $region120: #{relpos_encoder_forward.1} parent=87 // pred_fallthru
          _
        %s629 = sand.u32 %s46, 1
        %s630 = scalar_lea.sflag [#allocation3], %s629
        %s631 = sand.u32 %s46, 1
        %s632 = smul.addr %s631, 64
        %s633 = scalar_lea.vmem [#allocation2], %s632
        %p634 = pneg %p59
        %p635 = pneg %p56
        %p636 = pneg %p80
        %p637 = pneg %p77
        %p638 = pneg %p101
        %p639 = pneg %p98
        %p640 = pneg %p122
        %p641 = pneg %p119
        %p642 = pneg %p143
        %p643 = pneg %p140
        %p644 = pneg %p164
        %p645 = pneg %p161
        %p646 = pneg %p185
        %p647 = pneg %p182
        %p648 = pneg %p206
        %p649 = pneg %p203
        %p650 = pneg %p227
        %p651 = pneg %p224
        %p652 = pneg %p248
        %p653 = pneg %p245
        %p654 = pneg %p269
        %p655 = pneg %p266
        %p656 = pneg %p290
        %p657 = pneg %p287
        %p658 = pneg %p311
        %p659 = pneg %p308
        %p660 = pneg %p332
        %p661 = pneg %p329
        %p662 = pneg %p353
        %p663 = pneg %p350
        %p664 = pneg %p374
        %p665 = pneg %p371
        %p666 = pneg %p395
        %p667 = pneg %p392
        %p668 = pneg %p421
        %p669 = pneg %p418
        %s670 = sand.u32 %s408, 1
        %s671 = scalar_lea.sflag [#allocation4], %s670
        %s672 = sand.u32 %s408, 1
        %s673 = smul.addr %s672, 64
        %s674 = scalar_lea.vmem [#allocation16], %s673
        %v676 = vld [vmem:[%s588] sm:$0xff]
        %v677 = vld [vmem:[%s588 + $0x8] sm:$0xff]
        %v678 = vld [vmem:[%s588 + $0x10] sm:$0xff]
        %v679 = vld [vmem:[%s588 + $0x18] sm:$0xff]
        %v680 = vld [vmem:[%s588 + $0x20] sm:$0xff]
        %v681 = vld [vmem:[%s588 + $0x28] sm:$0xff]
        %v682 = vld [vmem:[%s588 + $0x30] sm:$0xff]
        %v683 = vld [vmem:[%s588 + $0x38] sm:$0xff]
        %vm684 = vcmask 261120
        %v685 = vsel %vm684, %v676, 0.0
        %686 = vadd.xlane.f32.xlu0 %v685
        %v687 = vpop.xlane.xlu0 %686
        %v688 = vsel %vm684, %v677, 0.0
        %689 = vadd.xlane.f32.xlu0 %v688
        %v690 = vpop.xlane.xlu0 %689
        %v691 = vsel %vm684, %v678, 0.0
        %692 = vadd.xlane.f32.xlu0 %v691
        %v693 = vpop.xlane.xlu0 %692
        %v694 = vsel %vm684, %v679, 0.0
        %695 = vadd.xlane.f32.xlu0 %v694
        %v696 = vpop.xlane.xlu0 %695
        %v697 = vsel %vm684, %v680, 0.0
        %698 = vadd.xlane.f32.xlu0 %v697
        %v699 = vpop.xlane.xlu0 %698
        %v700 = vsel %vm684, %v681, 0.0
        %701 = vadd.xlane.f32.xlu0 %v700
        %v702 = vpop.xlane.xlu0 %701
        %v703 = vsel %vm684, %v682, 0.0
        %704 = vadd.xlane.f32.xlu0 %v703
        %v705 = vpop.xlane.xlu0 %704
        %v706 = vsel %vm684, %v683, 0.0
        %707 = vadd.xlane.f32.xlu0 %v706
        %v708 = vpop.xlane.xlu0 %707
        %v709 = vrcp.pop 32.0
        %v710 = vmul.f32 32.0, %v709
        %v711 = vsub.f32 1.0, %v710
        %v712 = vmul.f32 %v709, %v711
        %v713 = vadd.f32 %v709, %v712
        %vm714 = vweird.f32 %v709
        %v715 = vsel %vm714, %v709, %v713
        %v716 = vmul.f32 %v687, %v715
        %v717 = vmul.f32 %v690, %v715
        %v718 = vmul.f32 %v693, %v715
        %v719 = vmul.f32 %v696, %v715
        %v720 = vmul.f32 %v699, %v715
        %v721 = vmul.f32 %v702, %v715
        %v722 = vmul.f32 %v705, %v715
        %v723 = vmul.f32 %v708, %v715
        %v724 = vsub.f32 %v676, %v716
        %v725 = vsub.f32 %v677, %v717
        %v726 = vsub.f32 %v678, %v718
        %v727 = vsub.f32 %v679, %v719
        %v728 = vsub.f32 %v680, %v720
        %v729 = vsub.f32 %v681, %v721
        %v730 = vsub.f32 %v682, %v722
        %v731 = vsub.f32 %v683, %v723
        %v732 = vmul.f32 %v724, %v724
        %v733 = vmul.f32 %v725, %v725
        %v734 = vmul.f32 %v726, %v726
        %v735 = vmul.f32 %v727, %v727
        %v736 = vmul.f32 %v728, %v728
        %v737 = vmul.f32 %v729, %v729
        %v738 = vmul.f32 %v730, %v730
        %v739 = vmul.f32 %v731, %v731
        %v740 = vsel %vm684, %v732, 0.0
        %741 = vadd.xlane.f32.xlu0 %v740
        %v742 = vpop.xlane.xlu0 %741
        %v743 = vsel %vm684, %v733, 0.0
        %744 = vadd.xlane.f32.xlu0 %v743
        %v745 = vpop.xlane.xlu0 %744
        %v746 = vsel %vm684, %v734, 0.0
        %747 = vadd.xlane.f32.xlu0 %v746
        %v748 = vpop.xlane.xlu0 %747
        %v749 = vsel %vm684, %v735, 0.0
        %750 = vadd.xlane.f32.xlu0 %v749
        %v751 = vpop.xlane.xlu0 %750
        %v752 = vsel %vm684, %v736, 0.0
        %753 = vadd.xlane.f32.xlu0 %v752
        %v754 = vpop.xlane.xlu0 %753
        %v755 = vsel %vm684, %v737, 0.0
        %756 = vadd.xlane.f32.xlu0 %v755
        %v757 = vpop.xlane.xlu0 %756
        %v758 = vsel %vm684, %v738, 0.0
        %759 = vadd.xlane.f32.xlu0 %v758
        %v760 = vpop.xlane.xlu0 %759
        %v761 = vsel %vm684, %v739, 0.0
        %762 = vadd.xlane.f32.xlu0 %v761
        %v763 = vpop.xlane.xlu0 %762
        %v764 = vmul.f32 %v742, %v715
        %v765 = vmul.f32 %v745, %v715
        %v766 = vmul.f32 %v748, %v715
        %v767 = vmul.f32 %v751, %v715
        %v768 = vmul.f32 %v754, %v715
        %v769 = vmul.f32 %v757, %v715
        %v770 = vmul.f32 %v760, %v715
        %v771 = vmul.f32 %v763, %v715
        %v772 = vadd.f32 %v764, 1e-05
        %v773 = vadd.f32 %v765, 1e-05
        %v774 = vadd.f32 %v766, 1e-05
        %v775 = vadd.f32 %v767, 1e-05
        %v776 = vadd.f32 %v768, 1e-05
        %v777 = vadd.f32 %v769, 1e-05
        %v778 = vadd.f32 %v770, 1e-05
        %v779 = vadd.f32 %v771, 1e-05
        %v780 = vrsqrt.pop %v772
        %v781 = vmul.f32 %v780, %v772
        %v782 = vmul.f32 %v781, %v780
        %v783 = vmul.f32 0.5, %v782
        %v784 = vsub.f32 1.5, %v783
        %v785 = vmul.f32 %v780, %v784
        %vm786 = vweird.f32 %v772
        %vm787 = vweird.f32 %v780
        %vm788 = vmor %vm786, %vm787
        %v789 = vsel %vm788, %v780, %v785
        %v790 = vrsqrt.pop %v773
        %v791 = vmul.f32 %v790, %v773
        %v792 = vmul.f32 %v791, %v790
        %v793 = vmul.f32 0.5, %v792
        %v794 = vsub.f32 1.5, %v793
        %v795 = vmul.f32 %v790, %v794
        %vm796 = vweird.f32 %v773
        %vm797 = vweird.f32 %v790
        %vm798 = vmor %vm796, %vm797
        %v799 = vsel %vm798, %v790, %v795
        %v800 = vrsqrt.pop %v774
        %v801 = vmul.f32 %v800, %v774
        %v802 = vmul.f32 %v801, %v800
        %v803 = vmul.f32 0.5, %v802
        %v804 = vsub.f32 1.5, %v803
        %v805 = vmul.f32 %v800, %v804
        %vm806 = vweird.f32 %v774
        %vm807 = vweird.f32 %v800
        %vm808 = vmor %vm806, %vm807
        %v809 = vsel %vm808, %v800, %v805
        %v810 = vrsqrt.pop %v775
        %v811 = vmul.f32 %v810, %v775
        %v812 = vmul.f32 %v811, %v810
        %v813 = vmul.f32 0.5, %v812
        %v814 = vsub.f32 1.5, %v813
        %v815 = vmul.f32 %v810, %v814
        %vm816 = vweird.f32 %v775
        %vm817 = vweird.f32 %v810
        %vm818 = vmor %vm816, %vm817
        %v819 = vsel %vm818, %v810, %v815
        %v820 = vrsqrt.pop %v776
        %v821 = vmul.f32 %v820, %v776
        %v822 = vmul.f32 %v821, %v820
        %v823 = vmul.f32 0.5, %v822
        %v824 = vsub.f32 1.5, %v823
        %v825 = vmul.f32 %v820, %v824
        %vm826 = vweird.f32 %v776
        %vm827 = vweird.f32 %v820
        %vm828 = vmor %vm826, %vm827
        %v829 = vsel %vm828, %v820, %v825
        %v830 = vrsqrt.pop %v777
        %v831 = vmul.f32 %v830, %v777
        %v832 = vmul.f32 %v831, %v830
        %v833 = vmul.f32 0.5, %v832
        %v834 = vsub.f32 1.5, %v833
        %v835 = vmul.f32 %v830, %v834
        %vm836 = vweird.f32 %v777
        %vm837 = vweird.f32 %v830
        %vm838 = vmor %vm836, %vm837
        %v839 = vsel %vm838, %v830, %v835
        %v840 = vrsqrt.pop %v778
        %v841 = vmul.f32 %v840, %v778
        %v842 = vmul.f32 %v841, %v840
        %v843 = vmul.f32 0.5, %v842
        %v844 = vsub.f32 1.5, %v843
        %v845 = vmul.f32 %v840, %v844
        %vm846 = vweird.f32 %v778
        %vm847 = vweird.f32 %v840
        %vm848 = vmor %vm846, %vm847
        %v849 = vsel %vm848, %v840, %v845
        %v850 = vrsqrt.pop %v779
        %v851 = vmul.f32 %v850, %v779
        %v852 = vmul.f32 %v851, %v850
        %v853 = vmul.f32 0.5, %v852
        %v854 = vsub.f32 1.5, %v853
        %v855 = vmul.f32 %v850, %v854
        %vm856 = vweird.f32 %v779
        %vm857 = vweird.f32 %v850
        %vm858 = vmor %vm856, %vm857
        %v859 = vsel %vm858, %v850, %v855
        %v860 = vmul.f32 %v724, %v789
        %v861 = vmul.f32 %v725, %v799
        %v862 = vmul.f32 %v726, %v809
        %v863 = vmul.f32 %v727, %v819
        %v864 = vmul.f32 %v728, %v829
        %v865 = vmul.f32 %v729, %v839
        %v866 = vmul.f32 %v730, %v849
        %v867 = vmul.f32 %v731, %v859
        %v868 = vld [vmem:[%s1] sm:$0x1]
        %v870 = vperm.slane %v868, 0
        %v872 = vmul.f32 %v860, %v870
        %v873 = vmul.f32 %v861, %v870
        %v874 = vmul.f32 %v862, %v870
        %v875 = vmul.f32 %v863, %v870
        %v876 = vmul.f32 %v864, %v870
        %v877 = vmul.f32 %v865, %v870
        %v878 = vmul.f32 %v866, %v870
        %v879 = vmul.f32 %v867, %v870
        %v880 = vld [vmem:[%s2] sm:$0x1]
        %v882 = vperm.slane %v880, 0
        %v884 = vadd.f32 %v872, %v882
        %v885 = vadd.f32 %v873, %v882
        %v886 = vadd.f32 %v874, %v882
        %v887 = vadd.f32 %v875, %v882
        %v888 = vadd.f32 %v876, %v882
        %v889 = vadd.f32 %v877, %v882
        %v890 = vadd.f32 %v878, %v882
        %v891 = vadd.f32 %v879, %v882
        %v892 = vpack.c.bf16 %v885, %v884
        %v893 = vpack.c.bf16 %v887, %v886
        %v894 = vpack.c.bf16 %v889, %v888
        %v895 = vpack.c.bf16 %v891, %v890
        %v896 = vld [vmem:[%s3] sm:$0xf]
        %v897 = vld [vmem:[%s3 + $0x4] sm:$0xf]
        %v898 = vld [vmem:[%s3 + $0x8] sm:$0xf]
        %v899 = vld [vmem:[%s3 + $0xc] sm:$0xf]
        %v900 = vld [vmem:[%s4] sm:$0x1]
        %v902 = vperm.slane %v900, 0
        %v908 = vunpack.c.l.b16 %v896
        %v909 = vunpack.c.l.b16 %v897
        %v910 = vunpack.c.l.b16 %v898
        %v911 = vunpack.c.l.b16 %v899
        %v912 = vpack.c.b16 %v909, %v908
        %v913 = vpack.c.b16 %v911, %v910
        %v917 = vsel %vm684, %v892, 0
        %v920 = vsel %vm684, %v893, 0
        %v923 = vsel %vm684, %v894, 0
        %v926 = vsel %vm684, %v895, 0
        %928 = vmatpush.bf16.msra.mxu0 0
        %929 = vmatpush.bf16.msra.mxu0 0
        %930 = vmatpush.bf16.msra.mxu0 0
        %931 = vmatpush.bf16.msra.mxu0 0
        %932 = vmatpush.bf16.msra.mxu0 0
        %933 = vmatpush.bf16.msra.mxu0 0
        %934 = vmatpush.bf16.msra.mxu0 %v913
        %935 = vmatpush.bf16.msra.mxu0 %v912
        %936 = vmatmul.bf16.gmra.mxu0 %v917
        %v937 = vpop.f32.mrf.mxu0
        %v938 = vadd.f32 %v902, %v937
        %v939 = vpop.f32.mrf.mxu0
        %v940 = vadd.f32 %v902, %v939
        %941 = vmatmul.bf16.gmra.mxu0 %v920
        %v942 = vpop.f32.mrf.mxu0
        %v943 = vadd.f32 %v902, %v942
        %v944 = vpop.f32.mrf.mxu0
        %v945 = vadd.f32 %v902, %v944
        %946 = vmatmul.bf16.gmra.mxu0 %v923
        %v947 = vpop.f32.mrf.mxu0
        %v948 = vadd.f32 %v902, %v947
        %v949 = vpop.f32.mrf.mxu0
        %v950 = vadd.f32 %v902, %v949
        %951 = vmatmul.bf16.gmra.mxu0 %v926
        %v952 = vpop.f32.mrf.mxu0
        %v953 = vadd.f32 %v902, %v952
        %v954 = vpop.f32.mrf.mxu0
        %v955 = vadd.f32 %v902, %v954
        %956 = vdwg.mxu0
        %v957 = vld [vmem:[#allocation5] sm:$0xff]
        %v958 = vld [vmem:[#allocation5 + $0x8] sm:$0xff]
        %v959 = vld [vmem:[#allocation5 + $0x10] sm:$0xff]
        %v960 = vld [vmem:[#allocation5 + $0x18] sm:$0xff]
        %v961 = vld [vmem:[#allocation5 + $0x20] sm:$0xff]
        %v962 = vld [vmem:[#allocation5 + $0x28] sm:$0xff]
        %v963 = vld [vmem:[#allocation5 + $0x30] sm:$0xff]
        %v964 = vld [vmem:[#allocation5 + $0x38] sm:$0xff]
        %v965 = vld [vmem:[#allocation7] sm:$0xff]
        %v966 = vld [vmem:[#allocation7 + $0x8] sm:$0xff]
        %v967 = vld [vmem:[#allocation7 + $0x10] sm:$0xff]
        %v968 = vld [vmem:[#allocation7 + $0x18] sm:$0xff]
        %v969 = vld [vmem:[#allocation7 + $0x20] sm:$0xff]
        %v970 = vld [vmem:[#allocation7 + $0x28] sm:$0xff]
        %v971 = vld [vmem:[#allocation7 + $0x30] sm:$0xff]
        %v972 = vld [vmem:[#allocation7 + $0x38] sm:$0xff]
        %v973 = vld [vmem:[#allocation8] sm:$0xff]
        %v974 = vld [vmem:[#allocation10] sm:$0xff]
        %v975 = vpack.c.bf16 %v940, %v938
        %v976 = vpack.c.bf16 %v945, %v943
        %v977 = vpack.c.bf16 %v950, %v948
        %v978 = vpack.c.bf16 %v955, %v953
        %983 = vrot.lane.b32.xlu0 %v975, 96
        %v984 = vpop.permute.xlu0 %983
        %985 = vrot.lane.b32.xlu0 %v976, 96
        %v986 = vpop.permute.xlu0 %985
        %987 = vrot.lane.b32.xlu0 %v977, 96
        %v988 = vpop.permute.xlu0 %987
        %989 = vrot.lane.b32.xlu0 %v978, 96
        %v990 = vpop.permute.xlu0 %989
        %vm991 = vcmask 64512
        %v993 = vsel %vm991, %v975, 0
        %v996 = vsel %vm991, %v976, 0
        %v999 = vsel %vm991, %v977, 0
        %v1002 = vsel %vm991, %v978, 0
        %v1005 = vsel %vm991, %v984, 0
        %v1008 = vsel %vm991, %v986, 0
        %v1011 = vsel %vm991, %v988, 0
        %v1014 = vsel %vm991, %v990, 0
        %1016 = vmatpush.bf16.xpose.msra.mxu0 0
        %1017 = vmatpush.bf16.xpose.msra.mxu0 0
        %1018 = vmatpush.bf16.xpose.msra.mxu0 0
        %1019 = vmatpush.bf16.xpose.msra.mxu0 0
        %1020 = vmatpush.bf16.xpose.msra.mxu0 %v1014
        %1021 = vmatpush.bf16.xpose.msra.mxu0 %v1011
        %1022 = vmatpush.bf16.xpose.msra.mxu0 %v1008
        %1023 = vmatpush.bf16.xpose.msra.mxu0 %v1005
        %1024 = vmatmul.bf16.gmra.mxu0 %v993
        %v1025 = vpop.f32.mrf.mxu0
        %v1026 = vadd.f32 0.0, %v1025
        %v1027 = vpop.f32.mrf.mxu0
        %v1028 = vadd.f32 0.0, %v1027
        %1029 = vmatmul.bf16.gmra.mxu0 %v996
        %v1030 = vpop.f32.mrf.mxu0
        %v1031 = vadd.f32 0.0, %v1030
        %v1032 = vpop.f32.mrf.mxu0
        %v1033 = vadd.f32 0.0, %v1032
        %1034 = vmatmul.bf16.gmra.mxu0 %v999
        %v1035 = vpop.f32.mrf.mxu0
        %v1036 = vadd.f32 0.0, %v1035
        %v1037 = vpop.f32.mrf.mxu0
        %v1038 = vadd.f32 0.0, %v1037
        %1039 = vmatmul.bf16.gmra.mxu0 %v1002
        %v1040 = vpop.f32.mrf.mxu0
        %v1041 = vadd.f32 0.0, %v1040
        %v1042 = vpop.f32.mrf.mxu0
        %v1043 = vadd.f32 0.0, %v1042
        %1044 = vdwg.mxu0
        %v1045 = vmul.f32 %v1026, 0.35355338
        %v1046 = vmul.f32 %v1028, 0.35355338
        %v1047 = vmul.f32 %v1031, 0.35355338
        %v1048 = vmul.f32 %v1033, 0.35355338
        %v1049 = vmul.f32 %v1036, 0.35355338
        %v1050 = vmul.f32 %v1038, 0.35355338
        %v1051 = vmul.f32 %v1041, 0.35355338
        %v1052 = vmul.f32 %v1043, 0.35355338
        %v1061 = vrot.slane %v938, 1
        %v1062 = vrot.slane %v938, 2
        %v1063 = vrot.slane %v938, 3
        %v1064 = vrot.slane %v938, 4
        %v1065 = vrot.slane %v938, 5
        %v1066 = vrot.slane %v938, 6
        %v1067 = vrot.slane %v938, 7
        %v1068 = vrot.slane %v940, 1
        %v1069 = vrot.slane %v940, 2
        %v1070 = vrot.slane %v940, 3
        %v1071 = vrot.slane %v940, 4
        %v1072 = vrot.slane %v940, 5
        %v1073 = vrot.slane %v940, 6
        %v1074 = vrot.slane %v940, 7
        %v1075 = vrot.slane %v943, 1
        %v1076 = vrot.slane %v943, 2
        %v1077 = vrot.slane %v943, 3
        %v1078 = vrot.slane %v943, 4
        %v1079 = vrot.slane %v943, 5
        %v1080 = vrot.slane %v943, 6
        %v1081 = vrot.slane %v943, 7
        %v1082 = vrot.slane %v945, 1
        %v1083 = vrot.slane %v945, 2
        %v1084 = vrot.slane %v945, 3
        %v1085 = vrot.slane %v945, 4
        %v1086 = vrot.slane %v945, 5
        %v1087 = vrot.slane %v945, 6
        %v1088 = vrot.slane %v945, 7
        %v1089 = vrot.slane %v948, 1
        %v1090 = vrot.slane %v948, 2
        %v1091 = vrot.slane %v948, 3
        %v1092 = vrot.slane %v948, 4
        %v1093 = vrot.slane %v948, 5
        %v1094 = vrot.slane %v948, 6
        %v1095 = vrot.slane %v948, 7
        %v1096 = vrot.slane %v950, 1
        %v1097 = vrot.slane %v950, 2
        %v1098 = vrot.slane %v950, 3
        %v1099 = vrot.slane %v950, 4
        %v1100 = vrot.slane %v950, 5
        %v1101 = vrot.slane %v950, 6
        %v1102 = vrot.slane %v950, 7
        %v1103 = vrot.slane %v953, 1
        %v1104 = vrot.slane %v953, 2
        %v1105 = vrot.slane %v953, 3
        %v1106 = vrot.slane %v953, 4
        %v1107 = vrot.slane %v953, 5
        %v1108 = vrot.slane %v953, 6
        %v1109 = vrot.slane %v953, 7
        %v1110 = vrot.slane %v955, 1
        %v1111 = vrot.slane %v955, 2
        %v1112 = vrot.slane %v955, 3
        %v1113 = vrot.slane %v955, 4
        %v1114 = vrot.slane %v955, 5
        %v1115 = vrot.slane %v955, 6
        %v1116 = vrot.slane %v955, 7
        %v1117 = vperm.slane %v938, 0
        %v1118 = vperm.slane %v1061, 0
        %v1119 = vperm.slane %v1062, 0
        %v1120 = vperm.slane %v1063, 0
        %v1121 = vperm.slane %v1064, 0
        %v1122 = vperm.slane %v1065, 0
        %v1123 = vperm.slane %v1066, 0
        %v1124 = vperm.slane %v1067, 0
        %v1125 = vperm.slane %v940, 0
        %v1126 = vperm.slane %v1068, 0
        %v1127 = vperm.slane %v1069, 0
        %v1128 = vperm.slane %v1070, 0
        %v1129 = vperm.slane %v1071, 0
        %v1130 = vperm.slane %v1072, 0
        %v1131 = vperm.slane %v1073, 0
        %v1132 = vperm.slane %v1074, 0
        %v1133 = vperm.slane %v943, 0
        %v1134 = vperm.slane %v1075, 0
        %v1135 = vperm.slane %v1076, 0
        %v1136 = vperm.slane %v1077, 0
        %v1137 = vperm.slane %v1078, 0
        %v1138 = vperm.slane %v1079, 0
        %v1139 = vperm.slane %v1080, 0
        %v1140 = vperm.slane %v1081, 0
        %v1141 = vperm.slane %v945, 0
        %v1142 = vperm.slane %v1082, 0
        %v1143 = vperm.slane %v1083, 0
        %v1144 = vperm.slane %v1084, 0
        %v1145 = vperm.slane %v1085, 0
        %v1146 = vperm.slane %v1086, 0
        %v1147 = vperm.slane %v1087, 0
        %v1148 = vperm.slane %v1088, 0
        %v1149 = vperm.slane %v948, 0
        %v1150 = vperm.slane %v1089, 0
        %v1151 = vperm.slane %v1090, 0
        %v1152 = vperm.slane %v1091, 0
        %v1153 = vperm.slane %v1092, 0
        %v1154 = vperm.slane %v1093, 0
        %v1155 = vperm.slane %v1094, 0
        %v1156 = vperm.slane %v1095, 0
        %v1157 = vperm.slane %v950, 0
        %v1158 = vperm.slane %v1096, 0
        %v1159 = vperm.slane %v1097, 0
        %v1160 = vperm.slane %v1098, 0
        %v1161 = vperm.slane %v1099, 0
        %v1162 = vperm.slane %v1100, 0
        %v1163 = vperm.slane %v1101, 0
        %v1164 = vperm.slane %v1102, 0
        %v1165 = vperm.slane %v953, 0
        %v1166 = vperm.slane %v1103, 0
        %v1167 = vperm.slane %v1104, 0
        %v1168 = vperm.slane %v1105, 0
        %v1169 = vperm.slane %v1106, 0
        %v1170 = vperm.slane %v1107, 0
        %v1171 = vperm.slane %v1108, 0
        %v1172 = vperm.slane %v1109, 0
        %v1173 = vperm.slane %v955, 0
        %v1174 = vperm.slane %v1110, 0
        %v1175 = vperm.slane %v1111, 0
        %v1176 = vperm.slane %v1112, 0
        %v1177 = vperm.slane %v1113, 0
        %v1178 = vperm.slane %v1114, 0
        %v1179 = vperm.slane %v1115, 0
        %v1180 = vperm.slane %v1116, 0
        %v1245 = vmul.f32 %v1117, %v957
        %v1246 = vmul.f32 %v1118, %v957
        %v1247 = vmul.f32 %v1119, %v957
        %v1248 = vmul.f32 %v1120, %v957
        %v1249 = vmul.f32 %v1121, %v957
        %v1250 = vmul.f32 %v1122, %v957
        %v1251 = vmul.f32 %v1123, %v957
        %v1252 = vmul.f32 %v1124, %v957
        %v1253 = vmul.f32 %v1125, %v958
        %v1254 = vmul.f32 %v1126, %v958
        %v1255 = vmul.f32 %v1127, %v958
        %v1256 = vmul.f32 %v1128, %v958
        %v1257 = vmul.f32 %v1129, %v958
        %v1258 = vmul.f32 %v1130, %v958
        %v1259 = vmul.f32 %v1131, %v958
        %v1260 = vmul.f32 %v1132, %v958
        %v1261 = vmul.f32 %v1133, %v959
        %v1262 = vmul.f32 %v1134, %v959
        %v1263 = vmul.f32 %v1135, %v959
        %v1264 = vmul.f32 %v1136, %v959
        %v1265 = vmul.f32 %v1137, %v959
        %v1266 = vmul.f32 %v1138, %v959
        %v1267 = vmul.f32 %v1139, %v959
        %v1268 = vmul.f32 %v1140, %v959
        %v1269 = vmul.f32 %v1141, %v960
        %v1270 = vmul.f32 %v1142, %v960
        %v1271 = vmul.f32 %v1143, %v960
        %v1272 = vmul.f32 %v1144, %v960
        %v1273 = vmul.f32 %v1145, %v960
        %v1274 = vmul.f32 %v1146, %v960
        %v1275 = vmul.f32 %v1147, %v960
        %v1276 = vmul.f32 %v1148, %v960
        %v1277 = vmul.f32 %v1149, %v961
        %v1278 = vmul.f32 %v1150, %v961
        %v1279 = vmul.f32 %v1151, %v961
        %v1280 = vmul.f32 %v1152, %v961
        %v1281 = vmul.f32 %v1153, %v961
        %v1282 = vmul.f32 %v1154, %v961
        %v1283 = vmul.f32 %v1155, %v961
        %v1284 = vmul.f32 %v1156, %v961
        %v1285 = vmul.f32 %v1157, %v962
        %v1286 = vmul.f32 %v1158, %v962
        %v1287 = vmul.f32 %v1159, %v962
        %v1288 = vmul.f32 %v1160, %v962
        %v1289 = vmul.f32 %v1161, %v962
        %v1290 = vmul.f32 %v1162, %v962
        %v1291 = vmul.f32 %v1163, %v962
        %v1292 = vmul.f32 %v1164, %v962
        %v1293 = vmul.f32 %v1165, %v963
        %v1294 = vmul.f32 %v1166, %v963
        %v1295 = vmul.f32 %v1167, %v963
        %v1296 = vmul.f32 %v1168, %v963
        %v1297 = vmul.f32 %v1169, %v963
        %v1298 = vmul.f32 %v1170, %v963
        %v1299 = vmul.f32 %v1171, %v963
        %v1300 = vmul.f32 %v1172, %v963
        %v1301 = vmul.f32 %v1173, %v964
        %v1302 = vmul.f32 %v1174, %v964
        %v1303 = vmul.f32 %v1175, %v964
        %v1304 = vmul.f32 %v1176, %v964
        %v1305 = vmul.f32 %v1177, %v964
        %v1306 = vmul.f32 %v1178, %v964
        %v1307 = vmul.f32 %v1179, %v964
        %v1308 = vmul.f32 %v1180, %v964
        %v1309 = vsel %vm991, %v1245, 0.0
        %1310 = vadd.xlane.f32.xlu0 %v1309
        %v1311 = vpop.xlane.xlu0 %1310
        %v1312 = vsel %vm991, %v1246, 0.0
        %1313 = vadd.xlane.f32.xlu0 %v1312
        %v1314 = vpop.xlane.xlu0 %1313
        %v1315 = vsel %vm991, %v1247, 0.0
        %1316 = vadd.xlane.f32.xlu0 %v1315
        %v1317 = vpop.xlane.xlu0 %1316
        %v1318 = vsel %vm991, %v1248, 0.0
        %1319 = vadd.xlane.f32.xlu0 %v1318
        %v1320 = vpop.xlane.xlu0 %1319
        %v1321 = vsel %vm991, %v1249, 0.0
        %1322 = vadd.xlane.f32.xlu0 %v1321
        %v1323 = vpop.xlane.xlu0 %1322
        %v1324 = vsel %vm991, %v1250, 0.0
        %1325 = vadd.xlane.f32.xlu0 %v1324
        %v1326 = vpop.xlane.xlu0 %1325
        %v1327 = vsel %vm991, %v1251, 0.0
        %1328 = vadd.xlane.f32.xlu0 %v1327
        %v1329 = vpop.xlane.xlu0 %1328
        %v1330 = vsel %vm991, %v1252, 0.0
        %1331 = vadd.xlane.f32.xlu0 %v1330
        %v1332 = vpop.xlane.xlu0 %1331
        %v1333 = vsel %vm991, %v1253, 0.0
        %1334 = vadd.xlane.f32.xlu0 %v1333
        %v1335 = vpop.xlane.xlu0 %1334
        %v1336 = vsel %vm991, %v1254, 0.0
        %1337 = vadd.xlane.f32.xlu0 %v1336
        %v1338 = vpop.xlane.xlu0 %1337
        %v1339 = vsel %vm991, %v1255, 0.0
        %1340 = vadd.xlane.f32.xlu0 %v1339
        %v1341 = vpop.xlane.xlu0 %1340
        %v1342 = vsel %vm991, %v1256, 0.0
        %1343 = vadd.xlane.f32.xlu0 %v1342
        %v1344 = vpop.xlane.xlu0 %1343
        %v1345 = vsel %vm991, %v1257, 0.0
        %1346 = vadd.xlane.f32.xlu0 %v1345
        %v1347 = vpop.xlane.xlu0 %1346
        %v1348 = vsel %vm991, %v1258, 0.0
        %1349 = vadd.xlane.f32.xlu0 %v1348
        %v1350 = vpop.xlane.xlu0 %1349
        %v1351 = vsel %vm991, %v1259, 0.0
        %1352 = vadd.xlane.f32.xlu0 %v1351
        %v1353 = vpop.xlane.xlu0 %1352
        %v1354 = vsel %vm991, %v1260, 0.0
        %1355 = vadd.xlane.f32.xlu0 %v1354
        %v1356 = vpop.xlane.xlu0 %1355
        %v1357 = vsel %vm991, %v1261, 0.0
        %1358 = vadd.xlane.f32.xlu0 %v1357
        %v1359 = vpop.xlane.xlu0 %1358
        %v1360 = vsel %vm991, %v1262, 0.0
        %1361 = vadd.xlane.f32.xlu0 %v1360
        %v1362 = vpop.xlane.xlu0 %1361
        %v1363 = vsel %vm991, %v1263, 0.0
        %1364 = vadd.xlane.f32.xlu0 %v1363
        %v1365 = vpop.xlane.xlu0 %1364
        %v1366 = vsel %vm991, %v1264, 0.0
        %1367 = vadd.xlane.f32.xlu0 %v1366
        %v1368 = vpop.xlane.xlu0 %1367
        %v1369 = vsel %vm991, %v1265, 0.0
        %1370 = vadd.xlane.f32.xlu0 %v1369
        %v1371 = vpop.xlane.xlu0 %1370
        %v1372 = vsel %vm991, %v1266, 0.0
        %1373 = vadd.xlane.f32.xlu0 %v1372
        %v1374 = vpop.xlane.xlu0 %1373
        %v1375 = vsel %vm991, %v1267, 0.0
        %1376 = vadd.xlane.f32.xlu0 %v1375
        %v1377 = vpop.xlane.xlu0 %1376
        %v1378 = vsel %vm991, %v1268, 0.0
        %1379 = vadd.xlane.f32.xlu0 %v1378
        %v1380 = vpop.xlane.xlu0 %1379
        %v1381 = vsel %vm991, %v1269, 0.0
        %1382 = vadd.xlane.f32.xlu0 %v1381
        %v1383 = vpop.xlane.xlu0 %1382
        %v1384 = vsel %vm991, %v1270, 0.0
        %1385 = vadd.xlane.f32.xlu0 %v1384
        %v1386 = vpop.xlane.xlu0 %1385
        %v1387 = vsel %vm991, %v1271, 0.0
        %1388 = vadd.xlane.f32.xlu0 %v1387
        %v1389 = vpop.xlane.xlu0 %1388
        %v1390 = vsel %vm991, %v1272, 0.0
        %1391 = vadd.xlane.f32.xlu0 %v1390
        %v1392 = vpop.xlane.xlu0 %1391
        %v1393 = vsel %vm991, %v1273, 0.0
        %1394 = vadd.xlane.f32.xlu0 %v1393
        %v1395 = vpop.xlane.xlu0 %1394
        %v1396 = vsel %vm991, %v1274, 0.0
        %1397 = vadd.xlane.f32.xlu0 %v1396
        %v1398 = vpop.xlane.xlu0 %1397
        %v1399 = vsel %vm991, %v1275, 0.0
        %1400 = vadd.xlane.f32.xlu0 %v1399
        %v1401 = vpop.xlane.xlu0 %1400
        %v1402 = vsel %vm991, %v1276, 0.0
        %1403 = vadd.xlane.f32.xlu0 %v1402
        %v1404 = vpop.xlane.xlu0 %1403
        %v1405 = vsel %vm991, %v1277, 0.0
        %1406 = vadd.xlane.f32.xlu0 %v1405
        %v1407 = vpop.xlane.xlu0 %1406
        %v1408 = vsel %vm991, %v1278, 0.0
        %1409 = vadd.xlane.f32.xlu0 %v1408
        %v1410 = vpop.xlane.xlu0 %1409
        %v1411 = vsel %vm991, %v1279, 0.0
        %1412 = vadd.xlane.f32.xlu0 %v1411
        %v1413 = vpop.xlane.xlu0 %1412
        %v1414 = vsel %vm991, %v1280, 0.0
        %1415 = vadd.xlane.f32.xlu0 %v1414
        %v1416 = vpop.xlane.xlu0 %1415
        %v1417 = vsel %vm991, %v1281, 0.0
        %1418 = vadd.xlane.f32.xlu0 %v1417
        %v1419 = vpop.xlane.xlu0 %1418
        %v1420 = vsel %vm991, %v1282, 0.0
        %1421 = vadd.xlane.f32.xlu0 %v1420
        %v1422 = vpop.xlane.xlu0 %1421
        %v1423 = vsel %vm991, %v1283, 0.0
        %1424 = vadd.xlane.f32.xlu0 %v1423
        %v1425 = vpop.xlane.xlu0 %1424
        %v1426 = vsel %vm991, %v1284, 0.0
        %1427 = vadd.xlane.f32.xlu0 %v1426
        %v1428 = vpop.xlane.xlu0 %1427
        %v1429 = vsel %vm991, %v1285, 0.0
        %1430 = vadd.xlane.f32.xlu0 %v1429
        %v1431 = vpop.xlane.xlu0 %1430
        %v1432 = vsel %vm991, %v1286, 0.0
        %1433 = vadd.xlane.f32.xlu0 %v1432
        %v1434 = vpop.xlane.xlu0 %1433
        %v1435 = vsel %vm991, %v1287, 0.0
        %1436 = vadd.xlane.f32.xlu0 %v1435
        %v1437 = vpop.xlane.xlu0 %1436
        %v1438 = vsel %vm991, %v1288, 0.0
        %1439 = vadd.xlane.f32.xlu0 %v1438
        %v1440 = vpop.xlane.xlu0 %1439
        %v1441 = vsel %vm991, %v1289, 0.0
        %1442 = vadd.xlane.f32.xlu0 %v1441
        %v1443 = vpop.xlane.xlu0 %1442
        %v1444 = vsel %vm991, %v1290, 0.0
        %1445 = vadd.xlane.f32.xlu0 %v1444
        %v1446 = vpop.xlane.xlu0 %1445
        %v1447 = vsel %vm991, %v1291, 0.0
        %1448 = vadd.xlane.f32.xlu0 %v1447
        %v1449 = vpop.xlane.xlu0 %1448
        %v1450 = vsel %vm991, %v1292, 0.0
        %1451 = vadd.xlane.f32.xlu0 %v1450
        %v1452 = vpop.xlane.xlu0 %1451
        %v1453 = vsel %vm991, %v1293, 0.0
        %1454 = vadd.xlane.f32.xlu0 %v1453
        %v1455 = vpop.xlane.xlu0 %1454
        %v1456 = vsel %vm991, %v1294, 0.0
        %1457 = vadd.xlane.f32.xlu0 %v1456
        %v1458 = vpop.xlane.xlu0 %1457
        %v1459 = vsel %vm991, %v1295, 0.0
        %1460 = vadd.xlane.f32.xlu0 %v1459
        %v1461 = vpop.xlane.xlu0 %1460
        %v1462 = vsel %vm991, %v1296, 0.0
        %1463 = vadd.xlane.f32.xlu0 %v1462
        %v1464 = vpop.xlane.xlu0 %1463
        %v1465 = vsel %vm991, %v1297, 0.0
        %1466 = vadd.xlane.f32.xlu0 %v1465
        %v1467 = vpop.xlane.xlu0 %1466
        %v1468 = vsel %vm991, %v1298, 0.0
        %1469 = vadd.xlane.f32.xlu0 %v1468
        %v1470 = vpop.xlane.xlu0 %1469
        %v1471 = vsel %vm991, %v1299, 0.0
        %1472 = vadd.xlane.f32.xlu0 %v1471
        %v1473 = vpop.xlane.xlu0 %1472
        %v1474 = vsel %vm991, %v1300, 0.0
        %1475 = vadd.xlane.f32.xlu0 %v1474
        %v1476 = vpop.xlane.xlu0 %1475
        %v1477 = vsel %vm991, %v1301, 0.0
        %1478 = vadd.xlane.f32.xlu0 %v1477
        %v1479 = vpop.xlane.xlu0 %1478
        %v1480 = vsel %vm991, %v1302, 0.0
        %1481 = vadd.xlane.f32.xlu0 %v1480
        %v1482 = vpop.xlane.xlu0 %1481
        %v1483 = vsel %vm991, %v1303, 0.0
        %1484 = vadd.xlane.f32.xlu0 %v1483
        %v1485 = vpop.xlane.xlu0 %1484
        %v1486 = vsel %vm991, %v1304, 0.0
        %1487 = vadd.xlane.f32.xlu0 %v1486
        %v1488 = vpop.xlane.xlu0 %1487
        %v1489 = vsel %vm991, %v1305, 0.0
        %1490 = vadd.xlane.f32.xlu0 %v1489
        %v1491 = vpop.xlane.xlu0 %1490
        %v1492 = vsel %vm991, %v1306, 0.0
        %1493 = vadd.xlane.f32.xlu0 %v1492
        %v1494 = vpop.xlane.xlu0 %1493
        %v1495 = vsel %vm991, %v1307, 0.0
        %1496 = vadd.xlane.f32.xlu0 %v1495
        %v1497 = vpop.xlane.xlu0 %1496
        %v1498 = vsel %vm991, %v1308, 0.0
        %1499 = vadd.xlane.f32.xlu0 %v1498
        %v1500 = vpop.xlane.xlu0 %1499
        %v1501 = vmul.f32 %v1117, %v965
        %v1502 = vmul.f32 %v1118, %v966
        %v1503 = vmul.f32 %v1119, %v967
        %v1504 = vmul.f32 %v1120, %v968
        %v1505 = vmul.f32 %v1121, %v969
        %v1506 = vmul.f32 %v1122, %v970
        %v1507 = vmul.f32 %v1123, %v971
        %v1508 = vmul.f32 %v1124, %v972
        %v1509 = vmul.f32 %v1125, %v965
        %v1510 = vmul.f32 %v1126, %v966
        %v1511 = vmul.f32 %v1127, %v967
        %v1512 = vmul.f32 %v1128, %v968
        %v1513 = vmul.f32 %v1129, %v969
        %v1514 = vmul.f32 %v1130, %v970
        %v1515 = vmul.f32 %v1131, %v971
        %v1516 = vmul.f32 %v1132, %v972
        %v1517 = vmul.f32 %v1133, %v965
        %v1518 = vmul.f32 %v1134, %v966
        %v1519 = vmul.f32 %v1135, %v967
        %v1520 = vmul.f32 %v1136, %v968
        %v1521 = vmul.f32 %v1137, %v969
        %v1522 = vmul.f32 %v1138, %v970
        %v1523 = vmul.f32 %v1139, %v971
        %v1524 = vmul.f32 %v1140, %v972
        %v1525 = vmul.f32 %v1141, %v965
        %v1526 = vmul.f32 %v1142, %v966
        %v1527 = vmul.f32 %v1143, %v967
        %v1528 = vmul.f32 %v1144, %v968
        %v1529 = vmul.f32 %v1145, %v969
        %v1530 = vmul.f32 %v1146, %v970
        %v1531 = vmul.f32 %v1147, %v971
        %v1532 = vmul.f32 %v1148, %v972
        %v1533 = vmul.f32 %v1149, %v965
        %v1534 = vmul.f32 %v1150, %v966
        %v1535 = vmul.f32 %v1151, %v967
        %v1536 = vmul.f32 %v1152, %v968
        %v1537 = vmul.f32 %v1153, %v969
        %v1538 = vmul.f32 %v1154, %v970
        %v1539 = vmul.f32 %v1155, %v971
        %v1540 = vmul.f32 %v1156, %v972
        %v1541 = vmul.f32 %v1157, %v965
        %v1542 = vmul.f32 %v1158, %v966
        %v1543 = vmul.f32 %v1159, %v967
        %v1544 = vmul.f32 %v1160, %v968
        %v1545 = vmul.f32 %v1161, %v969
        %v1546 = vmul.f32 %v1162, %v970
        %v1547 = vmul.f32 %v1163, %v971
        %v1548 = vmul.f32 %v1164, %v972
        %v1549 = vmul.f32 %v1165, %v965
        %v1550 = vmul.f32 %v1166, %v966
        %v1551 = vmul.f32 %v1167, %v967
        %v1552 = vmul.f32 %v1168, %v968
        %v1553 = vmul.f32 %v1169, %v969
        %v1554 = vmul.f32 %v1170, %v970
        %v1555 = vmul.f32 %v1171, %v971
        %v1556 = vmul.f32 %v1172, %v972
        %v1557 = vmul.f32 %v1173, %v965
        %v1558 = vmul.f32 %v1174, %v966
        %v1559 = vmul.f32 %v1175, %v967
        %v1560 = vmul.f32 %v1176, %v968
        %v1561 = vmul.f32 %v1177, %v969
        %v1562 = vmul.f32 %v1178, %v970
        %v1563 = vmul.f32 %v1179, %v971
        %v1564 = vmul.f32 %v1180, %v972
        %v1565 = vsel %vm991, %v1501, 0.0
        %1566 = vadd.xlane.f32.xlu0 %v1565
        %v1567 = vpop.xlane.xlu0 %1566
        %v1568 = vsel %vm991, %v1502, 0.0
        %1569 = vadd.xlane.f32.xlu0 %v1568
        %v1570 = vpop.xlane.xlu0 %1569
        %v1571 = vsel %vm991, %v1503, 0.0
        %1572 = vadd.xlane.f32.xlu0 %v1571
        %v1573 = vpop.xlane.xlu0 %1572
        %v1574 = vsel %vm991, %v1504, 0.0
        %1575 = vadd.xlane.f32.xlu0 %v1574
        %v1576 = vpop.xlane.xlu0 %1575
        %v1577 = vsel %vm991, %v1505, 0.0
        %1578 = vadd.xlane.f32.xlu0 %v1577
        %v1579 = vpop.xlane.xlu0 %1578
        %v1580 = vsel %vm991, %v1506, 0.0
        %1581 = vadd.xlane.f32.xlu0 %v1580
        %v1582 = vpop.xlane.xlu0 %1581
        %v1583 = vsel %vm991, %v1507, 0.0
        %1584 = vadd.xlane.f32.xlu0 %v1583
        %v1585 = vpop.xlane.xlu0 %1584
        %v1586 = vsel %vm991, %v1508, 0.0
        %1587 = vadd.xlane.f32.xlu0 %v1586
        %v1588 = vpop.xlane.xlu0 %1587
        %v1589 = vsel %vm991, %v1509, 0.0
        %1590 = vadd.xlane.f32.xlu0 %v1589
        %v1591 = vpop.xlane.xlu0 %1590
        %v1592 = vsel %vm991, %v1510, 0.0
        %1593 = vadd.xlane.f32.xlu0 %v1592
        %v1594 = vpop.xlane.xlu0 %1593
        %v1595 = vsel %vm991, %v1511, 0.0
        %1596 = vadd.xlane.f32.xlu0 %v1595
        %v1597 = vpop.xlane.xlu0 %1596
        %v1598 = vsel %vm991, %v1512, 0.0
        %1599 = vadd.xlane.f32.xlu0 %v1598
        %v1600 = vpop.xlane.xlu0 %1599
        %v1601 = vsel %vm991, %v1513, 0.0
        %1602 = vadd.xlane.f32.xlu0 %v1601
        %v1603 = vpop.xlane.xlu0 %1602
        %v1604 = vsel %vm991, %v1514, 0.0
        %1605 = vadd.xlane.f32.xlu0 %v1604
        %v1606 = vpop.xlane.xlu0 %1605
        %v1607 = vsel %vm991, %v1515, 0.0
        %1608 = vadd.xlane.f32.xlu0 %v1607
        %v1609 = vpop.xlane.xlu0 %1608
        %v1610 = vsel %vm991, %v1516, 0.0
        %1611 = vadd.xlane.f32.xlu0 %v1610
        %v1612 = vpop.xlane.xlu0 %1611
        %v1613 = vsel %vm991, %v1517, 0.0
        %1614 = vadd.xlane.f32.xlu0 %v1613
        %v1615 = vpop.xlane.xlu0 %1614
        %v1616 = vsel %vm991, %v1518, 0.0
        %1617 = vadd.xlane.f32.xlu0 %v1616
        %v1618 = vpop.xlane.xlu0 %1617
        %v1619 = vsel %vm991, %v1519, 0.0
        %1620 = vadd.xlane.f32.xlu0 %v1619
        %v1621 = vpop.xlane.xlu0 %1620
        %v1622 = vsel %vm991, %v1520, 0.0
        %1623 = vadd.xlane.f32.xlu0 %v1622
        %v1624 = vpop.xlane.xlu0 %1623
        %v1625 = vsel %vm991, %v1521, 0.0
        %1626 = vadd.xlane.f32.xlu0 %v1625
        %v1627 = vpop.xlane.xlu0 %1626
        %v1628 = vsel %vm991, %v1522, 0.0
        %1629 = vadd.xlane.f32.xlu0 %v1628
        %v1630 = vpop.xlane.xlu0 %1629
        %v1631 = vsel %vm991, %v1523, 0.0
        %1632 = vadd.xlane.f32.xlu0 %v1631
        %v1633 = vpop.xlane.xlu0 %1632
        %v1634 = vsel %vm991, %v1524, 0.0
        %1635 = vadd.xlane.f32.xlu0 %v1634
        %v1636 = vpop.xlane.xlu0 %1635
        %v1637 = vsel %vm991, %v1525, 0.0
        %1638 = vadd.xlane.f32.xlu0 %v1637
        %v1639 = vpop.xlane.xlu0 %1638
        %v1640 = vsel %vm991, %v1526, 0.0
        %1641 = vadd.xlane.f32.xlu0 %v1640
        %v1642 = vpop.xlane.xlu0 %1641
        %v1643 = vsel %vm991, %v1527, 0.0
        %1644 = vadd.xlane.f32.xlu0 %v1643
        %v1645 = vpop.xlane.xlu0 %1644
        %v1646 = vsel %vm991, %v1528, 0.0
        %1647 = vadd.xlane.f32.xlu0 %v1646
        %v1648 = vpop.xlane.xlu0 %1647
        %v1649 = vsel %vm991, %v1529, 0.0
        %1650 = vadd.xlane.f32.xlu0 %v1649
        %v1651 = vpop.xlane.xlu0 %1650
        %v1652 = vsel %vm991, %v1530, 0.0
        %1653 = vadd.xlane.f32.xlu0 %v1652
        %v1654 = vpop.xlane.xlu0 %1653
        %v1655 = vsel %vm991, %v1531, 0.0
        %1656 = vadd.xlane.f32.xlu0 %v1655
        %v1657 = vpop.xlane.xlu0 %1656
        %v1658 = vsel %vm991, %v1532, 0.0
        %1659 = vadd.xlane.f32.xlu0 %v1658
        %v1660 = vpop.xlane.xlu0 %1659
        %v1661 = vsel %vm991, %v1533, 0.0
        %1662 = vadd.xlane.f32.xlu0 %v1661
        %v1663 = vpop.xlane.xlu0 %1662
        %v1664 = vsel %vm991, %v1534, 0.0
        %1665 = vadd.xlane.f32.xlu0 %v1664
        %v1666 = vpop.xlane.xlu0 %1665
        %v1667 = vsel %vm991, %v1535, 0.0
        %1668 = vadd.xlane.f32.xlu0 %v1667
        %v1669 = vpop.xlane.xlu0 %1668
        %v1670 = vsel %vm991, %v1536, 0.0
        %1671 = vadd.xlane.f32.xlu0 %v1670
        %v1672 = vpop.xlane.xlu0 %1671
        %v1673 = vsel %vm991, %v1537, 0.0
        %1674 = vadd.xlane.f32.xlu0 %v1673
        %v1675 = vpop.xlane.xlu0 %1674
        %v1676 = vsel %vm991, %v1538, 0.0
        %1677 = vadd.xlane.f32.xlu0 %v1676
        %v1678 = vpop.xlane.xlu0 %1677
        %v1679 = vsel %vm991, %v1539, 0.0
        %1680 = vadd.xlane.f32.xlu0 %v1679
        %v1681 = vpop.xlane.xlu0 %1680
        %v1682 = vsel %vm991, %v1540, 0.0
        %1683 = vadd.xlane.f32.xlu0 %v1682
        %v1684 = vpop.xlane.xlu0 %1683
        %v1685 = vsel %vm991, %v1541, 0.0
        %1686 = vadd.xlane.f32.xlu0 %v1685
        %v1687 = vpop.xlane.xlu0 %1686
        %v1688 = vsel %vm991, %v1542, 0.0
        %1689 = vadd.xlane.f32.xlu0 %v1688
        %v1690 = vpop.xlane.xlu0 %1689
        %v1691 = vsel %vm991, %v1543, 0.0
        %1692 = vadd.xlane.f32.xlu0 %v1691
        %v1693 = vpop.xlane.xlu0 %1692
        %v1694 = vsel %vm991, %v1544, 0.0
        %1695 = vadd.xlane.f32.xlu0 %v1694
        %v1696 = vpop.xlane.xlu0 %1695
        %v1697 = vsel %vm991, %v1545, 0.0
        %1698 = vadd.xlane.f32.xlu0 %v1697
        %v1699 = vpop.xlane.xlu0 %1698
        %v1700 = vsel %vm991, %v1546, 0.0
        %1701 = vadd.xlane.f32.xlu0 %v1700
        %v1702 = vpop.xlane.xlu0 %1701
        %v1703 = vsel %vm991, %v1547, 0.0
        %1704 = vadd.xlane.f32.xlu0 %v1703
        %v1705 = vpop.xlane.xlu0 %1704
        %v1706 = vsel %vm991, %v1548, 0.0
        %1707 = vadd.xlane.f32.xlu0 %v1706
        %v1708 = vpop.xlane.xlu0 %1707
        %v1709 = vsel %vm991, %v1549, 0.0
        %1710 = vadd.xlane.f32.xlu0 %v1709
        %v1711 = vpop.xlane.xlu0 %1710
        %v1712 = vsel %vm991, %v1550, 0.0
        %1713 = vadd.xlane.f32.xlu0 %v1712
        %v1714 = vpop.xlane.xlu0 %1713
        %v1715 = vsel %vm991, %v1551, 0.0
        %1716 = vadd.xlane.f32.xlu0 %v1715
        %v1717 = vpop.xlane.xlu0 %1716
        %v1718 = vsel %vm991, %v1552, 0.0
        %1719 = vadd.xlane.f32.xlu0 %v1718
        %v1720 = vpop.xlane.xlu0 %1719
        %v1721 = vsel %vm991, %v1553, 0.0
        %1722 = vadd.xlane.f32.xlu0 %v1721
        %v1723 = vpop.xlane.xlu0 %1722
        %v1724 = vsel %vm991, %v1554, 0.0
        %1725 = vadd.xlane.f32.xlu0 %v1724
        %v1726 = vpop.xlane.xlu0 %1725
        %v1727 = vsel %vm991, %v1555, 0.0
        %1728 = vadd.xlane.f32.xlu0 %v1727
        %v1729 = vpop.xlane.xlu0 %1728
        %v1730 = vsel %vm991, %v1556, 0.0
        %1731 = vadd.xlane.f32.xlu0 %v1730
        %v1732 = vpop.xlane.xlu0 %1731
        %v1733 = vsel %vm991, %v1557, 0.0
        %1734 = vadd.xlane.f32.xlu0 %v1733
        %v1735 = vpop.xlane.xlu0 %1734
        %v1736 = vsel %vm991, %v1558, 0.0
        %1737 = vadd.xlane.f32.xlu0 %v1736
        %v1738 = vpop.xlane.xlu0 %1737
        %v1739 = vsel %vm991, %v1559, 0.0
        %1740 = vadd.xlane.f32.xlu0 %v1739
        %v1741 = vpop.xlane.xlu0 %1740
        %v1742 = vsel %vm991, %v1560, 0.0
        %1743 = vadd.xlane.f32.xlu0 %v1742
        %v1744 = vpop.xlane.xlu0 %1743
        %v1745 = vsel %vm991, %v1561, 0.0
        %1746 = vadd.xlane.f32.xlu0 %v1745
        %v1747 = vpop.xlane.xlu0 %1746
        %v1748 = vsel %vm991, %v1562, 0.0
        %1749 = vadd.xlane.f32.xlu0 %v1748
        %v1750 = vpop.xlane.xlu0 %1749
        %v1751 = vsel %vm991, %v1563, 0.0
        %1752 = vadd.xlane.f32.xlu0 %v1751
        %v1753 = vpop.xlane.xlu0 %1752
        %v1754 = vsel %vm991, %v1564, 0.0
        %1755 = vadd.xlane.f32.xlu0 %v1754
        %v1756 = vpop.xlane.xlu0 %1755
        %v1821 = vlaneseq
        %v1822 = vand.u32 %v1821, 127
        %v1823 = vperm.slane %v1311, %v1822
        %v1824 = vperm.slane %v1314, %v1822
        %v1825 = vperm.slane %v1317, %v1822
        %v1826 = vperm.slane %v1320, %v1822
        %v1827 = vperm.slane %v1323, %v1822
        %v1828 = vperm.slane %v1326, %v1822
        %v1829 = vperm.slane %v1329, %v1822
        %v1830 = vperm.slane %v1332, %v1822
        %v1831 = vperm.slane %v1335, %v1822
        %v1832 = vperm.slane %v1338, %v1822
        %v1833 = vperm.slane %v1341, %v1822
        %v1834 = vperm.slane %v1344, %v1822
        %v1835 = vperm.slane %v1347, %v1822
        %v1836 = vperm.slane %v1350, %v1822
        %v1837 = vperm.slane %v1353, %v1822
        %v1838 = vperm.slane %v1356, %v1822
        %v1839 = vperm.slane %v1359, %v1822
        %v1840 = vperm.slane %v1362, %v1822
        %v1841 = vperm.slane %v1365, %v1822
        %v1842 = vperm.slane %v1368, %v1822
        %v1843 = vperm.slane %v1371, %v1822
        %v1844 = vperm.slane %v1374, %v1822
        %v1845 = vperm.slane %v1377, %v1822
        %v1846 = vperm.slane %v1380, %v1822
        %v1847 = vperm.slane %v1383, %v1822
        %v1848 = vperm.slane %v1386, %v1822
        %v1849 = vperm.slane %v1389, %v1822
        %v1850 = vperm.slane %v1392, %v1822
        %v1851 = vperm.slane %v1395, %v1822
        %v1852 = vperm.slane %v1398, %v1822
        %v1853 = vperm.slane %v1401, %v1822
        %v1854 = vperm.slane %v1404, %v1822
        %v1855 = vperm.slane %v1407, %v1822
        %v1856 = vperm.slane %v1410, %v1822
        %v1857 = vperm.slane %v1413, %v1822
        %v1858 = vperm.slane %v1416, %v1822
        %v1859 = vperm.slane %v1419, %v1822
        %v1860 = vperm.slane %v1422, %v1822
        %v1861 = vperm.slane %v1425, %v1822
        %v1862 = vperm.slane %v1428, %v1822
        %v1863 = vperm.slane %v1431, %v1822
        %v1864 = vperm.slane %v1434, %v1822
        %v1865 = vperm.slane %v1437, %v1822
        %v1866 = vperm.slane %v1440, %v1822
        %v1867 = vperm.slane %v1443, %v1822
        %v1868 = vperm.slane %v1446, %v1822
        %v1869 = vperm.slane %v1449, %v1822
        %v1870 = vperm.slane %v1452, %v1822
        %v1871 = vperm.slane %v1455, %v1822
        %v1872 = vperm.slane %v1458, %v1822
        %v1873 = vperm.slane %v1461, %v1822
        %v1874 = vperm.slane %v1464, %v1822
        %v1875 = vperm.slane %v1467, %v1822
        %v1876 = vperm.slane %v1470, %v1822
        %v1877 = vperm.slane %v1473, %v1822
        %v1878 = vperm.slane %v1476, %v1822
        %v1879 = vperm.slane %v1479, %v1822
        %v1880 = vperm.slane %v1482, %v1822
        %v1881 = vperm.slane %v1485, %v1822
        %v1882 = vperm.slane %v1488, %v1822
        %v1883 = vperm.slane %v1491, %v1822
        %v1884 = vperm.slane %v1494, %v1822
        %v1885 = vperm.slane %v1497, %v1822
        %v1886 = vperm.slane %v1500, %v1822
        %vm1887 = vcmask 1041409
        %v1888 = vsel %vm1887, %v1824, %v1823
        %vm1889 = vcmask 1042434
        %v1890 = vsel %vm1889, %v1825, %v1888
        %vm1891 = vcmask 1043459
        %v1892 = vsel %vm1891, %v1826, %v1890
        %vm1893 = vcmask 1044484
        %v1894 = vsel %vm1893, %v1827, %v1892
        %vm1895 = vcmask 1045509
        %v1896 = vsel %vm1895, %v1828, %v1894
        %vm1897 = vcmask 1046534
        %v1898 = vsel %vm1897, %v1829, %v1896
        %vm1899 = vcmask 1047559
        %v1900 = vsel %vm1899, %v1830, %v1898
        %v1901 = vsel %vm1887, %v1832, %v1831
        %v1902 = vsel %vm1889, %v1833, %v1901
        %v1903 = vsel %vm1891, %v1834, %v1902
        %v1904 = vsel %vm1893, %v1835, %v1903
        %v1905 = vsel %vm1895, %v1836, %v1904
        %v1906 = vsel %vm1897, %v1837, %v1905
        %v1907 = vsel %vm1899, %v1838, %v1906
        %v1908 = vsel %vm1887, %v1840, %v1839
        %v1909 = vsel %vm1889, %v1841, %v1908
        %v1910 = vsel %vm1891, %v1842, %v1909
        %v1911 = vsel %vm1893, %v1843, %v1910
        %v1912 = vsel %vm1895, %v1844, %v1911
        %v1913 = vsel %vm1897, %v1845, %v1912
        %v1914 = vsel %vm1899, %v1846, %v1913
        %v1915 = vsel %vm1887, %v1848, %v1847
        %v1916 = vsel %vm1889, %v1849, %v1915
        %v1917 = vsel %vm1891, %v1850, %v1916
        %v1918 = vsel %vm1893, %v1851, %v1917
        %v1919 = vsel %vm1895, %v1852, %v1918
        %v1920 = vsel %vm1897, %v1853, %v1919
        %v1921 = vsel %vm1899, %v1854, %v1920
        %v1922 = vsel %vm1887, %v1856, %v1855
        %v1923 = vsel %vm1889, %v1857, %v1922
        %v1924 = vsel %vm1891, %v1858, %v1923
        %v1925 = vsel %vm1893, %v1859, %v1924
        %v1926 = vsel %vm1895, %v1860, %v1925
        %v1927 = vsel %vm1897, %v1861, %v1926
        %v1928 = vsel %vm1899, %v1862, %v1927
        %v1929 = vsel %vm1887, %v1864, %v1863
        %v1930 = vsel %vm1889, %v1865, %v1929
        %v1931 = vsel %vm1891, %v1866, %v1930
        %v1932 = vsel %vm1893, %v1867, %v1931
        %v1933 = vsel %vm1895, %v1868, %v1932
        %v1934 = vsel %vm1897, %v1869, %v1933
        %v1935 = vsel %vm1899, %v1870, %v1934
        %v1936 = vsel %vm1887, %v1872, %v1871
        %v1937 = vsel %vm1889, %v1873, %v1936
        %v1938 = vsel %vm1891, %v1874, %v1937
        %v1939 = vsel %vm1893, %v1875, %v1938
        %v1940 = vsel %vm1895, %v1876, %v1939
        %v1941 = vsel %vm1897, %v1877, %v1940
        %v1942 = vsel %vm1899, %v1878, %v1941
        %v1943 = vsel %vm1887, %v1880, %v1879
        %v1944 = vsel %vm1889, %v1881, %v1943
        %v1945 = vsel %vm1891, %v1882, %v1944
        %v1946 = vsel %vm1893, %v1883, %v1945
        %v1947 = vsel %vm1895, %v1884, %v1946
        %v1948 = vsel %vm1897, %v1885, %v1947
        %v1949 = vsel %vm1899, %v1886, %v1948
        %v1950 = vsel %vm991, %v1900, 0
        %v1952 = vsel %vm991, %v1907, 0
        %v1954 = vsel %vm991, %v1914, 0
        %v1956 = vsel %vm991, %v1921, 0
        %v1958 = vsel %vm991, %v1928, 0
        %v1960 = vsel %vm991, %v1935, 0
        %v1962 = vsel %vm991, %v1942, 0
        %v1964 = vsel %vm991, %v1949, 0
        %1966 = vmatpush.msra.mxu0 0.0
        %1967 = vmatpush.msra.mxu0 0.0
        %1968 = vmatpush.msra.mxu0 0.0
        %1969 = vmatpush.msra.mxu0 0.0
        %1970 = vmatpush.msra.mxu0 0.0
        %1971 = vmatpush.msra.mxu0 0.0
        %1972 = vmatpush.msra.mxu0 0.0
        %1973 = vmatpush.msra.mxu0 0.0
        %1974 = vmatpush.msra.mxu0 0.0
        %1975 = vmatpush.msra.mxu0 0.0
        %1976 = vmatpush.msra.mxu0 0.0
        %1977 = vmatpush.msra.mxu0 0.0
        %1978 = vmatpush.msra.mxu0 0.0
        %1979 = vmatpush.msra.mxu0 0.0
        %1980 = vmatpush.msra.mxu0 0.0
        %1981 = vmatpush.msra.mxu0 %v973
        %1982 = vmatmul.f32.gmra.mxu0 %v1950
        %v1983 = vpop.f32.mrf.mxu0
        %v1984 = vadd.f32 0.0, %v1983
        %1985 = vmatmul.f32.gmra.mxu0 %v1952
        %v1986 = vpop.f32.mrf.mxu0
        %v1987 = vadd.f32 0.0, %v1986
        %1988 = vmatmul.f32.gmra.mxu0 %v1954
        %v1989 = vpop.f32.mrf.mxu0
        %v1990 = vadd.f32 0.0, %v1989
        %1991 = vmatmul.f32.gmra.mxu0 %v1956
        %v1992 = vpop.f32.mrf.mxu0
        %v1993 = vadd.f32 0.0, %v1992
        %1994 = vmatmul.f32.gmra.mxu0 %v1958
        %v1995 = vpop.f32.mrf.mxu0
        %v1996 = vadd.f32 0.0, %v1995
        %1997 = vmatmul.f32.gmra.mxu0 %v1960
        %v1998 = vpop.f32.mrf.mxu0
        %v1999 = vadd.f32 0.0, %v1998
        %2000 = vmatmul.f32.gmra.mxu0 %v1962
        %v2001 = vpop.f32.mrf.mxu0
        %v2002 = vadd.f32 0.0, %v2001
        %2003 = vmatmul.f32.gmra.mxu0 %v1964
        %v2004 = vpop.f32.mrf.mxu0
        %v2005 = vadd.f32 0.0, %v2004
        %2006 = vdwg.mxu0
        %v2007 = vadd.f32 %v1045, %v1984
        %v2008 = vadd.f32 %v1046, %v1987
        %v2009 = vadd.f32 %v1047, %v1990
        %v2010 = vadd.f32 %v1048, %v1993
        %v2011 = vadd.f32 %v1049, %v1996
        %v2012 = vadd.f32 %v1050, %v1999
        %v2013 = vadd.f32 %v1051, %v2002
        %v2014 = vadd.f32 %v1052, %v2005
        %v2079 = vperm.slane %v1567, %v1822
        %v2080 = vperm.slane %v1570, %v1822
        %v2081 = vperm.slane %v1573, %v1822
        %v2082 = vperm.slane %v1576, %v1822
        %v2083 = vperm.slane %v1579, %v1822
        %v2084 = vperm.slane %v1582, %v1822
        %v2085 = vperm.slane %v1585, %v1822
        %v2086 = vperm.slane %v1588, %v1822
        %v2087 = vperm.slane %v1591, %v1822
        %v2088 = vperm.slane %v1594, %v1822
        %v2089 = vperm.slane %v1597, %v1822
        %v2090 = vperm.slane %v1600, %v1822
        %v2091 = vperm.slane %v1603, %v1822
        %v2092 = vperm.slane %v1606, %v1822
        %v2093 = vperm.slane %v1609, %v1822
        %v2094 = vperm.slane %v1612, %v1822
        %v2095 = vperm.slane %v1615, %v1822
        %v2096 = vperm.slane %v1618, %v1822
        %v2097 = vperm.slane %v1621, %v1822
        %v2098 = vperm.slane %v1624, %v1822
        %v2099 = vperm.slane %v1627, %v1822
        %v2100 = vperm.slane %v1630, %v1822
        %v2101 = vperm.slane %v1633, %v1822
        %v2102 = vperm.slane %v1636, %v1822
        %v2103 = vperm.slane %v1639, %v1822
        %v2104 = vperm.slane %v1642, %v1822
        %v2105 = vperm.slane %v1645, %v1822
        %v2106 = vperm.slane %v1648, %v1822
        %v2107 = vperm.slane %v1651, %v1822
        %v2108 = vperm.slane %v1654, %v1822
        %v2109 = vperm.slane %v1657, %v1822
        %v2110 = vperm.slane %v1660, %v1822
        %v2111 = vperm.slane %v1663, %v1822
        %v2112 = vperm.slane %v1666, %v1822
        %v2113 = vperm.slane %v1669, %v1822
        %v2114 = vperm.slane %v1672, %v1822
        %v2115 = vperm.slane %v1675, %v1822
        %v2116 = vperm.slane %v1678, %v1822
        %v2117 = vperm.slane %v1681, %v1822
        %v2118 = vperm.slane %v1684, %v1822
        %v2119 = vperm.slane %v1687, %v1822
        %v2120 = vperm.slane %v1690, %v1822
        %v2121 = vperm.slane %v1693, %v1822
        %v2122 = vperm.slane %v1696, %v1822
        %v2123 = vperm.slane %v1699, %v1822
        %v2124 = vperm.slane %v1702, %v1822
        %v2125 = vperm.slane %v1705, %v1822
        %v2126 = vperm.slane %v1708, %v1822
        %v2127 = vperm.slane %v1711, %v1822
        %v2128 = vperm.slane %v1714, %v1822
        %v2129 = vperm.slane %v1717, %v1822
        %v2130 = vperm.slane %v1720, %v1822
        %v2131 = vperm.slane %v1723, %v1822
        %v2132 = vperm.slane %v1726, %v1822
        %v2133 = vperm.slane %v1729, %v1822
        %v2134 = vperm.slane %v1732, %v1822
        %v2135 = vperm.slane %v1735, %v1822
        %v2136 = vperm.slane %v1738, %v1822
        %v2137 = vperm.slane %v1741, %v1822
        %v2138 = vperm.slane %v1744, %v1822
        %v2139 = vperm.slane %v1747, %v1822
        %v2140 = vperm.slane %v1750, %v1822
        %v2141 = vperm.slane %v1753, %v1822
        %v2142 = vperm.slane %v1756, %v1822
        %v2143 = vsel %vm1887, %v2080, %v2079
        %v2144 = vsel %vm1889, %v2081, %v2143
        %v2145 = vsel %vm1891, %v2082, %v2144
        %v2146 = vsel %vm1893, %v2083, %v2145
        %v2147 = vsel %vm1895, %v2084, %v2146
        %v2148 = vsel %vm1897, %v2085, %v2147
        %v2149 = vsel %vm1899, %v2086, %v2148
        %v2150 = vsel %vm1887, %v2088, %v2087
        %v2151 = vsel %vm1889, %v2089, %v2150
        %v2152 = vsel %vm1891, %v2090, %v2151
        %v2153 = vsel %vm1893, %v2091, %v2152
        %v2154 = vsel %vm1895, %v2092, %v2153
        %v2155 = vsel %vm1897, %v2093, %v2154
        %v2156 = vsel %vm1899, %v2094, %v2155
        %v2157 = vsel %vm1887, %v2096, %v2095
        %v2158 = vsel %vm1889, %v2097, %v2157
        %v2159 = vsel %vm1891, %v2098, %v2158
        %v2160 = vsel %vm1893, %v2099, %v2159
        %v2161 = vsel %vm1895, %v2100, %v2160
        %v2162 = vsel %vm1897, %v2101, %v2161
        %v2163 = vsel %vm1899, %v2102, %v2162
        %v2164 = vsel %vm1887, %v2104, %v2103
        %v2165 = vsel %vm1889, %v2105, %v2164
        %v2166 = vsel %vm1891, %v2106, %v2165
        %v2167 = vsel %vm1893, %v2107, %v2166
        %v2168 = vsel %vm1895, %v2108, %v2167
        %v2169 = vsel %vm1897, %v2109, %v2168
        %v2170 = vsel %vm1899, %v2110, %v2169
        %v2171 = vsel %vm1887, %v2112, %v2111
        %v2172 = vsel %vm1889, %v2113, %v2171
        %v2173 = vsel %vm1891, %v2114, %v2172
        %v2174 = vsel %vm1893, %v2115, %v2173
        %v2175 = vsel %vm1895, %v2116, %v2174
        %v2176 = vsel %vm1897, %v2117, %v2175
        %v2177 = vsel %vm1899, %v2118, %v2176
        %v2178 = vsel %vm1887, %v2120, %v2119
        %v2179 = vsel %vm1889, %v2121, %v2178
        %v2180 = vsel %vm1891, %v2122, %v2179
        %v2181 = vsel %vm1893, %v2123, %v2180
        %v2182 = vsel %vm1895, %v2124, %v2181
        %v2183 = vsel %vm1897, %v2125, %v2182
        %v2184 = vsel %vm1899, %v2126, %v2183
        %v2185 = vsel %vm1887, %v2128, %v2127
        %v2186 = vsel %vm1889, %v2129, %v2185
        %v2187 = vsel %vm1891, %v2130, %v2186
        %v2188 = vsel %vm1893, %v2131, %v2187
        %v2189 = vsel %vm1895, %v2132, %v2188
        %v2190 = vsel %vm1897, %v2133, %v2189
        %v2191 = vsel %vm1899, %v2134, %v2190
        %v2192 = vsel %vm1887, %v2136, %v2135
        %v2193 = vsel %vm1889, %v2137, %v2192
        %v2194 = vsel %vm1891, %v2138, %v2193
        %v2195 = vsel %vm1893, %v2139, %v2194
        %v2196 = vsel %vm1895, %v2140, %v2195
        %v2197 = vsel %vm1897, %v2141, %v2196
        %v2198 = vsel %vm1899, %v2142, %v2197
        %v2199 = vsel %vm991, %v2149, 0
        %v2201 = vsel %vm991, %v2156, 0
        %v2203 = vsel %vm991, %v2163, 0
        %v2205 = vsel %vm991, %v2170, 0
        %v2207 = vsel %vm991, %v2177, 0
        %v2209 = vsel %vm991, %v2184, 0
        %v2211 = vsel %vm991, %v2191, 0
        %v2213 = vsel %vm991, %v2198, 0
        %2215 = vmatpush.msra.mxu0 0.0
        %2216 = vmatpush.msra.mxu0 0.0
        %2217 = vmatpush.msra.mxu0 0.0
        %2218 = vmatpush.msra.mxu0 0.0
        %2219 = vmatpush.msra.mxu0 0.0
        %2220 = vmatpush.msra.mxu0 0.0
        %2221 = vmatpush.msra.mxu0 0.0
        %2222 = vmatpush.msra.mxu0 0.0
        %2223 = vmatpush.msra.mxu0 0.0
        %2224 = vmatpush.msra.mxu0 0.0
        %2225 = vmatpush.msra.mxu0 0.0
        %2226 = vmatpush.msra.mxu0 0.0
        %2227 = vmatpush.msra.mxu0 0.0
        %2228 = vmatpush.msra.mxu0 0.0
        %2229 = vmatpush.msra.mxu0 0.0
        %2230 = vmatpush.msra.mxu0 %v974
        %2231 = vmatmul.f32.gmra.mxu0 %v2199
        %v2232 = vpop.f32.mrf.mxu0
        %v2233 = vadd.f32 0.0, %v2232
        %2234 = vmatmul.f32.gmra.mxu0 %v2201
        %v2235 = vpop.f32.mrf.mxu0
        %v2236 = vadd.f32 0.0, %v2235
        %2237 = vmatmul.f32.gmra.mxu0 %v2203
        %v2238 = vpop.f32.mrf.mxu0
        %v2239 = vadd.f32 0.0, %v2238
        %2240 = vmatmul.f32.gmra.mxu0 %v2205
        %v2241 = vpop.f32.mrf.mxu0
        %v2242 = vadd.f32 0.0, %v2241
        %2243 = vmatmul.f32.gmra.mxu0 %v2207
        %v2244 = vpop.f32.mrf.mxu0
        %v2245 = vadd.f32 0.0, %v2244
        %2246 = vmatmul.f32.gmra.mxu0 %v2209
        %v2247 = vpop.f32.mrf.mxu0
        %v2248 = vadd.f32 0.0, %v2247
        %2249 = vmatmul.f32.gmra.mxu0 %v2211
        %v2250 = vpop.f32.mrf.mxu0
        %v2251 = vadd.f32 0.0, %v2250
        %2252 = vmatmul.f32.gmra.mxu0 %v2213
        %v2253 = vpop.f32.mrf.mxu0
        %v2254 = vadd.f32 0.0, %v2253
        %2255 = vdwg.mxu0
        %v2256 = vadd.f32 %v2007, %v2233
        %v2257 = vadd.f32 %v2008, %v2236
        %v2258 = vadd.f32 %v2009, %v2239
        %v2259 = vadd.f32 %v2010, %v2242
        %v2260 = vadd.f32 %v2011, %v2245
        %v2261 = vadd.f32 %v2012, %v2248
        %v2262 = vadd.f32 %v2013, %v2251
        %v2263 = vadd.f32 %v2014, %v2254
        %vm2264 = vcmask 523264
        %v2265 = vsel %vm2264, %v2256, -inf
        %2266 = vmax.xlane.f32.xlu0 %v2265
        %v2267 = vpop.xlane.xlu0 %2266
        %v2268 = vsel %vm2264, %v2257, -inf
        %2269 = vmax.xlane.f32.xlu0 %v2268
        %v2270 = vpop.xlane.xlu0 %2269
        %v2271 = vsel %vm2264, %v2258, -inf
        %2272 = vmax.xlane.f32.xlu0 %v2271
        %v2273 = vpop.xlane.xlu0 %2272
        %v2274 = vsel %vm2264, %v2259, -inf
        %2275 = vmax.xlane.f32.xlu0 %v2274
        %v2276 = vpop.xlane.xlu0 %2275
        %v2277 = vsel %vm2264, %v2260, -inf
        %2278 = vmax.xlane.f32.xlu0 %v2277
        %v2279 = vpop.xlane.xlu0 %2278
        %v2280 = vsel %vm2264, %v2261, -inf
        %2281 = vmax.xlane.f32.xlu0 %v2280
        %v2282 = vpop.xlane.xlu0 %2281
        %v2283 = vsel %vm2264, %v2262, -inf
        %2284 = vmax.xlane.f32.xlu0 %v2283
        %v2285 = vpop.xlane.xlu0 %2284
        %v2286 = vsel %vm2264, %v2263, -inf
        %2287 = vmax.xlane.f32.xlu0 %v2286
        %v2288 = vpop.xlane.xlu0 %2287
        %v2289 = vsub.f32 %v2256, %v2267
        %v2290 = vsub.f32 %v2257, %v2270
        %v2291 = vsub.f32 %v2258, %v2273
        %v2292 = vsub.f32 %v2259, %v2276
        %v2293 = vsub.f32 %v2260, %v2279
        %v2294 = vsub.f32 %v2261, %v2282
        %v2295 = vsub.f32 %v2262, %v2285
        %v2296 = vsub.f32 %v2263, %v2288
        %v2297 = vmul.f32 %v2289, 1.442695
        %v2298 = vpow.pop %v2297
        %v2299 = vmul.f32 %v2290, 1.442695
        %v2300 = vpow.pop %v2299
        %v2301 = vmul.f32 %v2291, 1.442695
        %v2302 = vpow.pop %v2301
        %v2303 = vmul.f32 %v2292, 1.442695
        %v2304 = vpow.pop %v2303
        %v2305 = vmul.f32 %v2293, 1.442695
        %v2306 = vpow.pop %v2305
        %v2307 = vmul.f32 %v2294, 1.442695
        %v2308 = vpow.pop %v2307
        %v2309 = vmul.f32 %v2295, 1.442695
        %v2310 = vpow.pop %v2309
        %v2311 = vmul.f32 %v2296, 1.442695
        %v2312 = vpow.pop %v2311
        %v2313 = vsel %vm2264, %v2298, 0.0
        %2314 = vadd.xlane.f32.xlu0 %v2313
        %v2315 = vpop.xlane.xlu0 %2314
        %v2316 = vsel %vm2264, %v2300, 0.0
        %2317 = vadd.xlane.f32.xlu0 %v2316
        %v2318 = vpop.xlane.xlu0 %2317
        %v2319 = vsel %vm2264, %v2302, 0.0
        %2320 = vadd.xlane.f32.xlu0 %v2319
        %v2321 = vpop.xlane.xlu0 %2320
        %v2322 = vsel %vm2264, %v2304, 0.0
        %2323 = vadd.xlane.f32.xlu0 %v2322
        %v2324 = vpop.xlane.xlu0 %2323
        %v2325 = vsel %vm2264, %v2306, 0.0
        %2326 = vadd.xlane.f32.xlu0 %v2325
        %v2327 = vpop.xlane.xlu0 %2326
        %v2328 = vsel %vm2264, %v2308, 0.0
        %2329 = vadd.xlane.f32.xlu0 %v2328
        %v2330 = vpop.xlane.xlu0 %2329
        %v2331 = vsel %vm2264, %v2310, 0.0
        %2332 = vadd.xlane.f32.xlu0 %v2331
        %v2333 = vpop.xlane.xlu0 %2332
        %v2334 = vsel %vm2264, %v2312, 0.0
        %2335 = vadd.xlane.f32.xlu0 %v2334
        %v2336 = vpop.xlane.xlu0 %2335
        %v2337 = vrcp.pop %v2315
        %v2338 = vrcp.pop %v2318
        %v2339 = vrcp.pop %v2321
        %v2340 = vrcp.pop %v2324
        %v2341 = vrcp.pop %v2327
        %v2342 = vrcp.pop %v2330
        %v2343 = vrcp.pop %v2333
        %v2344 = vrcp.pop %v2336
        %v2345 = vmul.f32 %v2298, %v2337
        %v2346 = vmul.f32 %v2300, %v2338
        %v2347 = vmul.f32 %v2302, %v2339
        %v2348 = vmul.f32 %v2304, %v2340
        %v2349 = vmul.f32 %v2306, %v2341
        %v2350 = vmul.f32 %v2308, %v2342
        %v2351 = vmul.f32 %v2310, %v2343
        %v2352 = vmul.f32 %v2312, %v2344
        %v2353 = vpack.c.bf16 %v2346, %v2345
        %v2354 = vpack.c.bf16 %v2348, %v2347
        %v2355 = vpack.c.bf16 %v2350, %v2349
        %v2356 = vpack.c.bf16 %v2352, %v2351
        %2357 = vrot.lane.b32.xlu0 %v975, 64
        %v2358 = vpop.permute.xlu0 %2357
        %2359 = vrot.lane.b32.xlu0 %v976, 64
        %v2360 = vpop.permute.xlu0 %2359
        %2361 = vrot.lane.b32.xlu0 %v977, 64
        %v2362 = vpop.permute.xlu0 %2361
        %2363 = vrot.lane.b32.xlu0 %v978, 64
        %v2364 = vpop.permute.xlu0 %2363
        %v2370 = vsel %vm2264, %v2353, 0
        %v2373 = vsel %vm2264, %v2354, 0
        %v2376 = vsel %vm2264, %v2355, 0
        %v2379 = vsel %vm2264, %v2356, 0
        %2381 = vmatpush.bf16.msra.mxu0 0
        %2382 = vmatpush.bf16.msra.mxu0 0
        %2383 = vmatpush.bf16.msra.mxu0 0
        %2384 = vmatpush.bf16.msra.mxu0 0
        %2385 = vmatpush.bf16.msra.mxu0 %v2364
        %2386 = vmatpush.bf16.msra.mxu0 %v2362
        %2387 = vmatpush.bf16.msra.mxu0 %v2360
        %2388 = vmatpush.bf16.msra.mxu0 %v2358
        %2389 = vmatmul.bf16.gmra.mxu0 %v2370
        %v2390 = vpop.f32.mrf.mxu0
        %v2391 = vadd.f32 0.0, %v2390
        %v2392 = vpop.f32.mrf.mxu0
        %v2393 = vadd.f32 0.0, %v2392
        %2394 = vmatmul.bf16.gmra.mxu0 %v2373
        %v2395 = vpop.f32.mrf.mxu0
        %v2396 = vadd.f32 0.0, %v2395
        %v2397 = vpop.f32.mrf.mxu0
        %v2398 = vadd.f32 0.0, %v2397
        %2399 = vmatmul.bf16.gmra.mxu0 %v2376
        %v2400 = vpop.f32.mrf.mxu0
        %v2401 = vadd.f32 0.0, %v2400
        %v2402 = vpop.f32.mrf.mxu0
        %v2403 = vadd.f32 0.0, %v2402
        %2404 = vmatmul.bf16.gmra.mxu0 %v2379
        %v2405 = vpop.f32.mrf.mxu0
        %v2406 = vadd.f32 0.0, %v2405
        %v2407 = vpop.f32.mrf.mxu0
        %v2408 = vadd.f32 0.0, %v2407
        %2409 = vdwg.mxu0
        %2410 = vrot.lane.b32.xlu0 %v975, 120
        %v2411 = vpop.permute.xlu0 %2410
        %2412 = vrot.lane.b32.xlu0 %v976, 120
        %v2413 = vpop.permute.xlu0 %2412
        %2414 = vrot.lane.b32.xlu0 %v977, 120
        %v2415 = vpop.permute.xlu0 %2414
        %2416 = vrot.lane.b32.xlu0 %v978, 120
        %v2417 = vpop.permute.xlu0 %2416
        %2418 = vrot.lane.b32.xlu0 %v975, 88
        %v2419 = vpop.permute.xlu0 %2418
        %2420 = vrot.lane.b32.xlu0 %v976, 88
        %v2421 = vpop.permute.xlu0 %2420
        %2422 = vrot.lane.b32.xlu0 %v977, 88
        %v2423 = vpop.permute.xlu0 %2422
        %2424 = vrot.lane.b32.xlu0 %v978, 88
        %v2425 = vpop.permute.xlu0 %2424
        %v2427 = vsel %vm991, %v2411, 0
        %v2430 = vsel %vm991, %v2413, 0
        %v2433 = vsel %vm991, %v2415, 0
        %v2436 = vsel %vm991, %v2417, 0
        %v2439 = vsel %vm991, %v2419, 0
        %v2442 = vsel %vm991, %v2421, 0
        %v2445 = vsel %vm991, %v2423, 0
        %v2448 = vsel %vm991, %v2425, 0
        %2450 = vmatpush.bf16.xpose.msra.mxu0 0
        %2451 = vmatpush.bf16.xpose.msra.mxu0 0
        %2452 = vmatpush.bf16.xpose.msra.mxu0 0
        %2453 = vmatpush.bf16.xpose.msra.mxu0 0
        %2454 = vmatpush.bf16.xpose.msra.mxu0 %v2448
        %2455 = vmatpush.bf16.xpose.msra.mxu0 %v2445
        %2456 = vmatpush.bf16.xpose.msra.mxu0 %v2442
        %2457 = vmatpush.bf16.xpose.msra.mxu0 %v2439
        %2458 = vmatmul.bf16.gmra.mxu0 %v2427
        %v2459 = vpop.f32.mrf.mxu0
        %v2460 = vadd.f32 0.0, %v2459
        %v2461 = vpop.f32.mrf.mxu0
        %v2462 = vadd.f32 0.0, %v2461
        %2463 = vmatmul.bf16.gmra.mxu0 %v2430
        %v2464 = vpop.f32.mrf.mxu0
        %v2465 = vadd.f32 0.0, %v2464
        %v2466 = vpop.f32.mrf.mxu0
        %v2467 = vadd.f32 0.0, %v2466
        %2468 = vmatmul.bf16.gmra.mxu0 %v2433
        %v2469 = vpop.f32.mrf.mxu0
        %v2470 = vadd.f32 0.0, %v2469
        %v2471 = vpop.f32.mrf.mxu0
        %v2472 = vadd.f32 0.0, %v2471
        %2473 = vmatmul.bf16.gmra.mxu0 %v2436
        %v2474 = vpop.f32.mrf.mxu0
        %v2475 = vadd.f32 0.0, %v2474
        %v2476 = vpop.f32.mrf.mxu0
        %v2477 = vadd.f32 0.0, %v2476
        %2478 = vdwg.mxu0
        %v2479 = vmul.f32 %v2460, 0.35355338
        %v2480 = vmul.f32 %v2462, 0.35355338
        %v2481 = vmul.f32 %v2465, 0.35355338
        %v2482 = vmul.f32 %v2467, 0.35355338
        %v2483 = vmul.f32 %v2470, 0.35355338
        %v2484 = vmul.f32 %v2472, 0.35355338
        %v2485 = vmul.f32 %v2475, 0.35355338
        %v2486 = vmul.f32 %v2477, 0.35355338
        %2495 = vrot.lane.b32.xlu0 %v957, 8
        %v2496 = vpop.permute.xlu0 %2495
        %2497 = vrot.lane.b32.xlu0 %v958, 8
        %v2498 = vpop.permute.xlu0 %2497
        %2499 = vrot.lane.b32.xlu0 %v959, 8
        %v2500 = vpop.permute.xlu0 %2499
        %2501 = vrot.lane.b32.xlu0 %v960, 8
        %v2502 = vpop.permute.xlu0 %2501
        %2503 = vrot.lane.b32.xlu0 %v961, 8
        %v2504 = vpop.permute.xlu0 %2503
        %2505 = vrot.lane.b32.xlu0 %v962, 8
        %v2506 = vpop.permute.xlu0 %2505
        %2507 = vrot.lane.b32.xlu0 %v963, 8
        %v2508 = vpop.permute.xlu0 %2507
        %2509 = vrot.lane.b32.xlu0 %v964, 8
        %v2510 = vpop.permute.xlu0 %2509
        %v2519 = vmul.f32 %v1117, %v2496
        %v2520 = vmul.f32 %v1118, %v2496
        %v2521 = vmul.f32 %v1119, %v2496
        %v2522 = vmul.f32 %v1120, %v2496
        %v2523 = vmul.f32 %v1121, %v2496
        %v2524 = vmul.f32 %v1122, %v2496
        %v2525 = vmul.f32 %v1123, %v2496
        %v2526 = vmul.f32 %v1124, %v2496
        %v2527 = vmul.f32 %v1125, %v2498
        %v2528 = vmul.f32 %v1126, %v2498
        %v2529 = vmul.f32 %v1127, %v2498
        %v2530 = vmul.f32 %v1128, %v2498
        %v2531 = vmul.f32 %v1129, %v2498
        %v2532 = vmul.f32 %v1130, %v2498
        %v2533 = vmul.f32 %v1131, %v2498
        %v2534 = vmul.f32 %v1132, %v2498
        %v2535 = vmul.f32 %v1133, %v2500
        %v2536 = vmul.f32 %v1134, %v2500
        %v2537 = vmul.f32 %v1135, %v2500
        %v2538 = vmul.f32 %v1136, %v2500
        %v2539 = vmul.f32 %v1137, %v2500
        %v2540 = vmul.f32 %v1138, %v2500
        %v2541 = vmul.f32 %v1139, %v2500
        %v2542 = vmul.f32 %v1140, %v2500
        %v2543 = vmul.f32 %v1141, %v2502
        %v2544 = vmul.f32 %v1142, %v2502
        %v2545 = vmul.f32 %v1143, %v2502
        %v2546 = vmul.f32 %v1144, %v2502
        %v2547 = vmul.f32 %v1145, %v2502
        %v2548 = vmul.f32 %v1146, %v2502
        %v2549 = vmul.f32 %v1147, %v2502
        %v2550 = vmul.f32 %v1148, %v2502
        %v2551 = vmul.f32 %v1149, %v2504
        %v2552 = vmul.f32 %v1150, %v2504
        %v2553 = vmul.f32 %v1151, %v2504
        %v2554 = vmul.f32 %v1152, %v2504
        %v2555 = vmul.f32 %v1153, %v2504
        %v2556 = vmul.f32 %v1154, %v2504
        %v2557 = vmul.f32 %v1155, %v2504
        %v2558 = vmul.f32 %v1156, %v2504
        %v2559 = vmul.f32 %v1157, %v2506
        %v2560 = vmul.f32 %v1158, %v2506
        %v2561 = vmul.f32 %v1159, %v2506
        %v2562 = vmul.f32 %v1160, %v2506
        %v2563 = vmul.f32 %v1161, %v2506
        %v2564 = vmul.f32 %v1162, %v2506
        %v2565 = vmul.f32 %v1163, %v2506
        %v2566 = vmul.f32 %v1164, %v2506
        %v2567 = vmul.f32 %v1165, %v2508
        %v2568 = vmul.f32 %v1166, %v2508
        %v2569 = vmul.f32 %v1167, %v2508
        %v2570 = vmul.f32 %v1168, %v2508
        %v2571 = vmul.f32 %v1169, %v2508
        %v2572 = vmul.f32 %v1170, %v2508
        %v2573 = vmul.f32 %v1171, %v2508
        %v2574 = vmul.f32 %v1172, %v2508
        %v2575 = vmul.f32 %v1173, %v2510
        %v2576 = vmul.f32 %v1174, %v2510
        %v2577 = vmul.f32 %v1175, %v2510
        %v2578 = vmul.f32 %v1176, %v2510
        %v2579 = vmul.f32 %v1177, %v2510
        %v2580 = vmul.f32 %v1178, %v2510
        %v2581 = vmul.f32 %v1179, %v2510
        %v2582 = vmul.f32 %v1180, %v2510
        %2647 = vrot.lane.b32.xlu0 %v2519, 120
        %v2648 = vpop.permute.xlu0 %2647
        %2649 = vrot.lane.b32.xlu0 %v2520, 120
        %v2650 = vpop.permute.xlu0 %2649
        %2651 = vrot.lane.b32.xlu0 %v2521, 120
        %v2652 = vpop.permute.xlu0 %2651
        %2653 = vrot.lane.b32.xlu0 %v2522, 120
        %v2654 = vpop.permute.xlu0 %2653
        %2655 = vrot.lane.b32.xlu0 %v2523, 120
        %v2656 = vpop.permute.xlu0 %2655
        %2657 = vrot.lane.b32.xlu0 %v2524, 120
        %v2658 = vpop.permute.xlu0 %2657
        %2659 = vrot.lane.b32.xlu0 %v2525, 120
        %v2660 = vpop.permute.xlu0 %2659
        %2661 = vrot.lane.b32.xlu0 %v2526, 120
        %v2662 = vpop.permute.xlu0 %2661
        %2663 = vrot.lane.b32.xlu0 %v2527, 120
        %v2664 = vpop.permute.xlu0 %2663
        %2665 = vrot.lane.b32.xlu0 %v2528, 120
        %v2666 = vpop.permute.xlu0 %2665
        %2667 = vrot.lane.b32.xlu0 %v2529, 120
        %v2668 = vpop.permute.xlu0 %2667
        %2669 = vrot.lane.b32.xlu0 %v2530, 120
        %v2670 = vpop.permute.xlu0 %2669
        %2671 = vrot.lane.b32.xlu0 %v2531, 120
        %v2672 = vpop.permute.xlu0 %2671
        %2673 = vrot.lane.b32.xlu0 %v2532, 120
        %v2674 = vpop.permute.xlu0 %2673
        %2675 = vrot.lane.b32.xlu0 %v2533, 120
        %v2676 = vpop.permute.xlu0 %2675
        %2677 = vrot.lane.b32.xlu0 %v2534, 120
        %v2678 = vpop.permute.xlu0 %2677
        %2679 = vrot.lane.b32.xlu0 %v2535, 120
        %v2680 = vpop.permute.xlu0 %2679
        %2681 = vrot.lane.b32.xlu0 %v2536, 120
        %v2682 = vpop.permute.xlu0 %2681
        %2683 = vrot.lane.b32.xlu0 %v2537, 120
        %v2684 = vpop.permute.xlu0 %2683
        %2685 = vrot.lane.b32.xlu0 %v2538, 120
        %v2686 = vpop.permute.xlu0 %2685
        %2687 = vrot.lane.b32.xlu0 %v2539, 120
        %v2688 = vpop.permute.xlu0 %2687
        %2689 = vrot.lane.b32.xlu0 %v2540, 120
        %v2690 = vpop.permute.xlu0 %2689
        %2691 = vrot.lane.b32.xlu0 %v2541, 120
        %v2692 = vpop.permute.xlu0 %2691
        %2693 = vrot.lane.b32.xlu0 %v2542, 120
        %v2694 = vpop.permute.xlu0 %2693
        %2695 = vrot.lane.b32.xlu0 %v2543, 120
        %v2696 = vpop.permute.xlu0 %2695
        %2697 = vrot.lane.b32.xlu0 %v2544, 120
        %v2698 = vpop.permute.xlu0 %2697
        %2699 = vrot.lane.b32.xlu0 %v2545, 120
        %v2700 = vpop.permute.xlu0 %2699
        %2701 = vrot.lane.b32.xlu0 %v2546, 120
        %v2702 = vpop.permute.xlu0 %2701
        %2703 = vrot.lane.b32.xlu0 %v2547, 120
        %v2704 = vpop.permute.xlu0 %2703
        %2705 = vrot.lane.b32.xlu0 %v2548, 120
        %v2706 = vpop.permute.xlu0 %2705
        %2707 = vrot.lane.b32.xlu0 %v2549, 120
        %v2708 = vpop.permute.xlu0 %2707
        %2709 = vrot.lane.b32.xlu0 %v2550, 120
        %v2710 = vpop.permute.xlu0 %2709
        %2711 = vrot.lane.b32.xlu0 %v2551, 120
        %v2712 = vpop.permute.xlu0 %2711
        %2713 = vrot.lane.b32.xlu0 %v2552, 120
        %v2714 = vpop.permute.xlu0 %2713
        %2715 = vrot.lane.b32.xlu0 %v2553, 120
        %v2716 = vpop.permute.xlu0 %2715
        %2717 = vrot.lane.b32.xlu0 %v2554, 120
        %v2718 = vpop.permute.xlu0 %2717
        %2719 = vrot.lane.b32.xlu0 %v2555, 120
        %v2720 = vpop.permute.xlu0 %2719
        %2721 = vrot.lane.b32.xlu0 %v2556, 120
        %v2722 = vpop.permute.xlu0 %2721
        %2723 = vrot.lane.b32.xlu0 %v2557, 120
        %v2724 = vpop.permute.xlu0 %2723
        %2725 = vrot.lane.b32.xlu0 %v2558, 120
        %v2726 = vpop.permute.xlu0 %2725
        %2727 = vrot.lane.b32.xlu0 %v2559, 120
        %v2728 = vpop.permute.xlu0 %2727
        %2729 = vrot.lane.b32.xlu0 %v2560, 120
        %v2730 = vpop.permute.xlu0 %2729
        %2731 = vrot.lane.b32.xlu0 %v2561, 120
        %v2732 = vpop.permute.xlu0 %2731
        %2733 = vrot.lane.b32.xlu0 %v2562, 120
        %v2734 = vpop.permute.xlu0 %2733
        %2735 = vrot.lane.b32.xlu0 %v2563, 120
        %v2736 = vpop.permute.xlu0 %2735
        %2737 = vrot.lane.b32.xlu0 %v2564, 120
        %v2738 = vpop.permute.xlu0 %2737
        %2739 = vrot.lane.b32.xlu0 %v2565, 120
        %v2740 = vpop.permute.xlu0 %2739
        %2741 = vrot.lane.b32.xlu0 %v2566, 120
        %v2742 = vpop.permute.xlu0 %2741
        %2743 = vrot.lane.b32.xlu0 %v2567, 120
        %v2744 = vpop.permute.xlu0 %2743
        %2745 = vrot.lane.b32.xlu0 %v2568, 120
        %v2746 = vpop.permute.xlu0 %2745
        %2747 = vrot.lane.b32.xlu0 %v2569, 120
        %v2748 = vpop.permute.xlu0 %2747
        %2749 = vrot.lane.b32.xlu0 %v2570, 120
        %v2750 = vpop.permute.xlu0 %2749
        %2751 = vrot.lane.b32.xlu0 %v2571, 120
        %v2752 = vpop.permute.xlu0 %2751
        %2753 = vrot.lane.b32.xlu0 %v2572, 120
        %v2754 = vpop.permute.xlu0 %2753
        %2755 = vrot.lane.b32.xlu0 %v2573, 120
        %v2756 = vpop.permute.xlu0 %2755
        %2757 = vrot.lane.b32.xlu0 %v2574, 120
        %v2758 = vpop.permute.xlu0 %2757
        %2759 = vrot.lane.b32.xlu0 %v2575, 120
        %v2760 = vpop.permute.xlu0 %2759
        %2761 = vrot.lane.b32.xlu0 %v2576, 120
        %v2762 = vpop.permute.xlu0 %2761
        %2763 = vrot.lane.b32.xlu0 %v2577, 120
        %v2764 = vpop.permute.xlu0 %2763
        %2765 = vrot.lane.b32.xlu0 %v2578, 120
        %v2766 = vpop.permute.xlu0 %2765
        %2767 = vrot.lane.b32.xlu0 %v2579, 120
        %v2768 = vpop.permute.xlu0 %2767
        %2769 = vrot.lane.b32.xlu0 %v2580, 120
        %v2770 = vpop.permute.xlu0 %2769
        %2771 = vrot.lane.b32.xlu0 %v2581, 120
        %v2772 = vpop.permute.xlu0 %2771
        %2773 = vrot.lane.b32.xlu0 %v2582, 120
        %v2774 = vpop.permute.xlu0 %2773
        %v2839 = vsel %vm991, %v2648, 0.0
        %2840 = vadd.xlane.f32.xlu0 %v2839
        %v2841 = vpop.xlane.xlu0 %2840
        %v2842 = vsel %vm991, %v2650, 0.0
        %2843 = vadd.xlane.f32.xlu0 %v2842
        %v2844 = vpop.xlane.xlu0 %2843
        %v2845 = vsel %vm991, %v2652, 0.0
        %2846 = vadd.xlane.f32.xlu0 %v2845
        %v2847 = vpop.xlane.xlu0 %2846
        %v2848 = vsel %vm991, %v2654, 0.0
        %2849 = vadd.xlane.f32.xlu0 %v2848
        %v2850 = vpop.xlane.xlu0 %2849
        %v2851 = vsel %vm991, %v2656, 0.0
        %2852 = vadd.xlane.f32.xlu0 %v2851
        %v2853 = vpop.xlane.xlu0 %2852
        %v2854 = vsel %vm991, %v2658, 0.0
        %2855 = vadd.xlane.f32.xlu0 %v2854
        %v2856 = vpop.xlane.xlu0 %2855
        %v2857 = vsel %vm991, %v2660, 0.0
        %2858 = vadd.xlane.f32.xlu0 %v2857
        %v2859 = vpop.xlane.xlu0 %2858
        %v2860 = vsel %vm991, %v2662, 0.0
        %2861 = vadd.xlane.f32.xlu0 %v2860
        %v2862 = vpop.xlane.xlu0 %2861
        %v2863 = vsel %vm991, %v2664, 0.0
        %2864 = vadd.xlane.f32.xlu0 %v2863
        %v2865 = vpop.xlane.xlu0 %2864
        %v2866 = vsel %vm991, %v2666, 0.0
        %2867 = vadd.xlane.f32.xlu0 %v2866
        %v2868 = vpop.xlane.xlu0 %2867
        %v2869 = vsel %vm991, %v2668, 0.0
        %2870 = vadd.xlane.f32.xlu0 %v2869
        %v2871 = vpop.xlane.xlu0 %2870
        %v2872 = vsel %vm991, %v2670, 0.0
        %2873 = vadd.xlane.f32.xlu0 %v2872
        %v2874 = vpop.xlane.xlu0 %2873
        %v2875 = vsel %vm991, %v2672, 0.0
        %2876 = vadd.xlane.f32.xlu0 %v2875
        %v2877 = vpop.xlane.xlu0 %2876
        %v2878 = vsel %vm991, %v2674, 0.0
        %2879 = vadd.xlane.f32.xlu0 %v2878
        %v2880 = vpop.xlane.xlu0 %2879
        %v2881 = vsel %vm991, %v2676, 0.0
        %2882 = vadd.xlane.f32.xlu0 %v2881
        %v2883 = vpop.xlane.xlu0 %2882
        %v2884 = vsel %vm991, %v2678, 0.0
        %2885 = vadd.xlane.f32.xlu0 %v2884
        %v2886 = vpop.xlane.xlu0 %2885
        %v2887 = vsel %vm991, %v2680, 0.0
        %2888 = vadd.xlane.f32.xlu0 %v2887
        %v2889 = vpop.xlane.xlu0 %2888
        %v2890 = vsel %vm991, %v2682, 0.0
        %2891 = vadd.xlane.f32.xlu0 %v2890
        %v2892 = vpop.xlane.xlu0 %2891
        %v2893 = vsel %vm991, %v2684, 0.0
        %2894 = vadd.xlane.f32.xlu0 %v2893
        %v2895 = vpop.xlane.xlu0 %2894
        %v2896 = vsel %vm991, %v2686, 0.0
        %2897 = vadd.xlane.f32.xlu0 %v2896
        %v2898 = vpop.xlane.xlu0 %2897
        %v2899 = vsel %vm991, %v2688, 0.0
        %2900 = vadd.xlane.f32.xlu0 %v2899
        %v2901 = vpop.xlane.xlu0 %2900
        %v2902 = vsel %vm991, %v2690, 0.0
        %2903 = vadd.xlane.f32.xlu0 %v2902
        %v2904 = vpop.xlane.xlu0 %2903
        %v2905 = vsel %vm991, %v2692, 0.0
        %2906 = vadd.xlane.f32.xlu0 %v2905
        %v2907 = vpop.xlane.xlu0 %2906
        %v2908 = vsel %vm991, %v2694, 0.0
        %2909 = vadd.xlane.f32.xlu0 %v2908
        %v2910 = vpop.xlane.xlu0 %2909
        %v2911 = vsel %vm991, %v2696, 0.0
        %2912 = vadd.xlane.f32.xlu0 %v2911
        %v2913 = vpop.xlane.xlu0 %2912
        %v2914 = vsel %vm991, %v2698, 0.0
        %2915 = vadd.xlane.f32.xlu0 %v2914
        %v2916 = vpop.xlane.xlu0 %2915
        %v2917 = vsel %vm991, %v2700, 0.0
        %2918 = vadd.xlane.f32.xlu0 %v2917
        %v2919 = vpop.xlane.xlu0 %2918
        %v2920 = vsel %vm991, %v2702, 0.0
        %2921 = vadd.xlane.f32.xlu0 %v2920
        %v2922 = vpop.xlane.xlu0 %2921
        %v2923 = vsel %vm991, %v2704, 0.0
        %2924 = vadd.xlane.f32.xlu0 %v2923
        %v2925 = vpop.xlane.xlu0 %2924
        %v2926 = vsel %vm991, %v2706, 0.0
        %2927 = vadd.xlane.f32.xlu0 %v2926
        %v2928 = vpop.xlane.xlu0 %2927
        %v2929 = vsel %vm991, %v2708, 0.0
        %2930 = vadd.xlane.f32.xlu0 %v2929
        %v2931 = vpop.xlane.xlu0 %2930
        %v2932 = vsel %vm991, %v2710, 0.0
        %2933 = vadd.xlane.f32.xlu0 %v2932
        %v2934 = vpop.xlane.xlu0 %2933
        %v2935 = vsel %vm991, %v2712, 0.0
        %2936 = vadd.xlane.f32.xlu0 %v2935
        %v2937 = vpop.xlane.xlu0 %2936
        %v2938 = vsel %vm991, %v2714, 0.0
        %2939 = vadd.xlane.f32.xlu0 %v2938
        %v2940 = vpop.xlane.xlu0 %2939
        %v2941 = vsel %vm991, %v2716, 0.0
        %2942 = vadd.xlane.f32.xlu0 %v2941
        %v2943 = vpop.xlane.xlu0 %2942
        %v2944 = vsel %vm991, %v2718, 0.0
        %2945 = vadd.xlane.f32.xlu0 %v2944
        %v2946 = vpop.xlane.xlu0 %2945
        %v2947 = vsel %vm991, %v2720, 0.0
        %2948 = vadd.xlane.f32.xlu0 %v2947
        %v2949 = vpop.xlane.xlu0 %2948
        %v2950 = vsel %vm991, %v2722, 0.0
        %2951 = vadd.xlane.f32.xlu0 %v2950
        %v2952 = vpop.xlane.xlu0 %2951
        %v2953 = vsel %vm991, %v2724, 0.0
        %2954 = vadd.xlane.f32.xlu0 %v2953
        %v2955 = vpop.xlane.xlu0 %2954
        %v2956 = vsel %vm991, %v2726, 0.0
        %2957 = vadd.xlane.f32.xlu0 %v2956
        %v2958 = vpop.xlane.xlu0 %2957
        %v2959 = vsel %vm991, %v2728, 0.0
        %2960 = vadd.xlane.f32.xlu0 %v2959
        %v2961 = vpop.xlane.xlu0 %2960
        %v2962 = vsel %vm991, %v2730, 0.0
        %2963 = vadd.xlane.f32.xlu0 %v2962
        %v2964 = vpop.xlane.xlu0 %2963
        %v2965 = vsel %vm991, %v2732, 0.0
        %2966 = vadd.xlane.f32.xlu0 %v2965
        %v2967 = vpop.xlane.xlu0 %2966
        %v2968 = vsel %vm991, %v2734, 0.0
        %2969 = vadd.xlane.f32.xlu0 %v2968
        %v2970 = vpop.xlane.xlu0 %2969
        %v2971 = vsel %vm991, %v2736, 0.0
        %2972 = vadd.xlane.f32.xlu0 %v2971
        %v2973 = vpop.xlane.xlu0 %2972
        %v2974 = vsel %vm991, %v2738, 0.0
        %2975 = vadd.xlane.f32.xlu0 %v2974
        %v2976 = vpop.xlane.xlu0 %2975
        %v2977 = vsel %vm991, %v2740, 0.0
        %2978 = vadd.xlane.f32.xlu0 %v2977
        %v2979 = vpop.xlane.xlu0 %2978
        %v2980 = vsel %vm991, %v2742, 0.0
        %2981 = vadd.xlane.f32.xlu0 %v2980
        %v2982 = vpop.xlane.xlu0 %2981
        %v2983 = vsel %vm991, %v2744, 0.0
        %2984 = vadd.xlane.f32.xlu0 %v2983
        %v2985 = vpop.xlane.xlu0 %2984
        %v2986 = vsel %vm991, %v2746, 0.0
        %2987 = vadd.xlane.f32.xlu0 %v2986
        %v2988 = vpop.xlane.xlu0 %2987
        %v2989 = vsel %vm991, %v2748, 0.0
        %2990 = vadd.xlane.f32.xlu0 %v2989
        %v2991 = vpop.xlane.xlu0 %2990
        %v2992 = vsel %vm991, %v2750, 0.0
        %2993 = vadd.xlane.f32.xlu0 %v2992
        %v2994 = vpop.xlane.xlu0 %2993
        %v2995 = vsel %vm991, %v2752, 0.0
        %2996 = vadd.xlane.f32.xlu0 %v2995
        %v2997 = vpop.xlane.xlu0 %2996
        %v2998 = vsel %vm991, %v2754, 0.0
        %2999 = vadd.xlane.f32.xlu0 %v2998
        %v3000 = vpop.xlane.xlu0 %2999
        %v3001 = vsel %vm991, %v2756, 0.0
        %3002 = vadd.xlane.f32.xlu0 %v3001
        %v3003 = vpop.xlane.xlu0 %3002
        %v3004 = vsel %vm991, %v2758, 0.0
        %3005 = vadd.xlane.f32.xlu0 %v3004
        %v3006 = vpop.xlane.xlu0 %3005
        %v3007 = vsel %vm991, %v2760, 0.0
        %3008 = vadd.xlane.f32.xlu0 %v3007
        %v3009 = vpop.xlane.xlu0 %3008
        %v3010 = vsel %vm991, %v2762, 0.0
        %3011 = vadd.xlane.f32.xlu0 %v3010
        %v3012 = vpop.xlane.xlu0 %3011
        %v3013 = vsel %vm991, %v2764, 0.0
        %3014 = vadd.xlane.f32.xlu0 %v3013
        %v3015 = vpop.xlane.xlu0 %3014
        %v3016 = vsel %vm991, %v2766, 0.0
        %3017 = vadd.xlane.f32.xlu0 %v3016
        %v3018 = vpop.xlane.xlu0 %3017
        %v3019 = vsel %vm991, %v2768, 0.0
        %3020 = vadd.xlane.f32.xlu0 %v3019
        %v3021 = vpop.xlane.xlu0 %3020
        %v3022 = vsel %vm991, %v2770, 0.0
        %3023 = vadd.xlane.f32.xlu0 %v3022
        %v3024 = vpop.xlane.xlu0 %3023
        %v3025 = vsel %vm991, %v2772, 0.0
        %3026 = vadd.xlane.f32.xlu0 %v3025
        %v3027 = vpop.xlane.xlu0 %3026
        %v3028 = vsel %vm991, %v2774, 0.0
        %3029 = vadd.xlane.f32.xlu0 %v3028
        %v3030 = vpop.xlane.xlu0 %3029
        %3039 = vrot.lane.b32.xlu0 %v965, 8
        %v3040 = vpop.permute.xlu0 %3039
        %3041 = vrot.lane.b32.xlu0 %v966, 8
        %v3042 = vpop.permute.xlu0 %3041
        %3043 = vrot.lane.b32.xlu0 %v967, 8
        %v3044 = vpop.permute.xlu0 %3043
        %3045 = vrot.lane.b32.xlu0 %v968, 8
        %v3046 = vpop.permute.xlu0 %3045
        %3047 = vrot.lane.b32.xlu0 %v969, 8
        %v3048 = vpop.permute.xlu0 %3047
        %3049 = vrot.lane.b32.xlu0 %v970, 8
        %v3050 = vpop.permute.xlu0 %3049
        %3051 = vrot.lane.b32.xlu0 %v971, 8
        %v3052 = vpop.permute.xlu0 %3051
        %3053 = vrot.lane.b32.xlu0 %v972, 8
        %v3054 = vpop.permute.xlu0 %3053
        %v3063 = vmul.f32 %v1117, %v3040
        %v3064 = vmul.f32 %v1118, %v3042
        %v3065 = vmul.f32 %v1119, %v3044
        %v3066 = vmul.f32 %v1120, %v3046
        %v3067 = vmul.f32 %v1121, %v3048
        %v3068 = vmul.f32 %v1122, %v3050
        %v3069 = vmul.f32 %v1123, %v3052
        %v3070 = vmul.f32 %v1124, %v3054
        %v3071 = vmul.f32 %v1125, %v3040
        %v3072 = vmul.f32 %v1126, %v3042
        %v3073 = vmul.f32 %v1127, %v3044
        %v3074 = vmul.f32 %v1128, %v3046
        %v3075 = vmul.f32 %v1129, %v3048
        %v3076 = vmul.f32 %v1130, %v3050
        %v3077 = vmul.f32 %v1131, %v3052
        %v3078 = vmul.f32 %v1132, %v3054
        %v3079 = vmul.f32 %v1133, %v3040
        %v3080 = vmul.f32 %v1134, %v3042
        %v3081 = vmul.f32 %v1135, %v3044
        %v3082 = vmul.f32 %v1136, %v3046
        %v3083 = vmul.f32 %v1137, %v3048
        %v3084 = vmul.f32 %v1138, %v3050
        %v3085 = vmul.f32 %v1139, %v3052
        %v3086 = vmul.f32 %v1140, %v3054
        %v3087 = vmul.f32 %v1141, %v3040
        %v3088 = vmul.f32 %v1142, %v3042
        %v3089 = vmul.f32 %v1143, %v3044
        %v3090 = vmul.f32 %v1144, %v3046
        %v3091 = vmul.f32 %v1145, %v3048
        %v3092 = vmul.f32 %v1146, %v3050
        %v3093 = vmul.f32 %v1147, %v3052
        %v3094 = vmul.f32 %v1148, %v3054
        %v3095 = vmul.f32 %v1149, %v3040
        %v3096 = vmul.f32 %v1150, %v3042
        %v3097 = vmul.f32 %v1151, %v3044
        %v3098 = vmul.f32 %v1152, %v3046
        %v3099 = vmul.f32 %v1153, %v3048
        %v3100 = vmul.f32 %v1154, %v3050
        %v3101 = vmul.f32 %v1155, %v3052
        %v3102 = vmul.f32 %v1156, %v3054
        %v3103 = vmul.f32 %v1157, %v3040
        %v3104 = vmul.f32 %v1158, %v3042
        %v3105 = vmul.f32 %v1159, %v3044
        %v3106 = vmul.f32 %v1160, %v3046
        %v3107 = vmul.f32 %v1161, %v3048
        %v3108 = vmul.f32 %v1162, %v3050
        %v3109 = vmul.f32 %v1163, %v3052
        %v3110 = vmul.f32 %v1164, %v3054
        %v3111 = vmul.f32 %v1165, %v3040
        %v3112 = vmul.f32 %v1166, %v3042
        %v3113 = vmul.f32 %v1167, %v3044
        %v3114 = vmul.f32 %v1168, %v3046
        %v3115 = vmul.f32 %v1169, %v3048
        %v3116 = vmul.f32 %v1170, %v3050
        %v3117 = vmul.f32 %v1171, %v3052
        %v3118 = vmul.f32 %v1172, %v3054
        %v3119 = vmul.f32 %v1173, %v3040
        %v3120 = vmul.f32 %v1174, %v3042
        %v3121 = vmul.f32 %v1175, %v3044
        %v3122 = vmul.f32 %v1176, %v3046
        %v3123 = vmul.f32 %v1177, %v3048
        %v3124 = vmul.f32 %v1178, %v3050
        %v3125 = vmul.f32 %v1179, %v3052
        %v3126 = vmul.f32 %v1180, %v3054
        %3191 = vrot.lane.b32.xlu0 %v3063, 120
        %v3192 = vpop.permute.xlu0 %3191
        %3193 = vrot.lane.b32.xlu0 %v3064, 120
        %v3194 = vpop.permute.xlu0 %3193
        %3195 = vrot.lane.b32.xlu0 %v3065, 120
        %v3196 = vpop.permute.xlu0 %3195
        %3197 = vrot.lane.b32.xlu0 %v3066, 120
        %v3198 = vpop.permute.xlu0 %3197
        %3199 = vrot.lane.b32.xlu0 %v3067, 120
        %v3200 = vpop.permute.xlu0 %3199
        %3201 = vrot.lane.b32.xlu0 %v3068, 120
        %v3202 = vpop.permute.xlu0 %3201
        %3203 = vrot.lane.b32.xlu0 %v3069, 120
        %v3204 = vpop.permute.xlu0 %3203
        %3205 = vrot.lane.b32.xlu0 %v3070, 120
        %v3206 = vpop.permute.xlu0 %3205
        %3207 = vrot.lane.b32.xlu0 %v3071, 120
        %v3208 = vpop.permute.xlu0 %3207
        %3209 = vrot.lane.b32.xlu0 %v3072, 120
        %v3210 = vpop.permute.xlu0 %3209
        %3211 = vrot.lane.b32.xlu0 %v3073, 120
        %v3212 = vpop.permute.xlu0 %3211
        %3213 = vrot.lane.b32.xlu0 %v3074, 120
        %v3214 = vpop.permute.xlu0 %3213
        %3215 = vrot.lane.b32.xlu0 %v3075, 120
        %v3216 = vpop.permute.xlu0 %3215
        %3217 = vrot.lane.b32.xlu0 %v3076, 120
        %v3218 = vpop.permute.xlu0 %3217
        %3219 = vrot.lane.b32.xlu0 %v3077, 120
        %v3220 = vpop.permute.xlu0 %3219
        %3221 = vrot.lane.b32.xlu0 %v3078, 120
        %v3222 = vpop.permute.xlu0 %3221
        %3223 = vrot.lane.b32.xlu0 %v3079, 120
        %v3224 = vpop.permute.xlu0 %3223
        %3225 = vrot.lane.b32.xlu0 %v3080, 120
        %v3226 = vpop.permute.xlu0 %3225
        %3227 = vrot.lane.b32.xlu0 %v3081, 120
        %v3228 = vpop.permute.xlu0 %3227
        %3229 = vrot.lane.b32.xlu0 %v3082, 120
        %v3230 = vpop.permute.xlu0 %3229
        %3231 = vrot.lane.b32.xlu0 %v3083, 120
        %v3232 = vpop.permute.xlu0 %3231
        %3233 = vrot.lane.b32.xlu0 %v3084, 120
        %v3234 = vpop.permute.xlu0 %3233
        %3235 = vrot.lane.b32.xlu0 %v3085, 120
        %v3236 = vpop.permute.xlu0 %3235
        %3237 = vrot.lane.b32.xlu0 %v3086, 120
        %v3238 = vpop.permute.xlu0 %3237
        %3239 = vrot.lane.b32.xlu0 %v3087, 120
        %v3240 = vpop.permute.xlu0 %3239
        %3241 = vrot.lane.b32.xlu0 %v3088, 120
        %v3242 = vpop.permute.xlu0 %3241
        %3243 = vrot.lane.b32.xlu0 %v3089, 120
        %v3244 = vpop.permute.xlu0 %3243
        %3245 = vrot.lane.b32.xlu0 %v3090, 120
        %v3246 = vpop.permute.xlu0 %3245
        %3247 = vrot.lane.b32.xlu0 %v3091, 120
        %v3248 = vpop.permute.xlu0 %3247
        %3249 = vrot.lane.b32.xlu0 %v3092, 120
        %v3250 = vpop.permute.xlu0 %3249
        %3251 = vrot.lane.b32.xlu0 %v3093, 120
        %v3252 = vpop.permute.xlu0 %3251
        %3253 = vrot.lane.b32.xlu0 %v3094, 120
        %v3254 = vpop.permute.xlu0 %3253
        %3255 = vrot.lane.b32.xlu0 %v3095, 120
        %v3256 = vpop.permute.xlu0 %3255
        %3257 = vrot.lane.b32.xlu0 %v3096, 120
        %v3258 = vpop.permute.xlu0 %3257
        %3259 = vrot.lane.b32.xlu0 %v3097, 120
        %v3260 = vpop.permute.xlu0 %3259
        %3261 = vrot.lane.b32.xlu0 %v3098, 120
        %v3262 = vpop.permute.xlu0 %3261
        %3263 = vrot.lane.b32.xlu0 %v3099, 120
        %v3264 = vpop.permute.xlu0 %3263
        %3265 = vrot.lane.b32.xlu0 %v3100, 120
        %v3266 = vpop.permute.xlu0 %3265
        %3267 = vrot.lane.b32.xlu0 %v3101, 120
        %v3268 = vpop.permute.xlu0 %3267
        %3269 = vrot.lane.b32.xlu0 %v3102, 120
        %v3270 = vpop.permute.xlu0 %3269
        %3271 = vrot.lane.b32.xlu0 %v3103, 120
        %v3272 = vpop.permute.xlu0 %3271
        %3273 = vrot.lane.b32.xlu0 %v3104, 120
        %v3274 = vpop.permute.xlu0 %3273
        %3275 = vrot.lane.b32.xlu0 %v3105, 120
        %v3276 = vpop.permute.xlu0 %3275
        %3277 = vrot.lane.b32.xlu0 %v3106, 120
        %v3278 = vpop.permute.xlu0 %3277
        %3279 = vrot.lane.b32.xlu0 %v3107, 120
        %v3280 = vpop.permute.xlu0 %3279
        %3281 = vrot.lane.b32.xlu0 %v3108, 120
        %v3282 = vpop.permute.xlu0 %3281
        %3283 = vrot.lane.b32.xlu0 %v3109, 120
        %v3284 = vpop.permute.xlu0 %3283
        %3285 = vrot.lane.b32.xlu0 %v3110, 120
        %v3286 = vpop.permute.xlu0 %3285
        %3287 = vrot.lane.b32.xlu0 %v3111, 120
        %v3288 = vpop.permute.xlu0 %3287
        %3289 = vrot.lane.b32.xlu0 %v3112, 120
        %v3290 = vpop.permute.xlu0 %3289
        %3291 = vrot.lane.b32.xlu0 %v3113, 120
        %v3292 = vpop.permute.xlu0 %3291
        %3293 = vrot.lane.b32.xlu0 %v3114, 120
        %v3294 = vpop.permute.xlu0 %3293
        %3295 = vrot.lane.b32.xlu0 %v3115, 120
        %v3296 = vpop.permute.xlu0 %3295
        %3297 = vrot.lane.b32.xlu0 %v3116, 120
        %v3298 = vpop.permute.xlu0 %3297
        %3299 = vrot.lane.b32.xlu0 %v3117, 120
        %v3300 = vpop.permute.xlu0 %3299
        %3301 = vrot.lane.b32.xlu0 %v3118, 120
        %v3302 = vpop.permute.xlu0 %3301
        %3303 = vrot.lane.b32.xlu0 %v3119, 120
        %v3304 = vpop.permute.xlu0 %3303
        %3305 = vrot.lane.b32.xlu0 %v3120, 120
        %v3306 = vpop.permute.xlu0 %3305
        %3307 = vrot.lane.b32.xlu0 %v3121, 120
        %v3308 = vpop.permute.xlu0 %3307
        %3309 = vrot.lane.b32.xlu0 %v3122, 120
        %v3310 = vpop.permute.xlu0 %3309
        %3311 = vrot.lane.b32.xlu0 %v3123, 120
        %v3312 = vpop.permute.xlu0 %3311
        %3313 = vrot.lane.b32.xlu0 %v3124, 120
        %v3314 = vpop.permute.xlu0 %3313
        %3315 = vrot.lane.b32.xlu0 %v3125, 120
        %v3316 = vpop.permute.xlu0 %3315
        %3317 = vrot.lane.b32.xlu0 %v3126, 120
        %v3318 = vpop.permute.xlu0 %3317
        %v3383 = vsel %vm991, %v3192, 0.0
        %3384 = vadd.xlane.f32.xlu0 %v3383
        %v3385 = vpop.xlane.xlu0 %3384
        %v3386 = vsel %vm991, %v3194, 0.0
        %3387 = vadd.xlane.f32.xlu0 %v3386
        %v3388 = vpop.xlane.xlu0 %3387
        %v3389 = vsel %vm991, %v3196, 0.0
        %3390 = vadd.xlane.f32.xlu0 %v3389
        %v3391 = vpop.xlane.xlu0 %3390
        %v3392 = vsel %vm991, %v3198, 0.0
        %3393 = vadd.xlane.f32.xlu0 %v3392
        %v3394 = vpop.xlane.xlu0 %3393
        %v3395 = vsel %vm991, %v3200, 0.0
        %3396 = vadd.xlane.f32.xlu0 %v3395
        %v3397 = vpop.xlane.xlu0 %3396
        %v3398 = vsel %vm991, %v3202, 0.0
        %3399 = vadd.xlane.f32.xlu0 %v3398
        %v3400 = vpop.xlane.xlu0 %3399
        %v3401 = vsel %vm991, %v3204, 0.0
        %3402 = vadd.xlane.f32.xlu0 %v3401
        %v3403 = vpop.xlane.xlu0 %3402
        %v3404 = vsel %vm991, %v3206, 0.0
        %3405 = vadd.xlane.f32.xlu0 %v3404
        %v3406 = vpop.xlane.xlu0 %3405
        %v3407 = vsel %vm991, %v3208, 0.0
        %3408 = vadd.xlane.f32.xlu0 %v3407
        %v3409 = vpop.xlane.xlu0 %3408
        %v3410 = vsel %vm991, %v3210, 0.0
        %3411 = vadd.xlane.f32.xlu0 %v3410
        %v3412 = vpop.xlane.xlu0 %3411
        %v3413 = vsel %vm991, %v3212, 0.0
        %3414 = vadd.xlane.f32.xlu0 %v3413
        %v3415 = vpop.xlane.xlu0 %3414
        %v3416 = vsel %vm991, %v3214, 0.0
        %3417 = vadd.xlane.f32.xlu0 %v3416
        %v3418 = vpop.xlane.xlu0 %3417
        %v3419 = vsel %vm991, %v3216, 0.0
        %3420 = vadd.xlane.f32.xlu0 %v3419
        %v3421 = vpop.xlane.xlu0 %3420
        %v3422 = vsel %vm991, %v3218, 0.0
        %3423 = vadd.xlane.f32.xlu0 %v3422
        %v3424 = vpop.xlane.xlu0 %3423
        %v3425 = vsel %vm991, %v3220, 0.0
        %3426 = vadd.xlane.f32.xlu0 %v3425
        %v3427 = vpop.xlane.xlu0 %3426
        %v3428 = vsel %vm991, %v3222, 0.0
        %3429 = vadd.xlane.f32.xlu0 %v3428
        %v3430 = vpop.xlane.xlu0 %3429
        %v3431 = vsel %vm991, %v3224, 0.0
        %3432 = vadd.xlane.f32.xlu0 %v3431
        %v3433 = vpop.xlane.xlu0 %3432
        %v3434 = vsel %vm991, %v3226, 0.0
        %3435 = vadd.xlane.f32.xlu0 %v3434
        %v3436 = vpop.xlane.xlu0 %3435
        %v3437 = vsel %vm991, %v3228, 0.0
        %3438 = vadd.xlane.f32.xlu0 %v3437
        %v3439 = vpop.xlane.xlu0 %3438
        %v3440 = vsel %vm991, %v3230, 0.0
        %3441 = vadd.xlane.f32.xlu0 %v3440
        %v3442 = vpop.xlane.xlu0 %3441
        %v3443 = vsel %vm991, %v3232, 0.0
        %3444 = vadd.xlane.f32.xlu0 %v3443
        %v3445 = vpop.xlane.xlu0 %3444
        %v3446 = vsel %vm991, %v3234, 0.0
        %3447 = vadd.xlane.f32.xlu0 %v3446
        %v3448 = vpop.xlane.xlu0 %3447
        %v3449 = vsel %vm991, %v3236, 0.0
        %3450 = vadd.xlane.f32.xlu0 %v3449
        %v3451 = vpop.xlane.xlu0 %3450
        %v3452 = vsel %vm991, %v3238, 0.0
        %3453 = vadd.xlane.f32.xlu0 %v3452
        %v3454 = vpop.xlane.xlu0 %3453
        %v3455 = vsel %vm991, %v3240, 0.0
        %3456 = vadd.xlane.f32.xlu0 %v3455
        %v3457 = vpop.xlane.xlu0 %3456
        %v3458 = vsel %vm991, %v3242, 0.0
        %3459 = vadd.xlane.f32.xlu0 %v3458
        %v3460 = vpop.xlane.xlu0 %3459
        %v3461 = vsel %vm991, %v3244, 0.0
        %3462 = vadd.xlane.f32.xlu0 %v3461
        %v3463 = vpop.xlane.xlu0 %3462
        %v3464 = vsel %vm991, %v3246, 0.0
        %3465 = vadd.xlane.f32.xlu0 %v3464
        %v3466 = vpop.xlane.xlu0 %3465
        %v3467 = vsel %vm991, %v3248, 0.0
        %3468 = vadd.xlane.f32.xlu0 %v3467
        %v3469 = vpop.xlane.xlu0 %3468
        %v3470 = vsel %vm991, %v3250, 0.0
        %3471 = vadd.xlane.f32.xlu0 %v3470
        %v3472 = vpop.xlane.xlu0 %3471
        %v3473 = vsel %vm991, %v3252, 0.0
        %3474 = vadd.xlane.f32.xlu0 %v3473
        %v3475 = vpop.xlane.xlu0 %3474
        %v3476 = vsel %vm991, %v3254, 0.0
        %3477 = vadd.xlane.f32.xlu0 %v3476
        %v3478 = vpop.xlane.xlu0 %3477
        %v3479 = vsel %vm991, %v3256, 0.0
        %3480 = vadd.xlane.f32.xlu0 %v3479
        %v3481 = vpop.xlane.xlu0 %3480
        %v3482 = vsel %vm991, %v3258, 0.0
        %3483 = vadd.xlane.f32.xlu0 %v3482
        %v3484 = vpop.xlane.xlu0 %3483
        %v3485 = vsel %vm991, %v3260, 0.0
        %3486 = vadd.xlane.f32.xlu0 %v3485
        %v3487 = vpop.xlane.xlu0 %3486
        %v3488 = vsel %vm991, %v3262, 0.0
        %3489 = vadd.xlane.f32.xlu0 %v3488
        %v3490 = vpop.xlane.xlu0 %3489
        %v3491 = vsel %vm991, %v3264, 0.0
        %3492 = vadd.xlane.f32.xlu0 %v3491
        %v3493 = vpop.xlane.xlu0 %3492
        %v3494 = vsel %vm991, %v3266, 0.0
        %3495 = vadd.xlane.f32.xlu0 %v3494
        %v3496 = vpop.xlane.xlu0 %3495
        %v3497 = vsel %vm991, %v3268, 0.0
        %3498 = vadd.xlane.f32.xlu0 %v3497
        %v3499 = vpop.xlane.xlu0 %3498
        %v3500 = vsel %vm991, %v3270, 0.0
        %3501 = vadd.xlane.f32.xlu0 %v3500
        %v3502 = vpop.xlane.xlu0 %3501
        %v3503 = vsel %vm991, %v3272, 0.0
        %3504 = vadd.xlane.f32.xlu0 %v3503
        %v3505 = vpop.xlane.xlu0 %3504
        %v3506 = vsel %vm991, %v3274, 0.0
        %3507 = vadd.xlane.f32.xlu0 %v3506
        %v3508 = vpop.xlane.xlu0 %3507
        %v3509 = vsel %vm991, %v3276, 0.0
        %3510 = vadd.xlane.f32.xlu0 %v3509
        %v3511 = vpop.xlane.xlu0 %3510
        %v3512 = vsel %vm991, %v3278, 0.0
        %3513 = vadd.xlane.f32.xlu0 %v3512
        %v3514 = vpop.xlane.xlu0 %3513
        %v3515 = vsel %vm991, %v3280, 0.0
        %3516 = vadd.xlane.f32.xlu0 %v3515
        %v3517 = vpop.xlane.xlu0 %3516
        %v3518 = vsel %vm991, %v3282, 0.0
        %3519 = vadd.xlane.f32.xlu0 %v3518
        %v3520 = vpop.xlane.xlu0 %3519
        %v3521 = vsel %vm991, %v3284, 0.0
        %3522 = vadd.xlane.f32.xlu0 %v3521
        %v3523 = vpop.xlane.xlu0 %3522
        %v3524 = vsel %vm991, %v3286, 0.0
        %3525 = vadd.xlane.f32.xlu0 %v3524
        %v3526 = vpop.xlane.xlu0 %3525
        %v3527 = vsel %vm991, %v3288, 0.0
        %3528 = vadd.xlane.f32.xlu0 %v3527
        %v3529 = vpop.xlane.xlu0 %3528
        %v3530 = vsel %vm991, %v3290, 0.0
        %3531 = vadd.xlane.f32.xlu0 %v3530
        %v3532 = vpop.xlane.xlu0 %3531
        %v3533 = vsel %vm991, %v3292, 0.0
        %3534 = vadd.xlane.f32.xlu0 %v3533
        %v3535 = vpop.xlane.xlu0 %3534
        %v3536 = vsel %vm991, %v3294, 0.0
        %3537 = vadd.xlane.f32.xlu0 %v3536
        %v3538 = vpop.xlane.xlu0 %3537
        %v3539 = vsel %vm991, %v3296, 0.0
        %3540 = vadd.xlane.f32.xlu0 %v3539
        %v3541 = vpop.xlane.xlu0 %3540
        %v3542 = vsel %vm991, %v3298, 0.0
        %3543 = vadd.xlane.f32.xlu0 %v3542
        %v3544 = vpop.xlane.xlu0 %3543
        %v3545 = vsel %vm991, %v3300, 0.0
        %3546 = vadd.xlane.f32.xlu0 %v3545
        %v3547 = vpop.xlane.xlu0 %3546
        %v3548 = vsel %vm991, %v3302, 0.0
        %3549 = vadd.xlane.f32.xlu0 %v3548
        %v3550 = vpop.xlane.xlu0 %3549
        %v3551 = vsel %vm991, %v3304, 0.0
        %3552 = vadd.xlane.f32.xlu0 %v3551
        %v3553 = vpop.xlane.xlu0 %3552
        %v3554 = vsel %vm991, %v3306, 0.0
        %3555 = vadd.xlane.f32.xlu0 %v3554
        %v3556 = vpop.xlane.xlu0 %3555
        %v3557 = vsel %vm991, %v3308, 0.0
        %3558 = vadd.xlane.f32.xlu0 %v3557
        %v3559 = vpop.xlane.xlu0 %3558
        %v3560 = vsel %vm991, %v3310, 0.0
        %3561 = vadd.xlane.f32.xlu0 %v3560
        %v3562 = vpop.xlane.xlu0 %3561
        %v3563 = vsel %vm991, %v3312, 0.0
        %3564 = vadd.xlane.f32.xlu0 %v3563
        %v3565 = vpop.xlane.xlu0 %3564
        %v3566 = vsel %vm991, %v3314, 0.0
        %3567 = vadd.xlane.f32.xlu0 %v3566
        %v3568 = vpop.xlane.xlu0 %3567
        %v3569 = vsel %vm991, %v3316, 0.0
        %3570 = vadd.xlane.f32.xlu0 %v3569
        %v3571 = vpop.xlane.xlu0 %3570
        %v3572 = vsel %vm991, %v3318, 0.0
        %3573 = vadd.xlane.f32.xlu0 %v3572
        %v3574 = vpop.xlane.xlu0 %3573
        %v3639 = vperm.slane %v2841, %v1822
        %v3640 = vperm.slane %v2844, %v1822
        %v3641 = vperm.slane %v2847, %v1822
        %v3642 = vperm.slane %v2850, %v1822
        %v3643 = vperm.slane %v2853, %v1822
        %v3644 = vperm.slane %v2856, %v1822
        %v3645 = vperm.slane %v2859, %v1822
        %v3646 = vperm.slane %v2862, %v1822
        %v3647 = vperm.slane %v2865, %v1822
        %v3648 = vperm.slane %v2868, %v1822
        %v3649 = vperm.slane %v2871, %v1822
        %v3650 = vperm.slane %v2874, %v1822
        %v3651 = vperm.slane %v2877, %v1822
        %v3652 = vperm.slane %v2880, %v1822
        %v3653 = vperm.slane %v2883, %v1822
        %v3654 = vperm.slane %v2886, %v1822
        %v3655 = vperm.slane %v2889, %v1822
        %v3656 = vperm.slane %v2892, %v1822
        %v3657 = vperm.slane %v2895, %v1822
        %v3658 = vperm.slane %v2898, %v1822
        %v3659 = vperm.slane %v2901, %v1822
        %v3660 = vperm.slane %v2904, %v1822
        %v3661 = vperm.slane %v2907, %v1822
        %v3662 = vperm.slane %v2910, %v1822
        %v3663 = vperm.slane %v2913, %v1822
        %v3664 = vperm.slane %v2916, %v1822
        %v3665 = vperm.slane %v2919, %v1822
        %v3666 = vperm.slane %v2922, %v1822
        %v3667 = vperm.slane %v2925, %v1822
        %v3668 = vperm.slane %v2928, %v1822
        %v3669 = vperm.slane %v2931, %v1822
        %v3670 = vperm.slane %v2934, %v1822
        %v3671 = vperm.slane %v2937, %v1822
        %v3672 = vperm.slane %v2940, %v1822
        %v3673 = vperm.slane %v2943, %v1822
        %v3674 = vperm.slane %v2946, %v1822
        %v3675 = vperm.slane %v2949, %v1822
        %v3676 = vperm.slane %v2952, %v1822
        %v3677 = vperm.slane %v2955, %v1822
        %v3678 = vperm.slane %v2958, %v1822
        %v3679 = vperm.slane %v2961, %v1822
        %v3680 = vperm.slane %v2964, %v1822
        %v3681 = vperm.slane %v2967, %v1822
        %v3682 = vperm.slane %v2970, %v1822
        %v3683 = vperm.slane %v2973, %v1822
        %v3684 = vperm.slane %v2976, %v1822
        %v3685 = vperm.slane %v2979, %v1822
        %v3686 = vperm.slane %v2982, %v1822
        %v3687 = vperm.slane %v2985, %v1822
        %v3688 = vperm.slane %v2988, %v1822
        %v3689 = vperm.slane %v2991, %v1822
        %v3690 = vperm.slane %v2994, %v1822
        %v3691 = vperm.slane %v2997, %v1822
        %v3692 = vperm.slane %v3000, %v1822
        %v3693 = vperm.slane %v3003, %v1822
        %v3694 = vperm.slane %v3006, %v1822
        %v3695 = vperm.slane %v3009, %v1822
        %v3696 = vperm.slane %v3012, %v1822
        %v3697 = vperm.slane %v3015, %v1822
        %v3698 = vperm.slane %v3018, %v1822
        %v3699 = vperm.slane %v3021, %v1822
        %v3700 = vperm.slane %v3024, %v1822
        %v3701 = vperm.slane %v3027, %v1822
        %v3702 = vperm.slane %v3030, %v1822
        %v3703 = vsel %vm1887, %v3640, %v3639
        %v3704 = vsel %vm1889, %v3641, %v3703
        %v3705 = vsel %vm1891, %v3642, %v3704
        %v3706 = vsel %vm1893, %v3643, %v3705
        %v3707 = vsel %vm1895, %v3644, %v3706
        %v3708 = vsel %vm1897, %v3645, %v3707
        %v3709 = vsel %vm1899, %v3646, %v3708
        %v3710 = vsel %vm1887, %v3648, %v3647
        %v3711 = vsel %vm1889, %v3649, %v3710
        %v3712 = vsel %vm1891, %v3650, %v3711
        %v3713 = vsel %vm1893, %v3651, %v3712
        %v3714 = vsel %vm1895, %v3652, %v3713
        %v3715 = vsel %vm1897, %v3653, %v3714
        %v3716 = vsel %vm1899, %v3654, %v3715
        %v3717 = vsel %vm1887, %v3656, %v3655
        %v3718 = vsel %vm1889, %v3657, %v3717
        %v3719 = vsel %vm1891, %v3658, %v3718
        %v3720 = vsel %vm1893, %v3659, %v3719
        %v3721 = vsel %vm1895, %v3660, %v3720
        %v3722 = vsel %vm1897, %v3661, %v3721
        %v3723 = vsel %vm1899, %v3662, %v3722
        %v3724 = vsel %vm1887, %v3664, %v3663
        %v3725 = vsel %vm1889, %v3665, %v3724
        %v3726 = vsel %vm1891, %v3666, %v3725
        %v3727 = vsel %vm1893, %v3667, %v3726
        %v3728 = vsel %vm1895, %v3668, %v3727
        %v3729 = vsel %vm1897, %v3669, %v3728
        %v3730 = vsel %vm1899, %v3670, %v3729
        %v3731 = vsel %vm1887, %v3672, %v3671
        %v3732 = vsel %vm1889, %v3673, %v3731
        %v3733 = vsel %vm1891, %v3674, %v3732
        %v3734 = vsel %vm1893, %v3675, %v3733
        %v3735 = vsel %vm1895, %v3676, %v3734
        %v3736 = vsel %vm1897, %v3677, %v3735
        %v3737 = vsel %vm1899, %v3678, %v3736
        %v3738 = vsel %vm1887, %v3680, %v3679
        %v3739 = vsel %vm1889, %v3681, %v3738
        %v3740 = vsel %vm1891, %v3682, %v3739
        %v3741 = vsel %vm1893, %v3683, %v3740
        %v3742 = vsel %vm1895, %v3684, %v3741
        %v3743 = vsel %vm1897, %v3685, %v3742
        %v3744 = vsel %vm1899, %v3686, %v3743
        %v3745 = vsel %vm1887, %v3688, %v3687
        %v3746 = vsel %vm1889, %v3689, %v3745
        %v3747 = vsel %vm1891, %v3690, %v3746
        %v3748 = vsel %vm1893, %v3691, %v3747
        %v3749 = vsel %vm1895, %v3692, %v3748
        %v3750 = vsel %vm1897, %v3693, %v3749
        %v3751 = vsel %vm1899, %v3694, %v3750
        %v3752 = vsel %vm1887, %v3696, %v3695
        %v3753 = vsel %vm1889, %v3697, %v3752
        %v3754 = vsel %vm1891, %v3698, %v3753
        %v3755 = vsel %vm1893, %v3699, %v3754
        %v3756 = vsel %vm1895, %v3700, %v3755
        %v3757 = vsel %vm1897, %v3701, %v3756
        %v3758 = vsel %vm1899, %v3702, %v3757
        %v3759 = vsel %vm991, %v3709, 0
        %v3761 = vsel %vm991, %v3716, 0
        %v3763 = vsel %vm991, %v3723, 0
        %v3765 = vsel %vm991, %v3730, 0
        %v3767 = vsel %vm991, %v3737, 0
        %v3769 = vsel %vm991, %v3744, 0
        %v3771 = vsel %vm991, %v3751, 0
        %v3773 = vsel %vm991, %v3758, 0
        %3775 = vmatpush.msra.mxu0 0.0
        %3776 = vmatpush.msra.mxu0 0.0
        %3777 = vmatpush.msra.mxu0 0.0
        %3778 = vmatpush.msra.mxu0 0.0
        %3779 = vmatpush.msra.mxu0 0.0
        %3780 = vmatpush.msra.mxu0 0.0
        %3781 = vmatpush.msra.mxu0 0.0
        %3782 = vmatpush.msra.mxu0 0.0
        %3783 = vmatpush.msra.mxu0 0.0
        %3784 = vmatpush.msra.mxu0 0.0
        %3785 = vmatpush.msra.mxu0 0.0
        %3786 = vmatpush.msra.mxu0 0.0
        %3787 = vmatpush.msra.mxu0 0.0
        %3788 = vmatpush.msra.mxu0 0.0
        %3789 = vmatpush.msra.mxu0 0.0
        %3790 = vmatpush.msra.mxu0 %v973
        %3791 = vmatmul.f32.gmra.mxu0 %v3759
        %v3792 = vpop.f32.mrf.mxu0
        %v3793 = vadd.f32 0.0, %v3792
        %3794 = vmatmul.f32.gmra.mxu0 %v3761
        %v3795 = vpop.f32.mrf.mxu0
        %v3796 = vadd.f32 0.0, %v3795
        %3797 = vmatmul.f32.gmra.mxu0 %v3763
        %v3798 = vpop.f32.mrf.mxu0
        %v3799 = vadd.f32 0.0, %v3798
        %3800 = vmatmul.f32.gmra.mxu0 %v3765
        %v3801 = vpop.f32.mrf.mxu0
        %v3802 = vadd.f32 0.0, %v3801
        %3803 = vmatmul.f32.gmra.mxu0 %v3767
        %v3804 = vpop.f32.mrf.mxu0
        %v3805 = vadd.f32 0.0, %v3804
        %3806 = vmatmul.f32.gmra.mxu0 %v3769
        %v3807 = vpop.f32.mrf.mxu0
        %v3808 = vadd.f32 0.0, %v3807
        %3809 = vmatmul.f32.gmra.mxu0 %v3771
        %v3810 = vpop.f32.mrf.mxu0
        %v3811 = vadd.f32 0.0, %v3810
        %3812 = vmatmul.f32.gmra.mxu0 %v3773
        %v3813 = vpop.f32.mrf.mxu0
        %v3814 = vadd.f32 0.0, %v3813
        %3815 = vdwg.mxu0
        %v3816 = vadd.f32 %v2479, %v3793
        %v3817 = vadd.f32 %v2480, %v3796
        %v3818 = vadd.f32 %v2481, %v3799
        %v3819 = vadd.f32 %v2482, %v3802
        %v3820 = vadd.f32 %v2483, %v3805
        %v3821 = vadd.f32 %v2484, %v3808
        %v3822 = vadd.f32 %v2485, %v3811
        %v3823 = vadd.f32 %v2486, %v3814
        %v3888 = vperm.slane %v3385, %v1822
        %v3889 = vperm.slane %v3388, %v1822
        %v3890 = vperm.slane %v3391, %v1822
        %v3891 = vperm.slane %v3394, %v1822
        %v3892 = vperm.slane %v3397, %v1822
        %v3893 = vperm.slane %v3400, %v1822
        %v3894 = vperm.slane %v3403, %v1822
        %v3895 = vperm.slane %v3406, %v1822
        %v3896 = vperm.slane %v3409, %v1822
        %v3897 = vperm.slane %v3412, %v1822
        %v3898 = vperm.slane %v3415, %v1822
        %v3899 = vperm.slane %v3418, %v1822
        %v3900 = vperm.slane %v3421, %v1822
        %v3901 = vperm.slane %v3424, %v1822
        %v3902 = vperm.slane %v3427, %v1822
        %v3903 = vperm.slane %v3430, %v1822
        %v3904 = vperm.slane %v3433, %v1822
        %v3905 = vperm.slane %v3436, %v1822
        %v3906 = vperm.slane %v3439, %v1822
        %v3907 = vperm.slane %v3442, %v1822
        %v3908 = vperm.slane %v3445, %v1822
        %v3909 = vperm.slane %v3448, %v1822
        %v3910 = vperm.slane %v3451, %v1822
        %v3911 = vperm.slane %v3454, %v1822
        %v3912 = vperm.slane %v3457, %v1822
        %v3913 = vperm.slane %v3460, %v1822
        %v3914 = vperm.slane %v3463, %v1822
        %v3915 = vperm.slane %v3466, %v1822
        %v3916 = vperm.slane %v3469, %v1822
        %v3917 = vperm.slane %v3472, %v1822
        %v3918 = vperm.slane %v3475, %v1822
        %v3919 = vperm.slane %v3478, %v1822
        %v3920 = vperm.slane %v3481, %v1822
        %v3921 = vperm.slane %v3484, %v1822
        %v3922 = vperm.slane %v3487, %v1822
        %v3923 = vperm.slane %v3490, %v1822
        %v3924 = vperm.slane %v3493, %v1822
        %v3925 = vperm.slane %v3496, %v1822
        %v3926 = vperm.slane %v3499, %v1822
        %v3927 = vperm.slane %v3502, %v1822
        %v3928 = vperm.slane %v3505, %v1822
        %v3929 = vperm.slane %v3508, %v1822
        %v3930 = vperm.slane %v3511, %v1822
        %v3931 = vperm.slane %v3514, %v1822
        %v3932 = vperm.slane %v3517, %v1822
        %v3933 = vperm.slane %v3520, %v1822
        %v3934 = vperm.slane %v3523, %v1822
        %v3935 = vperm.slane %v3526, %v1822
        %v3936 = vperm.slane %v3529, %v1822
        %v3937 = vperm.slane %v3532, %v1822
        %v3938 = vperm.slane %v3535, %v1822
        %v3939 = vperm.slane %v3538, %v1822
        %v3940 = vperm.slane %v3541, %v1822
        %v3941 = vperm.slane %v3544, %v1822
        %v3942 = vperm.slane %v3547, %v1822
        %v3943 = vperm.slane %v3550, %v1822
        %v3944 = vperm.slane %v3553, %v1822
        %v3945 = vperm.slane %v3556, %v1822
        %v3946 = vperm.slane %v3559, %v1822
        %v3947 = vperm.slane %v3562, %v1822
        %v3948 = vperm.slane %v3565, %v1822
        %v3949 = vperm.slane %v3568, %v1822
        %v3950 = vperm.slane %v3571, %v1822
        %v3951 = vperm.slane %v3574, %v1822
        %v3952 = vsel %vm1887, %v3889, %v3888
        %v3953 = vsel %vm1889, %v3890, %v3952
        %v3954 = vsel %vm1891, %v3891, %v3953
        %v3955 = vsel %vm1893, %v3892, %v3954
        %v3956 = vsel %vm1895, %v3893, %v3955
        %v3957 = vsel %vm1897, %v3894, %v3956
        %v3958 = vsel %vm1899, %v3895, %v3957
        %v3959 = vsel %vm1887, %v3897, %v3896
        %v3960 = vsel %vm1889, %v3898, %v3959
        %v3961 = vsel %vm1891, %v3899, %v3960
        %v3962 = vsel %vm1893, %v3900, %v3961
        %v3963 = vsel %vm1895, %v3901, %v3962
        %v3964 = vsel %vm1897, %v3902, %v3963
        %v3965 = vsel %vm1899, %v3903, %v3964
        %v3966 = vsel %vm1887, %v3905, %v3904
        %v3967 = vsel %vm1889, %v3906, %v3966
        %v3968 = vsel %vm1891, %v3907, %v3967
        %v3969 = vsel %vm1893, %v3908, %v3968
        %v3970 = vsel %vm1895, %v3909, %v3969
        %v3971 = vsel %vm1897, %v3910, %v3970
        %v3972 = vsel %vm1899, %v3911, %v3971
        %v3973 = vsel %vm1887, %v3913, %v3912
        %v3974 = vsel %vm1889, %v3914, %v3973
        %v3975 = vsel %vm1891, %v3915, %v3974
        %v3976 = vsel %vm1893, %v3916, %v3975
        %v3977 = vsel %vm1895, %v3917, %v3976
        %v3978 = vsel %vm1897, %v3918, %v3977
        %v3979 = vsel %vm1899, %v3919, %v3978
        %v3980 = vsel %vm1887, %v3921, %v3920
        %v3981 = vsel %vm1889, %v3922, %v3980
        %v3982 = vsel %vm1891, %v3923, %v3981
        %v3983 = vsel %vm1893, %v3924, %v3982
        %v3984 = vsel %vm1895, %v3925, %v3983
        %v3985 = vsel %vm1897, %v3926, %v3984
        %v3986 = vsel %vm1899, %v3927, %v3985
        %v3987 = vsel %vm1887, %v3929, %v3928
        %v3988 = vsel %vm1889, %v3930, %v3987
        %v3989 = vsel %vm1891, %v3931, %v3988
        %v3990 = vsel %vm1893, %v3932, %v3989
        %v3991 = vsel %vm1895, %v3933, %v3990
        %v3992 = vsel %vm1897, %v3934, %v3991
        %v3993 = vsel %vm1899, %v3935, %v3992
        %v3994 = vsel %vm1887, %v3937, %v3936
        %v3995 = vsel %vm1889, %v3938, %v3994
        %v3996 = vsel %vm1891, %v3939, %v3995
        %v3997 = vsel %vm1893, %v3940, %v3996
        %v3998 = vsel %vm1895, %v3941, %v3997
        %v3999 = vsel %vm1897, %v3942, %v3998
        %v4000 = vsel %vm1899, %v3943, %v3999
        %v4001 = vsel %vm1887, %v3945, %v3944
        %v4002 = vsel %vm1889, %v3946, %v4001
        %v4003 = vsel %vm1891, %v3947, %v4002
        %v4004 = vsel %vm1893, %v3948, %v4003
        %v4005 = vsel %vm1895, %v3949, %v4004
        %v4006 = vsel %vm1897, %v3950, %v4005
        %v4007 = vsel %vm1899, %v3951, %v4006
        %v4008 = vsel %vm991, %v3958, 0
        %v4010 = vsel %vm991, %v3965, 0
        %v4012 = vsel %vm991, %v3972, 0
        %v4014 = vsel %vm991, %v3979, 0
        %v4016 = vsel %vm991, %v3986, 0
        %v4018 = vsel %vm991, %v3993, 0
        %v4020 = vsel %vm991, %v4000, 0
        %v4022 = vsel %vm991, %v4007, 0
        %4024 = vmatpush.msra.mxu0 0.0
        %4025 = vmatpush.msra.mxu0 0.0
        %4026 = vmatpush.msra.mxu0 0.0
        %4027 = vmatpush.msra.mxu0 0.0
        %4028 = vmatpush.msra.mxu0 0.0
        %4029 = vmatpush.msra.mxu0 0.0
        %4030 = vmatpush.msra.mxu0 0.0
        %4031 = vmatpush.msra.mxu0 0.0
        %4032 = vmatpush.msra.mxu0 0.0
        %4033 = vmatpush.msra.mxu0 0.0
        %4034 = vmatpush.msra.mxu0 0.0
        %4035 = vmatpush.msra.mxu0 0.0
        %4036 = vmatpush.msra.mxu0 0.0
        %4037 = vmatpush.msra.mxu0 0.0
        %4038 = vmatpush.msra.mxu0 0.0
        %4039 = vmatpush.msra.mxu0 %v974
        %4040 = vmatmul.f32.gmra.mxu0 %v4008
        %v4041 = vpop.f32.mrf.mxu0
        %v4042 = vadd.f32 0.0, %v4041
        %4043 = vmatmul.f32.gmra.mxu0 %v4010
        %v4044 = vpop.f32.mrf.mxu0
        %v4045 = vadd.f32 0.0, %v4044
        %4046 = vmatmul.f32.gmra.mxu0 %v4012
        %v4047 = vpop.f32.mrf.mxu0
        %v4048 = vadd.f32 0.0, %v4047
        %4049 = vmatmul.f32.gmra.mxu0 %v4014
        %v4050 = vpop.f32.mrf.mxu0
        %v4051 = vadd.f32 0.0, %v4050
        %4052 = vmatmul.f32.gmra.mxu0 %v4016
        %v4053 = vpop.f32.mrf.mxu0
        %v4054 = vadd.f32 0.0, %v4053
        %4055 = vmatmul.f32.gmra.mxu0 %v4018
        %v4056 = vpop.f32.mrf.mxu0
        %v4057 = vadd.f32 0.0, %v4056
        %4058 = vmatmul.f32.gmra.mxu0 %v4020
        %v4059 = vpop.f32.mrf.mxu0
        %v4060 = vadd.f32 0.0, %v4059
        %4061 = vmatmul.f32.gmra.mxu0 %v4022
        %v4062 = vpop.f32.mrf.mxu0
        %v4063 = vadd.f32 0.0, %v4062
        %4064 = vdwg.mxu0
        %v4065 = vadd.f32 %v3816, %v4042
        %v4066 = vadd.f32 %v3817, %v4045
        %v4067 = vadd.f32 %v3818, %v4048
        %v4068 = vadd.f32 %v3819, %v4051
        %v4069 = vadd.f32 %v3820, %v4054
        %v4070 = vadd.f32 %v3821, %v4057
        %v4071 = vadd.f32 %v3822, %v4060
        %v4072 = vadd.f32 %v3823, %v4063
        %v4073 = vsel %vm2264, %v4065, -inf
        %4074 = vmax.xlane.f32.xlu0 %v4073
        %v4075 = vpop.xlane.xlu0 %4074
        %v4076 = vsel %vm2264, %v4066, -inf
        %4077 = vmax.xlane.f32.xlu0 %v4076
        %v4078 = vpop.xlane.xlu0 %4077
        %v4079 = vsel %vm2264, %v4067, -inf
        %4080 = vmax.xlane.f32.xlu0 %v4079
        %v4081 = vpop.xlane.xlu0 %4080
        %v4082 = vsel %vm2264, %v4068, -inf
        %4083 = vmax.xlane.f32.xlu0 %v4082
        %v4084 = vpop.xlane.xlu0 %4083
        %v4085 = vsel %vm2264, %v4069, -inf
        %4086 = vmax.xlane.f32.xlu0 %v4085
        %v4087 = vpop.xlane.xlu0 %4086
        %v4088 = vsel %vm2264, %v4070, -inf
        %4089 = vmax.xlane.f32.xlu0 %v4088
        %v4090 = vpop.xlane.xlu0 %4089
        %v4091 = vsel %vm2264, %v4071, -inf
        %4092 = vmax.xlane.f32.xlu0 %v4091
        %v4093 = vpop.xlane.xlu0 %4092
        %v4094 = vsel %vm2264, %v4072, -inf
        %4095 = vmax.xlane.f32.xlu0 %v4094
        %v4096 = vpop.xlane.xlu0 %4095
        %v4097 = vsub.f32 %v4065, %v4075
        %v4098 = vsub.f32 %v4066, %v4078
        %v4099 = vsub.f32 %v4067, %v4081
        %v4100 = vsub.f32 %v4068, %v4084
        %v4101 = vsub.f32 %v4069, %v4087
        %v4102 = vsub.f32 %v4070, %v4090
        %v4103 = vsub.f32 %v4071, %v4093
        %v4104 = vsub.f32 %v4072, %v4096
        %v4105 = vmul.f32 %v4097, 1.442695
        %v4106 = vpow.pop %v4105
        %v4107 = vmul.f32 %v4098, 1.442695
        %v4108 = vpow.pop %v4107
        %v4109 = vmul.f32 %v4099, 1.442695
        %v4110 = vpow.pop %v4109
        %v4111 = vmul.f32 %v4100, 1.442695
        %v4112 = vpow.pop %v4111
        %v4113 = vmul.f32 %v4101, 1.442695
        %v4114 = vpow.pop %v4113
        %v4115 = vmul.f32 %v4102, 1.442695
        %v4116 = vpow.pop %v4115
        %v4117 = vmul.f32 %v4103, 1.442695
        %v4118 = vpow.pop %v4117
        %v4119 = vmul.f32 %v4104, 1.442695
        %v4120 = vpow.pop %v4119
        %v4121 = vsel %vm2264, %v4106, 0.0
        %4122 = vadd.xlane.f32.xlu0 %v4121
        %v4123 = vpop.xlane.xlu0 %4122
        %v4124 = vsel %vm2264, %v4108, 0.0
        %4125 = vadd.xlane.f32.xlu0 %v4124
        %v4126 = vpop.xlane.xlu0 %4125
        %v4127 = vsel %vm2264, %v4110, 0.0
        %4128 = vadd.xlane.f32.xlu0 %v4127
        %v4129 = vpop.xlane.xlu0 %4128
        %v4130 = vsel %vm2264, %v4112, 0.0
        %4131 = vadd.xlane.f32.xlu0 %v4130
        %v4132 = vpop.xlane.xlu0 %4131
        %v4133 = vsel %vm2264, %v4114, 0.0
        %4134 = vadd.xlane.f32.xlu0 %v4133
        %v4135 = vpop.xlane.xlu0 %4134
        %v4136 = vsel %vm2264, %v4116, 0.0
        %4137 = vadd.xlane.f32.xlu0 %v4136
        %v4138 = vpop.xlane.xlu0 %4137
        %v4139 = vsel %vm2264, %v4118, 0.0
        %4140 = vadd.xlane.f32.xlu0 %v4139
        %v4141 = vpop.xlane.xlu0 %4140
        %v4142 = vsel %vm2264, %v4120, 0.0
        %4143 = vadd.xlane.f32.xlu0 %v4142
        %v4144 = vpop.xlane.xlu0 %4143
        %v4145 = vrcp.pop %v4123
        %v4146 = vrcp.pop %v4126
        %v4147 = vrcp.pop %v4129
        %v4148 = vrcp.pop %v4132
        %v4149 = vrcp.pop %v4135
        %v4150 = vrcp.pop %v4138
        %v4151 = vrcp.pop %v4141
        %v4152 = vrcp.pop %v4144
        %v4153 = vmul.f32 %v4106, %v4145
        %v4154 = vmul.f32 %v4108, %v4146
        %v4155 = vmul.f32 %v4110, %v4147
        %v4156 = vmul.f32 %v4112, %v4148
        %v4157 = vmul.f32 %v4114, %v4149
        %v4158 = vmul.f32 %v4116, %v4150
        %v4159 = vmul.f32 %v4118, %v4151
        %v4160 = vmul.f32 %v4120, %v4152
        %v4161 = vpack.c.bf16 %v4154, %v4153
        %v4162 = vpack.c.bf16 %v4156, %v4155
        %v4163 = vpack.c.bf16 %v4158, %v4157
        %v4164 = vpack.c.bf16 %v4160, %v4159
        %4165 = vrot.lane.b32.xlu0 %v975, 56
        %v4166 = vpop.permute.xlu0 %4165
        %4167 = vrot.lane.b32.xlu0 %v976, 56
        %v4168 = vpop.permute.xlu0 %4167
        %4169 = vrot.lane.b32.xlu0 %v977, 56
        %v4170 = vpop.permute.xlu0 %4169
        %4171 = vrot.lane.b32.xlu0 %v978, 56
        %v4172 = vpop.permute.xlu0 %4171
        %v4178 = vsel %vm2264, %v4161, 0
        %v4181 = vsel %vm2264, %v4162, 0
        %v4184 = vsel %vm2264, %v4163, 0
        %v4187 = vsel %vm2264, %v4164, 0
        %4189 = vmatpush.bf16.msra.mxu0 0
        %4190 = vmatpush.bf16.msra.mxu0 0
        %4191 = vmatpush.bf16.msra.mxu0 0
        %4192 = vmatpush.bf16.msra.mxu0 0
        %4193 = vmatpush.bf16.msra.mxu0 %v4172
        %4194 = vmatpush.bf16.msra.mxu0 %v4170
        %4195 = vmatpush.bf16.msra.mxu0 %v4168
        %4196 = vmatpush.bf16.msra.mxu0 %v4166
        %4197 = vmatmul.bf16.gmra.mxu0 %v4178
        %v4198 = vpop.f32.mrf.mxu0
        %v4199 = vadd.f32 0.0, %v4198
        %v4200 = vpop.f32.mrf.mxu0
        %v4201 = vadd.f32 0.0, %v4200
        %4202 = vmatmul.bf16.gmra.mxu0 %v4181
        %v4203 = vpop.f32.mrf.mxu0
        %v4204 = vadd.f32 0.0, %v4203
        %v4205 = vpop.f32.mrf.mxu0
        %v4206 = vadd.f32 0.0, %v4205
        %4207 = vmatmul.bf16.gmra.mxu0 %v4184
        %v4208 = vpop.f32.mrf.mxu0
        %v4209 = vadd.f32 0.0, %v4208
        %v4210 = vpop.f32.mrf.mxu0
        %v4211 = vadd.f32 0.0, %v4210
        %4212 = vmatmul.bf16.gmra.mxu0 %v4187
        %v4213 = vpop.f32.mrf.mxu0
        %v4214 = vadd.f32 0.0, %v4213
        %v4215 = vpop.f32.mrf.mxu0
        %v4216 = vadd.f32 0.0, %v4215
        %4217 = vdwg.mxu0
        %4218 = vrot.lane.b32.xlu0 %v975, 112
        %v4219 = vpop.permute.xlu0 %4218
        %4220 = vrot.lane.b32.xlu0 %v976, 112
        %v4221 = vpop.permute.xlu0 %4220
        %4222 = vrot.lane.b32.xlu0 %v977, 112
        %v4223 = vpop.permute.xlu0 %4222
        %4224 = vrot.lane.b32.xlu0 %v978, 112
        %v4225 = vpop.permute.xlu0 %4224
        %4226 = vrot.lane.b32.xlu0 %v975, 80
        %v4227 = vpop.permute.xlu0 %4226
        %4228 = vrot.lane.b32.xlu0 %v976, 80
        %v4229 = vpop.permute.xlu0 %4228
        %4230 = vrot.lane.b32.xlu0 %v977, 80
        %v4231 = vpop.permute.xlu0 %4230
        %4232 = vrot.lane.b32.xlu0 %v978, 80
        %v4233 = vpop.permute.xlu0 %4232
        %v4235 = vsel %vm991, %v4219, 0
        %v4238 = vsel %vm991, %v4221, 0
        %v4241 = vsel %vm991, %v4223, 0
        %v4244 = vsel %vm991, %v4225, 0
        %v4247 = vsel %vm991, %v4227, 0
        %v4250 = vsel %vm991, %v4229, 0
        %v4253 = vsel %vm991, %v4231, 0
        %v4256 = vsel %vm991, %v4233, 0
        %4258 = vmatpush.bf16.xpose.msra.mxu0 0
        %4259 = vmatpush.bf16.xpose.msra.mxu0 0
        %4260 = vmatpush.bf16.xpose.msra.mxu0 0
        %4261 = vmatpush.bf16.xpose.msra.mxu0 0
        %4262 = vmatpush.bf16.xpose.msra.mxu0 %v4256
        %4263 = vmatpush.bf16.xpose.msra.mxu0 %v4253
        %4264 = vmatpush.bf16.xpose.msra.mxu0 %v4250
        %4265 = vmatpush.bf16.xpose.msra.mxu0 %v4247
        %4266 = vmatmul.bf16.gmra.mxu0 %v4235
        %v4267 = vpop.f32.mrf.mxu0
        %v4268 = vadd.f32 0.0, %v4267
        %v4269 = vpop.f32.mrf.mxu0
        %v4270 = vadd.f32 0.0, %v4269
        %4271 = vmatmul.bf16.gmra.mxu0 %v4238
        %v4272 = vpop.f32.mrf.mxu0
        %v4273 = vadd.f32 0.0, %v4272
        %v4274 = vpop.f32.mrf.mxu0
        %v4275 = vadd.f32 0.0, %v4274
        %4276 = vmatmul.bf16.gmra.mxu0 %v4241
        %v4277 = vpop.f32.mrf.mxu0
        %v4278 = vadd.f32 0.0, %v4277
        %v4279 = vpop.f32.mrf.mxu0
        %v4280 = vadd.f32 0.0, %v4279
        %4281 = vmatmul.bf16.gmra.mxu0 %v4244
        %v4282 = vpop.f32.mrf.mxu0
        %v4283 = vadd.f32 0.0, %v4282
        %v4284 = vpop.f32.mrf.mxu0
        %v4285 = vadd.f32 0.0, %v4284
        %4286 = vdwg.mxu0
        %v4287 = vmul.f32 %v4268, 0.35355338
        %v4288 = vmul.f32 %v4270, 0.35355338
        %v4289 = vmul.f32 %v4273, 0.35355338
        %v4290 = vmul.f32 %v4275, 0.35355338
        %v4291 = vmul.f32 %v4278, 0.35355338
        %v4292 = vmul.f32 %v4280, 0.35355338
        %v4293 = vmul.f32 %v4283, 0.35355338
        %v4294 = vmul.f32 %v4285, 0.35355338
        %4295 = vrot.lane.b32.xlu0 %v957, 16
        %v4296 = vpop.permute.xlu0 %4295
        %4297 = vrot.lane.b32.xlu0 %v958, 16
        %v4298 = vpop.permute.xlu0 %4297
        %4299 = vrot.lane.b32.xlu0 %v959, 16
        %v4300 = vpop.permute.xlu0 %4299
        %4301 = vrot.lane.b32.xlu0 %v960, 16
        %v4302 = vpop.permute.xlu0 %4301
        %4303 = vrot.lane.b32.xlu0 %v961, 16
        %v4304 = vpop.permute.xlu0 %4303
        %4305 = vrot.lane.b32.xlu0 %v962, 16
        %v4306 = vpop.permute.xlu0 %4305
        %4307 = vrot.lane.b32.xlu0 %v963, 16
        %v4308 = vpop.permute.xlu0 %4307
        %4309 = vrot.lane.b32.xlu0 %v964, 16
        %v4310 = vpop.permute.xlu0 %4309
        %v4319 = vmul.f32 %v1117, %v4296
        %v4320 = vmul.f32 %v1118, %v4296
        %v4321 = vmul.f32 %v1119, %v4296
        %v4322 = vmul.f32 %v1120, %v4296
        %v4323 = vmul.f32 %v1121, %v4296
        %v4324 = vmul.f32 %v1122, %v4296
        %v4325 = vmul.f32 %v1123, %v4296
        %v4326 = vmul.f32 %v1124, %v4296
        %v4327 = vmul.f32 %v1125, %v4298
        %v4328 = vmul.f32 %v1126, %v4298
        %v4329 = vmul.f32 %v1127, %v4298
        %v4330 = vmul.f32 %v1128, %v4298
        %v4331 = vmul.f32 %v1129, %v4298
        %v4332 = vmul.f32 %v1130, %v4298
        %v4333 = vmul.f32 %v1131, %v4298
        %v4334 = vmul.f32 %v1132, %v4298
        %v4335 = vmul.f32 %v1133, %v4300
        %v4336 = vmul.f32 %v1134, %v4300
        %v4337 = vmul.f32 %v1135, %v4300
        %v4338 = vmul.f32 %v1136, %v4300
        %v4339 = vmul.f32 %v1137, %v4300
        %v4340 = vmul.f32 %v1138, %v4300
        %v4341 = vmul.f32 %v1139, %v4300
        %v4342 = vmul.f32 %v1140, %v4300
        %v4343 = vmul.f32 %v1141, %v4302
        %v4344 = vmul.f32 %v1142, %v4302
        %v4345 = vmul.f32 %v1143, %v4302
        %v4346 = vmul.f32 %v1144, %v4302
        %v4347 = vmul.f32 %v1145, %v4302
        %v4348 = vmul.f32 %v1146, %v4302
        %v4349 = vmul.f32 %v1147, %v4302
        %v4350 = vmul.f32 %v1148, %v4302
        %v4351 = vmul.f32 %v1149, %v4304
        %v4352 = vmul.f32 %v1150, %v4304
        %v4353 = vmul.f32 %v1151, %v4304
        %v4354 = vmul.f32 %v1152, %v4304
        %v4355 = vmul.f32 %v1153, %v4304
        %v4356 = vmul.f32 %v1154, %v4304
        %v4357 = vmul.f32 %v1155, %v4304
        %v4358 = vmul.f32 %v1156, %v4304
        %v4359 = vmul.f32 %v1157, %v4306
        %v4360 = vmul.f32 %v1158, %v4306
        %v4361 = vmul.f32 %v1159, %v4306
        %v4362 = vmul.f32 %v1160, %v4306
        %v4363 = vmul.f32 %v1161, %v4306
        %v4364 = vmul.f32 %v1162, %v4306
        %v4365 = vmul.f32 %v1163, %v4306
        %v4366 = vmul.f32 %v1164, %v4306
        %v4367 = vmul.f32 %v1165, %v4308
        %v4368 = vmul.f32 %v1166, %v4308
        %v4369 = vmul.f32 %v1167, %v4308
        %v4370 = vmul.f32 %v1168, %v4308
        %v4371 = vmul.f32 %v1169, %v4308
        %v4372 = vmul.f32 %v1170, %v4308
        %v4373 = vmul.f32 %v1171, %v4308
        %v4374 = vmul.f32 %v1172, %v4308
        %v4375 = vmul.f32 %v1173, %v4310
        %v4376 = vmul.f32 %v1174, %v4310
        %v4377 = vmul.f32 %v1175, %v4310
        %v4378 = vmul.f32 %v1176, %v4310
        %v4379 = vmul.f32 %v1177, %v4310
        %v4380 = vmul.f32 %v1178, %v4310
        %v4381 = vmul.f32 %v1179, %v4310
        %v4382 = vmul.f32 %v1180, %v4310
        %4447 = vrot.lane.b32.xlu0 %v4319, 112
        %v4448 = vpop.permute.xlu0 %4447
        %4449 = vrot.lane.b32.xlu0 %v4320, 112
        %v4450 = vpop.permute.xlu0 %4449
        %4451 = vrot.lane.b32.xlu0 %v4321, 112
        %v4452 = vpop.permute.xlu0 %4451
        %4453 = vrot.lane.b32.xlu0 %v4322, 112
        %v4454 = vpop.permute.xlu0 %4453
        %4455 = vrot.lane.b32.xlu0 %v4323, 112
        %v4456 = vpop.permute.xlu0 %4455
        %4457 = vrot.lane.b32.xlu0 %v4324, 112
        %v4458 = vpop.permute.xlu0 %4457
        %4459 = vrot.lane.b32.xlu0 %v4325, 112
        %v4460 = vpop.permute.xlu0 %4459
        %4461 = vrot.lane.b32.xlu0 %v4326, 112
        %v4462 = vpop.permute.xlu0 %4461
        %4463 = vrot.lane.b32.xlu0 %v4327, 112
        %v4464 = vpop.permute.xlu0 %4463
        %4465 = vrot.lane.b32.xlu0 %v4328, 112
        %v4466 = vpop.permute.xlu0 %4465
        %4467 = vrot.lane.b32.xlu0 %v4329, 112
        %v4468 = vpop.permute.xlu0 %4467
        %4469 = vrot.lane.b32.xlu0 %v4330, 112
        %v4470 = vpop.permute.xlu0 %4469
        %4471 = vrot.lane.b32.xlu0 %v4331, 112
        %v4472 = vpop.permute.xlu0 %4471
        %4473 = vrot.lane.b32.xlu0 %v4332, 112
        %v4474 = vpop.permute.xlu0 %4473
        %4475 = vrot.lane.b32.xlu0 %v4333, 112
        %v4476 = vpop.permute.xlu0 %4475
        %4477 = vrot.lane.b32.xlu0 %v4334, 112
        %v4478 = vpop.permute.xlu0 %4477
        %4479 = vrot.lane.b32.xlu0 %v4335, 112
        %v4480 = vpop.permute.xlu0 %4479
        %4481 = vrot.lane.b32.xlu0 %v4336, 112
        %v4482 = vpop.permute.xlu0 %4481
        %4483 = vrot.lane.b32.xlu0 %v4337, 112
        %v4484 = vpop.permute.xlu0 %4483
        %4485 = vrot.lane.b32.xlu0 %v4338, 112
        %v4486 = vpop.permute.xlu0 %4485
        %4487 = vrot.lane.b32.xlu0 %v4339, 112
        %v4488 = vpop.permute.xlu0 %4487
        %4489 = vrot.lane.b32.xlu0 %v4340, 112
        %v4490 = vpop.permute.xlu0 %4489
        %4491 = vrot.lane.b32.xlu0 %v4341, 112
        %v4492 = vpop.permute.xlu0 %4491
        %4493 = vrot.lane.b32.xlu0 %v4342, 112
        %v4494 = vpop.permute.xlu0 %4493
        %4495 = vrot.lane.b32.xlu0 %v4343, 112
        %v4496 = vpop.permute.xlu0 %4495
        %4497 = vrot.lane.b32.xlu0 %v4344, 112
        %v4498 = vpop.permute.xlu0 %4497
        %4499 = vrot.lane.b32.xlu0 %v4345, 112
        %v4500 = vpop.permute.xlu0 %4499
        %4501 = vrot.lane.b32.xlu0 %v4346, 112
        %v4502 = vpop.permute.xlu0 %4501
        %4503 = vrot.lane.b32.xlu0 %v4347, 112
        %v4504 = vpop.permute.xlu0 %4503
        %4505 = vrot.lane.b32.xlu0 %v4348, 112
        %v4506 = vpop.permute.xlu0 %4505
        %4507 = vrot.lane.b32.xlu0 %v4349, 112
        %v4508 = vpop.permute.xlu0 %4507
        %4509 = vrot.lane.b32.xlu0 %v4350, 112
        %v4510 = vpop.permute.xlu0 %4509
        %4511 = vrot.lane.b32.xlu0 %v4351, 112
        %v4512 = vpop.permute.xlu0 %4511
        %4513 = vrot.lane.b32.xlu0 %v4352, 112
        %v4514 = vpop.permute.xlu0 %4513
        %4515 = vrot.lane.b32.xlu0 %v4353, 112
        %v4516 = vpop.permute.xlu0 %4515
        %4517 = vrot.lane.b32.xlu0 %v4354, 112
        %v4518 = vpop.permute.xlu0 %4517
        %4519 = vrot.lane.b32.xlu0 %v4355, 112
        %v4520 = vpop.permute.xlu0 %4519
        %4521 = vrot.lane.b32.xlu0 %v4356, 112
        %v4522 = vpop.permute.xlu0 %4521
        %4523 = vrot.lane.b32.xlu0 %v4357, 112
        %v4524 = vpop.permute.xlu0 %4523
        %4525 = vrot.lane.b32.xlu0 %v4358, 112
        %v4526 = vpop.permute.xlu0 %4525
        %4527 = vrot.lane.b32.xlu0 %v4359, 112
        %v4528 = vpop.permute.xlu0 %4527
        %4529 = vrot.lane.b32.xlu0 %v4360, 112
        %v4530 = vpop.permute.xlu0 %4529
        %4531 = vrot.lane.b32.xlu0 %v4361, 112
        %v4532 = vpop.permute.xlu0 %4531
        %4533 = vrot.lane.b32.xlu0 %v4362, 112
        %v4534 = vpop.permute.xlu0 %4533
        %4535 = vrot.lane.b32.xlu0 %v4363, 112
        %v4536 = vpop.permute.xlu0 %4535
        %4537 = vrot.lane.b32.xlu0 %v4364, 112
        %v4538 = vpop.permute.xlu0 %4537
        %4539 = vrot.lane.b32.xlu0 %v4365, 112
        %v4540 = vpop.permute.xlu0 %4539
        %4541 = vrot.lane.b32.xlu0 %v4366, 112
        %v4542 = vpop.permute.xlu0 %4541
        %4543 = vrot.lane.b32.xlu0 %v4367, 112
        %v4544 = vpop.permute.xlu0 %4543
        %4545 = vrot.lane.b32.xlu0 %v4368, 112
        %v4546 = vpop.permute.xlu0 %4545
        %4547 = vrot.lane.b32.xlu0 %v4369, 112
        %v4548 = vpop.permute.xlu0 %4547
        %4549 = vrot.lane.b32.xlu0 %v4370, 112
        %v4550 = vpop.permute.xlu0 %4549
        %4551 = vrot.lane.b32.xlu0 %v4371, 112
        %v4552 = vpop.permute.xlu0 %4551
        %4553 = vrot.lane.b32.xlu0 %v4372, 112
        %v4554 = vpop.permute.xlu0 %4553
        %4555 = vrot.lane.b32.xlu0 %v4373, 112
        %v4556 = vpop.permute.xlu0 %4555
        %4557 = vrot.lane.b32.xlu0 %v4374, 112
        %v4558 = vpop.permute.xlu0 %4557
        %4559 = vrot.lane.b32.xlu0 %v4375, 112
        %v4560 = vpop.permute.xlu0 %4559
        %4561 = vrot.lane.b32.xlu0 %v4376, 112
        %v4562 = vpop.permute.xlu0 %4561
        %4563 = vrot.lane.b32.xlu0 %v4377, 112
        %v4564 = vpop.permute.xlu0 %4563
        %4565 = vrot.lane.b32.xlu0 %v4378, 112
        %v4566 = vpop.permute.xlu0 %4565
        %4567 = vrot.lane.b32.xlu0 %v4379, 112
        %v4568 = vpop.permute.xlu0 %4567
        %4569 = vrot.lane.b32.xlu0 %v4380, 112
        %v4570 = vpop.permute.xlu0 %4569
        %4571 = vrot.lane.b32.xlu0 %v4381, 112
        %v4572 = vpop.permute.xlu0 %4571
        %4573 = vrot.lane.b32.xlu0 %v4382, 112
        %v4574 = vpop.permute.xlu0 %4573
        %v4639 = vsel %vm991, %v4448, 0.0
        %4640 = vadd.xlane.f32.xlu0 %v4639
        %v4641 = vpop.xlane.xlu0 %4640
        %v4642 = vsel %vm991, %v4450, 0.0
        %4643 = vadd.xlane.f32.xlu0 %v4642
        %v4644 = vpop.xlane.xlu0 %4643
        %v4645 = vsel %vm991, %v4452, 0.0
        %4646 = vadd.xlane.f32.xlu0 %v4645
        %v4647 = vpop.xlane.xlu0 %4646
        %v4648 = vsel %vm991, %v4454, 0.0
        %4649 = vadd.xlane.f32.xlu0 %v4648
        %v4650 = vpop.xlane.xlu0 %4649
        %v4651 = vsel %vm991, %v4456, 0.0
        %4652 = vadd.xlane.f32.xlu0 %v4651
        %v4653 = vpop.xlane.xlu0 %4652
        %v4654 = vsel %vm991, %v4458, 0.0
        %4655 = vadd.xlane.f32.xlu0 %v4654
        %v4656 = vpop.xlane.xlu0 %4655
        %v4657 = vsel %vm991, %v4460, 0.0
        %4658 = vadd.xlane.f32.xlu0 %v4657
        %v4659 = vpop.xlane.xlu0 %4658
        %v4660 = vsel %vm991, %v4462, 0.0
        %4661 = vadd.xlane.f32.xlu0 %v4660
        %v4662 = vpop.xlane.xlu0 %4661
        %v4663 = vsel %vm991, %v4464, 0.0
        %4664 = vadd.xlane.f32.xlu0 %v4663
        %v4665 = vpop.xlane.xlu0 %4664
        %v4666 = vsel %vm991, %v4466, 0.0
        %4667 = vadd.xlane.f32.xlu0 %v4666
        %v4668 = vpop.xlane.xlu0 %4667
        %v4669 = vsel %vm991, %v4468, 0.0
        %4670 = vadd.xlane.f32.xlu0 %v4669
        %v4671 = vpop.xlane.xlu0 %4670
        %v4672 = vsel %vm991, %v4470, 0.0
        %4673 = vadd.xlane.f32.xlu0 %v4672
        %v4674 = vpop.xlane.xlu0 %4673
        %v4675 = vsel %vm991, %v4472, 0.0
        %4676 = vadd.xlane.f32.xlu0 %v4675
        %v4677 = vpop.xlane.xlu0 %4676
        %v4678 = vsel %vm991, %v4474, 0.0
        %4679 = vadd.xlane.f32.xlu0 %v4678
        %v4680 = vpop.xlane.xlu0 %4679
        %v4681 = vsel %vm991, %v4476, 0.0
        %4682 = vadd.xlane.f32.xlu0 %v4681
        %v4683 = vpop.xlane.xlu0 %4682
        %v4684 = vsel %vm991, %v4478, 0.0
        %4685 = vadd.xlane.f32.xlu0 %v4684
        %v4686 = vpop.xlane.xlu0 %4685
        %v4687 = vsel %vm991, %v4480, 0.0
        %4688 = vadd.xlane.f32.xlu0 %v4687
        %v4689 = vpop.xlane.xlu0 %4688
        %v4690 = vsel %vm991, %v4482, 0.0
        %4691 = vadd.xlane.f32.xlu0 %v4690
        %v4692 = vpop.xlane.xlu0 %4691
        %v4693 = vsel %vm991, %v4484, 0.0
        %4694 = vadd.xlane.f32.xlu0 %v4693
        %v4695 = vpop.xlane.xlu0 %4694
        %v4696 = vsel %vm991, %v4486, 0.0
        %4697 = vadd.xlane.f32.xlu0 %v4696
        %v4698 = vpop.xlane.xlu0 %4697
        %v4699 = vsel %vm991, %v4488, 0.0
        %4700 = vadd.xlane.f32.xlu0 %v4699
        %v4701 = vpop.xlane.xlu0 %4700
        %v4702 = vsel %vm991, %v4490, 0.0
        %4703 = vadd.xlane.f32.xlu0 %v4702
        %v4704 = vpop.xlane.xlu0 %4703
        %v4705 = vsel %vm991, %v4492, 0.0
        %4706 = vadd.xlane.f32.xlu0 %v4705
        %v4707 = vpop.xlane.xlu0 %4706
        %v4708 = vsel %vm991, %v4494, 0.0
        %4709 = vadd.xlane.f32.xlu0 %v4708
        %v4710 = vpop.xlane.xlu0 %4709
        %v4711 = vsel %vm991, %v4496, 0.0
        %4712 = vadd.xlane.f32.xlu0 %v4711
        %v4713 = vpop.xlane.xlu0 %4712
        %v4714 = vsel %vm991, %v4498, 0.0
        %4715 = vadd.xlane.f32.xlu0 %v4714
        %v4716 = vpop.xlane.xlu0 %4715
        %v4717 = vsel %vm991, %v4500, 0.0
        %4718 = vadd.xlane.f32.xlu0 %v4717
        %v4719 = vpop.xlane.xlu0 %4718
        %v4720 = vsel %vm991, %v4502, 0.0
        %4721 = vadd.xlane.f32.xlu0 %v4720
        %v4722 = vpop.xlane.xlu0 %4721
        %v4723 = vsel %vm991, %v4504, 0.0
        %4724 = vadd.xlane.f32.xlu0 %v4723
        %v4725 = vpop.xlane.xlu0 %4724
        %v4726 = vsel %vm991, %v4506, 0.0
        %4727 = vadd.xlane.f32.xlu0 %v4726
        %v4728 = vpop.xlane.xlu0 %4727
        %v4729 = vsel %vm991, %v4508, 0.0
        %4730 = vadd.xlane.f32.xlu0 %v4729
        %v4731 = vpop.xlane.xlu0 %4730
        %v4732 = vsel %vm991, %v4510, 0.0
        %4733 = vadd.xlane.f32.xlu0 %v4732
        %v4734 = vpop.xlane.xlu0 %4733
        %v4735 = vsel %vm991, %v4512, 0.0
        %4736 = vadd.xlane.f32.xlu0 %v4735
        %v4737 = vpop.xlane.xlu0 %4736
        %v4738 = vsel %vm991, %v4514, 0.0
        %4739 = vadd.xlane.f32.xlu0 %v4738
        %v4740 = vpop.xlane.xlu0 %4739
        %v4741 = vsel %vm991, %v4516, 0.0
        %4742 = vadd.xlane.f32.xlu0 %v4741
        %v4743 = vpop.xlane.xlu0 %4742
        %v4744 = vsel %vm991, %v4518, 0.0
        %4745 = vadd.xlane.f32.xlu0 %v4744
        %v4746 = vpop.xlane.xlu0 %4745
        %v4747 = vsel %vm991, %v4520, 0.0
        %4748 = vadd.xlane.f32.xlu0 %v4747
        %v4749 = vpop.xlane.xlu0 %4748
        %v4750 = vsel %vm991, %v4522, 0.0
        %4751 = vadd.xlane.f32.xlu0 %v4750
        %v4752 = vpop.xlane.xlu0 %4751
        %v4753 = vsel %vm991, %v4524, 0.0
        %4754 = vadd.xlane.f32.xlu0 %v4753
        %v4755 = vpop.xlane.xlu0 %4754
        %v4756 = vsel %vm991, %v4526, 0.0
        %4757 = vadd.xlane.f32.xlu0 %v4756
        %v4758 = vpop.xlane.xlu0 %4757
        %v4759 = vsel %vm991, %v4528, 0.0
        %4760 = vadd.xlane.f32.xlu0 %v4759
        %v4761 = vpop.xlane.xlu0 %4760
        %v4762 = vsel %vm991, %v4530, 0.0
        %4763 = vadd.xlane.f32.xlu0 %v4762
        %v4764 = vpop.xlane.xlu0 %4763
        %v4765 = vsel %vm991, %v4532, 0.0
        %4766 = vadd.xlane.f32.xlu0 %v4765
        %v4767 = vpop.xlane.xlu0 %4766
        %v4768 = vsel %vm991, %v4534, 0.0
        %4769 = vadd.xlane.f32.xlu0 %v4768
        %v4770 = vpop.xlane.xlu0 %4769
        %v4771 = vsel %vm991, %v4536, 0.0
        %4772 = vadd.xlane.f32.xlu0 %v4771
        %v4773 = vpop.xlane.xlu0 %4772
        %v4774 = vsel %vm991, %v4538, 0.0
        %4775 = vadd.xlane.f32.xlu0 %v4774
        %v4776 = vpop.xlane.xlu0 %4775
        %v4777 = vsel %vm991, %v4540, 0.0
        %4778 = vadd.xlane.f32.xlu0 %v4777
        %v4779 = vpop.xlane.xlu0 %4778
        %v4780 = vsel %vm991, %v4542, 0.0
        %4781 = vadd.xlane.f32.xlu0 %v4780
        %v4782 = vpop.xlane.xlu0 %4781
        %v4783 = vsel %vm991, %v4544, 0.0
        %4784 = vadd.xlane.f32.xlu0 %v4783
        %v4785 = vpop.xlane.xlu0 %4784
        %v4786 = vsel %vm991, %v4546, 0.0
        %4787 = vadd.xlane.f32.xlu0 %v4786
        %v4788 = vpop.xlane.xlu0 %4787
        %v4789 = vsel %vm991, %v4548, 0.0
        %4790 = vadd.xlane.f32.xlu0 %v4789
        %v4791 = vpop.xlane.xlu0 %4790
        %v4792 = vsel %vm991, %v4550, 0.0
        %4793 = vadd.xlane.f32.xlu0 %v4792
        %v4794 = vpop.xlane.xlu0 %4793
        %v4795 = vsel %vm991, %v4552, 0.0
        %4796 = vadd.xlane.f32.xlu0 %v4795
        %v4797 = vpop.xlane.xlu0 %4796
        %v4798 = vsel %vm991, %v4554, 0.0
        %4799 = vadd.xlane.f32.xlu0 %v4798
        %v4800 = vpop.xlane.xlu0 %4799
        %v4801 = vsel %vm991, %v4556, 0.0
        %4802 = vadd.xlane.f32.xlu0 %v4801
        %v4803 = vpop.xlane.xlu0 %4802
        %v4804 = vsel %vm991, %v4558, 0.0
        %4805 = vadd.xlane.f32.xlu0 %v4804
        %v4806 = vpop.xlane.xlu0 %4805
        %v4807 = vsel %vm991, %v4560, 0.0
        %4808 = vadd.xlane.f32.xlu0 %v4807
        %v4809 = vpop.xlane.xlu0 %4808
        %v4810 = vsel %vm991, %v4562, 0.0
        %4811 = vadd.xlane.f32.xlu0 %v4810
        %v4812 = vpop.xlane.xlu0 %4811
        %v4813 = vsel %vm991, %v4564, 0.0
        %4814 = vadd.xlane.f32.xlu0 %v4813
        %v4815 = vpop.xlane.xlu0 %4814
        %v4816 = vsel %vm991, %v4566, 0.0
        %4817 = vadd.xlane.f32.xlu0 %v4816
        %v4818 = vpop.xlane.xlu0 %4817
        %v4819 = vsel %vm991, %v4568, 0.0
        %4820 = vadd.xlane.f32.xlu0 %v4819
        %v4821 = vpop.xlane.xlu0 %4820
        %v4822 = vsel %vm991, %v4570, 0.0
        %4823 = vadd.xlane.f32.xlu0 %v4822
        %v4824 = vpop.xlane.xlu0 %4823
        %v4825 = vsel %vm991, %v4572, 0.0
        %4826 = vadd.xlane.f32.xlu0 %v4825
        %v4827 = vpop.xlane.xlu0 %4826
        %v4828 = vsel %vm991, %v4574, 0.0
        %4829 = vadd.xlane.f32.xlu0 %v4828
        %v4830 = vpop.xlane.xlu0 %4829
        %4831 = vrot.lane.b32.xlu0 %v965, 16
        %v4832 = vpop.permute.xlu0 %4831
        %4833 = vrot.lane.b32.xlu0 %v966, 16
        %v4834 = vpop.permute.xlu0 %4833
        %4835 = vrot.lane.b32.xlu0 %v967, 16
        %v4836 = vpop.permute.xlu0 %4835
        %4837 = vrot.lane.b32.xlu0 %v968, 16
        %v4838 = vpop.permute.xlu0 %4837
        %4839 = vrot.lane.b32.xlu0 %v969, 16
        %v4840 = vpop.permute.xlu0 %4839
        %4841 = vrot.lane.b32.xlu0 %v970, 16
        %v4842 = vpop.permute.xlu0 %4841
        %4843 = vrot.lane.b32.xlu0 %v971, 16
        %v4844 = vpop.permute.xlu0 %4843
        %4845 = vrot.lane.b32.xlu0 %v972, 16
        %v4846 = vpop.permute.xlu0 %4845
        %v4855 = vmul.f32 %v1117, %v4832
        %v4856 = vmul.f32 %v1118, %v4834
        %v4857 = vmul.f32 %v1119, %v4836
        %v4858 = vmul.f32 %v1120, %v4838
        %v4859 = vmul.f32 %v1121, %v4840
        %v4860 = vmul.f32 %v1122, %v4842
        %v4861 = vmul.f32 %v1123, %v4844
        %v4862 = vmul.f32 %v1124, %v4846
        %v4863 = vmul.f32 %v1125, %v4832
        %v4864 = vmul.f32 %v1126, %v4834
        %v4865 = vmul.f32 %v1127, %v4836
        %v4866 = vmul.f32 %v1128, %v4838
        %v4867 = vmul.f32 %v1129, %v4840
        %v4868 = vmul.f32 %v1130, %v4842
        %v4869 = vmul.f32 %v1131, %v4844
        %v4870 = vmul.f32 %v1132, %v4846
        %v4871 = vmul.f32 %v1133, %v4832
        %v4872 = vmul.f32 %v1134, %v4834
        %v4873 = vmul.f32 %v1135, %v4836
        %v4874 = vmul.f32 %v1136, %v4838
        %v4875 = vmul.f32 %v1137, %v4840
        %v4876 = vmul.f32 %v1138, %v4842
        %v4877 = vmul.f32 %v1139, %v4844
        %v4878 = vmul.f32 %v1140, %v4846
        %v4879 = vmul.f32 %v1141, %v4832
        %v4880 = vmul.f32 %v1142, %v4834
        %v4881 = vmul.f32 %v1143, %v4836
        %v4882 = vmul.f32 %v1144, %v4838
        %v4883 = vmul.f32 %v1145, %v4840
        %v4884 = vmul.f32 %v1146, %v4842
        %v4885 = vmul.f32 %v1147, %v4844
        %v4886 = vmul.f32 %v1148, %v4846
        %v4887 = vmul.f32 %v1149, %v4832
        %v4888 = vmul.f32 %v1150, %v4834
        %v4889 = vmul.f32 %v1151, %v4836
        %v4890 = vmul.f32 %v1152, %v4838
        %v4891 = vmul.f32 %v1153, %v4840
        %v4892 = vmul.f32 %v1154, %v4842
        %v4893 = vmul.f32 %v1155, %v4844
        %v4894 = vmul.f32 %v1156, %v4846
        %v4895 = vmul.f32 %v1157, %v4832
        %v4896 = vmul.f32 %v1158, %v4834
        %v4897 = vmul.f32 %v1159, %v4836
        %v4898 = vmul.f32 %v1160, %v4838
        %v4899 = vmul.f32 %v1161, %v4840
        %v4900 = vmul.f32 %v1162, %v4842
        %v4901 = vmul.f32 %v1163, %v4844
        %v4902 = vmul.f32 %v1164, %v4846
        %v4903 = vmul.f32 %v1165, %v4832
        %v4904 = vmul.f32 %v1166, %v4834
        %v4905 = vmul.f32 %v1167, %v4836
        %v4906 = vmul.f32 %v1168, %v4838
        %v4907 = vmul.f32 %v1169, %v4840
        %v4908 = vmul.f32 %v1170, %v4842
        %v4909 = vmul.f32 %v1171, %v4844
        %v4910 = vmul.f32 %v1172, %v4846
        %v4911 = vmul.f32 %v1173, %v4832
        %v4912 = vmul.f32 %v1174, %v4834
        %v4913 = vmul.f32 %v1175, %v4836
        %v4914 = vmul.f32 %v1176, %v4838
        %v4915 = vmul.f32 %v1177, %v4840
        %v4916 = vmul.f32 %v1178, %v4842
        %v4917 = vmul.f32 %v1179, %v4844
        %v4918 = vmul.f32 %v1180, %v4846
        %4983 = vrot.lane.b32.xlu0 %v4855, 112
        %v4984 = vpop.permute.xlu0 %4983
        %4985 = vrot.lane.b32.xlu0 %v4856, 112
        %v4986 = vpop.permute.xlu0 %4985
        %4987 = vrot.lane.b32.xlu0 %v4857, 112
        %v4988 = vpop.permute.xlu0 %4987
        %4989 = vrot.lane.b32.xlu0 %v4858, 112
        %v4990 = vpop.permute.xlu0 %4989
        %4991 = vrot.lane.b32.xlu0 %v4859, 112
        %v4992 = vpop.permute.xlu0 %4991
        %4993 = vrot.lane.b32.xlu0 %v4860, 112
        %v4994 = vpop.permute.xlu0 %4993
        %4995 = vrot.lane.b32.xlu0 %v4861, 112
        %v4996 = vpop.permute.xlu0 %4995
        %4997 = vrot.lane.b32.xlu0 %v4862, 112
        %v4998 = vpop.permute.xlu0 %4997
        %4999 = vrot.lane.b32.xlu0 %v4863, 112
        %v5000 = vpop.permute.xlu0 %4999
        %5001 = vrot.lane.b32.xlu0 %v4864, 112
        %v5002 = vpop.permute.xlu0 %5001
        %5003 = vrot.lane.b32.xlu0 %v4865, 112
        %v5004 = vpop.permute.xlu0 %5003
        %5005 = vrot.lane.b32.xlu0 %v4866, 112
        %v5006 = vpop.permute.xlu0 %5005
        %5007 = vrot.lane.b32.xlu0 %v4867, 112
        %v5008 = vpop.permute.xlu0 %5007
        %5009 = vrot.lane.b32.xlu0 %v4868, 112
        %v5010 = vpop.permute.xlu0 %5009
        %5011 = vrot.lane.b32.xlu0 %v4869, 112
        %v5012 = vpop.permute.xlu0 %5011
        %5013 = vrot.lane.b32.xlu0 %v4870, 112
        %v5014 = vpop.permute.xlu0 %5013
        %5015 = vrot.lane.b32.xlu0 %v4871, 112
        %v5016 = vpop.permute.xlu0 %5015
        %5017 = vrot.lane.b32.xlu0 %v4872, 112
        %v5018 = vpop.permute.xlu0 %5017
        %5019 = vrot.lane.b32.xlu0 %v4873, 112
        %v5020 = vpop.permute.xlu0 %5019
        %5021 = vrot.lane.b32.xlu0 %v4874, 112
        %v5022 = vpop.permute.xlu0 %5021
        %5023 = vrot.lane.b32.xlu0 %v4875, 112
        %v5024 = vpop.permute.xlu0 %5023
        %5025 = vrot.lane.b32.xlu0 %v4876, 112
        %v5026 = vpop.permute.xlu0 %5025
        %5027 = vrot.lane.b32.xlu0 %v4877, 112
        %v5028 = vpop.permute.xlu0 %5027
        %5029 = vrot.lane.b32.xlu0 %v4878, 112
        %v5030 = vpop.permute.xlu0 %5029
        %5031 = vrot.lane.b32.xlu0 %v4879, 112
        %v5032 = vpop.permute.xlu0 %5031
        %5033 = vrot.lane.b32.xlu0 %v4880, 112
        %v5034 = vpop.permute.xlu0 %5033
        %5035 = vrot.lane.b32.xlu0 %v4881, 112
        %v5036 = vpop.permute.xlu0 %5035
        %5037 = vrot.lane.b32.xlu0 %v4882, 112
        %v5038 = vpop.permute.xlu0 %5037
        %5039 = vrot.lane.b32.xlu0 %v4883, 112
        %v5040 = vpop.permute.xlu0 %5039
        %5041 = vrot.lane.b32.xlu0 %v4884, 112
        %v5042 = vpop.permute.xlu0 %5041
        %5043 = vrot.lane.b32.xlu0 %v4885, 112
        %v5044 = vpop.permute.xlu0 %5043
        %5045 = vrot.lane.b32.xlu0 %v4886, 112
        %v5046 = vpop.permute.xlu0 %5045
        %5047 = vrot.lane.b32.xlu0 %v4887, 112
        %v5048 = vpop.permute.xlu0 %5047
        %5049 = vrot.lane.b32.xlu0 %v4888, 112
        %v5050 = vpop.permute.xlu0 %5049
        %5051 = vrot.lane.b32.xlu0 %v4889, 112
        %v5052 = vpop.permute.xlu0 %5051
        %5053 = vrot.lane.b32.xlu0 %v4890, 112
        %v5054 = vpop.permute.xlu0 %5053
        %5055 = vrot.lane.b32.xlu0 %v4891, 112
        %v5056 = vpop.permute.xlu0 %5055
        %5057 = vrot.lane.b32.xlu0 %v4892, 112
        %v5058 = vpop.permute.xlu0 %5057
        %5059 = vrot.lane.b32.xlu0 %v4893, 112
        %v5060 = vpop.permute.xlu0 %5059
        %5061 = vrot.lane.b32.xlu0 %v4894, 112
        %v5062 = vpop.permute.xlu0 %5061
        %5063 = vrot.lane.b32.xlu0 %v4895, 112
        %v5064 = vpop.permute.xlu0 %5063
        %5065 = vrot.lane.b32.xlu0 %v4896, 112
        %v5066 = vpop.permute.xlu0 %5065
        %5067 = vrot.lane.b32.xlu0 %v4897, 112
        %v5068 = vpop.permute.xlu0 %5067
        %5069 = vrot.lane.b32.xlu0 %v4898, 112
        %v5070 = vpop.permute.xlu0 %5069
        %5071 = vrot.lane.b32.xlu0 %v4899, 112
        %v5072 = vpop.permute.xlu0 %5071
        %5073 = vrot.lane.b32.xlu0 %v4900, 112
        %v5074 = vpop.permute.xlu0 %5073
        %5075 = vrot.lane.b32.xlu0 %v4901, 112
        %v5076 = vpop.permute.xlu0 %5075
        %5077 = vrot.lane.b32.xlu0 %v4902, 112
        %v5078 = vpop.permute.xlu0 %5077
        %5079 = vrot.lane.b32.xlu0 %v4903, 112
        %v5080 = vpop.permute.xlu0 %5079
        %5081 = vrot.lane.b32.xlu0 %v4904, 112
        %v5082 = vpop.permute.xlu0 %5081
        %5083 = vrot.lane.b32.xlu0 %v4905, 112
        %v5084 = vpop.permute.xlu0 %5083
        %5085 = vrot.lane.b32.xlu0 %v4906, 112
        %v5086 = vpop.permute.xlu0 %5085
        %5087 = vrot.lane.b32.xlu0 %v4907, 112
        %v5088 = vpop.permute.xlu0 %5087
        %5089 = vrot.lane.b32.xlu0 %v4908, 112
        %v5090 = vpop.permute.xlu0 %5089
        %5091 = vrot.lane.b32.xlu0 %v4909, 112
        %v5092 = vpop.permute.xlu0 %5091
        %5093 = vrot.lane.b32.xlu0 %v4910, 112
        %v5094 = vpop.permute.xlu0 %5093
        %5095 = vrot.lane.b32.xlu0 %v4911, 112
        %v5096 = vpop.permute.xlu0 %5095
        %5097 = vrot.lane.b32.xlu0 %v4912, 112
        %v5098 = vpop.permute.xlu0 %5097
        %5099 = vrot.lane.b32.xlu0 %v4913, 112
        %v5100 = vpop.permute.xlu0 %5099
        %5101 = vrot.lane.b32.xlu0 %v4914, 112
        %v5102 = vpop.permute.xlu0 %5101
        %5103 = vrot.lane.b32.xlu0 %v4915, 112
        %v5104 = vpop.permute.xlu0 %5103
        %5105 = vrot.lane.b32.xlu0 %v4916, 112
        %v5106 = vpop.permute.xlu0 %5105
        %5107 = vrot.lane.b32.xlu0 %v4917, 112
        %v5108 = vpop.permute.xlu0 %5107
        %5109 = vrot.lane.b32.xlu0 %v4918, 112
        %v5110 = vpop.permute.xlu0 %5109
        %v5175 = vsel %vm991, %v4984, 0.0
        %5176 = vadd.xlane.f32.xlu0 %v5175
        %v5177 = vpop.xlane.xlu0 %5176
        %v5178 = vsel %vm991, %v4986, 0.0
        %5179 = vadd.xlane.f32.xlu0 %v5178
        %v5180 = vpop.xlane.xlu0 %5179
        %v5181 = vsel %vm991, %v4988, 0.0
        %5182 = vadd.xlane.f32.xlu0 %v5181
        %v5183 = vpop.xlane.xlu0 %5182
        %v5184 = vsel %vm991, %v4990, 0.0
        %5185 = vadd.xlane.f32.xlu0 %v5184
        %v5186 = vpop.xlane.xlu0 %5185
        %v5187 = vsel %vm991, %v4992, 0.0
        %5188 = vadd.xlane.f32.xlu0 %v5187
        %v5189 = vpop.xlane.xlu0 %5188
        %v5190 = vsel %vm991, %v4994, 0.0
        %5191 = vadd.xlane.f32.xlu0 %v5190
        %v5192 = vpop.xlane.xlu0 %5191
        %v5193 = vsel %vm991, %v4996, 0.0
        %5194 = vadd.xlane.f32.xlu0 %v5193
        %v5195 = vpop.xlane.xlu0 %5194
        %v5196 = vsel %vm991, %v4998, 0.0
        %5197 = vadd.xlane.f32.xlu0 %v5196
        %v5198 = vpop.xlane.xlu0 %5197
        %v5199 = vsel %vm991, %v5000, 0.0
        %5200 = vadd.xlane.f32.xlu0 %v5199
        %v5201 = vpop.xlane.xlu0 %5200
        %v5202 = vsel %vm991, %v5002, 0.0
        %5203 = vadd.xlane.f32.xlu0 %v5202
        %v5204 = vpop.xlane.xlu0 %5203
        %v5205 = vsel %vm991, %v5004, 0.0
        %5206 = vadd.xlane.f32.xlu0 %v5205
        %v5207 = vpop.xlane.xlu0 %5206
        %v5208 = vsel %vm991, %v5006, 0.0
        %5209 = vadd.xlane.f32.xlu0 %v5208
        %v5210 = vpop.xlane.xlu0 %5209
        %v5211 = vsel %vm991, %v5008, 0.0
        %5212 = vadd.xlane.f32.xlu0 %v5211
        %v5213 = vpop.xlane.xlu0 %5212
        %v5214 = vsel %vm991, %v5010, 0.0
        %5215 = vadd.xlane.f32.xlu0 %v5214
        %v5216 = vpop.xlane.xlu0 %5215
        %v5217 = vsel %vm991, %v5012, 0.0
        %5218 = vadd.xlane.f32.xlu0 %v5217
        %v5219 = vpop.xlane.xlu0 %5218
        %v5220 = vsel %vm991, %v5014, 0.0
        %5221 = vadd.xlane.f32.xlu0 %v5220
        %v5222 = vpop.xlane.xlu0 %5221
        %v5223 = vsel %vm991, %v5016, 0.0
        %5224 = vadd.xlane.f32.xlu0 %v5223
        %v5225 = vpop.xlane.xlu0 %5224
        %v5226 = vsel %vm991, %v5018, 0.0
        %5227 = vadd.xlane.f32.xlu0 %v5226
        %v5228 = vpop.xlane.xlu0 %5227
        %v5229 = vsel %vm991, %v5020, 0.0
        %5230 = vadd.xlane.f32.xlu0 %v5229
        %v5231 = vpop.xlane.xlu0 %5230
        %v5232 = vsel %vm991, %v5022, 0.0
        %5233 = vadd.xlane.f32.xlu0 %v5232
        %v5234 = vpop.xlane.xlu0 %5233
        %v5235 = vsel %vm991, %v5024, 0.0
        %5236 = vadd.xlane.f32.xlu0 %v5235
        %v5237 = vpop.xlane.xlu0 %5236
        %v5238 = vsel %vm991, %v5026, 0.0
        %5239 = vadd.xlane.f32.xlu0 %v5238
        %v5240 = vpop.xlane.xlu0 %5239
        %v5241 = vsel %vm991, %v5028, 0.0
        %5242 = vadd.xlane.f32.xlu0 %v5241
        %v5243 = vpop.xlane.xlu0 %5242
        %v5244 = vsel %vm991, %v5030, 0.0
        %5245 = vadd.xlane.f32.xlu0 %v5244
        %v5246 = vpop.xlane.xlu0 %5245
        %v5247 = vsel %vm991, %v5032, 0.0
        %5248 = vadd.xlane.f32.xlu0 %v5247
        %v5249 = vpop.xlane.xlu0 %5248
        %v5250 = vsel %vm991, %v5034, 0.0
        %5251 = vadd.xlane.f32.xlu0 %v5250
        %v5252 = vpop.xlane.xlu0 %5251
        %v5253 = vsel %vm991, %v5036, 0.0
        %5254 = vadd.xlane.f32.xlu0 %v5253
        %v5255 = vpop.xlane.xlu0 %5254
        %v5256 = vsel %vm991, %v5038, 0.0
        %5257 = vadd.xlane.f32.xlu0 %v5256
        %v5258 = vpop.xlane.xlu0 %5257
        %v5259 = vsel %vm991, %v5040, 0.0
        %5260 = vadd.xlane.f32.xlu0 %v5259
        %v5261 = vpop.xlane.xlu0 %5260
        %v5262 = vsel %vm991, %v5042, 0.0
        %5263 = vadd.xlane.f32.xlu0 %v5262
        %v5264 = vpop.xlane.xlu0 %5263
        %v5265 = vsel %vm991, %v5044, 0.0
        %5266 = vadd.xlane.f32.xlu0 %v5265
        %v5267 = vpop.xlane.xlu0 %5266
        %v5268 = vsel %vm991, %v5046, 0.0
        %5269 = vadd.xlane.f32.xlu0 %v5268
        %v5270 = vpop.xlane.xlu0 %5269
        %v5271 = vsel %vm991, %v5048, 0.0
        %5272 = vadd.xlane.f32.xlu0 %v5271
        %v5273 = vpop.xlane.xlu0 %5272
        %v5274 = vsel %vm991, %v5050, 0.0
        %5275 = vadd.xlane.f32.xlu0 %v5274
        %v5276 = vpop.xlane.xlu0 %5275
        %v5277 = vsel %vm991, %v5052, 0.0
        %5278 = vadd.xlane.f32.xlu0 %v5277
        %v5279 = vpop.xlane.xlu0 %5278
        %v5280 = vsel %vm991, %v5054, 0.0
        %5281 = vadd.xlane.f32.xlu0 %v5280
        %v5282 = vpop.xlane.xlu0 %5281
        %v5283 = vsel %vm991, %v5056, 0.0
        %5284 = vadd.xlane.f32.xlu0 %v5283
        %v5285 = vpop.xlane.xlu0 %5284
        %v5286 = vsel %vm991, %v5058, 0.0
        %5287 = vadd.xlane.f32.xlu0 %v5286
        %v5288 = vpop.xlane.xlu0 %5287
        %v5289 = vsel %vm991, %v5060, 0.0
        %5290 = vadd.xlane.f32.xlu0 %v5289
        %v5291 = vpop.xlane.xlu0 %5290
        %v5292 = vsel %vm991, %v5062, 0.0
        %5293 = vadd.xlane.f32.xlu0 %v5292
        %v5294 = vpop.xlane.xlu0 %5293
        %v5295 = vsel %vm991, %v5064, 0.0
        %5296 = vadd.xlane.f32.xlu0 %v5295
        %v5297 = vpop.xlane.xlu0 %5296
        %v5298 = vsel %vm991, %v5066, 0.0
        %5299 = vadd.xlane.f32.xlu0 %v5298
        %v5300 = vpop.xlane.xlu0 %5299
        %v5301 = vsel %vm991, %v5068, 0.0
        %5302 = vadd.xlane.f32.xlu0 %v5301
        %v5303 = vpop.xlane.xlu0 %5302
        %v5304 = vsel %vm991, %v5070, 0.0
        %5305 = vadd.xlane.f32.xlu0 %v5304
        %v5306 = vpop.xlane.xlu0 %5305
        %v5307 = vsel %vm991, %v5072, 0.0
        %5308 = vadd.xlane.f32.xlu0 %v5307
        %v5309 = vpop.xlane.xlu0 %5308
        %v5310 = vsel %vm991, %v5074, 0.0
        %5311 = vadd.xlane.f32.xlu0 %v5310
        %v5312 = vpop.xlane.xlu0 %5311
        %v5313 = vsel %vm991, %v5076, 0.0
        %5314 = vadd.xlane.f32.xlu0 %v5313
        %v5315 = vpop.xlane.xlu0 %5314
        %v5316 = vsel %vm991, %v5078, 0.0
        %5317 = vadd.xlane.f32.xlu0 %v5316
        %v5318 = vpop.xlane.xlu0 %5317
        %v5319 = vsel %vm991, %v5080, 0.0
        %5320 = vadd.xlane.f32.xlu0 %v5319
        %v5321 = vpop.xlane.xlu0 %5320
        %v5322 = vsel %vm991, %v5082, 0.0
        %5323 = vadd.xlane.f32.xlu0 %v5322
        %v5324 = vpop.xlane.xlu0 %5323
        %v5325 = vsel %vm991, %v5084, 0.0
        %5326 = vadd.xlane.f32.xlu0 %v5325
        %v5327 = vpop.xlane.xlu0 %5326
        %v5328 = vsel %vm991, %v5086, 0.0
        %5329 = vadd.xlane.f32.xlu0 %v5328
        %v5330 = vpop.xlane.xlu0 %5329
        %v5331 = vsel %vm991, %v5088, 0.0
        %5332 = vadd.xlane.f32.xlu0 %v5331
        %v5333 = vpop.xlane.xlu0 %5332
        %v5334 = vsel %vm991, %v5090, 0.0
        %5335 = vadd.xlane.f32.xlu0 %v5334
        %v5336 = vpop.xlane.xlu0 %5335
        %v5337 = vsel %vm991, %v5092, 0.0
        %5338 = vadd.xlane.f32.xlu0 %v5337
        %v5339 = vpop.xlane.xlu0 %5338
        %v5340 = vsel %vm991, %v5094, 0.0
        %5341 = vadd.xlane.f32.xlu0 %v5340
        %v5342 = vpop.xlane.xlu0 %5341
        %v5343 = vsel %vm991, %v5096, 0.0
        %5344 = vadd.xlane.f32.xlu0 %v5343
        %v5345 = vpop.xlane.xlu0 %5344
        %v5346 = vsel %vm991, %v5098, 0.0
        %5347 = vadd.xlane.f32.xlu0 %v5346
        %v5348 = vpop.xlane.xlu0 %5347
        %v5349 = vsel %vm991, %v5100, 0.0
        %5350 = vadd.xlane.f32.xlu0 %v5349
        %v5351 = vpop.xlane.xlu0 %5350
        %v5352 = vsel %vm991, %v5102, 0.0
        %5353 = vadd.xlane.f32.xlu0 %v5352
        %v5354 = vpop.xlane.xlu0 %5353
        %v5355 = vsel %vm991, %v5104, 0.0
        %5356 = vadd.xlane.f32.xlu0 %v5355
        %v5357 = vpop.xlane.xlu0 %5356
        %v5358 = vsel %vm991, %v5106, 0.0
        %5359 = vadd.xlane.f32.xlu0 %v5358
        %v5360 = vpop.xlane.xlu0 %5359
        %v5361 = vsel %vm991, %v5108, 0.0
        %5362 = vadd.xlane.f32.xlu0 %v5361
        %v5363 = vpop.xlane.xlu0 %5362
        %v5364 = vsel %vm991, %v5110, 0.0
        %5365 = vadd.xlane.f32.xlu0 %v5364
        %v5366 = vpop.xlane.xlu0 %5365
        %v5431 = vperm.slane %v4641, %v1822
        %v5432 = vperm.slane %v4644, %v1822
        %v5433 = vperm.slane %v4647, %v1822
        %v5434 = vperm.slane %v4650, %v1822
        %v5435 = vperm.slane %v4653, %v1822
        %v5436 = vperm.slane %v4656, %v1822
        %v5437 = vperm.slane %v4659, %v1822
        %v5438 = vperm.slane %v4662, %v1822
        %v5439 = vperm.slane %v4665, %v1822
        %v5440 = vperm.slane %v4668, %v1822
        %v5441 = vperm.slane %v4671, %v1822
        %v5442 = vperm.slane %v4674, %v1822
        %v5443 = vperm.slane %v4677, %v1822
        %v5444 = vperm.slane %v4680, %v1822
        %v5445 = vperm.slane %v4683, %v1822
        %v5446 = vperm.slane %v4686, %v1822
        %v5447 = vperm.slane %v4689, %v1822
        %v5448 = vperm.slane %v4692, %v1822
        %v5449 = vperm.slane %v4695, %v1822
        %v5450 = vperm.slane %v4698, %v1822
        %v5451 = vperm.slane %v4701, %v1822
        %v5452 = vperm.slane %v4704, %v1822
        %v5453 = vperm.slane %v4707, %v1822
        %v5454 = vperm.slane %v4710, %v1822
        %v5455 = vperm.slane %v4713, %v1822
        %v5456 = vperm.slane %v4716, %v1822
        %v5457 = vperm.slane %v4719, %v1822
        %v5458 = vperm.slane %v4722, %v1822
        %v5459 = vperm.slane %v4725, %v1822
        %v5460 = vperm.slane %v4728, %v1822
        %v5461 = vperm.slane %v4731, %v1822
        %v5462 = vperm.slane %v4734, %v1822
        %v5463 = vperm.slane %v4737, %v1822
        %v5464 = vperm.slane %v4740, %v1822
        %v5465 = vperm.slane %v4743, %v1822
        %v5466 = vperm.slane %v4746, %v1822
        %v5467 = vperm.slane %v4749, %v1822
        %v5468 = vperm.slane %v4752, %v1822
        %v5469 = vperm.slane %v4755, %v1822
        %v5470 = vperm.slane %v4758, %v1822
        %v5471 = vperm.slane %v4761, %v1822
        %v5472 = vperm.slane %v4764, %v1822
        %v5473 = vperm.slane %v4767, %v1822
        %v5474 = vperm.slane %v4770, %v1822
        %v5475 = vperm.slane %v4773, %v1822
        %v5476 = vperm.slane %v4776, %v1822
        %v5477 = vperm.slane %v4779, %v1822
        %v5478 = vperm.slane %v4782, %v1822
        %v5479 = vperm.slane %v4785, %v1822
        %v5480 = vperm.slane %v4788, %v1822
        %v5481 = vperm.slane %v4791, %v1822
        %v5482 = vperm.slane %v4794, %v1822
        %v5483 = vperm.slane %v4797, %v1822
        %v5484 = vperm.slane %v4800, %v1822
        %v5485 = vperm.slane %v4803, %v1822
        %v5486 = vperm.slane %v4806, %v1822
        %v5487 = vperm.slane %v4809, %v1822
        %v5488 = vperm.slane %v4812, %v1822
        %v5489 = vperm.slane %v4815, %v1822
        %v5490 = vperm.slane %v4818, %v1822
        %v5491 = vperm.slane %v4821, %v1822
        %v5492 = vperm.slane %v4824, %v1822
        %v5493 = vperm.slane %v4827, %v1822
        %v5494 = vperm.slane %v4830, %v1822
        %v5495 = vsel %vm1887, %v5432, %v5431
        %v5496 = vsel %vm1889, %v5433, %v5495
        %v5497 = vsel %vm1891, %v5434, %v5496
        %v5498 = vsel %vm1893, %v5435, %v5497
        %v5499 = vsel %vm1895, %v5436, %v5498
        %v5500 = vsel %vm1897, %v5437, %v5499
        %v5501 = vsel %vm1899, %v5438, %v5500
        %v5502 = vsel %vm1887, %v5440, %v5439
        %v5503 = vsel %vm1889, %v5441, %v5502
        %v5504 = vsel %vm1891, %v5442, %v5503
        %v5505 = vsel %vm1893, %v5443, %v5504
        %v5506 = vsel %vm1895, %v5444, %v5505
        %v5507 = vsel %vm1897, %v5445, %v5506
        %v5508 = vsel %vm1899, %v5446, %v5507
        %v5509 = vsel %vm1887, %v5448, %v5447
        %v5510 = vsel %vm1889, %v5449, %v5509
        %v5511 = vsel %vm1891, %v5450, %v5510
        %v5512 = vsel %vm1893, %v5451, %v5511
        %v5513 = vsel %vm1895, %v5452, %v5512
        %v5514 = vsel %vm1897, %v5453, %v5513
        %v5515 = vsel %vm1899, %v5454, %v5514
        %v5516 = vsel %vm1887, %v5456, %v5455
        %v5517 = vsel %vm1889, %v5457, %v5516
        %v5518 = vsel %vm1891, %v5458, %v5517
        %v5519 = vsel %vm1893, %v5459, %v5518
        %v5520 = vsel %vm1895, %v5460, %v5519
        %v5521 = vsel %vm1897, %v5461, %v5520
        %v5522 = vsel %vm1899, %v5462, %v5521
        %v5523 = vsel %vm1887, %v5464, %v5463
        %v5524 = vsel %vm1889, %v5465, %v5523
        %v5525 = vsel %vm1891, %v5466, %v5524
        %v5526 = vsel %vm1893, %v5467, %v5525
        %v5527 = vsel %vm1895, %v5468, %v5526
        %v5528 = vsel %vm1897, %v5469, %v5527
        %v5529 = vsel %vm1899, %v5470, %v5528
        %v5530 = vsel %vm1887, %v5472, %v5471
        %v5531 = vsel %vm1889, %v5473, %v5530
        %v5532 = vsel %vm1891, %v5474, %v5531
        %v5533 = vsel %vm1893, %v5475, %v5532
        %v5534 = vsel %vm1895, %v5476, %v5533
        %v5535 = vsel %vm1897, %v5477, %v5534
        %v5536 = vsel %vm1899, %v5478, %v5535
        %v5537 = vsel %vm1887, %v5480, %v5479
        %v5538 = vsel %vm1889, %v5481, %v5537
        %v5539 = vsel %vm1891, %v5482, %v5538
        %v5540 = vsel %vm1893, %v5483, %v5539
        %v5541 = vsel %vm1895, %v5484, %v5540
        %v5542 = vsel %vm1897, %v5485, %v5541
        %v5543 = vsel %vm1899, %v5486, %v5542
        %v5544 = vsel %vm1887, %v5488, %v5487
        %v5545 = vsel %vm1889, %v5489, %v5544
        %v5546 = vsel %vm1891, %v5490, %v5545
        %v5547 = vsel %vm1893, %v5491, %v5546
        %v5548 = vsel %vm1895, %v5492, %v5547
        %v5549 = vsel %vm1897, %v5493, %v5548
        %v5550 = vsel %vm1899, %v5494, %v5549
        %v5551 = vsel %vm991, %v5501, 0
        %v5553 = vsel %vm991, %v5508, 0
        %v5555 = vsel %vm991, %v5515, 0
        %v5557 = vsel %vm991, %v5522, 0
        %v5559 = vsel %vm991, %v5529, 0
        %v5561 = vsel %vm991, %v5536, 0
        %v5563 = vsel %vm991, %v5543, 0
        %v5565 = vsel %vm991, %v5550, 0
        %5567 = vmatpush.msra.mxu0 0.0
        %5568 = vmatpush.msra.mxu0 0.0
        %5569 = vmatpush.msra.mxu0 0.0
        %5570 = vmatpush.msra.mxu0 0.0
        %5571 = vmatpush.msra.mxu0 0.0
        %5572 = vmatpush.msra.mxu0 0.0
        %5573 = vmatpush.msra.mxu0 0.0
        %5574 = vmatpush.msra.mxu0 0.0
        %5575 = vmatpush.msra.mxu0 0.0
        %5576 = vmatpush.msra.mxu0 0.0
        %5577 = vmatpush.msra.mxu0 0.0
        %5578 = vmatpush.msra.mxu0 0.0
        %5579 = vmatpush.msra.mxu0 0.0
        %5580 = vmatpush.msra.mxu0 0.0
        %5581 = vmatpush.msra.mxu0 0.0
        %5582 = vmatpush.msra.mxu0 %v973
        %5583 = vmatmul.f32.gmra.mxu0 %v5551
        %v5584 = vpop.f32.mrf.mxu0
        %v5585 = vadd.f32 0.0, %v5584
        %5586 = vmatmul.f32.gmra.mxu0 %v5553
        %v5587 = vpop.f32.mrf.mxu0
        %v5588 = vadd.f32 0.0, %v5587
        %5589 = vmatmul.f32.gmra.mxu0 %v5555
        %v5590 = vpop.f32.mrf.mxu0
        %v5591 = vadd.f32 0.0, %v5590
        %5592 = vmatmul.f32.gmra.mxu0 %v5557
        %v5593 = vpop.f32.mrf.mxu0
        %v5594 = vadd.f32 0.0, %v5593
        %5595 = vmatmul.f32.gmra.mxu0 %v5559
        %v5596 = vpop.f32.mrf.mxu0
        %v5597 = vadd.f32 0.0, %v5596
        %5598 = vmatmul.f32.gmra.mxu0 %v5561
        %v5599 = vpop.f32.mrf.mxu0
        %v5600 = vadd.f32 0.0, %v5599
        %5601 = vmatmul.f32.gmra.mxu0 %v5563
        %v5602 = vpop.f32.mrf.mxu0
        %v5603 = vadd.f32 0.0, %v5602
        %5604 = vmatmul.f32.gmra.mxu0 %v5565
        %v5605 = vpop.f32.mrf.mxu0
        %v5606 = vadd.f32 0.0, %v5605
        %5607 = vdwg.mxu0
        %v5608 = vadd.f32 %v4287, %v5585
        %v5609 = vadd.f32 %v4288, %v5588
        %v5610 = vadd.f32 %v4289, %v5591
        %v5611 = vadd.f32 %v4290, %v5594
        %v5612 = vadd.f32 %v4291, %v5597
        %v5613 = vadd.f32 %v4292, %v5600
        %v5614 = vadd.f32 %v4293, %v5603
        %v5615 = vadd.f32 %v4294, %v5606
        %v5680 = vperm.slane %v5177, %v1822
        %v5681 = vperm.slane %v5180, %v1822
        %v5682 = vperm.slane %v5183, %v1822
        %v5683 = vperm.slane %v5186, %v1822
        %v5684 = vperm.slane %v5189, %v1822
        %v5685 = vperm.slane %v5192, %v1822
        %v5686 = vperm.slane %v5195, %v1822
        %v5687 = vperm.slane %v5198, %v1822
        %v5688 = vperm.slane %v5201, %v1822
        %v5689 = vperm.slane %v5204, %v1822
        %v5690 = vperm.slane %v5207, %v1822
        %v5691 = vperm.slane %v5210, %v1822
        %v5692 = vperm.slane %v5213, %v1822
        %v5693 = vperm.slane %v5216, %v1822
        %v5694 = vperm.slane %v5219, %v1822
        %v5695 = vperm.slane %v5222, %v1822
        %v5696 = vperm.slane %v5225, %v1822
        %v5697 = vperm.slane %v5228, %v1822
        %v5698 = vperm.slane %v5231, %v1822
        %v5699 = vperm.slane %v5234, %v1822
        %v5700 = vperm.slane %v5237, %v1822
        %v5701 = vperm.slane %v5240, %v1822
        %v5702 = vperm.slane %v5243, %v1822
        %v5703 = vperm.slane %v5246, %v1822
        %v5704 = vperm.slane %v5249, %v1822
        %v5705 = vperm.slane %v5252, %v1822
        %v5706 = vperm.slane %v5255, %v1822
        %v5707 = vperm.slane %v5258, %v1822
        %v5708 = vperm.slane %v5261, %v1822
        %v5709 = vperm.slane %v5264, %v1822
        %v5710 = vperm.slane %v5267, %v1822
        %v5711 = vperm.slane %v5270, %v1822
        %v5712 = vperm.slane %v5273, %v1822
        %v5713 = vperm.slane %v5276, %v1822
        %v5714 = vperm.slane %v5279, %v1822
        %v5715 = vperm.slane %v5282, %v1822
        %v5716 = vperm.slane %v5285, %v1822
        %v5717 = vperm.slane %v5288, %v1822
        %v5718 = vperm.slane %v5291, %v1822
        %v5719 = vperm.slane %v5294, %v1822
        %v5720 = vperm.slane %v5297, %v1822
        %v5721 = vperm.slane %v5300, %v1822
        %v5722 = vperm.slane %v5303, %v1822
        %v5723 = vperm.slane %v5306, %v1822
        %v5724 = vperm.slane %v5309, %v1822
        %v5725 = vperm.slane %v5312, %v1822
        %v5726 = vperm.slane %v5315, %v1822
        %v5727 = vperm.slane %v5318, %v1822
        %v5728 = vperm.slane %v5321, %v1822
        %v5729 = vperm.slane %v5324, %v1822
        %v5730 = vperm.slane %v5327, %v1822
        %v5731 = vperm.slane %v5330, %v1822
        %v5732 = vperm.slane %v5333, %v1822
        %v5733 = vperm.slane %v5336, %v1822
        %v5734 = vperm.slane %v5339, %v1822
        %v5735 = vperm.slane %v5342, %v1822
        %v5736 = vperm.slane %v5345, %v1822
        %v5737 = vperm.slane %v5348, %v1822
        %v5738 = vperm.slane %v5351, %v1822
        %v5739 = vperm.slane %v5354, %v1822
        %v5740 = vperm.slane %v5357, %v1822
        %v5741 = vperm.slane %v5360, %v1822
        %v5742 = vperm.slane %v5363, %v1822
        %v5743 = vperm.slane %v5366, %v1822
        %v5744 = vsel %vm1887, %v5681, %v5680
        %v5745 = vsel %vm1889, %v5682, %v5744
        %v5746 = vsel %vm1891, %v5683, %v5745
        %v5747 = vsel %vm1893, %v5684, %v5746
        %v5748 = vsel %vm1895, %v5685, %v5747
        %v5749 = vsel %vm1897, %v5686, %v5748
        %v5750 = vsel %vm1899, %v5687, %v5749
        %v5751 = vsel %vm1887, %v5689, %v5688
        %v5752 = vsel %vm1889, %v5690, %v5751
        %v5753 = vsel %vm1891, %v5691, %v5752
        %v5754 = vsel %vm1893, %v5692, %v5753
        %v5755 = vsel %vm1895, %v5693, %v5754
        %v5756 = vsel %vm1897, %v5694, %v5755
        %v5757 = vsel %vm1899, %v5695, %v5756
        %v5758 = vsel %vm1887, %v5697, %v5696
        %v5759 = vsel %vm1889, %v5698, %v5758
        %v5760 = vsel %vm1891, %v5699, %v5759
        %v5761 = vsel %vm1893, %v5700, %v5760
        %v5762 = vsel %vm1895, %v5701, %v5761
        %v5763 = vsel %vm1897, %v5702, %v5762
        %v5764 = vsel %vm1899, %v5703, %v5763
        %v5765 = vsel %vm1887, %v5705, %v5704
        %v5766 = vsel %vm1889, %v5706, %v5765
        %v5767 = vsel %vm1891, %v5707, %v5766
        %v5768 = vsel %vm1893, %v5708, %v5767
        %v5769 = vsel %vm1895, %v5709, %v5768
        %v5770 = vsel %vm1897, %v5710, %v5769
        %v5771 = vsel %vm1899, %v5711, %v5770
        %v5772 = vsel %vm1887, %v5713, %v5712
        %v5773 = vsel %vm1889, %v5714, %v5772
        %v5774 = vsel %vm1891, %v5715, %v5773
        %v5775 = vsel %vm1893, %v5716, %v5774
        %v5776 = vsel %vm1895, %v5717, %v5775
        %v5777 = vsel %vm1897, %v5718, %v5776
        %v5778 = vsel %vm1899, %v5719, %v5777
        %v5779 = vsel %vm1887, %v5721, %v5720
        %v5780 = vsel %vm1889, %v5722, %v5779
        %v5781 = vsel %vm1891, %v5723, %v5780
        %v5782 = vsel %vm1893, %v5724, %v5781
        %v5783 = vsel %vm1895, %v5725, %v5782
        %v5784 = vsel %vm1897, %v5726, %v5783
        %v5785 = vsel %vm1899, %v5727, %v5784
        %v5786 = vsel %vm1887, %v5729, %v5728
        %v5787 = vsel %vm1889, %v5730, %v5786
        %v5788 = vsel %vm1891, %v5731, %v5787
        %v5789 = vsel %vm1893, %v5732, %v5788
        %v5790 = vsel %vm1895, %v5733, %v5789
        %v5791 = vsel %vm1897, %v5734, %v5790
        %v5792 = vsel %vm1899, %v5735, %v5791
        %v5793 = vsel %vm1887, %v5737, %v5736
        %v5794 = vsel %vm1889, %v5738, %v5793
        %v5795 = vsel %vm1891, %v5739, %v5794
        %v5796 = vsel %vm1893, %v5740, %v5795
        %v5797 = vsel %vm1895, %v5741, %v5796
        %v5798 = vsel %vm1897, %v5742, %v5797
        %v5799 = vsel %vm1899, %v5743, %v5798
        %v5800 = vsel %vm991, %v5750, 0
        %v5802 = vsel %vm991, %v5757, 0
        %v5804 = vsel %vm991, %v5764, 0
        %v5806 = vsel %vm991, %v5771, 0
        %v5808 = vsel %vm991, %v5778, 0
        %v5810 = vsel %vm991, %v5785, 0
        %v5812 = vsel %vm991, %v5792, 0
        %v5814 = vsel %vm991, %v5799, 0
        %5816 = vmatpush.msra.mxu0 0.0
        %5817 = vmatpush.msra.mxu0 0.0
        %5818 = vmatpush.msra.mxu0 0.0
        %5819 = vmatpush.msra.mxu0 0.0
        %5820 = vmatpush.msra.mxu0 0.0
        %5821 = vmatpush.msra.mxu0 0.0
        %5822 = vmatpush.msra.mxu0 0.0
        %5823 = vmatpush.msra.mxu0 0.0
        %5824 = vmatpush.msra.mxu0 0.0
        %5825 = vmatpush.msra.mxu0 0.0
        %5826 = vmatpush.msra.mxu0 0.0
        %5827 = vmatpush.msra.mxu0 0.0
        %5828 = vmatpush.msra.mxu0 0.0
        %5829 = vmatpush.msra.mxu0 0.0
        %5830 = vmatpush.msra.mxu0 0.0
        %5831 = vmatpush.msra.mxu0 %v974
        %5832 = vmatmul.f32.gmra.mxu0 %v5800
        %v5833 = vpop.f32.mrf.mxu0
        %v5834 = vadd.f32 0.0, %v5833
        %5835 = vmatmul.f32.gmra.mxu0 %v5802
        %v5836 = vpop.f32.mrf.mxu0
        %v5837 = vadd.f32 0.0, %v5836
        %5838 = vmatmul.f32.gmra.mxu0 %v5804
        %v5839 = vpop.f32.mrf.mxu0
        %v5840 = vadd.f32 0.0, %v5839
        %5841 = vmatmul.f32.gmra.mxu0 %v5806
        %v5842 = vpop.f32.mrf.mxu0
        %v5843 = vadd.f32 0.0, %v5842
        %5844 = vmatmul.f32.gmra.mxu0 %v5808
        %v5845 = vpop.f32.mrf.mxu0
        %v5846 = vadd.f32 0.0, %v5845
        %5847 = vmatmul.f32.gmra.mxu0 %v5810
        %v5848 = vpop.f32.mrf.mxu0
        %v5849 = vadd.f32 0.0, %v5848
        %5850 = vmatmul.f32.gmra.mxu0 %v5812
        %v5851 = vpop.f32.mrf.mxu0
        %v5852 = vadd.f32 0.0, %v5851
        %5853 = vmatmul.f32.gmra.mxu0 %v5814
        %v5854 = vpop.f32.mrf.mxu0
        %v5855 = vadd.f32 0.0, %v5854
        %5856 = vdwg.mxu0
        %v5857 = vadd.f32 %v5608, %v5834
        %v5858 = vadd.f32 %v5609, %v5837
        %v5859 = vadd.f32 %v5610, %v5840
        %v5860 = vadd.f32 %v5611, %v5843
        %v5861 = vadd.f32 %v5612, %v5846
        %v5862 = vadd.f32 %v5613, %v5849
        %v5863 = vadd.f32 %v5614, %v5852
        %v5864 = vadd.f32 %v5615, %v5855
        %v5865 = vsel %vm2264, %v5857, -inf
        %5866 = vmax.xlane.f32.xlu0 %v5865
        %v5867 = vpop.xlane.xlu0 %5866
        %v5868 = vsel %vm2264, %v5858, -inf
        %5869 = vmax.xlane.f32.xlu0 %v5868
        %v5870 = vpop.xlane.xlu0 %5869
        %v5871 = vsel %vm2264, %v5859, -inf
        %5872 = vmax.xlane.f32.xlu0 %v5871
        %v5873 = vpop.xlane.xlu0 %5872
        %v5874 = vsel %vm2264, %v5860, -inf
        %5875 = vmax.xlane.f32.xlu0 %v5874
        %v5876 = vpop.xlane.xlu0 %5875
        %v5877 = vsel %vm2264, %v5861, -inf
        %5878 = vmax.xlane.f32.xlu0 %v5877
        %v5879 = vpop.xlane.xlu0 %5878
        %v5880 = vsel %vm2264, %v5862, -inf
        %5881 = vmax.xlane.f32.xlu0 %v5880
        %v5882 = vpop.xlane.xlu0 %5881
        %v5883 = vsel %vm2264, %v5863, -inf
        %5884 = vmax.xlane.f32.xlu0 %v5883
        %v5885 = vpop.xlane.xlu0 %5884
        %v5886 = vsel %vm2264, %v5864, -inf
        %5887 = vmax.xlane.f32.xlu0 %v5886
        %v5888 = vpop.xlane.xlu0 %5887
        %v5889 = vsub.f32 %v5857, %v5867
        %v5890 = vsub.f32 %v5858, %v5870
        %v5891 = vsub.f32 %v5859, %v5873
        %v5892 = vsub.f32 %v5860, %v5876
        %v5893 = vsub.f32 %v5861, %v5879
        %v5894 = vsub.f32 %v5862, %v5882
        %v5895 = vsub.f32 %v5863, %v5885
        %v5896 = vsub.f32 %v5864, %v5888
        %v5897 = vmul.f32 %v5889, 1.442695
        %v5898 = vpow.pop %v5897
        %v5899 = vmul.f32 %v5890, 1.442695
        %v5900 = vpow.pop %v5899
        %v5901 = vmul.f32 %v5891, 1.442695
        %v5902 = vpow.pop %v5901
        %v5903 = vmul.f32 %v5892, 1.442695
        %v5904 = vpow.pop %v5903
        %v5905 = vmul.f32 %v5893, 1.442695
        %v5906 = vpow.pop %v5905
        %v5907 = vmul.f32 %v5894, 1.442695
        %v5908 = vpow.pop %v5907
        %v5909 = vmul.f32 %v5895, 1.442695
        %v5910 = vpow.pop %v5909
        %v5911 = vmul.f32 %v5896, 1.442695
        %v5912 = vpow.pop %v5911
        %v5913 = vsel %vm2264, %v5898, 0.0
        %5914 = vadd.xlane.f32.xlu0 %v5913
        %v5915 = vpop.xlane.xlu0 %5914
        %v5916 = vsel %vm2264, %v5900, 0.0
        %5917 = vadd.xlane.f32.xlu0 %v5916
        %v5918 = vpop.xlane.xlu0 %5917
        %v5919 = vsel %vm2264, %v5902, 0.0
        %5920 = vadd.xlane.f32.xlu0 %v5919
        %v5921 = vpop.xlane.xlu0 %5920
        %v5922 = vsel %vm2264, %v5904, 0.0
        %5923 = vadd.xlane.f32.xlu0 %v5922
        %v5924 = vpop.xlane.xlu0 %5923
        %v5925 = vsel %vm2264, %v5906, 0.0
        %5926 = vadd.xlane.f32.xlu0 %v5925
        %v5927 = vpop.xlane.xlu0 %5926
        %v5928 = vsel %vm2264, %v5908, 0.0
        %5929 = vadd.xlane.f32.xlu0 %v5928
        %v5930 = vpop.xlane.xlu0 %5929
        %v5931 = vsel %vm2264, %v5910, 0.0
        %5932 = vadd.xlane.f32.xlu0 %v5931
        %v5933 = vpop.xlane.xlu0 %5932
        %v5934 = vsel %vm2264, %v5912, 0.0
        %5935 = vadd.xlane.f32.xlu0 %v5934
        %v5936 = vpop.xlane.xlu0 %5935
        %v5937 = vrcp.pop %v5915
        %v5938 = vrcp.pop %v5918
        %v5939 = vrcp.pop %v5921
        %v5940 = vrcp.pop %v5924
        %v5941 = vrcp.pop %v5927
        %v5942 = vrcp.pop %v5930
        %v5943 = vrcp.pop %v5933
        %v5944 = vrcp.pop %v5936
        %v5945 = vmul.f32 %v5898, %v5937
        %v5946 = vmul.f32 %v5900, %v5938
        %v5947 = vmul.f32 %v5902, %v5939
        %v5948 = vmul.f32 %v5904, %v5940
        %v5949 = vmul.f32 %v5906, %v5941
        %v5950 = vmul.f32 %v5908, %v5942
        %v5951 = vmul.f32 %v5910, %v5943
        %v5952 = vmul.f32 %v5912, %v5944
        %v5953 = vpack.c.bf16 %v5946, %v5945
        %v5954 = vpack.c.bf16 %v5948, %v5947
        %v5955 = vpack.c.bf16 %v5950, %v5949
        %v5956 = vpack.c.bf16 %v5952, %v5951
        %5957 = vrot.lane.b32.xlu0 %v975, 48
        %v5958 = vpop.permute.xlu0 %5957
        %5959 = vrot.lane.b32.xlu0 %v976, 48
        %v5960 = vpop.permute.xlu0 %5959
        %5961 = vrot.lane.b32.xlu0 %v977, 48
        %v5962 = vpop.permute.xlu0 %5961
        %5963 = vrot.lane.b32.xlu0 %v978, 48
        %v5964 = vpop.permute.xlu0 %5963
        %v5970 = vsel %vm2264, %v5953, 0
        %v5973 = vsel %vm2264, %v5954, 0
        %v5976 = vsel %vm2264, %v5955, 0
        %v5979 = vsel %vm2264, %v5956, 0
        %5981 = vmatpush.bf16.msra.mxu0 0
        %5982 = vmatpush.bf16.msra.mxu0 0
        %5983 = vmatpush.bf16.msra.mxu0 0
        %5984 = vmatpush.bf16.msra.mxu0 0
        %5985 = vmatpush.bf16.msra.mxu0 %v5964
        %5986 = vmatpush.bf16.msra.mxu0 %v5962
        %5987 = vmatpush.bf16.msra.mxu0 %v5960
        %5988 = vmatpush.bf16.msra.mxu0 %v5958
        %5989 = vmatmul.bf16.gmra.mxu0 %v5970
        %v5990 = vpop.f32.mrf.mxu0
        %v5991 = vadd.f32 0.0, %v5990
        %v5992 = vpop.f32.mrf.mxu0
        %v5993 = vadd.f32 0.0, %v5992
        %5994 = vmatmul.bf16.gmra.mxu0 %v5973
        %v5995 = vpop.f32.mrf.mxu0
        %v5996 = vadd.f32 0.0, %v5995
        %v5997 = vpop.f32.mrf.mxu0
        %v5998 = vadd.f32 0.0, %v5997
        %5999 = vmatmul.bf16.gmra.mxu0 %v5976
        %v6000 = vpop.f32.mrf.mxu0
        %v6001 = vadd.f32 0.0, %v6000
        %v6002 = vpop.f32.mrf.mxu0
        %v6003 = vadd.f32 0.0, %v6002
        %6004 = vmatmul.bf16.gmra.mxu0 %v5979
        %v6005 = vpop.f32.mrf.mxu0
        %v6006 = vadd.f32 0.0, %v6005
        %v6007 = vpop.f32.mrf.mxu0
        %v6008 = vadd.f32 0.0, %v6007
        %6009 = vdwg.mxu0
        %6010 = vrot.lane.b32.xlu0 %v975, 104
        %v6011 = vpop.permute.xlu0 %6010
        %6012 = vrot.lane.b32.xlu0 %v976, 104
        %v6013 = vpop.permute.xlu0 %6012
        %6014 = vrot.lane.b32.xlu0 %v977, 104
        %v6015 = vpop.permute.xlu0 %6014
        %6016 = vrot.lane.b32.xlu0 %v978, 104
        %v6017 = vpop.permute.xlu0 %6016
        %6018 = vrot.lane.b32.xlu0 %v975, 72
        %v6019 = vpop.permute.xlu0 %6018
        %6020 = vrot.lane.b32.xlu0 %v976, 72
        %v6021 = vpop.permute.xlu0 %6020
        %6022 = vrot.lane.b32.xlu0 %v977, 72
        %v6023 = vpop.permute.xlu0 %6022
        %6024 = vrot.lane.b32.xlu0 %v978, 72
        %v6025 = vpop.permute.xlu0 %6024
        %v6027 = vsel %vm991, %v6011, 0
        %v6030 = vsel %vm991, %v6013, 0
        %v6033 = vsel %vm991, %v6015, 0
        %v6036 = vsel %vm991, %v6017, 0
        %v6039 = vsel %vm991, %v6019, 0
        %v6042 = vsel %vm991, %v6021, 0
        %v6045 = vsel %vm991, %v6023, 0
        %v6048 = vsel %vm991, %v6025, 0
        %6050 = vmatpush.bf16.xpose.msra.mxu0 0
        %6051 = vmatpush.bf16.xpose.msra.mxu0 0
        %6052 = vmatpush.bf16.xpose.msra.mxu0 0
        %6053 = vmatpush.bf16.xpose.msra.mxu0 0
        %6054 = vmatpush.bf16.xpose.msra.mxu0 %v6048
        %6055 = vmatpush.bf16.xpose.msra.mxu0 %v6045
        %6056 = vmatpush.bf16.xpose.msra.mxu0 %v6042
        %6057 = vmatpush.bf16.xpose.msra.mxu0 %v6039
        %6058 = vmatmul.bf16.gmra.mxu0 %v6027
        %v6059 = vpop.f32.mrf.mxu0
        %v6060 = vadd.f32 0.0, %v6059
        %v6061 = vpop.f32.mrf.mxu0
        %v6062 = vadd.f32 0.0, %v6061
        %6063 = vmatmul.bf16.gmra.mxu0 %v6030
        %v6064 = vpop.f32.mrf.mxu0
        %v6065 = vadd.f32 0.0, %v6064
        %v6066 = vpop.f32.mrf.mxu0
        %v6067 = vadd.f32 0.0, %v6066
        %6068 = vmatmul.bf16.gmra.mxu0 %v6033
        %v6069 = vpop.f32.mrf.mxu0
        %v6070 = vadd.f32 0.0, %v6069
        %v6071 = vpop.f32.mrf.mxu0
        %v6072 = vadd.f32 0.0, %v6071
        %6073 = vmatmul.bf16.gmra.mxu0 %v6036
        %v6074 = vpop.f32.mrf.mxu0
        %v6075 = vadd.f32 0.0, %v6074
        %v6076 = vpop.f32.mrf.mxu0
        %v6077 = vadd.f32 0.0, %v6076
        %6078 = vdwg.mxu0
        %v6079 = vmul.f32 %v6060, 0.35355338
        %v6080 = vmul.f32 %v6062, 0.35355338
        %v6081 = vmul.f32 %v6065, 0.35355338
        %v6082 = vmul.f32 %v6067, 0.35355338
        %v6083 = vmul.f32 %v6070, 0.35355338
        %v6084 = vmul.f32 %v6072, 0.35355338
        %v6085 = vmul.f32 %v6075, 0.35355338
        %v6086 = vmul.f32 %v6077, 0.35355338
        %6087 = vrot.lane.b32.xlu0 %v957, 24
        %v6088 = vpop.permute.xlu0 %6087
        %6089 = vrot.lane.b32.xlu0 %v958, 24
        %v6090 = vpop.permute.xlu0 %6089
        %6091 = vrot.lane.b32.xlu0 %v959, 24
        %v6092 = vpop.permute.xlu0 %6091
        %6093 = vrot.lane.b32.xlu0 %v960, 24
        %v6094 = vpop.permute.xlu0 %6093
        %6095 = vrot.lane.b32.xlu0 %v961, 24
        %v6096 = vpop.permute.xlu0 %6095
        %6097 = vrot.lane.b32.xlu0 %v962, 24
        %v6098 = vpop.permute.xlu0 %6097
        %6099 = vrot.lane.b32.xlu0 %v963, 24
        %v6100 = vpop.permute.xlu0 %6099
        %6101 = vrot.lane.b32.xlu0 %v964, 24
        %v6102 = vpop.permute.xlu0 %6101
        %v6111 = vmul.f32 %v1117, %v6088
        %v6112 = vmul.f32 %v1118, %v6088
        %v6113 = vmul.f32 %v1119, %v6088
        %v6114 = vmul.f32 %v1120, %v6088
        %v6115 = vmul.f32 %v1121, %v6088
        %v6116 = vmul.f32 %v1122, %v6088
        %v6117 = vmul.f32 %v1123, %v6088
        %v6118 = vmul.f32 %v1124, %v6088
        %v6119 = vmul.f32 %v1125, %v6090
        %v6120 = vmul.f32 %v1126, %v6090
        %v6121 = vmul.f32 %v1127, %v6090
        %v6122 = vmul.f32 %v1128, %v6090
        %v6123 = vmul.f32 %v1129, %v6090
        %v6124 = vmul.f32 %v1130, %v6090
        %v6125 = vmul.f32 %v1131, %v6090
        %v6126 = vmul.f32 %v1132, %v6090
        %v6127 = vmul.f32 %v1133, %v6092
        %v6128 = vmul.f32 %v1134, %v6092
        %v6129 = vmul.f32 %v1135, %v6092
        %v6130 = vmul.f32 %v1136, %v6092
        %v6131 = vmul.f32 %v1137, %v6092
        %v6132 = vmul.f32 %v1138, %v6092
        %v6133 = vmul.f32 %v1139, %v6092
        %v6134 = vmul.f32 %v1140, %v6092
        %v6135 = vmul.f32 %v1141, %v6094
        %v6136 = vmul.f32 %v1142, %v6094
        %v6137 = vmul.f32 %v1143, %v6094
        %v6138 = vmul.f32 %v1144, %v6094
        %v6139 = vmul.f32 %v1145, %v6094
        %v6140 = vmul.f32 %v1146, %v6094
        %v6141 = vmul.f32 %v1147, %v6094
        %v6142 = vmul.f32 %v1148, %v6094
        %v6143 = vmul.f32 %v1149, %v6096
        %v6144 = vmul.f32 %v1150, %v6096
        %v6145 = vmul.f32 %v1151, %v6096
        %v6146 = vmul.f32 %v1152, %v6096
        %v6147 = vmul.f32 %v1153, %v6096
        %v6148 = vmul.f32 %v1154, %v6096
        %v6149 = vmul.f32 %v1155, %v6096
        %v6150 = vmul.f32 %v1156, %v6096
        %v6151 = vmul.f32 %v1157, %v6098
        %v6152 = vmul.f32 %v1158, %v6098
        %v6153 = vmul.f32 %v1159, %v6098
        %v6154 = vmul.f32 %v1160, %v6098
        %v6155 = vmul.f32 %v1161, %v6098
        %v6156 = vmul.f32 %v1162, %v6098
        %v6157 = vmul.f32 %v1163, %v6098
        %v6158 = vmul.f32 %v1164, %v6098
        %v6159 = vmul.f32 %v1165, %v6100
        %v6160 = vmul.f32 %v1166, %v6100
        %v6161 = vmul.f32 %v1167, %v6100
        %v6162 = vmul.f32 %v1168, %v6100
        %v6163 = vmul.f32 %v1169, %v6100
        %v6164 = vmul.f32 %v1170, %v6100
        %v6165 = vmul.f32 %v1171, %v6100
        %v6166 = vmul.f32 %v1172, %v6100
        %v6167 = vmul.f32 %v1173, %v6102
        %v6168 = vmul.f32 %v1174, %v6102
        %v6169 = vmul.f32 %v1175, %v6102
        %v6170 = vmul.f32 %v1176, %v6102
        %v6171 = vmul.f32 %v1177, %v6102
        %v6172 = vmul.f32 %v1178, %v6102
        %v6173 = vmul.f32 %v1179, %v6102
        %v6174 = vmul.f32 %v1180, %v6102
        %6239 = vrot.lane.b32.xlu0 %v6111, 104
        %v6240 = vpop.permute.xlu0 %6239
        %6241 = vrot.lane.b32.xlu0 %v6112, 104
        %v6242 = vpop.permute.xlu0 %6241
        %6243 = vrot.lane.b32.xlu0 %v6113, 104
        %v6244 = vpop.permute.xlu0 %6243
        %6245 = vrot.lane.b32.xlu0 %v6114, 104
        %v6246 = vpop.permute.xlu0 %6245
        %6247 = vrot.lane.b32.xlu0 %v6115, 104
        %v6248 = vpop.permute.xlu0 %6247
        %6249 = vrot.lane.b32.xlu0 %v6116, 104
        %v6250 = vpop.permute.xlu0 %6249
        %6251 = vrot.lane.b32.xlu0 %v6117, 104
        %v6252 = vpop.permute.xlu0 %6251
        %6253 = vrot.lane.b32.xlu0 %v6118, 104
        %v6254 = vpop.permute.xlu0 %6253
        %6255 = vrot.lane.b32.xlu0 %v6119, 104
        %v6256 = vpop.permute.xlu0 %6255
        %6257 = vrot.lane.b32.xlu0 %v6120, 104
        %v6258 = vpop.permute.xlu0 %6257
        %6259 = vrot.lane.b32.xlu0 %v6121, 104
        %v6260 = vpop.permute.xlu0 %6259
        %6261 = vrot.lane.b32.xlu0 %v6122, 104
        %v6262 = vpop.permute.xlu0 %6261
        %6263 = vrot.lane.b32.xlu0 %v6123, 104
        %v6264 = vpop.permute.xlu0 %6263
        %6265 = vrot.lane.b32.xlu0 %v6124, 104
        %v6266 = vpop.permute.xlu0 %6265
        %6267 = vrot.lane.b32.xlu0 %v6125, 104
        %v6268 = vpop.permute.xlu0 %6267
        %6269 = vrot.lane.b32.xlu0 %v6126, 104
        %v6270 = vpop.permute.xlu0 %6269
        %6271 = vrot.lane.b32.xlu0 %v6127, 104
        %v6272 = vpop.permute.xlu0 %6271
        %6273 = vrot.lane.b32.xlu0 %v6128, 104
        %v6274 = vpop.permute.xlu0 %6273
        %6275 = vrot.lane.b32.xlu0 %v6129, 104
        %v6276 = vpop.permute.xlu0 %6275
        %6277 = vrot.lane.b32.xlu0 %v6130, 104
        %v6278 = vpop.permute.xlu0 %6277
        %6279 = vrot.lane.b32.xlu0 %v6131, 104
        %v6280 = vpop.permute.xlu0 %6279
        %6281 = vrot.lane.b32.xlu0 %v6132, 104
        %v6282 = vpop.permute.xlu0 %6281
        %6283 = vrot.lane.b32.xlu0 %v6133, 104
        %v6284 = vpop.permute.xlu0 %6283
        %6285 = vrot.lane.b32.xlu0 %v6134, 104
        %v6286 = vpop.permute.xlu0 %6285
        %6287 = vrot.lane.b32.xlu0 %v6135, 104
        %v6288 = vpop.permute.xlu0 %6287
        %6289 = vrot.lane.b32.xlu0 %v6136, 104
        %v6290 = vpop.permute.xlu0 %6289
        %6291 = vrot.lane.b32.xlu0 %v6137, 104
        %v6292 = vpop.permute.xlu0 %6291
        %6293 = vrot.lane.b32.xlu0 %v6138, 104
        %v6294 = vpop.permute.xlu0 %6293
        %6295 = vrot.lane.b32.xlu0 %v6139, 104
        %v6296 = vpop.permute.xlu0 %6295
        %6297 = vrot.lane.b32.xlu0 %v6140, 104
        %v6298 = vpop.permute.xlu0 %6297
        %6299 = vrot.lane.b32.xlu0 %v6141, 104
        %v6300 = vpop.permute.xlu0 %6299
        %6301 = vrot.lane.b32.xlu0 %v6142, 104
        %v6302 = vpop.permute.xlu0 %6301
        %6303 = vrot.lane.b32.xlu0 %v6143, 104
        %v6304 = vpop.permute.xlu0 %6303
        %6305 = vrot.lane.b32.xlu0 %v6144, 104
        %v6306 = vpop.permute.xlu0 %6305
        %6307 = vrot.lane.b32.xlu0 %v6145, 104
        %v6308 = vpop.permute.xlu0 %6307
        %6309 = vrot.lane.b32.xlu0 %v6146, 104
        %v6310 = vpop.permute.xlu0 %6309
        %6311 = vrot.lane.b32.xlu0 %v6147, 104
        %v6312 = vpop.permute.xlu0 %6311
        %6313 = vrot.lane.b32.xlu0 %v6148, 104
        %v6314 = vpop.permute.xlu0 %6313
        %6315 = vrot.lane.b32.xlu0 %v6149, 104
        %v6316 = vpop.permute.xlu0 %6315
        %6317 = vrot.lane.b32.xlu0 %v6150, 104
        %v6318 = vpop.permute.xlu0 %6317
        %6319 = vrot.lane.b32.xlu0 %v6151, 104
        %v6320 = vpop.permute.xlu0 %6319
        %6321 = vrot.lane.b32.xlu0 %v6152, 104
        %v6322 = vpop.permute.xlu0 %6321
        %6323 = vrot.lane.b32.xlu0 %v6153, 104
        %v6324 = vpop.permute.xlu0 %6323
        %6325 = vrot.lane.b32.xlu0 %v6154, 104
        %v6326 = vpop.permute.xlu0 %6325
        %6327 = vrot.lane.b32.xlu0 %v6155, 104
        %v6328 = vpop.permute.xlu0 %6327
        %6329 = vrot.lane.b32.xlu0 %v6156, 104
        %v6330 = vpop.permute.xlu0 %6329
        %6331 = vrot.lane.b32.xlu0 %v6157, 104
        %v6332 = vpop.permute.xlu0 %6331
        %6333 = vrot.lane.b32.xlu0 %v6158, 104
        %v6334 = vpop.permute.xlu0 %6333
        %6335 = vrot.lane.b32.xlu0 %v6159, 104
        %v6336 = vpop.permute.xlu0 %6335
        %6337 = vrot.lane.b32.xlu0 %v6160, 104
        %v6338 = vpop.permute.xlu0 %6337
        %6339 = vrot.lane.b32.xlu0 %v6161, 104
        %v6340 = vpop.permute.xlu0 %6339
        %6341 = vrot.lane.b32.xlu0 %v6162, 104
        %v6342 = vpop.permute.xlu0 %6341
        %6343 = vrot.lane.b32.xlu0 %v6163, 104
        %v6344 = vpop.permute.xlu0 %6343
        %6345 = vrot.lane.b32.xlu0 %v6164, 104
        %v6346 = vpop.permute.xlu0 %6345
        %6347 = vrot.lane.b32.xlu0 %v6165, 104
        %v6348 = vpop.permute.xlu0 %6347
        %6349 = vrot.lane.b32.xlu0 %v6166, 104
        %v6350 = vpop.permute.xlu0 %6349
        %6351 = vrot.lane.b32.xlu0 %v6167, 104
        %v6352 = vpop.permute.xlu0 %6351
        %6353 = vrot.lane.b32.xlu0 %v6168, 104
        %v6354 = vpop.permute.xlu0 %6353
        %6355 = vrot.lane.b32.xlu0 %v6169, 104
        %v6356 = vpop.permute.xlu0 %6355
        %6357 = vrot.lane.b32.xlu0 %v6170, 104
        %v6358 = vpop.permute.xlu0 %6357
        %6359 = vrot.lane.b32.xlu0 %v6171, 104
        %v6360 = vpop.permute.xlu0 %6359
        %6361 = vrot.lane.b32.xlu0 %v6172, 104
        %v6362 = vpop.permute.xlu0 %6361
        %6363 = vrot.lane.b32.xlu0 %v6173, 104
        %v6364 = vpop.permute.xlu0 %6363
        %6365 = vrot.lane.b32.xlu0 %v6174, 104
        %v6366 = vpop.permute.xlu0 %6365
        %v6431 = vsel %vm991, %v6240, 0.0
        %6432 = vadd.xlane.f32.xlu0 %v6431
        %v6433 = vpop.xlane.xlu0 %6432
        %v6434 = vsel %vm991, %v6242, 0.0
        %6435 = vadd.xlane.f32.xlu0 %v6434
        %v6436 = vpop.xlane.xlu0 %6435
        %v6437 = vsel %vm991, %v6244, 0.0
        %6438 = vadd.xlane.f32.xlu0 %v6437
        %v6439 = vpop.xlane.xlu0 %6438
        %v6440 = vsel %vm991, %v6246, 0.0
        %6441 = vadd.xlane.f32.xlu0 %v6440
        %v6442 = vpop.xlane.xlu0 %6441
        %v6443 = vsel %vm991, %v6248, 0.0
        %6444 = vadd.xlane.f32.xlu0 %v6443
        %v6445 = vpop.xlane.xlu0 %6444
        %v6446 = vsel %vm991, %v6250, 0.0
        %6447 = vadd.xlane.f32.xlu0 %v6446
        %v6448 = vpop.xlane.xlu0 %6447
        %v6449 = vsel %vm991, %v6252, 0.0
        %6450 = vadd.xlane.f32.xlu0 %v6449
        %v6451 = vpop.xlane.xlu0 %6450
        %v6452 = vsel %vm991, %v6254, 0.0
        %6453 = vadd.xlane.f32.xlu0 %v6452
        %v6454 = vpop.xlane.xlu0 %6453
        %v6455 = vsel %vm991, %v6256, 0.0
        %6456 = vadd.xlane.f32.xlu0 %v6455
        %v6457 = vpop.xlane.xlu0 %6456
        %v6458 = vsel %vm991, %v6258, 0.0
        %6459 = vadd.xlane.f32.xlu0 %v6458
        %v6460 = vpop.xlane.xlu0 %6459
        %v6461 = vsel %vm991, %v6260, 0.0
        %6462 = vadd.xlane.f32.xlu0 %v6461
        %v6463 = vpop.xlane.xlu0 %6462
        %v6464 = vsel %vm991, %v6262, 0.0
        %6465 = vadd.xlane.f32.xlu0 %v6464
        %v6466 = vpop.xlane.xlu0 %6465
        %v6467 = vsel %vm991, %v6264, 0.0
        %6468 = vadd.xlane.f32.xlu0 %v6467
        %v6469 = vpop.xlane.xlu0 %6468
        %v6470 = vsel %vm991, %v6266, 0.0
        %6471 = vadd.xlane.f32.xlu0 %v6470
        %v6472 = vpop.xlane.xlu0 %6471
        %v6473 = vsel %vm991, %v6268, 0.0
        %6474 = vadd.xlane.f32.xlu0 %v6473
        %v6475 = vpop.xlane.xlu0 %6474
        %v6476 = vsel %vm991, %v6270, 0.0
        %6477 = vadd.xlane.f32.xlu0 %v6476
        %v6478 = vpop.xlane.xlu0 %6477
        %v6479 = vsel %vm991, %v6272, 0.0
        %6480 = vadd.xlane.f32.xlu0 %v6479
        %v6481 = vpop.xlane.xlu0 %6480
        %v6482 = vsel %vm991, %v6274, 0.0
        %6483 = vadd.xlane.f32.xlu0 %v6482
        %v6484 = vpop.xlane.xlu0 %6483
        %v6485 = vsel %vm991, %v6276, 0.0
        %6486 = vadd.xlane.f32.xlu0 %v6485
        %v6487 = vpop.xlane.xlu0 %6486
        %v6488 = vsel %vm991, %v6278, 0.0
        %6489 = vadd.xlane.f32.xlu0 %v6488
        %v6490 = vpop.xlane.xlu0 %6489
        %v6491 = vsel %vm991, %v6280, 0.0
        %6492 = vadd.xlane.f32.xlu0 %v6491
        %v6493 = vpop.xlane.xlu0 %6492
        %v6494 = vsel %vm991, %v6282, 0.0
        %6495 = vadd.xlane.f32.xlu0 %v6494
        %v6496 = vpop.xlane.xlu0 %6495
        %v6497 = vsel %vm991, %v6284, 0.0
        %6498 = vadd.xlane.f32.xlu0 %v6497
        %v6499 = vpop.xlane.xlu0 %6498
        %v6500 = vsel %vm991, %v6286, 0.0
        %6501 = vadd.xlane.f32.xlu0 %v6500
        %v6502 = vpop.xlane.xlu0 %6501
        %v6503 = vsel %vm991, %v6288, 0.0
        %6504 = vadd.xlane.f32.xlu0 %v6503
        %v6505 = vpop.xlane.xlu0 %6504
        %v6506 = vsel %vm991, %v6290, 0.0
        %6507 = vadd.xlane.f32.xlu0 %v6506
        %v6508 = vpop.xlane.xlu0 %6507
        %v6509 = vsel %vm991, %v6292, 0.0
        %6510 = vadd.xlane.f32.xlu0 %v6509
        %v6511 = vpop.xlane.xlu0 %6510
        %v6512 = vsel %vm991, %v6294, 0.0
        %6513 = vadd.xlane.f32.xlu0 %v6512
        %v6514 = vpop.xlane.xlu0 %6513
        %v6515 = vsel %vm991, %v6296, 0.0
        %6516 = vadd.xlane.f32.xlu0 %v6515
        %v6517 = vpop.xlane.xlu0 %6516
        %v6518 = vsel %vm991, %v6298, 0.0
        %6519 = vadd.xlane.f32.xlu0 %v6518
        %v6520 = vpop.xlane.xlu0 %6519
        %v6521 = vsel %vm991, %v6300, 0.0
        %6522 = vadd.xlane.f32.xlu0 %v6521
        %v6523 = vpop.xlane.xlu0 %6522
        %v6524 = vsel %vm991, %v6302, 0.0
        %6525 = vadd.xlane.f32.xlu0 %v6524
        %v6526 = vpop.xlane.xlu0 %6525
        %v6527 = vsel %vm991, %v6304, 0.0
        %6528 = vadd.xlane.f32.xlu0 %v6527
        %v6529 = vpop.xlane.xlu0 %6528
        %v6530 = vsel %vm991, %v6306, 0.0
        %6531 = vadd.xlane.f32.xlu0 %v6530
        %v6532 = vpop.xlane.xlu0 %6531
        %v6533 = vsel %vm991, %v6308, 0.0
        %6534 = vadd.xlane.f32.xlu0 %v6533
        %v6535 = vpop.xlane.xlu0 %6534
        %v6536 = vsel %vm991, %v6310, 0.0
        %6537 = vadd.xlane.f32.xlu0 %v6536
        %v6538 = vpop.xlane.xlu0 %6537
        %v6539 = vsel %vm991, %v6312, 0.0
        %6540 = vadd.xlane.f32.xlu0 %v6539
        %v6541 = vpop.xlane.xlu0 %6540
        %v6542 = vsel %vm991, %v6314, 0.0
        %6543 = vadd.xlane.f32.xlu0 %v6542
        %v6544 = vpop.xlane.xlu0 %6543
        %v6545 = vsel %vm991, %v6316, 0.0
        %6546 = vadd.xlane.f32.xlu0 %v6545
        %v6547 = vpop.xlane.xlu0 %6546
        %v6548 = vsel %vm991, %v6318, 0.0
        %6549 = vadd.xlane.f32.xlu0 %v6548
        %v6550 = vpop.xlane.xlu0 %6549
        %v6551 = vsel %vm991, %v6320, 0.0
        %6552 = vadd.xlane.f32.xlu0 %v6551
        %v6553 = vpop.xlane.xlu0 %6552
        %v6554 = vsel %vm991, %v6322, 0.0
        %6555 = vadd.xlane.f32.xlu0 %v6554
        %v6556 = vpop.xlane.xlu0 %6555
        %v6557 = vsel %vm991, %v6324, 0.0
        %6558 = vadd.xlane.f32.xlu0 %v6557
        %v6559 = vpop.xlane.xlu0 %6558
        %v6560 = vsel %vm991, %v6326, 0.0
        %6561 = vadd.xlane.f32.xlu0 %v6560
        %v6562 = vpop.xlane.xlu0 %6561
        %v6563 = vsel %vm991, %v6328, 0.0
        %6564 = vadd.xlane.f32.xlu0 %v6563
        %v6565 = vpop.xlane.xlu0 %6564
        %v6566 = vsel %vm991, %v6330, 0.0
        %6567 = vadd.xlane.f32.xlu0 %v6566
        %v6568 = vpop.xlane.xlu0 %6567
        %v6569 = vsel %vm991, %v6332, 0.0
        %6570 = vadd.xlane.f32.xlu0 %v6569
        %v6571 = vpop.xlane.xlu0 %6570
        %v6572 = vsel %vm991, %v6334, 0.0
        %6573 = vadd.xlane.f32.xlu0 %v6572
        %v6574 = vpop.xlane.xlu0 %6573
        %v6575 = vsel %vm991, %v6336, 0.0
        %6576 = vadd.xlane.f32.xlu0 %v6575
        %v6577 = vpop.xlane.xlu0 %6576
        %v6578 = vsel %vm991, %v6338, 0.0
        %6579 = vadd.xlane.f32.xlu0 %v6578
        %v6580 = vpop.xlane.xlu0 %6579
        %v6581 = vsel %vm991, %v6340, 0.0
        %6582 = vadd.xlane.f32.xlu0 %v6581
        %v6583 = vpop.xlane.xlu0 %6582
        %v6584 = vsel %vm991, %v6342, 0.0
        %6585 = vadd.xlane.f32.xlu0 %v6584
        %v6586 = vpop.xlane.xlu0 %6585
        %v6587 = vsel %vm991, %v6344, 0.0
        %6588 = vadd.xlane.f32.xlu0 %v6587
        %v6589 = vpop.xlane.xlu0 %6588
        %v6590 = vsel %vm991, %v6346, 0.0
        %6591 = vadd.xlane.f32.xlu0 %v6590
        %v6592 = vpop.xlane.xlu0 %6591
        %v6593 = vsel %vm991, %v6348, 0.0
        %6594 = vadd.xlane.f32.xlu0 %v6593
        %v6595 = vpop.xlane.xlu0 %6594
        %v6596 = vsel %vm991, %v6350, 0.0
        %6597 = vadd.xlane.f32.xlu0 %v6596
        %v6598 = vpop.xlane.xlu0 %6597
        %v6599 = vsel %vm991, %v6352, 0.0
        %6600 = vadd.xlane.f32.xlu0 %v6599
        %v6601 = vpop.xlane.xlu0 %6600
        %v6602 = vsel %vm991, %v6354, 0.0
        %6603 = vadd.xlane.f32.xlu0 %v6602
        %v6604 = vpop.xlane.xlu0 %6603
        %v6605 = vsel %vm991, %v6356, 0.0
        %6606 = vadd.xlane.f32.xlu0 %v6605
        %v6607 = vpop.xlane.xlu0 %6606
        %v6608 = vsel %vm991, %v6358, 0.0
        %6609 = vadd.xlane.f32.xlu0 %v6608
        %v6610 = vpop.xlane.xlu0 %6609
        %v6611 = vsel %vm991, %v6360, 0.0
        %6612 = vadd.xlane.f32.xlu0 %v6611
        %v6613 = vpop.xlane.xlu0 %6612
        %v6614 = vsel %vm991, %v6362, 0.0
        %6615 = vadd.xlane.f32.xlu0 %v6614
        %v6616 = vpop.xlane.xlu0 %6615
        %v6617 = vsel %vm991, %v6364, 0.0
        %6618 = vadd.xlane.f32.xlu0 %v6617
        %v6619 = vpop.xlane.xlu0 %6618
        %v6620 = vsel %vm991, %v6366, 0.0
        %6621 = vadd.xlane.f32.xlu0 %v6620
        %v6622 = vpop.xlane.xlu0 %6621
        %6623 = vrot.lane.b32.xlu0 %v965, 24
        %v6624 = vpop.permute.xlu0 %6623
        %6625 = vrot.lane.b32.xlu0 %v966, 24
        %v6626 = vpop.permute.xlu0 %6625
        %6627 = vrot.lane.b32.xlu0 %v967, 24
        %v6628 = vpop.permute.xlu0 %6627
        %6629 = vrot.lane.b32.xlu0 %v968, 24
        %v6630 = vpop.permute.xlu0 %6629
        %6631 = vrot.lane.b32.xlu0 %v969, 24
        %v6632 = vpop.permute.xlu0 %6631
        %6633 = vrot.lane.b32.xlu0 %v970, 24
        %v6634 = vpop.permute.xlu0 %6633
        %6635 = vrot.lane.b32.xlu0 %v971, 24
        %v6636 = vpop.permute.xlu0 %6635
        %6637 = vrot.lane.b32.xlu0 %v972, 24
        %v6638 = vpop.permute.xlu0 %6637
        %v6647 = vmul.f32 %v1117, %v6624
        %v6648 = vmul.f32 %v1118, %v6626
        %v6649 = vmul.f32 %v1119, %v6628
        %v6650 = vmul.f32 %v1120, %v6630
        %v6651 = vmul.f32 %v1121, %v6632
        %v6652 = vmul.f32 %v1122, %v6634
        %v6653 = vmul.f32 %v1123, %v6636
        %v6654 = vmul.f32 %v1124, %v6638
        %v6655 = vmul.f32 %v1125, %v6624
        %v6656 = vmul.f32 %v1126, %v6626
        %v6657 = vmul.f32 %v1127, %v6628
        %v6658 = vmul.f32 %v1128, %v6630
        %v6659 = vmul.f32 %v1129, %v6632
        %v6660 = vmul.f32 %v1130, %v6634
        %v6661 = vmul.f32 %v1131, %v6636
        %v6662 = vmul.f32 %v1132, %v6638
        %v6663 = vmul.f32 %v1133, %v6624
        %v6664 = vmul.f32 %v1134, %v6626
        %v6665 = vmul.f32 %v1135, %v6628
        %v6666 = vmul.f32 %v1136, %v6630
        %v6667 = vmul.f32 %v1137, %v6632
        %v6668 = vmul.f32 %v1138, %v6634
        %v6669 = vmul.f32 %v1139, %v6636
        %v6670 = vmul.f32 %v1140, %v6638
        %v6671 = vmul.f32 %v1141, %v6624
        %v6672 = vmul.f32 %v1142, %v6626
        %v6673 = vmul.f32 %v1143, %v6628
        %v6674 = vmul.f32 %v1144, %v6630
        %v6675 = vmul.f32 %v1145, %v6632
        %v6676 = vmul.f32 %v1146, %v6634
        %v6677 = vmul.f32 %v1147, %v6636
        %v6678 = vmul.f32 %v1148, %v6638
        %v6679 = vmul.f32 %v1149, %v6624
        %v6680 = vmul.f32 %v1150, %v6626
        %v6681 = vmul.f32 %v1151, %v6628
        %v6682 = vmul.f32 %v1152, %v6630
        %v6683 = vmul.f32 %v1153, %v6632
        %v6684 = vmul.f32 %v1154, %v6634
        %v6685 = vmul.f32 %v1155, %v6636
        %v6686 = vmul.f32 %v1156, %v6638
        %v6687 = vmul.f32 %v1157, %v6624
        %v6688 = vmul.f32 %v1158, %v6626
        %v6689 = vmul.f32 %v1159, %v6628
        %v6690 = vmul.f32 %v1160, %v6630
        %v6691 = vmul.f32 %v1161, %v6632
        %v6692 = vmul.f32 %v1162, %v6634
        %v6693 = vmul.f32 %v1163, %v6636
        %v6694 = vmul.f32 %v1164, %v6638
        %v6695 = vmul.f32 %v1165, %v6624
        %v6696 = vmul.f32 %v1166, %v6626
        %v6697 = vmul.f32 %v1167, %v6628
        %v6698 = vmul.f32 %v1168, %v6630
        %v6699 = vmul.f32 %v1169, %v6632
        %v6700 = vmul.f32 %v1170, %v6634
        %v6701 = vmul.f32 %v1171, %v6636
        %v6702 = vmul.f32 %v1172, %v6638
        %v6703 = vmul.f32 %v1173, %v6624
        %v6704 = vmul.f32 %v1174, %v6626
        %v6705 = vmul.f32 %v1175, %v6628
        %v6706 = vmul.f32 %v1176, %v6630
        %v6707 = vmul.f32 %v1177, %v6632
        %v6708 = vmul.f32 %v1178, %v6634
        %v6709 = vmul.f32 %v1179, %v6636
        %v6710 = vmul.f32 %v1180, %v6638
        %6775 = vrot.lane.b32.xlu0 %v6647, 104
        %v6776 = vpop.permute.xlu0 %6775
        %6777 = vrot.lane.b32.xlu0 %v6648, 104
        %v6778 = vpop.permute.xlu0 %6777
        %6779 = vrot.lane.b32.xlu0 %v6649, 104
        %v6780 = vpop.permute.xlu0 %6779
        %6781 = vrot.lane.b32.xlu0 %v6650, 104
        %v6782 = vpop.permute.xlu0 %6781
        %6783 = vrot.lane.b32.xlu0 %v6651, 104
        %v6784 = vpop.permute.xlu0 %6783
        %6785 = vrot.lane.b32.xlu0 %v6652, 104
        %v6786 = vpop.permute.xlu0 %6785
        %6787 = vrot.lane.b32.xlu0 %v6653, 104
        %v6788 = vpop.permute.xlu0 %6787
        %6789 = vrot.lane.b32.xlu0 %v6654, 104
        %v6790 = vpop.permute.xlu0 %6789
        %6791 = vrot.lane.b32.xlu0 %v6655, 104
        %v6792 = vpop.permute.xlu0 %6791
        %6793 = vrot.lane.b32.xlu0 %v6656, 104
        %v6794 = vpop.permute.xlu0 %6793
        %6795 = vrot.lane.b32.xlu0 %v6657, 104
        %v6796 = vpop.permute.xlu0 %6795
        %6797 = vrot.lane.b32.xlu0 %v6658, 104
        %v6798 = vpop.permute.xlu0 %6797
        %6799 = vrot.lane.b32.xlu0 %v6659, 104
        %v6800 = vpop.permute.xlu0 %6799
        %6801 = vrot.lane.b32.xlu0 %v6660, 104
        %v6802 = vpop.permute.xlu0 %6801
        %6803 = vrot.lane.b32.xlu0 %v6661, 104
        %v6804 = vpop.permute.xlu0 %6803
        %6805 = vrot.lane.b32.xlu0 %v6662, 104
        %v6806 = vpop.permute.xlu0 %6805
        %6807 = vrot.lane.b32.xlu0 %v6663, 104
        %v6808 = vpop.permute.xlu0 %6807
        %6809 = vrot.lane.b32.xlu0 %v6664, 104
        %v6810 = vpop.permute.xlu0 %6809
        %6811 = vrot.lane.b32.xlu0 %v6665, 104
        %v6812 = vpop.permute.xlu0 %6811
        %6813 = vrot.lane.b32.xlu0 %v6666, 104
        %v6814 = vpop.permute.xlu0 %6813
        %6815 = vrot.lane.b32.xlu0 %v6667, 104
        %v6816 = vpop.permute.xlu0 %6815
        %6817 = vrot.lane.b32.xlu0 %v6668, 104
        %v6818 = vpop.permute.xlu0 %6817
        %6819 = vrot.lane.b32.xlu0 %v6669, 104
        %v6820 = vpop.permute.xlu0 %6819
        %6821 = vrot.lane.b32.xlu0 %v6670, 104
        %v6822 = vpop.permute.xlu0 %6821
        %6823 = vrot.lane.b32.xlu0 %v6671, 104
        %v6824 = vpop.permute.xlu0 %6823
        %6825 = vrot.lane.b32.xlu0 %v6672, 104
        %v6826 = vpop.permute.xlu0 %6825
        %6827 = vrot.lane.b32.xlu0 %v6673, 104
        %v6828 = vpop.permute.xlu0 %6827
        %6829 = vrot.lane.b32.xlu0 %v6674, 104
        %v6830 = vpop.permute.xlu0 %6829
        %6831 = vrot.lane.b32.xlu0 %v6675, 104
        %v6832 = vpop.permute.xlu0 %6831
        %6833 = vrot.lane.b32.xlu0 %v6676, 104
        %v6834 = vpop.permute.xlu0 %6833
        %6835 = vrot.lane.b32.xlu0 %v6677, 104
        %v6836 = vpop.permute.xlu0 %6835
        %6837 = vrot.lane.b32.xlu0 %v6678, 104
        %v6838 = vpop.permute.xlu0 %6837
        %6839 = vrot.lane.b32.xlu0 %v6679, 104
        %v6840 = vpop.permute.xlu0 %6839
        %6841 = vrot.lane.b32.xlu0 %v6680, 104
        %v6842 = vpop.permute.xlu0 %6841
        %6843 = vrot.lane.b32.xlu0 %v6681, 104
        %v6844 = vpop.permute.xlu0 %6843
        %6845 = vrot.lane.b32.xlu0 %v6682, 104
        %v6846 = vpop.permute.xlu0 %6845
        %6847 = vrot.lane.b32.xlu0 %v6683, 104
        %v6848 = vpop.permute.xlu0 %6847
        %6849 = vrot.lane.b32.xlu0 %v6684, 104
        %v6850 = vpop.permute.xlu0 %6849
        %6851 = vrot.lane.b32.xlu0 %v6685, 104
        %v6852 = vpop.permute.xlu0 %6851
        %6853 = vrot.lane.b32.xlu0 %v6686, 104
        %v6854 = vpop.permute.xlu0 %6853
        %6855 = vrot.lane.b32.xlu0 %v6687, 104
        %v6856 = vpop.permute.xlu0 %6855
        %6857 = vrot.lane.b32.xlu0 %v6688, 104
        %v6858 = vpop.permute.xlu0 %6857
        %6859 = vrot.lane.b32.xlu0 %v6689, 104
        %v6860 = vpop.permute.xlu0 %6859
        %6861 = vrot.lane.b32.xlu0 %v6690, 104
        %v6862 = vpop.permute.xlu0 %6861
        %6863 = vrot.lane.b32.xlu0 %v6691, 104
        %v6864 = vpop.permute.xlu0 %6863
        %6865 = vrot.lane.b32.xlu0 %v6692, 104
        %v6866 = vpop.permute.xlu0 %6865
        %6867 = vrot.lane.b32.xlu0 %v6693, 104
        %v6868 = vpop.permute.xlu0 %6867
        %6869 = vrot.lane.b32.xlu0 %v6694, 104
        %v6870 = vpop.permute.xlu0 %6869
        %6871 = vrot.lane.b32.xlu0 %v6695, 104
        %v6872 = vpop.permute.xlu0 %6871
        %6873 = vrot.lane.b32.xlu0 %v6696, 104
        %v6874 = vpop.permute.xlu0 %6873
        %6875 = vrot.lane.b32.xlu0 %v6697, 104
        %v6876 = vpop.permute.xlu0 %6875
        %6877 = vrot.lane.b32.xlu0 %v6698, 104
        %v6878 = vpop.permute.xlu0 %6877
        %6879 = vrot.lane.b32.xlu0 %v6699, 104
        %v6880 = vpop.permute.xlu0 %6879
        %6881 = vrot.lane.b32.xlu0 %v6700, 104
        %v6882 = vpop.permute.xlu0 %6881
        %6883 = vrot.lane.b32.xlu0 %v6701, 104
        %v6884 = vpop.permute.xlu0 %6883
        %6885 = vrot.lane.b32.xlu0 %v6702, 104
        %v6886 = vpop.permute.xlu0 %6885
        %6887 = vrot.lane.b32.xlu0 %v6703, 104
        %v6888 = vpop.permute.xlu0 %6887
        %6889 = vrot.lane.b32.xlu0 %v6704, 104
        %v6890 = vpop.permute.xlu0 %6889
        %6891 = vrot.lane.b32.xlu0 %v6705, 104
        %v6892 = vpop.permute.xlu0 %6891
        %6893 = vrot.lane.b32.xlu0 %v6706, 104
        %v6894 = vpop.permute.xlu0 %6893
        %6895 = vrot.lane.b32.xlu0 %v6707, 104
        %v6896 = vpop.permute.xlu0 %6895
        %6897 = vrot.lane.b32.xlu0 %v6708, 104
        %v6898 = vpop.permute.xlu0 %6897
        %6899 = vrot.lane.b32.xlu0 %v6709, 104
        %v6900 = vpop.permute.xlu0 %6899
        %6901 = vrot.lane.b32.xlu0 %v6710, 104
        %v6902 = vpop.permute.xlu0 %6901
        %v6967 = vsel %vm991, %v6776, 0.0
        %6968 = vadd.xlane.f32.xlu0 %v6967
        %v6969 = vpop.xlane.xlu0 %6968
        %v6970 = vsel %vm991, %v6778, 0.0
        %6971 = vadd.xlane.f32.xlu0 %v6970
        %v6972 = vpop.xlane.xlu0 %6971
        %v6973 = vsel %vm991, %v6780, 0.0
        %6974 = vadd.xlane.f32.xlu0 %v6973
        %v6975 = vpop.xlane.xlu0 %6974
        %v6976 = vsel %vm991, %v6782, 0.0
        %6977 = vadd.xlane.f32.xlu0 %v6976
        %v6978 = vpop.xlane.xlu0 %6977
        %v6979 = vsel %vm991, %v6784, 0.0
        %6980 = vadd.xlane.f32.xlu0 %v6979
        %v6981 = vpop.xlane.xlu0 %6980
        %v6982 = vsel %vm991, %v6786, 0.0
        %6983 = vadd.xlane.f32.xlu0 %v6982
        %v6984 = vpop.xlane.xlu0 %6983
        %v6985 = vsel %vm991, %v6788, 0.0
        %6986 = vadd.xlane.f32.xlu0 %v6985
        %v6987 = vpop.xlane.xlu0 %6986
        %v6988 = vsel %vm991, %v6790, 0.0
        %6989 = vadd.xlane.f32.xlu0 %v6988
        %v6990 = vpop.xlane.xlu0 %6989
        %v6991 = vsel %vm991, %v6792, 0.0
        %6992 = vadd.xlane.f32.xlu0 %v6991
        %v6993 = vpop.xlane.xlu0 %6992
        %v6994 = vsel %vm991, %v6794, 0.0
        %6995 = vadd.xlane.f32.xlu0 %v6994
        %v6996 = vpop.xlane.xlu0 %6995
        %v6997 = vsel %vm991, %v6796, 0.0
        %6998 = vadd.xlane.f32.xlu0 %v6997
        %v6999 = vpop.xlane.xlu0 %6998
        %v7000 = vsel %vm991, %v6798, 0.0
        %7001 = vadd.xlane.f32.xlu0 %v7000
        %v7002 = vpop.xlane.xlu0 %7001
        %v7003 = vsel %vm991, %v6800, 0.0
        %7004 = vadd.xlane.f32.xlu0 %v7003
        %v7005 = vpop.xlane.xlu0 %7004
        %v7006 = vsel %vm991, %v6802, 0.0
        %7007 = vadd.xlane.f32.xlu0 %v7006
        %v7008 = vpop.xlane.xlu0 %7007
        %v7009 = vsel %vm991, %v6804, 0.0
        %7010 = vadd.xlane.f32.xlu0 %v7009
        %v7011 = vpop.xlane.xlu0 %7010
        %v7012 = vsel %vm991, %v6806, 0.0
        %7013 = vadd.xlane.f32.xlu0 %v7012
        %v7014 = vpop.xlane.xlu0 %7013
        %v7015 = vsel %vm991, %v6808, 0.0
        %7016 = vadd.xlane.f32.xlu0 %v7015
        %v7017 = vpop.xlane.xlu0 %7016
        %v7018 = vsel %vm991, %v6810, 0.0
        %7019 = vadd.xlane.f32.xlu0 %v7018
        %v7020 = vpop.xlane.xlu0 %7019
        %v7021 = vsel %vm991, %v6812, 0.0
        %7022 = vadd.xlane.f32.xlu0 %v7021
        %v7023 = vpop.xlane.xlu0 %7022
        %v7024 = vsel %vm991, %v6814, 0.0
        %7025 = vadd.xlane.f32.xlu0 %v7024
        %v7026 = vpop.xlane.xlu0 %7025
        %v7027 = vsel %vm991, %v6816, 0.0
        %7028 = vadd.xlane.f32.xlu0 %v7027
        %v7029 = vpop.xlane.xlu0 %7028
        %v7030 = vsel %vm991, %v6818, 0.0
        %7031 = vadd.xlane.f32.xlu0 %v7030
        %v7032 = vpop.xlane.xlu0 %7031
        %v7033 = vsel %vm991, %v6820, 0.0
        %7034 = vadd.xlane.f32.xlu0 %v7033
        %v7035 = vpop.xlane.xlu0 %7034
        %v7036 = vsel %vm991, %v6822, 0.0
        %7037 = vadd.xlane.f32.xlu0 %v7036
        %v7038 = vpop.xlane.xlu0 %7037
        %v7039 = vsel %vm991, %v6824, 0.0
        %7040 = vadd.xlane.f32.xlu0 %v7039
        %v7041 = vpop.xlane.xlu0 %7040
        %v7042 = vsel %vm991, %v6826, 0.0
        %7043 = vadd.xlane.f32.xlu0 %v7042
        %v7044 = vpop.xlane.xlu0 %7043
        %v7045 = vsel %vm991, %v6828, 0.0
        %7046 = vadd.xlane.f32.xlu0 %v7045
        %v7047 = vpop.xlane.xlu0 %7046
        %v7048 = vsel %vm991, %v6830, 0.0
        %7049 = vadd.xlane.f32.xlu0 %v7048
        %v7050 = vpop.xlane.xlu0 %7049
        %v7051 = vsel %vm991, %v6832, 0.0
        %7052 = vadd.xlane.f32.xlu0 %v7051
        %v7053 = vpop.xlane.xlu0 %7052
        %v7054 = vsel %vm991, %v6834, 0.0
        %7055 = vadd.xlane.f32.xlu0 %v7054
        %v7056 = vpop.xlane.xlu0 %7055
        %v7057 = vsel %vm991, %v6836, 0.0
        %7058 = vadd.xlane.f32.xlu0 %v7057
        %v7059 = vpop.xlane.xlu0 %7058
        %v7060 = vsel %vm991, %v6838, 0.0
        %7061 = vadd.xlane.f32.xlu0 %v7060
        %v7062 = vpop.xlane.xlu0 %7061
        %v7063 = vsel %vm991, %v6840, 0.0
        %7064 = vadd.xlane.f32.xlu0 %v7063
        %v7065 = vpop.xlane.xlu0 %7064
        %v7066 = vsel %vm991, %v6842, 0.0
        %7067 = vadd.xlane.f32.xlu0 %v7066
        %v7068 = vpop.xlane.xlu0 %7067
        %v7069 = vsel %vm991, %v6844, 0.0
        %7070 = vadd.xlane.f32.xlu0 %v7069
        %v7071 = vpop.xlane.xlu0 %7070
        %v7072 = vsel %vm991, %v6846, 0.0
        %7073 = vadd.xlane.f32.xlu0 %v7072
        %v7074 = vpop.xlane.xlu0 %7073
        %v7075 = vsel %vm991, %v6848, 0.0
        %7076 = vadd.xlane.f32.xlu0 %v7075
        %v7077 = vpop.xlane.xlu0 %7076
        %v7078 = vsel %vm991, %v6850, 0.0
        %7079 = vadd.xlane.f32.xlu0 %v7078
        %v7080 = vpop.xlane.xlu0 %7079
        %v7081 = vsel %vm991, %v6852, 0.0
        %7082 = vadd.xlane.f32.xlu0 %v7081
        %v7083 = vpop.xlane.xlu0 %7082
        %v7084 = vsel %vm991, %v6854, 0.0
        %7085 = vadd.xlane.f32.xlu0 %v7084
        %v7086 = vpop.xlane.xlu0 %7085
        %v7087 = vsel %vm991, %v6856, 0.0
        %7088 = vadd.xlane.f32.xlu0 %v7087
        %v7089 = vpop.xlane.xlu0 %7088
        %v7090 = vsel %vm991, %v6858, 0.0
        %7091 = vadd.xlane.f32.xlu0 %v7090
        %v7092 = vpop.xlane.xlu0 %7091
        %v7093 = vsel %vm991, %v6860, 0.0
        %7094 = vadd.xlane.f32.xlu0 %v7093
        %v7095 = vpop.xlane.xlu0 %7094
        %v7096 = vsel %vm991, %v6862, 0.0
        %7097 = vadd.xlane.f32.xlu0 %v7096
        %v7098 = vpop.xlane.xlu0 %7097
        %v7099 = vsel %vm991, %v6864, 0.0
        %7100 = vadd.xlane.f32.xlu0 %v7099
        %v7101 = vpop.xlane.xlu0 %7100
        %v7102 = vsel %vm991, %v6866, 0.0
        %7103 = vadd.xlane.f32.xlu0 %v7102
        %v7104 = vpop.xlane.xlu0 %7103
        %v7105 = vsel %vm991, %v6868, 0.0
        %7106 = vadd.xlane.f32.xlu0 %v7105
        %v7107 = vpop.xlane.xlu0 %7106
        %v7108 = vsel %vm991, %v6870, 0.0
        %7109 = vadd.xlane.f32.xlu0 %v7108
        %v7110 = vpop.xlane.xlu0 %7109
        %v7111 = vsel %vm991, %v6872, 0.0
        %7112 = vadd.xlane.f32.xlu0 %v7111
        %v7113 = vpop.xlane.xlu0 %7112
        %v7114 = vsel %vm991, %v6874, 0.0
        %7115 = vadd.xlane.f32.xlu0 %v7114
        %v7116 = vpop.xlane.xlu0 %7115
        %v7117 = vsel %vm991, %v6876, 0.0
        %7118 = vadd.xlane.f32.xlu0 %v7117
        %v7119 = vpop.xlane.xlu0 %7118
        %v7120 = vsel %vm991, %v6878, 0.0
        %7121 = vadd.xlane.f32.xlu0 %v7120
        %v7122 = vpop.xlane.xlu0 %7121
        %v7123 = vsel %vm991, %v6880, 0.0
        %7124 = vadd.xlane.f32.xlu0 %v7123
        %v7125 = vpop.xlane.xlu0 %7124
        %v7126 = vsel %vm991, %v6882, 0.0
        %7127 = vadd.xlane.f32.xlu0 %v7126
        %v7128 = vpop.xlane.xlu0 %7127
        %v7129 = vsel %vm991, %v6884, 0.0
        %7130 = vadd.xlane.f32.xlu0 %v7129
        %v7131 = vpop.xlane.xlu0 %7130
        %v7132 = vsel %vm991, %v6886, 0.0
        %7133 = vadd.xlane.f32.xlu0 %v7132
        %v7134 = vpop.xlane.xlu0 %7133
        %v7135 = vsel %vm991, %v6888, 0.0
        %7136 = vadd.xlane.f32.xlu0 %v7135
        %v7137 = vpop.xlane.xlu0 %7136
        %v7138 = vsel %vm991, %v6890, 0.0
        %7139 = vadd.xlane.f32.xlu0 %v7138
        %v7140 = vpop.xlane.xlu0 %7139
        %v7141 = vsel %vm991, %v6892, 0.0
        %7142 = vadd.xlane.f32.xlu0 %v7141
        %v7143 = vpop.xlane.xlu0 %7142
        %v7144 = vsel %vm991, %v6894, 0.0
        %7145 = vadd.xlane.f32.xlu0 %v7144
        %v7146 = vpop.xlane.xlu0 %7145
        %v7147 = vsel %vm991, %v6896, 0.0
        %7148 = vadd.xlane.f32.xlu0 %v7147
        %v7149 = vpop.xlane.xlu0 %7148
        %v7150 = vsel %vm991, %v6898, 0.0
        %7151 = vadd.xlane.f32.xlu0 %v7150
        %v7152 = vpop.xlane.xlu0 %7151
        %v7153 = vsel %vm991, %v6900, 0.0
        %7154 = vadd.xlane.f32.xlu0 %v7153
        %v7155 = vpop.xlane.xlu0 %7154
        %v7156 = vsel %vm991, %v6902, 0.0
        %7157 = vadd.xlane.f32.xlu0 %v7156
        %v7158 = vpop.xlane.xlu0 %7157
        %v7223 = vperm.slane %v6433, %v1822
        %v7224 = vperm.slane %v6436, %v1822
        %v7225 = vperm.slane %v6439, %v1822
        %v7226 = vperm.slane %v6442, %v1822
        %v7227 = vperm.slane %v6445, %v1822
        %v7228 = vperm.slane %v6448, %v1822
        %v7229 = vperm.slane %v6451, %v1822
        %v7230 = vperm.slane %v6454, %v1822
        %v7231 = vperm.slane %v6457, %v1822
        %v7232 = vperm.slane %v6460, %v1822
        %v7233 = vperm.slane %v6463, %v1822
        %v7234 = vperm.slane %v6466, %v1822
        %v7235 = vperm.slane %v6469, %v1822
        %v7236 = vperm.slane %v6472, %v1822
        %v7237 = vperm.slane %v6475, %v1822
        %v7238 = vperm.slane %v6478, %v1822
        %v7239 = vperm.slane %v6481, %v1822
        %v7240 = vperm.slane %v6484, %v1822
        %v7241 = vperm.slane %v6487, %v1822
        %v7242 = vperm.slane %v6490, %v1822
        %v7243 = vperm.slane %v6493, %v1822
        %v7244 = vperm.slane %v6496, %v1822
        %v7245 = vperm.slane %v6499, %v1822
        %v7246 = vperm.slane %v6502, %v1822
        %v7247 = vperm.slane %v6505, %v1822
        %v7248 = vperm.slane %v6508, %v1822
        %v7249 = vperm.slane %v6511, %v1822
        %v7250 = vperm.slane %v6514, %v1822
        %v7251 = vperm.slane %v6517, %v1822
        %v7252 = vperm.slane %v6520, %v1822
        %v7253 = vperm.slane %v6523, %v1822
        %v7254 = vperm.slane %v6526, %v1822
        %v7255 = vperm.slane %v6529, %v1822
        %v7256 = vperm.slane %v6532, %v1822
        %v7257 = vperm.slane %v6535, %v1822
        %v7258 = vperm.slane %v6538, %v1822
        %v7259 = vperm.slane %v6541, %v1822
        %v7260 = vperm.slane %v6544, %v1822
        %v7261 = vperm.slane %v6547, %v1822
        %v7262 = vperm.slane %v6550, %v1822
        %v7263 = vperm.slane %v6553, %v1822
        %v7264 = vperm.slane %v6556, %v1822
        %v7265 = vperm.slane %v6559, %v1822
        %v7266 = vperm.slane %v6562, %v1822
        %v7267 = vperm.slane %v6565, %v1822
        %v7268 = vperm.slane %v6568, %v1822
        %v7269 = vperm.slane %v6571, %v1822
        %v7270 = vperm.slane %v6574, %v1822
        %v7271 = vperm.slane %v6577, %v1822
        %v7272 = vperm.slane %v6580, %v1822
        %v7273 = vperm.slane %v6583, %v1822
        %v7274 = vperm.slane %v6586, %v1822
        %v7275 = vperm.slane %v6589, %v1822
        %v7276 = vperm.slane %v6592, %v1822
        %v7277 = vperm.slane %v6595, %v1822
        %v7278 = vperm.slane %v6598, %v1822
        %v7279 = vperm.slane %v6601, %v1822
        %v7280 = vperm.slane %v6604, %v1822
        %v7281 = vperm.slane %v6607, %v1822
        %v7282 = vperm.slane %v6610, %v1822
        %v7283 = vperm.slane %v6613, %v1822
        %v7284 = vperm.slane %v6616, %v1822
        %v7285 = vperm.slane %v6619, %v1822
        %v7286 = vperm.slane %v6622, %v1822
        %v7287 = vsel %vm1887, %v7224, %v7223
        %v7288 = vsel %vm1889, %v7225, %v7287
        %v7289 = vsel %vm1891, %v7226, %v7288
        %v7290 = vsel %vm1893, %v7227, %v7289
        %v7291 = vsel %vm1895, %v7228, %v7290
        %v7292 = vsel %vm1897, %v7229, %v7291
        %v7293 = vsel %vm1899, %v7230, %v7292
        %v7294 = vsel %vm1887, %v7232, %v7231
        %v7295 = vsel %vm1889, %v7233, %v7294
        %v7296 = vsel %vm1891, %v7234, %v7295
        %v7297 = vsel %vm1893, %v7235, %v7296
        %v7298 = vsel %vm1895, %v7236, %v7297
        %v7299 = vsel %vm1897, %v7237, %v7298
        %v7300 = vsel %vm1899, %v7238, %v7299
        %v7301 = vsel %vm1887, %v7240, %v7239
        %v7302 = vsel %vm1889, %v7241, %v7301
        %v7303 = vsel %vm1891, %v7242, %v7302
        %v7304 = vsel %vm1893, %v7243, %v7303
        %v7305 = vsel %vm1895, %v7244, %v7304
        %v7306 = vsel %vm1897, %v7245, %v7305
        %v7307 = vsel %vm1899, %v7246, %v7306
        %v7308 = vsel %vm1887, %v7248, %v7247
        %v7309 = vsel %vm1889, %v7249, %v7308
        %v7310 = vsel %vm1891, %v7250, %v7309
        %v7311 = vsel %vm1893, %v7251, %v7310
        %v7312 = vsel %vm1895, %v7252, %v7311
        %v7313 = vsel %vm1897, %v7253, %v7312
        %v7314 = vsel %vm1899, %v7254, %v7313
        %v7315 = vsel %vm1887, %v7256, %v7255
        %v7316 = vsel %vm1889, %v7257, %v7315
        %v7317 = vsel %vm1891, %v7258, %v7316
        %v7318 = vsel %vm1893, %v7259, %v7317
        %v7319 = vsel %vm1895, %v7260, %v7318
        %v7320 = vsel %vm1897, %v7261, %v7319
        %v7321 = vsel %vm1899, %v7262, %v7320
        %v7322 = vsel %vm1887, %v7264, %v7263
        %v7323 = vsel %vm1889, %v7265, %v7322
        %v7324 = vsel %vm1891, %v7266, %v7323
        %v7325 = vsel %vm1893, %v7267, %v7324
        %v7326 = vsel %vm1895, %v7268, %v7325
        %v7327 = vsel %vm1897, %v7269, %v7326
        %v7328 = vsel %vm1899, %v7270, %v7327
        %v7329 = vsel %vm1887, %v7272, %v7271
        %v7330 = vsel %vm1889, %v7273, %v7329
        %v7331 = vsel %vm1891, %v7274, %v7330
        %v7332 = vsel %vm1893, %v7275, %v7331
        %v7333 = vsel %vm1895, %v7276, %v7332
        %v7334 = vsel %vm1897, %v7277, %v7333
        %v7335 = vsel %vm1899, %v7278, %v7334
        %v7336 = vsel %vm1887, %v7280, %v7279
        %v7337 = vsel %vm1889, %v7281, %v7336
        %v7338 = vsel %vm1891, %v7282, %v7337
        %v7339 = vsel %vm1893, %v7283, %v7338
        %v7340 = vsel %vm1895, %v7284, %v7339
        %v7341 = vsel %vm1897, %v7285, %v7340
        %v7342 = vsel %vm1899, %v7286, %v7341
        %v7343 = vsel %vm991, %v7293, 0
        %v7345 = vsel %vm991, %v7300, 0
        %v7347 = vsel %vm991, %v7307, 0
        %v7349 = vsel %vm991, %v7314, 0
        %v7351 = vsel %vm991, %v7321, 0
        %v7353 = vsel %vm991, %v7328, 0
        %v7355 = vsel %vm991, %v7335, 0
        %v7357 = vsel %vm991, %v7342, 0
        %7359 = vmatpush.msra.mxu0 0.0
        %7360 = vmatpush.msra.mxu0 0.0
        %7361 = vmatpush.msra.mxu0 0.0
        %7362 = vmatpush.msra.mxu0 0.0
        %7363 = vmatpush.msra.mxu0 0.0
        %7364 = vmatpush.msra.mxu0 0.0
        %7365 = vmatpush.msra.mxu0 0.0
        %7366 = vmatpush.msra.mxu0 0.0
        %7367 = vmatpush.msra.mxu0 0.0
        %7368 = vmatpush.msra.mxu0 0.0
        %7369 = vmatpush.msra.mxu0 0.0
        %7370 = vmatpush.msra.mxu0 0.0
        %7371 = vmatpush.msra.mxu0 0.0
        %7372 = vmatpush.msra.mxu0 0.0
        %7373 = vmatpush.msra.mxu0 0.0
        %7374 = vmatpush.msra.mxu0 %v973
        %7375 = vmatmul.f32.gmra.mxu0 %v7343
        %v7376 = vpop.f32.mrf.mxu0
        %v7377 = vadd.f32 0.0, %v7376
        %7378 = vmatmul.f32.gmra.mxu0 %v7345
        %v7379 = vpop.f32.mrf.mxu0
        %v7380 = vadd.f32 0.0, %v7379
        %7381 = vmatmul.f32.gmra.mxu0 %v7347
        %v7382 = vpop.f32.mrf.mxu0
        %v7383 = vadd.f32 0.0, %v7382
        %7384 = vmatmul.f32.gmra.mxu0 %v7349
        %v7385 = vpop.f32.mrf.mxu0
        %v7386 = vadd.f32 0.0, %v7385
        %7387 = vmatmul.f32.gmra.mxu0 %v7351
        %v7388 = vpop.f32.mrf.mxu0
        %v7389 = vadd.f32 0.0, %v7388
        %7390 = vmatmul.f32.gmra.mxu0 %v7353
        %v7391 = vpop.f32.mrf.mxu0
        %v7392 = vadd.f32 0.0, %v7391
        %7393 = vmatmul.f32.gmra.mxu0 %v7355
        %v7394 = vpop.f32.mrf.mxu0
        %v7395 = vadd.f32 0.0, %v7394
        %7396 = vmatmul.f32.gmra.mxu0 %v7357
        %v7397 = vpop.f32.mrf.mxu0
        %v7398 = vadd.f32 0.0, %v7397
        %7399 = vdwg.mxu0
        %v7400 = vadd.f32 %v6079, %v7377
        %v7401 = vadd.f32 %v6080, %v7380
        %v7402 = vadd.f32 %v6081, %v7383
        %v7403 = vadd.f32 %v6082, %v7386
        %v7404 = vadd.f32 %v6083, %v7389
        %v7405 = vadd.f32 %v6084, %v7392
        %v7406 = vadd.f32 %v6085, %v7395
        %v7407 = vadd.f32 %v6086, %v7398
        %v7472 = vperm.slane %v6969, %v1822
        %v7473 = vperm.slane %v6972, %v1822
        %v7474 = vperm.slane %v6975, %v1822
        %v7475 = vperm.slane %v6978, %v1822
        %v7476 = vperm.slane %v6981, %v1822
        %v7477 = vperm.slane %v6984, %v1822
        %v7478 = vperm.slane %v6987, %v1822
        %v7479 = vperm.slane %v6990, %v1822
        %v7480 = vperm.slane %v6993, %v1822
        %v7481 = vperm.slane %v6996, %v1822
        %v7482 = vperm.slane %v6999, %v1822
        %v7483 = vperm.slane %v7002, %v1822
        %v7484 = vperm.slane %v7005, %v1822
        %v7485 = vperm.slane %v7008, %v1822
        %v7486 = vperm.slane %v7011, %v1822
        %v7487 = vperm.slane %v7014, %v1822
        %v7488 = vperm.slane %v7017, %v1822
        %v7489 = vperm.slane %v7020, %v1822
        %v7490 = vperm.slane %v7023, %v1822
        %v7491 = vperm.slane %v7026, %v1822
        %v7492 = vperm.slane %v7029, %v1822
        %v7493 = vperm.slane %v7032, %v1822
        %v7494 = vperm.slane %v7035, %v1822
        %v7495 = vperm.slane %v7038, %v1822
        %v7496 = vperm.slane %v7041, %v1822
        %v7497 = vperm.slane %v7044, %v1822
        %v7498 = vperm.slane %v7047, %v1822
        %v7499 = vperm.slane %v7050, %v1822
        %v7500 = vperm.slane %v7053, %v1822
        %v7501 = vperm.slane %v7056, %v1822
        %v7502 = vperm.slane %v7059, %v1822
        %v7503 = vperm.slane %v7062, %v1822
        %v7504 = vperm.slane %v7065, %v1822
        %v7505 = vperm.slane %v7068, %v1822
        %v7506 = vperm.slane %v7071, %v1822
        %v7507 = vperm.slane %v7074, %v1822
        %v7508 = vperm.slane %v7077, %v1822
        %v7509 = vperm.slane %v7080, %v1822
        %v7510 = vperm.slane %v7083, %v1822
        %v7511 = vperm.slane %v7086, %v1822
        %v7512 = vperm.slane %v7089, %v1822
        %v7513 = vperm.slane %v7092, %v1822
        %v7514 = vperm.slane %v7095, %v1822
        %v7515 = vperm.slane %v7098, %v1822
        %v7516 = vperm.slane %v7101, %v1822
        %v7517 = vperm.slane %v7104, %v1822
        %v7518 = vperm.slane %v7107, %v1822
        %v7519 = vperm.slane %v7110, %v1822
        %v7520 = vperm.slane %v7113, %v1822
        %v7521 = vperm.slane %v7116, %v1822
        %v7522 = vperm.slane %v7119, %v1822
        %v7523 = vperm.slane %v7122, %v1822
        %v7524 = vperm.slane %v7125, %v1822
        %v7525 = vperm.slane %v7128, %v1822
        %v7526 = vperm.slane %v7131, %v1822
        %v7527 = vperm.slane %v7134, %v1822
        %v7528 = vperm.slane %v7137, %v1822
        %v7529 = vperm.slane %v7140, %v1822
        %v7530 = vperm.slane %v7143, %v1822
        %v7531 = vperm.slane %v7146, %v1822
        %v7532 = vperm.slane %v7149, %v1822
        %v7533 = vperm.slane %v7152, %v1822
        %v7534 = vperm.slane %v7155, %v1822
        %v7535 = vperm.slane %v7158, %v1822
        %v7536 = vsel %vm1887, %v7473, %v7472
        %v7537 = vsel %vm1889, %v7474, %v7536
        %v7538 = vsel %vm1891, %v7475, %v7537
        %v7539 = vsel %vm1893, %v7476, %v7538
        %v7540 = vsel %vm1895, %v7477, %v7539
        %v7541 = vsel %vm1897, %v7478, %v7540
        %v7542 = vsel %vm1899, %v7479, %v7541
        %v7543 = vsel %vm1887, %v7481, %v7480
        %v7544 = vsel %vm1889, %v7482, %v7543
        %v7545 = vsel %vm1891, %v7483, %v7544
        %v7546 = vsel %vm1893, %v7484, %v7545
        %v7547 = vsel %vm1895, %v7485, %v7546
        %v7548 = vsel %vm1897, %v7486, %v7547
        %v7549 = vsel %vm1899, %v7487, %v7548
        %v7550 = vsel %vm1887, %v7489, %v7488
        %v7551 = vsel %vm1889, %v7490, %v7550
        %v7552 = vsel %vm1891, %v7491, %v7551
        %v7553 = vsel %vm1893, %v7492, %v7552
        %v7554 = vsel %vm1895, %v7493, %v7553
        %v7555 = vsel %vm1897, %v7494, %v7554
        %v7556 = vsel %vm1899, %v7495, %v7555
        %v7557 = vsel %vm1887, %v7497, %v7496
        %v7558 = vsel %vm1889, %v7498, %v7557
        %v7559 = vsel %vm1891, %v7499, %v7558
        %v7560 = vsel %vm1893, %v7500, %v7559
        %v7561 = vsel %vm1895, %v7501, %v7560
        %v7562 = vsel %vm1897, %v7502, %v7561
        %v7563 = vsel %vm1899, %v7503, %v7562
        %v7564 = vsel %vm1887, %v7505, %v7504
        %v7565 = vsel %vm1889, %v7506, %v7564
        %v7566 = vsel %vm1891, %v7507, %v7565
        %v7567 = vsel %vm1893, %v7508, %v7566
        %v7568 = vsel %vm1895, %v7509, %v7567
        %v7569 = vsel %vm1897, %v7510, %v7568
        %v7570 = vsel %vm1899, %v7511, %v7569
        %v7571 = vsel %vm1887, %v7513, %v7512
        %v7572 = vsel %vm1889, %v7514, %v7571
        %v7573 = vsel %vm1891, %v7515, %v7572
        %v7574 = vsel %vm1893, %v7516, %v7573
        %v7575 = vsel %vm1895, %v7517, %v7574
        %v7576 = vsel %vm1897, %v7518, %v7575
        %v7577 = vsel %vm1899, %v7519, %v7576
        %v7578 = vsel %vm1887, %v7521, %v7520
        %v7579 = vsel %vm1889, %v7522, %v7578
        %v7580 = vsel %vm1891, %v7523, %v7579
        %v7581 = vsel %vm1893, %v7524, %v7580
        %v7582 = vsel %vm1895, %v7525, %v7581
        %v7583 = vsel %vm1897, %v7526, %v7582
        %v7584 = vsel %vm1899, %v7527, %v7583
        %v7585 = vsel %vm1887, %v7529, %v7528
        %v7586 = vsel %vm1889, %v7530, %v7585
        %v7587 = vsel %vm1891, %v7531, %v7586
        %v7588 = vsel %vm1893, %v7532, %v7587
        %v7589 = vsel %vm1895, %v7533, %v7588
        %v7590 = vsel %vm1897, %v7534, %v7589
        %v7591 = vsel %vm1899, %v7535, %v7590
        %v7592 = vsel %vm991, %v7542, 0
        %v7594 = vsel %vm991, %v7549, 0
        %v7596 = vsel %vm991, %v7556, 0
        %v7598 = vsel %vm991, %v7563, 0
        %v7600 = vsel %vm991, %v7570, 0
        %v7602 = vsel %vm991, %v7577, 0
        %v7604 = vsel %vm991, %v7584, 0
        %v7606 = vsel %vm991, %v7591, 0
        %7608 = vmatpush.msra.mxu0 0.0
        %7609 = vmatpush.msra.mxu0 0.0
        %7610 = vmatpush.msra.mxu0 0.0
        %7611 = vmatpush.msra.mxu0 0.0
        %7612 = vmatpush.msra.mxu0 0.0
        %7613 = vmatpush.msra.mxu0 0.0
        %7614 = vmatpush.msra.mxu0 0.0
        %7615 = vmatpush.msra.mxu0 0.0
        %7616 = vmatpush.msra.mxu0 0.0
        %7617 = vmatpush.msra.mxu0 0.0
        %7618 = vmatpush.msra.mxu0 0.0
        %7619 = vmatpush.msra.mxu0 0.0
        %7620 = vmatpush.msra.mxu0 0.0
        %7621 = vmatpush.msra.mxu0 0.0
        %7622 = vmatpush.msra.mxu0 0.0
        %7623 = vmatpush.msra.mxu0 %v974
        %7624 = vmatmul.f32.gmra.mxu0 %v7592
        %v7625 = vpop.f32.mrf.mxu0
        %v7626 = vadd.f32 0.0, %v7625
        %7627 = vmatmul.f32.gmra.mxu0 %v7594
        %v7628 = vpop.f32.mrf.mxu0
        %v7629 = vadd.f32 0.0, %v7628
        %7630 = vmatmul.f32.gmra.mxu0 %v7596
        %v7631 = vpop.f32.mrf.mxu0
        %v7632 = vadd.f32 0.0, %v7631
        %7633 = vmatmul.f32.gmra.mxu0 %v7598
        %v7634 = vpop.f32.mrf.mxu0
        %v7635 = vadd.f32 0.0, %v7634
        %7636 = vmatmul.f32.gmra.mxu0 %v7600
        %v7637 = vpop.f32.mrf.mxu0
        %v7638 = vadd.f32 0.0, %v7637
        %7639 = vmatmul.f32.gmra.mxu0 %v7602
        %v7640 = vpop.f32.mrf.mxu0
        %v7641 = vadd.f32 0.0, %v7640
        %7642 = vmatmul.f32.gmra.mxu0 %v7604
        %v7643 = vpop.f32.mrf.mxu0
        %v7644 = vadd.f32 0.0, %v7643
        %7645 = vmatmul.f32.gmra.mxu0 %v7606
        %v7646 = vpop.f32.mrf.mxu0
        %v7647 = vadd.f32 0.0, %v7646
        %7648 = vdwg.mxu0
        %v7649 = vadd.f32 %v7400, %v7626
        %v7650 = vadd.f32 %v7401, %v7629
        %v7651 = vadd.f32 %v7402, %v7632
        %v7652 = vadd.f32 %v7403, %v7635
        %v7653 = vadd.f32 %v7404, %v7638
        %v7654 = vadd.f32 %v7405, %v7641
        %v7655 = vadd.f32 %v7406, %v7644
        %v7656 = vadd.f32 %v7407, %v7647
        %v7657 = vsel %vm2264, %v7649, -inf
        %7658 = vmax.xlane.f32.xlu0 %v7657
        %v7659 = vpop.xlane.xlu0 %7658
        %v7660 = vsel %vm2264, %v7650, -inf
        %7661 = vmax.xlane.f32.xlu0 %v7660
        %v7662 = vpop.xlane.xlu0 %7661
        %v7663 = vsel %vm2264, %v7651, -inf
        %7664 = vmax.xlane.f32.xlu0 %v7663
        %v7665 = vpop.xlane.xlu0 %7664
        %v7666 = vsel %vm2264, %v7652, -inf
        %7667 = vmax.xlane.f32.xlu0 %v7666
        %v7668 = vpop.xlane.xlu0 %7667
        %v7669 = vsel %vm2264, %v7653, -inf
        %7670 = vmax.xlane.f32.xlu0 %v7669
        %v7671 = vpop.xlane.xlu0 %7670
        %v7672 = vsel %vm2264, %v7654, -inf
        %7673 = vmax.xlane.f32.xlu0 %v7672
        %v7674 = vpop.xlane.xlu0 %7673
        %v7675 = vsel %vm2264, %v7655, -inf
        %7676 = vmax.xlane.f32.xlu0 %v7675
        %v7677 = vpop.xlane.xlu0 %7676
        %v7678 = vsel %vm2264, %v7656, -inf
        %7679 = vmax.xlane.f32.xlu0 %v7678
        %v7680 = vpop.xlane.xlu0 %7679
        %v7681 = vsub.f32 %v7649, %v7659
        %v7682 = vsub.f32 %v7650, %v7662
        %v7683 = vsub.f32 %v7651, %v7665
        %v7684 = vsub.f32 %v7652, %v7668
        %v7685 = vsub.f32 %v7653, %v7671
        %v7686 = vsub.f32 %v7654, %v7674
        %v7687 = vsub.f32 %v7655, %v7677
        %v7688 = vsub.f32 %v7656, %v7680
        %v7689 = vmul.f32 %v7681, 1.442695
        %v7690 = vpow.pop %v7689
        %v7691 = vmul.f32 %v7682, 1.442695
        %v7692 = vpow.pop %v7691
        %v7693 = vmul.f32 %v7683, 1.442695
        %v7694 = vpow.pop %v7693
        %v7695 = vmul.f32 %v7684, 1.442695
        %v7696 = vpow.pop %v7695
        %v7697 = vmul.f32 %v7685, 1.442695
        %v7698 = vpow.pop %v7697
        %v7699 = vmul.f32 %v7686, 1.442695
        %v7700 = vpow.pop %v7699
        %v7701 = vmul.f32 %v7687, 1.442695
        %v7702 = vpow.pop %v7701
        %v7703 = vmul.f32 %v7688, 1.442695
        %v7704 = vpow.pop %v7703
        %v7705 = vsel %vm2264, %v7690, 0.0
        %7706 = vadd.xlane.f32.xlu0 %v7705
        %v7707 = vpop.xlane.xlu0 %7706
        %v7708 = vsel %vm2264, %v7692, 0.0
        %7709 = vadd.xlane.f32.xlu0 %v7708
        %v7710 = vpop.xlane.xlu0 %7709
        %v7711 = vsel %vm2264, %v7694, 0.0
        %7712 = vadd.xlane.f32.xlu0 %v7711
        %v7713 = vpop.xlane.xlu0 %7712
        %v7714 = vsel %vm2264, %v7696, 0.0
        %7715 = vadd.xlane.f32.xlu0 %v7714
        %v7716 = vpop.xlane.xlu0 %7715
        %v7717 = vsel %vm2264, %v7698, 0.0
        %7718 = vadd.xlane.f32.xlu0 %v7717
        %v7719 = vpop.xlane.xlu0 %7718
        %v7720 = vsel %vm2264, %v7700, 0.0
        %7721 = vadd.xlane.f32.xlu0 %v7720
        %v7722 = vpop.xlane.xlu0 %7721
        %v7723 = vsel %vm2264, %v7702, 0.0
        %7724 = vadd.xlane.f32.xlu0 %v7723
        %v7725 = vpop.xlane.xlu0 %7724
        %v7726 = vsel %vm2264, %v7704, 0.0
        %7727 = vadd.xlane.f32.xlu0 %v7726
        %v7728 = vpop.xlane.xlu0 %7727
        %v7729 = vrcp.pop %v7707
        %v7730 = vrcp.pop %v7710
        %v7731 = vrcp.pop %v7713
        %v7732 = vrcp.pop %v7716
        %v7733 = vrcp.pop %v7719
        %v7734 = vrcp.pop %v7722
        %v7735 = vrcp.pop %v7725
        %v7736 = vrcp.pop %v7728
        %v7737 = vmul.f32 %v7690, %v7729
        %v7738 = vmul.f32 %v7692, %v7730
        %v7739 = vmul.f32 %v7694, %v7731
        %v7740 = vmul.f32 %v7696, %v7732
        %v7741 = vmul.f32 %v7698, %v7733
        %v7742 = vmul.f32 %v7700, %v7734
        %v7743 = vmul.f32 %v7702, %v7735
        %v7744 = vmul.f32 %v7704, %v7736
        %v7745 = vpack.c.bf16 %v7738, %v7737
        %v7746 = vpack.c.bf16 %v7740, %v7739
        %v7747 = vpack.c.bf16 %v7742, %v7741
        %v7748 = vpack.c.bf16 %v7744, %v7743
        %7749 = vrot.lane.b32.xlu0 %v975, 40
        %v7750 = vpop.permute.xlu0 %7749
        %7751 = vrot.lane.b32.xlu0 %v976, 40
        %v7752 = vpop.permute.xlu0 %7751
        %7753 = vrot.lane.b32.xlu0 %v977, 40
        %v7754 = vpop.permute.xlu0 %7753
        %7755 = vrot.lane.b32.xlu0 %v978, 40
        %v7756 = vpop.permute.xlu0 %7755
        %v7762 = vsel %vm2264, %v7745, 0
        %v7765 = vsel %vm2264, %v7746, 0
        %v7768 = vsel %vm2264, %v7747, 0
        %v7771 = vsel %vm2264, %v7748, 0
        %7773 = vmatpush.bf16.msra.mxu0 0
        %7774 = vmatpush.bf16.msra.mxu0 0
        %7775 = vmatpush.bf16.msra.mxu0 0
        %7776 = vmatpush.bf16.msra.mxu0 0
        %7777 = vmatpush.bf16.msra.mxu0 %v7756
        %7778 = vmatpush.bf16.msra.mxu0 %v7754
        %7779 = vmatpush.bf16.msra.mxu0 %v7752
        %7780 = vmatpush.bf16.msra.mxu0 %v7750
        %7781 = vmatmul.bf16.gmra.mxu0 %v7762
        %v7782 = vpop.f32.mrf.mxu0
        %v7783 = vadd.f32 0.0, %v7782
        %v7784 = vpop.f32.mrf.mxu0
        %v7785 = vadd.f32 0.0, %v7784
        %7786 = vmatmul.bf16.gmra.mxu0 %v7765
        %v7787 = vpop.f32.mrf.mxu0
        %v7788 = vadd.f32 0.0, %v7787
        %v7789 = vpop.f32.mrf.mxu0
        %v7790 = vadd.f32 0.0, %v7789
        %7791 = vmatmul.bf16.gmra.mxu0 %v7768
        %v7792 = vpop.f32.mrf.mxu0
        %v7793 = vadd.f32 0.0, %v7792
        %v7794 = vpop.f32.mrf.mxu0
        %v7795 = vadd.f32 0.0, %v7794
        %7796 = vmatmul.bf16.gmra.mxu0 %v7771
        %v7797 = vpop.f32.mrf.mxu0
        %v7798 = vadd.f32 0.0, %v7797
        %v7799 = vpop.f32.mrf.mxu0
        %v7800 = vadd.f32 0.0, %v7799
        %7801 = vdwg.mxu0
        %7810 = vrot.lane.b32.xlu0 %v4199, 8
        %v7811 = vpop.permute.xlu0 %7810
        %7812 = vrot.lane.b32.xlu0 %v4201, 8
        %v7813 = vpop.permute.xlu0 %7812
        %7814 = vrot.lane.b32.xlu0 %v4204, 8
        %v7815 = vpop.permute.xlu0 %7814
        %7816 = vrot.lane.b32.xlu0 %v4206, 8
        %v7817 = vpop.permute.xlu0 %7816
        %7818 = vrot.lane.b32.xlu0 %v4209, 8
        %v7819 = vpop.permute.xlu0 %7818
        %7820 = vrot.lane.b32.xlu0 %v4211, 8
        %v7821 = vpop.permute.xlu0 %7820
        %7822 = vrot.lane.b32.xlu0 %v4214, 8
        %v7823 = vpop.permute.xlu0 %7822
        %7824 = vrot.lane.b32.xlu0 %v4216, 8
        %v7825 = vpop.permute.xlu0 %7824
        %7842 = vrot.lane.b32.xlu0 %v5991, 16
        %v7843 = vpop.permute.xlu0 %7842
        %7844 = vrot.lane.b32.xlu0 %v5993, 16
        %v7845 = vpop.permute.xlu0 %7844
        %7846 = vrot.lane.b32.xlu0 %v5996, 16
        %v7847 = vpop.permute.xlu0 %7846
        %7848 = vrot.lane.b32.xlu0 %v5998, 16
        %v7849 = vpop.permute.xlu0 %7848
        %7850 = vrot.lane.b32.xlu0 %v6001, 16
        %v7851 = vpop.permute.xlu0 %7850
        %7852 = vrot.lane.b32.xlu0 %v6003, 16
        %v7853 = vpop.permute.xlu0 %7852
        %7854 = vrot.lane.b32.xlu0 %v6006, 16
        %v7855 = vpop.permute.xlu0 %7854
        %7856 = vrot.lane.b32.xlu0 %v6008, 16
        %v7857 = vpop.permute.xlu0 %7856
        %7874 = vrot.lane.b32.xlu0 %v7783, 24
        %v7875 = vpop.permute.xlu0 %7874
        %7876 = vrot.lane.b32.xlu0 %v7785, 24
        %v7877 = vpop.permute.xlu0 %7876
        %7878 = vrot.lane.b32.xlu0 %v7788, 24
        %v7879 = vpop.permute.xlu0 %7878
        %7880 = vrot.lane.b32.xlu0 %v7790, 24
        %v7881 = vpop.permute.xlu0 %7880
        %7882 = vrot.lane.b32.xlu0 %v7793, 24
        %v7883 = vpop.permute.xlu0 %7882
        %7884 = vrot.lane.b32.xlu0 %v7795, 24
        %v7885 = vpop.permute.xlu0 %7884
        %7886 = vrot.lane.b32.xlu0 %v7798, 24
        %v7887 = vpop.permute.xlu0 %7886
        %7888 = vrot.lane.b32.xlu0 %v7800, 24
        %v7889 = vpop.permute.xlu0 %7888
        %v7898 = vsel %vm991, %v2391, %v7811
        %v7899 = vsel %vm991, %v2393, %v7813
        %v7900 = vsel %vm991, %v2396, %v7815
        %v7901 = vsel %vm991, %v2398, %v7817
        %v7902 = vsel %vm991, %v2401, %v7819
        %v7903 = vsel %vm991, %v2403, %v7821
        %v7904 = vsel %vm991, %v2406, %v7823
        %v7905 = vsel %vm991, %v2408, %v7825
        %vm7906 = vcmask 130048
        %v7907 = vsel %vm7906, %v7898, %v7843
        %v7908 = vsel %vm7906, %v7899, %v7845
        %v7909 = vsel %vm7906, %v7900, %v7847
        %v7910 = vsel %vm7906, %v7901, %v7849
        %v7911 = vsel %vm7906, %v7902, %v7851
        %v7912 = vsel %vm7906, %v7903, %v7853
        %v7913 = vsel %vm7906, %v7904, %v7855
        %v7914 = vsel %vm7906, %v7905, %v7857
        %vm7915 = vcmask 195584
        %v7916 = vsel %vm7915, %v7907, %v7875
        %v7917 = vsel %vm7915, %v7908, %v7877
        %v7918 = vsel %vm7915, %v7909, %v7879
        %v7919 = vsel %vm7915, %v7910, %v7881
        %v7920 = vsel %vm7915, %v7911, %v7883
        %v7921 = vsel %vm7915, %v7912, %v7885
        %v7922 = vsel %vm7915, %v7913, %v7887
        %v7923 = vsel %vm7915, %v7914, %v7889
        %v7924 = vpack.c.bf16 %v7917, %v7916
        %v7925 = vpack.c.bf16 %v7919, %v7918
        %v7926 = vpack.c.bf16 %v7921, %v7920
        %v7927 = vpack.c.bf16 %v7923, %v7922
        %v7928 = vld [vmem:[%s9] sm:$0xf]
        %v7929 = vld [vmem:[%s9 + $0x4] sm:$0xf]
        %v7930 = vld [vmem:[%s9 + $0x8] sm:$0xf]
        %v7931 = vld [vmem:[%s9 + $0xc] sm:$0xf]
        %v7932 = vld [vmem:[#allocation11] sm:$0x1]
        %v7934 = vperm.slane %v7932, 0
        %v7940 = vunpack.c.l.b16 %v7928
        %v7941 = vunpack.c.l.b16 %v7929
        %v7942 = vunpack.c.l.b16 %v7930
        %v7943 = vunpack.c.l.b16 %v7931
        %v7944 = vpack.c.b16 %v7941, %v7940
        %v7945 = vpack.c.b16 %v7943, %v7942
        %v7949 = vsel %vm684, %v7924, 0
        %v7952 = vsel %vm684, %v7925, 0
        %v7955 = vsel %vm684, %v7926, 0
        %v7958 = vsel %vm684, %v7927, 0
        %7960 = vmatpush.bf16.msra.mxu0 0
        %7961 = vmatpush.bf16.msra.mxu0 0
        %7962 = vmatpush.bf16.msra.mxu0 0
        %7963 = vmatpush.bf16.msra.mxu0 0
        %7964 = vmatpush.bf16.msra.mxu0 0
        %7965 = vmatpush.bf16.msra.mxu0 0
        %7966 = vmatpush.bf16.msra.mxu0 %v7945
        %7967 = vmatpush.bf16.msra.mxu0 %v7944
        %7968 = vmatmul.bf16.gmra.mxu0 %v7949
        %v7969 = vpop.f32.mrf.mxu0
        %v7970 = vadd.f32 %v7934, %v7969
        %v7971 = vpop.f32.mrf.mxu0
        %v7972 = vadd.f32 %v7934, %v7971
        %7973 = vmatmul.bf16.gmra.mxu0 %v7952
        %v7974 = vpop.f32.mrf.mxu0
        %v7975 = vadd.f32 %v7934, %v7974
        %v7976 = vpop.f32.mrf.mxu0
        %v7977 = vadd.f32 %v7934, %v7976
        %7978 = vmatmul.bf16.gmra.mxu0 %v7955
        %v7979 = vpop.f32.mrf.mxu0
        %v7980 = vadd.f32 %v7934, %v7979
        %v7981 = vpop.f32.mrf.mxu0
        %v7982 = vadd.f32 %v7934, %v7981
        %7983 = vmatmul.bf16.gmra.mxu0 %v7958
        %v7984 = vpop.f32.mrf.mxu0
        %v7985 = vadd.f32 %v7934, %v7984
        %v7986 = vpop.f32.mrf.mxu0
        %v7987 = vadd.f32 %v7934, %v7986
        %7988 = vdwg.mxu0
        %v7989 = vadd.f32 %v676, %v7970
        %v7990 = vadd.f32 %v677, %v7972
        %v7991 = vadd.f32 %v678, %v7975
        %v7992 = vadd.f32 %v679, %v7977
        %v7993 = vadd.f32 %v680, %v7980
        %v7994 = vadd.f32 %v681, %v7982
        %v7995 = vadd.f32 %v682, %v7985
        %v7996 = vadd.f32 %v683, %v7987
        %v7997 = vsel %vm684, %v7989, 0.0
        %7998 = vadd.xlane.f32.xlu0 %v7997
        %v7999 = vpop.xlane.xlu0 %7998
        %v8000 = vsel %vm684, %v7990, 0.0
        %8001 = vadd.xlane.f32.xlu0 %v8000
        %v8002 = vpop.xlane.xlu0 %8001
        %v8003 = vsel %vm684, %v7991, 0.0
        %8004 = vadd.xlane.f32.xlu0 %v8003
        %v8005 = vpop.xlane.xlu0 %8004
        %v8006 = vsel %vm684, %v7992, 0.0
        %8007 = vadd.xlane.f32.xlu0 %v8006
        %v8008 = vpop.xlane.xlu0 %8007
        %v8009 = vsel %vm684, %v7993, 0.0
        %8010 = vadd.xlane.f32.xlu0 %v8009
        %v8011 = vpop.xlane.xlu0 %8010
        %v8012 = vsel %vm684, %v7994, 0.0
        %8013 = vadd.xlane.f32.xlu0 %v8012
        %v8014 = vpop.xlane.xlu0 %8013
        %v8015 = vsel %vm684, %v7995, 0.0
        %8016 = vadd.xlane.f32.xlu0 %v8015
        %v8017 = vpop.xlane.xlu0 %8016
        %v8018 = vsel %vm684, %v7996, 0.0
        %8019 = vadd.xlane.f32.xlu0 %v8018
        %v8020 = vpop.xlane.xlu0 %8019
        %v8021 = vmul.f32 %v7999, %v715
        %v8022 = vmul.f32 %v8002, %v715
        %v8023 = vmul.f32 %v8005, %v715
        %v8024 = vmul.f32 %v8008, %v715
        %v8025 = vmul.f32 %v8011, %v715
        %v8026 = vmul.f32 %v8014, %v715
        %v8027 = vmul.f32 %v8017, %v715
        %v8028 = vmul.f32 %v8020, %v715
        %v8029 = vsub.f32 %v7989, %v8021
        %v8030 = vsub.f32 %v7990, %v8022
        %v8031 = vsub.f32 %v7991, %v8023
        %v8032 = vsub.f32 %v7992, %v8024
        %v8033 = vsub.f32 %v7993, %v8025
        %v8034 = vsub.f32 %v7994, %v8026
        %v8035 = vsub.f32 %v7995, %v8027
        %v8036 = vsub.f32 %v7996, %v8028
        %v8037 = vmul.f32 %v8029, %v8029
        %v8038 = vmul.f32 %v8030, %v8030
        %v8039 = vmul.f32 %v8031, %v8031
        %v8040 = vmul.f32 %v8032, %v8032
        %v8041 = vmul.f32 %v8033, %v8033
        %v8042 = vmul.f32 %v8034, %v8034
        %v8043 = vmul.f32 %v8035, %v8035
        %v8044 = vmul.f32 %v8036, %v8036
        %v8045 = vsel %vm684, %v8037, 0.0
        %8046 = vadd.xlane.f32.xlu0 %v8045
        %v8047 = vpop.xlane.xlu0 %8046
        %v8048 = vsel %vm684, %v8038, 0.0
        %8049 = vadd.xlane.f32.xlu0 %v8048
        %v8050 = vpop.xlane.xlu0 %8049
        %v8051 = vsel %vm684, %v8039, 0.0
        %8052 = vadd.xlane.f32.xlu0 %v8051
        %v8053 = vpop.xlane.xlu0 %8052
        %v8054 = vsel %vm684, %v8040, 0.0
        %8055 = vadd.xlane.f32.xlu0 %v8054
        %v8056 = vpop.xlane.xlu0 %8055
        %v8057 = vsel %vm684, %v8041, 0.0
        %8058 = vadd.xlane.f32.xlu0 %v8057
        %v8059 = vpop.xlane.xlu0 %8058
        %v8060 = vsel %vm684, %v8042, 0.0
        %8061 = vadd.xlane.f32.xlu0 %v8060
        %v8062 = vpop.xlane.xlu0 %8061
        %v8063 = vsel %vm684, %v8043, 0.0
        %8064 = vadd.xlane.f32.xlu0 %v8063
        %v8065 = vpop.xlane.xlu0 %8064
        %v8066 = vsel %vm684, %v8044, 0.0
        %8067 = vadd.xlane.f32.xlu0 %v8066
        %v8068 = vpop.xlane.xlu0 %8067
        %v8069 = vmul.f32 %v8047, %v715
        %v8070 = vmul.f32 %v8050, %v715
        %v8071 = vmul.f32 %v8053, %v715
        %v8072 = vmul.f32 %v8056, %v715
        %v8073 = vmul.f32 %v8059, %v715
        %v8074 = vmul.f32 %v8062, %v715
        %v8075 = vmul.f32 %v8065, %v715
        %v8076 = vmul.f32 %v8068, %v715
        %v8077 = vadd.f32 %v8069, 1e-05
        %v8078 = vadd.f32 %v8070, 1e-05
        %v8079 = vadd.f32 %v8071, 1e-05
        %v8080 = vadd.f32 %v8072, 1e-05
        %v8081 = vadd.f32 %v8073, 1e-05
        %v8082 = vadd.f32 %v8074, 1e-05
        %v8083 = vadd.f32 %v8075, 1e-05
        %v8084 = vadd.f32 %v8076, 1e-05
        %v8085 = vrsqrt.pop %v8077
        %v8086 = vmul.f32 %v8085, %v8077
        %v8087 = vmul.f32 %v8086, %v8085
        %v8088 = vmul.f32 0.5, %v8087
        %v8089 = vsub.f32 1.5, %v8088
        %v8090 = vmul.f32 %v8085, %v8089
        %vm8091 = vweird.f32 %v8077
        %vm8092 = vweird.f32 %v8085
        %vm8093 = vmor %vm8091, %vm8092
        %v8094 = vsel %vm8093, %v8085, %v8090
        %v8095 = vrsqrt.pop %v8078
        %v8096 = vmul.f32 %v8095, %v8078
        %v8097 = vmul.f32 %v8096, %v8095
        %v8098 = vmul.f32 0.5, %v8097
        %v8099 = vsub.f32 1.5, %v8098
        %v8100 = vmul.f32 %v8095, %v8099
        %vm8101 = vweird.f32 %v8078
        %vm8102 = vweird.f32 %v8095
        %vm8103 = vmor %vm8101, %vm8102
        %v8104 = vsel %vm8103, %v8095, %v8100
        %v8105 = vrsqrt.pop %v8079
        %v8106 = vmul.f32 %v8105, %v8079
        %v8107 = vmul.f32 %v8106, %v8105
        %v8108 = vmul.f32 0.5, %v8107
        %v8109 = vsub.f32 1.5, %v8108
        %v8110 = vmul.f32 %v8105, %v8109
        %vm8111 = vweird.f32 %v8079
        %vm8112 = vweird.f32 %v8105
        %vm8113 = vmor %vm8111, %vm8112
        %v8114 = vsel %vm8113, %v8105, %v8110
        %v8115 = vrsqrt.pop %v8080
        %v8116 = vmul.f32 %v8115, %v8080
        %v8117 = vmul.f32 %v8116, %v8115
        %v8118 = vmul.f32 0.5, %v8117
        %v8119 = vsub.f32 1.5, %v8118
        %v8120 = vmul.f32 %v8115, %v8119
        %vm8121 = vweird.f32 %v8080
        %vm8122 = vweird.f32 %v8115
        %vm8123 = vmor %vm8121, %vm8122
        %v8124 = vsel %vm8123, %v8115, %v8120
        %v8125 = vrsqrt.pop %v8081
        %v8126 = vmul.f32 %v8125, %v8081
        %v8127 = vmul.f32 %v8126, %v8125
        %v8128 = vmul.f32 0.5, %v8127
        %v8129 = vsub.f32 1.5, %v8128
        %v8130 = vmul.f32 %v8125, %v8129
        %vm8131 = vweird.f32 %v8081
        %vm8132 = vweird.f32 %v8125
        %vm8133 = vmor %vm8131, %vm8132
        %v8134 = vsel %vm8133, %v8125, %v8130
        %v8135 = vrsqrt.pop %v8082
        %v8136 = vmul.f32 %v8135, %v8082
        %v8137 = vmul.f32 %v8136, %v8135
        %v8138 = vmul.f32 0.5, %v8137
        %v8139 = vsub.f32 1.5, %v8138
        %v8140 = vmul.f32 %v8135, %v8139
        %vm8141 = vweird.f32 %v8082
        %vm8142 = vweird.f32 %v8135
        %vm8143 = vmor %vm8141, %vm8142
        %v8144 = vsel %vm8143, %v8135, %v8140
        %v8145 = vrsqrt.pop %v8083
        %v8146 = vmul.f32 %v8145, %v8083
        %v8147 = vmul.f32 %v8146, %v8145
        %v8148 = vmul.f32 0.5, %v8147
        %v8149 = vsub.f32 1.5, %v8148
        %v8150 = vmul.f32 %v8145, %v8149
        %vm8151 = vweird.f32 %v8083
        %vm8152 = vweird.f32 %v8145
        %vm8153 = vmor %vm8151, %vm8152
        %v8154 = vsel %vm8153, %v8145, %v8150
        %v8155 = vrsqrt.pop %v8084
        %v8156 = vmul.f32 %v8155, %v8084
        %v8157 = vmul.f32 %v8156, %v8155
        %v8158 = vmul.f32 0.5, %v8157
        %v8159 = vsub.f32 1.5, %v8158
        %v8160 = vmul.f32 %v8155, %v8159
        %vm8161 = vweird.f32 %v8084
        %vm8162 = vweird.f32 %v8155
        %vm8163 = vmor %vm8161, %vm8162
        %v8164 = vsel %vm8163, %v8155, %v8160
        %v8165 = vmul.f32 %v8029, %v8094
        %v8166 = vmul.f32 %v8030, %v8104
        %v8167 = vmul.f32 %v8031, %v8114
        %v8168 = vmul.f32 %v8032, %v8124
        %v8169 = vmul.f32 %v8033, %v8134
        %v8170 = vmul.f32 %v8034, %v8144
        %v8171 = vmul.f32 %v8035, %v8154
        %v8172 = vmul.f32 %v8036, %v8164
        %v8173 = vld [vmem:[%s11] sm:$0x1]
        %v8175 = vperm.slane %v8173, 0
        %v8177 = vmul.f32 %v8165, %v8175
        %v8178 = vmul.f32 %v8166, %v8175
        %v8179 = vmul.f32 %v8167, %v8175
        %v8180 = vmul.f32 %v8168, %v8175
        %v8181 = vmul.f32 %v8169, %v8175
        %v8182 = vmul.f32 %v8170, %v8175
        %v8183 = vmul.f32 %v8171, %v8175
        %v8184 = vmul.f32 %v8172, %v8175
        %v8185 = vld [vmem:[%s12] sm:$0x1]
        %v8187 = vperm.slane %v8185, 0
        %v8189 = vadd.f32 %v8177, %v8187
        %v8190 = vadd.f32 %v8178, %v8187
        %v8191 = vadd.f32 %v8179, %v8187
        %v8192 = vadd.f32 %v8180, %v8187
        %v8193 = vadd.f32 %v8181, %v8187
        %v8194 = vadd.f32 %v8182, %v8187
        %v8195 = vadd.f32 %v8183, %v8187
        %v8196 = vadd.f32 %v8184, %v8187
        %v8197 = vpack.c.bf16 %v8190, %v8189
        %v8198 = vpack.c.bf16 %v8192, %v8191
        %v8199 = vpack.c.bf16 %v8194, %v8193
        %v8200 = vpack.c.bf16 %v8196, %v8195
        %v8201 = vld [vmem:[%s13] sm:$0xf]
        %v8202 = vld [vmem:[%s13 + $0x4] sm:$0xf]
        %v8203 = vld [vmem:[%s13 + $0x8] sm:$0xf]
        %v8204 = vld [vmem:[%s13 + $0xc] sm:$0xf]
        %v8205 = vld [vmem:[#allocation13] sm:$0x1]
        %v8207 = vperm.slane %v8205, 0
        %v8213 = vunpack.c.l.b16 %v8201
        %v8214 = vunpack.c.l.b16 %v8202
        %v8215 = vunpack.c.l.b16 %v8203
        %v8216 = vunpack.c.l.b16 %v8204
        %v8217 = vpack.c.b16 %v8214, %v8213
        %v8218 = vpack.c.b16 %v8216, %v8215
        %v8222 = vsel %vm684, %v8197, 0
        %v8225 = vsel %vm684, %v8198, 0
        %v8228 = vsel %vm684, %v8199, 0
        %v8231 = vsel %vm684, %v8200, 0
        %8233 = vmatpush.bf16.msra.mxu0 0
        %8234 = vmatpush.bf16.msra.mxu0 0
        %8235 = vmatpush.bf16.msra.mxu0 0
        %8236 = vmatpush.bf16.msra.mxu0 0
        %8237 = vmatpush.bf16.msra.mxu0 0
        %8238 = vmatpush.bf16.msra.mxu0 0
        %8239 = vmatpush.bf16.msra.mxu0 %v8218
        %8240 = vmatpush.bf16.msra.mxu0 %v8217
        %8241 = vmatmul.bf16.gmra.mxu0 %v8222
        %v8242 = vpop.f32.mrf.mxu0
        %v8243 = vadd.f32 %v8207, %v8242
        %v8244 = vpop.f32.mrf.mxu0
        %v8245 = vadd.f32 %v8207, %v8244
        %8246 = vmatmul.bf16.gmra.mxu0 %v8225
        %v8247 = vpop.f32.mrf.mxu0
        %v8248 = vadd.f32 %v8207, %v8247
        %v8249 = vpop.f32.mrf.mxu0
        %v8250 = vadd.f32 %v8207, %v8249
        %8251 = vmatmul.bf16.gmra.mxu0 %v8228
        %v8252 = vpop.f32.mrf.mxu0
        %v8253 = vadd.f32 %v8207, %v8252
        %v8254 = vpop.f32.mrf.mxu0
        %v8255 = vadd.f32 %v8207, %v8254
        %8256 = vmatmul.bf16.gmra.mxu0 %v8231
        %v8257 = vpop.f32.mrf.mxu0
        %v8258 = vadd.f32 %v8207, %v8257
        %v8259 = vpop.f32.mrf.mxu0
        %v8260 = vadd.f32 %v8207, %v8259
        %8261 = vdwg.mxu0
        %v8262 = vmul.f32 %v8243, 0.5
        %v8263 = vmul.f32 %v8245, 0.5
        %v8264 = vmul.f32 %v8248, 0.5
        %v8265 = vmul.f32 %v8250, 0.5
        %v8266 = vmul.f32 %v8253, 0.5
        %v8267 = vmul.f32 %v8255, 0.5
        %v8268 = vmul.f32 %v8258, 0.5
        %v8269 = vmul.f32 %v8260, 0.5
        %v8270 = vmul.f32 %v8243, 0.70710677
        %v8271 = vmul.f32 %v8245, 0.70710677
        %v8272 = vmul.f32 %v8248, 0.70710677
        %v8273 = vmul.f32 %v8250, 0.70710677
        %v8274 = vmul.f32 %v8253, 0.70710677
        %v8275 = vmul.f32 %v8255, 0.70710677
        %v8276 = vmul.f32 %v8258, 0.70710677
        %v8277 = vmul.f32 %v8260, 0.70710677
        %v8278 = vmul.f32 %v8270, %v8270
        %v8279 = vmin.f32 16.0, %v8278
        %v8280 = vmul.f32 %v8279, 2.1237322e-06
        %v8281 = vadd.f32 %v8280, 0.00028619796
        %v8282 = vmul.f32 %v8279, %v8281
        %v8283 = vadd.f32 %v8282, 0.0036580483
        %v8284 = vmul.f32 %v8279, %v8283
        %v8285 = vadd.f32 %v8284, 0.05243302
        %v8286 = vmul.f32 %v8279, %v8285
        %v8287 = vadd.f32 %v8286, 0.18741608
        %v8288 = vmul.f32 %v8279, %v8287
        %v8289 = vadd.f32 %v8288, 1.1283791
        %v8290 = vmul.f32 %v8270, %v8289
        %v8291 = vmul.f32 %v8279, 3.8918573e-05
        %v8292 = vadd.f32 %v8291, 0.001143296
        %v8293 = vmul.f32 %v8279, %v8292
        %v8294 = vadd.f32 %v8293, 0.014752088
        %v8295 = vmul.f32 %v8279, %v8294
        %v8296 = vadd.f32 %v8295, 0.112945676
        %v8297 = vmul.f32 %v8279, %v8296
        %v8298 = vadd.f32 %v8297, 0.4994258
        %v8299 = vmul.f32 %v8279, %v8298
        %v8300 = vadd.f32 %v8299, 1.0
        %v8301 = vrcp.pop %v8300
        %v8302 = vmul.f32 %v8300, %v8301
        %v8303 = vsub.f32 1.0, %v8302
        %v8304 = vmul.f32 %v8301, %v8303
        %v8305 = vadd.f32 %v8301, %v8304
        %vm8306 = vweird.f32 %v8300
        %vm8307 = vweird.f32 %v8301
        %vm8308 = vmor %vm8306, %vm8307
        %v8309 = vsel %vm8308, %v8301, %v8305
        %v8310 = vand.u32 2147483647, %v8300
        %vm8311 = vcmp.eq.f32.partialorder %v8310, 8.507059e+37
        %v8312 = vand.u32 %v8300, 2147483648
        %v8313 = vor.u32 1.1754944e-38, %v8312
        %v8314 = vsel %vm8311, %v8313, %v8309
        %v8315 = vmul.f32 %v8290, %v8314
        %v8316 = vmin.f32 %v8315, 1.0
        %v8317 = vmax.f32 %v8316, -1.0
        %v8318 = vmul.f32 %v8271, %v8271
        %v8319 = vmin.f32 16.0, %v8318
        %v8320 = vmul.f32 %v8319, 2.1237322e-06
        %v8321 = vadd.f32 %v8320, 0.00028619796
        %v8322 = vmul.f32 %v8319, %v8321
        %v8323 = vadd.f32 %v8322, 0.0036580483
        %v8324 = vmul.f32 %v8319, %v8323
        %v8325 = vadd.f32 %v8324, 0.05243302
        %v8326 = vmul.f32 %v8319, %v8325
        %v8327 = vadd.f32 %v8326, 0.18741608
        %v8328 = vmul.f32 %v8319, %v8327
        %v8329 = vadd.f32 %v8328, 1.1283791
        %v8330 = vmul.f32 %v8271, %v8329
        %v8331 = vmul.f32 %v8319, 3.8918573e-05
        %v8332 = vadd.f32 %v8331, 0.001143296
        %v8333 = vmul.f32 %v8319, %v8332
        %v8334 = vadd.f32 %v8333, 0.014752088
        %v8335 = vmul.f32 %v8319, %v8334
        %v8336 = vadd.f32 %v8335, 0.112945676
        %v8337 = vmul.f32 %v8319, %v8336
        %v8338 = vadd.f32 %v8337, 0.4994258
        %v8339 = vmul.f32 %v8319, %v8338
        %v8340 = vadd.f32 %v8339, 1.0
        %v8341 = vrcp.pop %v8340
        %v8342 = vmul.f32 %v8340, %v8341
        %v8343 = vsub.f32 1.0, %v8342
        %v8344 = vmul.f32 %v8341, %v8343
        %v8345 = vadd.f32 %v8341, %v8344
        %vm8346 = vweird.f32 %v8340
        %vm8347 = vweird.f32 %v8341
        %vm8348 = vmor %vm8346, %vm8347
        %v8349 = vsel %vm8348, %v8341, %v8345
        %v8350 = vand.u32 2147483647, %v8340
        %vm8351 = vcmp.eq.f32.partialorder %v8350, 8.507059e+37
        %v8352 = vand.u32 %v8340, 2147483648
        %v8353 = vor.u32 1.1754944e-38, %v8352
        %v8354 = vsel %vm8351, %v8353, %v8349
        %v8355 = vmul.f32 %v8330, %v8354
        %v8356 = vmin.f32 %v8355, 1.0
        %v8357 = vmax.f32 %v8356, -1.0
        %v8358 = vmul.f32 %v8272, %v8272
        %v8359 = vmin.f32 16.0, %v8358
        %v8360 = vmul.f32 %v8359, 2.1237322e-06
        %v8361 = vadd.f32 %v8360, 0.00028619796
        %v8362 = vmul.f32 %v8359, %v8361
        %v8363 = vadd.f32 %v8362, 0.0036580483
        %v8364 = vmul.f32 %v8359, %v8363
        %v8365 = vadd.f32 %v8364, 0.05243302
        %v8366 = vmul.f32 %v8359, %v8365
        %v8367 = vadd.f32 %v8366, 0.18741608
        %v8368 = vmul.f32 %v8359, %v8367
        %v8369 = vadd.f32 %v8368, 1.1283791
        %v8370 = vmul.f32 %v8272, %v8369
        %v8371 = vmul.f32 %v8359, 3.8918573e-05
        %v8372 = vadd.f32 %v8371, 0.001143296
        %v8373 = vmul.f32 %v8359, %v8372
        %v8374 = vadd.f32 %v8373, 0.014752088
        %v8375 = vmul.f32 %v8359, %v8374
        %v8376 = vadd.f32 %v8375, 0.112945676
        %v8377 = vmul.f32 %v8359, %v8376
        %v8378 = vadd.f32 %v8377, 0.4994258
        %v8379 = vmul.f32 %v8359, %v8378
        %v8380 = vadd.f32 %v8379, 1.0
        %v8381 = vrcp.pop %v8380
        %v8382 = vmul.f32 %v8380, %v8381
        %v8383 = vsub.f32 1.0, %v8382
        %v8384 = vmul.f32 %v8381, %v8383
        %v8385 = vadd.f32 %v8381, %v8384
        %vm8386 = vweird.f32 %v8380
        %vm8387 = vweird.f32 %v8381
        %vm8388 = vmor %vm8386, %vm8387
        %v8389 = vsel %vm8388, %v8381, %v8385
        %v8390 = vand.u32 2147483647, %v8380
        %vm8391 = vcmp.eq.f32.partialorder %v8390, 8.507059e+37
        %v8392 = vand.u32 %v8380, 2147483648
        %v8393 = vor.u32 1.1754944e-38, %v8392
        %v8394 = vsel %vm8391, %v8393, %v8389
        %v8395 = vmul.f32 %v8370, %v8394
        %v8396 = vmin.f32 %v8395, 1.0
        %v8397 = vmax.f32 %v8396, -1.0
        %v8398 = vmul.f32 %v8273, %v8273
        %v8399 = vmin.f32 16.0, %v8398
        %v8400 = vmul.f32 %v8399, 2.1237322e-06
        %v8401 = vadd.f32 %v8400, 0.00028619796
        %v8402 = vmul.f32 %v8399, %v8401
        %v8403 = vadd.f32 %v8402, 0.0036580483
        %v8404 = vmul.f32 %v8399, %v8403
        %v8405 = vadd.f32 %v8404, 0.05243302
        %v8406 = vmul.f32 %v8399, %v8405
        %v8407 = vadd.f32 %v8406, 0.18741608
        %v8408 = vmul.f32 %v8399, %v8407
        %v8409 = vadd.f32 %v8408, 1.1283791
        %v8410 = vmul.f32 %v8273, %v8409
        %v8411 = vmul.f32 %v8399, 3.8918573e-05
        %v8412 = vadd.f32 %v8411, 0.001143296
        %v8413 = vmul.f32 %v8399, %v8412
        %v8414 = vadd.f32 %v8413, 0.014752088
        %v8415 = vmul.f32 %v8399, %v8414
        %v8416 = vadd.f32 %v8415, 0.112945676
        %v8417 = vmul.f32 %v8399, %v8416
        %v8418 = vadd.f32 %v8417, 0.4994258
        %v8419 = vmul.f32 %v8399, %v8418
        %v8420 = vadd.f32 %v8419, 1.0
        %v8421 = vrcp.pop %v8420
        %v8422 = vmul.f32 %v8420, %v8421
        %v8423 = vsub.f32 1.0, %v8422
        %v8424 = vmul.f32 %v8421, %v8423
        %v8425 = vadd.f32 %v8421, %v8424
        %vm8426 = vweird.f32 %v8420
        %vm8427 = vweird.f32 %v8421
        %vm8428 = vmor %vm8426, %vm8427
        %v8429 = vsel %vm8428, %v8421, %v8425
        %v8430 = vand.u32 2147483647, %v8420
        %vm8431 = vcmp.eq.f32.partialorder %v8430, 8.507059e+37
        %v8432 = vand.u32 %v8420, 2147483648
        %v8433 = vor.u32 1.1754944e-38, %v8432
        %v8434 = vsel %vm8431, %v8433, %v8429
        %v8435 = vmul.f32 %v8410, %v8434
        %v8436 = vmin.f32 %v8435, 1.0
        %v8437 = vmax.f32 %v8436, -1.0
        %v8438 = vmul.f32 %v8274, %v8274
        %v8439 = vmin.f32 16.0, %v8438
        %v8440 = vmul.f32 %v8439, 2.1237322e-06
        %v8441 = vadd.f32 %v8440, 0.00028619796
        %v8442 = vmul.f32 %v8439, %v8441
        %v8443 = vadd.f32 %v8442, 0.0036580483
        %v8444 = vmul.f32 %v8439, %v8443
        %v8445 = vadd.f32 %v8444, 0.05243302
        %v8446 = vmul.f32 %v8439, %v8445
        %v8447 = vadd.f32 %v8446, 0.18741608
        %v8448 = vmul.f32 %v8439, %v8447
        %v8449 = vadd.f32 %v8448, 1.1283791
        %v8450 = vmul.f32 %v8274, %v8449
        %v8451 = vmul.f32 %v8439, 3.8918573e-05
        %v8452 = vadd.f32 %v8451, 0.001143296
        %v8453 = vmul.f32 %v8439, %v8452
        %v8454 = vadd.f32 %v8453, 0.014752088
        %v8455 = vmul.f32 %v8439, %v8454
        %v8456 = vadd.f32 %v8455, 0.112945676
        %v8457 = vmul.f32 %v8439, %v8456
        %v8458 = vadd.f32 %v8457, 0.4994258
        %v8459 = vmul.f32 %v8439, %v8458
        %v8460 = vadd.f32 %v8459, 1.0
        %v8461 = vrcp.pop %v8460
        %v8462 = vmul.f32 %v8460, %v8461
        %v8463 = vsub.f32 1.0, %v8462
        %v8464 = vmul.f32 %v8461, %v8463
        %v8465 = vadd.f32 %v8461, %v8464
        %vm8466 = vweird.f32 %v8460
        %vm8467 = vweird.f32 %v8461
        %vm8468 = vmor %vm8466, %vm8467
        %v8469 = vsel %vm8468, %v8461, %v8465
        %v8470 = vand.u32 2147483647, %v8460
        %vm8471 = vcmp.eq.f32.partialorder %v8470, 8.507059e+37
        %v8472 = vand.u32 %v8460, 2147483648
        %v8473 = vor.u32 1.1754944e-38, %v8472
        %v8474 = vsel %vm8471, %v8473, %v8469
        %v8475 = vmul.f32 %v8450, %v8474
        %v8476 = vmin.f32 %v8475, 1.0
        %v8477 = vmax.f32 %v8476, -1.0
        %v8478 = vmul.f32 %v8275, %v8275
        %v8479 = vmin.f32 16.0, %v8478
        %v8480 = vmul.f32 %v8479, 2.1237322e-06
        %v8481 = vadd.f32 %v8480, 0.00028619796
        %v8482 = vmul.f32 %v8479, %v8481
        %v8483 = vadd.f32 %v8482, 0.0036580483
        %v8484 = vmul.f32 %v8479, %v8483
        %v8485 = vadd.f32 %v8484, 0.05243302
        %v8486 = vmul.f32 %v8479, %v8485
        %v8487 = vadd.f32 %v8486, 0.18741608
        %v8488 = vmul.f32 %v8479, %v8487
        %v8489 = vadd.f32 %v8488, 1.1283791
        %v8490 = vmul.f32 %v8275, %v8489
        %v8491 = vmul.f32 %v8479, 3.8918573e-05
        %v8492 = vadd.f32 %v8491, 0.001143296
        %v8493 = vmul.f32 %v8479, %v8492
        %v8494 = vadd.f32 %v8493, 0.014752088
        %v8495 = vmul.f32 %v8479, %v8494
        %v8496 = vadd.f32 %v8495, 0.112945676
        %v8497 = vmul.f32 %v8479, %v8496
        %v8498 = vadd.f32 %v8497, 0.4994258
        %v8499 = vmul.f32 %v8479, %v8498
        %v8500 = vadd.f32 %v8499, 1.0
        %v8501 = vrcp.pop %v8500
        %v8502 = vmul.f32 %v8500, %v8501
        %v8503 = vsub.f32 1.0, %v8502
        %v8504 = vmul.f32 %v8501, %v8503
        %v8505 = vadd.f32 %v8501, %v8504
        %vm8506 = vweird.f32 %v8500
        %vm8507 = vweird.f32 %v8501
        %vm8508 = vmor %vm8506, %vm8507
        %v8509 = vsel %vm8508, %v8501, %v8505
        %v8510 = vand.u32 2147483647, %v8500
        %vm8511 = vcmp.eq.f32.partialorder %v8510, 8.507059e+37
        %v8512 = vand.u32 %v8500, 2147483648
        %v8513 = vor.u32 1.1754944e-38, %v8512
        %v8514 = vsel %vm8511, %v8513, %v8509
        %v8515 = vmul.f32 %v8490, %v8514
        %v8516 = vmin.f32 %v8515, 1.0
        %v8517 = vmax.f32 %v8516, -1.0
        %v8518 = vmul.f32 %v8276, %v8276
        %v8519 = vmin.f32 16.0, %v8518
        %v8520 = vmul.f32 %v8519, 2.1237322e-06
        %v8521 = vadd.f32 %v8520, 0.00028619796
        %v8522 = vmul.f32 %v8519, %v8521
        %v8523 = vadd.f32 %v8522, 0.0036580483
        %v8524 = vmul.f32 %v8519, %v8523
        %v8525 = vadd.f32 %v8524, 0.05243302
        %v8526 = vmul.f32 %v8519, %v8525
        %v8527 = vadd.f32 %v8526, 0.18741608
        %v8528 = vmul.f32 %v8519, %v8527
        %v8529 = vadd.f32 %v8528, 1.1283791
        %v8530 = vmul.f32 %v8276, %v8529
        %v8531 = vmul.f32 %v8519, 3.8918573e-05
        %v8532 = vadd.f32 %v8531, 0.001143296
        %v8533 = vmul.f32 %v8519, %v8532
        %v8534 = vadd.f32 %v8533, 0.014752088
        %v8535 = vmul.f32 %v8519, %v8534
        %v8536 = vadd.f32 %v8535, 0.112945676
        %v8537 = vmul.f32 %v8519, %v8536
        %v8538 = vadd.f32 %v8537, 0.4994258
        %v8539 = vmul.f32 %v8519, %v8538
        %v8540 = vadd.f32 %v8539, 1.0
        %v8541 = vrcp.pop %v8540
        %v8542 = vmul.f32 %v8540, %v8541
        %v8543 = vsub.f32 1.0, %v8542
        %v8544 = vmul.f32 %v8541, %v8543
        %v8545 = vadd.f32 %v8541, %v8544
        %vm8546 = vweird.f32 %v8540
        %vm8547 = vweird.f32 %v8541
        %vm8548 = vmor %vm8546, %vm8547
        %v8549 = vsel %vm8548, %v8541, %v8545
        %v8550 = vand.u32 2147483647, %v8540
        %vm8551 = vcmp.eq.f32.partialorder %v8550, 8.507059e+37
        %v8552 = vand.u32 %v8540, 2147483648
        %v8553 = vor.u32 1.1754944e-38, %v8552
        %v8554 = vsel %vm8551, %v8553, %v8549
        %v8555 = vmul.f32 %v8530, %v8554
        %v8556 = vmin.f32 %v8555, 1.0
        %v8557 = vmax.f32 %v8556, -1.0
        %v8558 = vmul.f32 %v8277, %v8277
        %v8559 = vmin.f32 16.0, %v8558
        %v8560 = vmul.f32 %v8559, 2.1237322e-06
        %v8561 = vadd.f32 %v8560, 0.00028619796
        %v8562 = vmul.f32 %v8559, %v8561
        %v8563 = vadd.f32 %v8562, 0.0036580483
        %v8564 = vmul.f32 %v8559, %v8563
        %v8565 = vadd.f32 %v8564, 0.05243302
        %v8566 = vmul.f32 %v8559, %v8565
        %v8567 = vadd.f32 %v8566, 0.18741608
        %v8568 = vmul.f32 %v8559, %v8567
        %v8569 = vadd.f32 %v8568, 1.1283791
        %v8570 = vmul.f32 %v8277, %v8569
        %v8571 = vmul.f32 %v8559, 3.8918573e-05
        %v8572 = vadd.f32 %v8571, 0.001143296
        %v8573 = vmul.f32 %v8559, %v8572
        %v8574 = vadd.f32 %v8573, 0.014752088
        %v8575 = vmul.f32 %v8559, %v8574
        %v8576 = vadd.f32 %v8575, 0.112945676
        %v8577 = vmul.f32 %v8559, %v8576
        %v8578 = vadd.f32 %v8577, 0.4994258
        %v8579 = vmul.f32 %v8559, %v8578
        %v8580 = vadd.f32 %v8579, 1.0
        %v8581 = vrcp.pop %v8580
        %v8582 = vmul.f32 %v8580, %v8581
        %v8583 = vsub.f32 1.0, %v8582
        %v8584 = vmul.f32 %v8581, %v8583
        %v8585 = vadd.f32 %v8581, %v8584
        %vm8586 = vweird.f32 %v8580
        %vm8587 = vweird.f32 %v8581
        %vm8588 = vmor %vm8586, %vm8587
        %v8589 = vsel %vm8588, %v8581, %v8585
        %v8590 = vand.u32 2147483647, %v8580
        %vm8591 = vcmp.eq.f32.partialorder %v8590, 8.507059e+37
        %v8592 = vand.u32 %v8580, 2147483648
        %v8593 = vor.u32 1.1754944e-38, %v8592
        %v8594 = vsel %vm8591, %v8593, %v8589
        %v8595 = vmul.f32 %v8570, %v8594
        %v8596 = vmin.f32 %v8595, 1.0
        %v8597 = vmax.f32 %v8596, -1.0
        %v8598 = vadd.f32 %v8317, 1.0
        %v8599 = vadd.f32 %v8357, 1.0
        %v8600 = vadd.f32 %v8397, 1.0
        %v8601 = vadd.f32 %v8437, 1.0
        %v8602 = vadd.f32 %v8477, 1.0
        %v8603 = vadd.f32 %v8517, 1.0
        %v8604 = vadd.f32 %v8557, 1.0
        %v8605 = vadd.f32 %v8597, 1.0
        %v8606 = vmul.f32 %v8262, %v8598
        %v8607 = vmul.f32 %v8263, %v8599
        %v8608 = vmul.f32 %v8264, %v8600
        %v8609 = vmul.f32 %v8265, %v8601
        %v8610 = vmul.f32 %v8266, %v8602
        %v8611 = vmul.f32 %v8267, %v8603
        %v8612 = vmul.f32 %v8268, %v8604
        %v8613 = vmul.f32 %v8269, %v8605
        %v8614 = vpack.c.bf16 %v8607, %v8606
        %v8615 = vpack.c.bf16 %v8609, %v8608
        %v8616 = vpack.c.bf16 %v8611, %v8610
        %v8617 = vpack.c.bf16 %v8613, %v8612
        %v8618 = vld [vmem:[%s15] sm:$0xf]
        %v8619 = vld [vmem:[%s15 + $0x4] sm:$0xf]
        %v8620 = vld [vmem:[%s15 + $0x8] sm:$0xf]
        %v8621 = vld [vmem:[%s15 + $0xc] sm:$0xf]
        %v8622 = vld [vmem:[%s15 + $0x10] sm:$0xf]
        %v8623 = vld [vmem:[%s15 + $0x14] sm:$0xf]
        %v8624 = vld [vmem:[%s15 + $0x18] sm:$0xf]
        %v8625 = vld [vmem:[%s15 + $0x1c] sm:$0xf]
        %v8626 = vld [vmem:[#allocation14] sm:$0x1]
        %v8628 = vperm.slane %v8626, 0
        %v8638 = vunpack.c.l.b16 %v8618
        %v8639 = vunpack.c.l.b16 %v8619
        %v8640 = vunpack.c.l.b16 %v8620
        %v8641 = vunpack.c.l.b16 %v8621
        %v8642 = vunpack.c.l.b16 %v8622
        %v8643 = vunpack.c.l.b16 %v8623
        %v8644 = vunpack.c.l.b16 %v8624
        %v8645 = vunpack.c.l.b16 %v8625
        %v8646 = vpack.c.b16 %v8639, %v8638
        %v8647 = vpack.c.b16 %v8641, %v8640
        %v8648 = vpack.c.b16 %v8643, %v8642
        %v8649 = vpack.c.b16 %v8645, %v8644
        %v8655 = vsel %vm2264, %v8614, 0
        %v8658 = vsel %vm2264, %v8615, 0
        %v8661 = vsel %vm2264, %v8616, 0
        %v8664 = vsel %vm2264, %v8617, 0
        %8666 = vmatpush.bf16.msra.mxu0 0
        %8667 = vmatpush.bf16.msra.mxu0 0
        %8668 = vmatpush.bf16.msra.mxu0 0
        %8669 = vmatpush.bf16.msra.mxu0 0
        %8670 = vmatpush.bf16.msra.mxu0 %v8649
        %8671 = vmatpush.bf16.msra.mxu0 %v8648
        %8672 = vmatpush.bf16.msra.mxu0 %v8647
        %8673 = vmatpush.bf16.msra.mxu0 %v8646
        %8674 = vmatmul.bf16.gmra.mxu0 %v8655
        %v8675 = vpop.f32.mrf.mxu0
        %v8676 = vadd.f32 %v8628, %v8675
        %v8677 = vpop.f32.mrf.mxu0
        %v8678 = vadd.f32 %v8628, %v8677
        %8679 = vmatmul.bf16.gmra.mxu0 %v8658
        %v8680 = vpop.f32.mrf.mxu0
        %v8681 = vadd.f32 %v8628, %v8680
        %v8682 = vpop.f32.mrf.mxu0
        %v8683 = vadd.f32 %v8628, %v8682
        %8684 = vmatmul.bf16.gmra.mxu0 %v8661
        %v8685 = vpop.f32.mrf.mxu0
        %v8686 = vadd.f32 %v8628, %v8685
        %v8687 = vpop.f32.mrf.mxu0
        %v8688 = vadd.f32 %v8628, %v8687
        %8689 = vmatmul.bf16.gmra.mxu0 %v8664
        %v8690 = vpop.f32.mrf.mxu0
        %v8691 = vadd.f32 %v8628, %v8690
        %v8692 = vpop.f32.mrf.mxu0
        %v8693 = vadd.f32 %v8628, %v8692
        %8694 = vdwg.mxu0
        %v8695 = vadd.f32 %v7989, %v8676
        %v8696 = vadd.f32 %v7990, %v8678
        %v8697 = vadd.f32 %v7991, %v8681
        %v8698 = vadd.f32 %v7992, %v8683
        %v8699 = vadd.f32 %v7993, %v8686
        %v8700 = vadd.f32 %v7994, %v8688
        %v8701 = vadd.f32 %v7995, %v8691
        %v8702 = vadd.f32 %v7996, %v8693
        %8703 = vst.msk [vmem:[%s674] sm:$0xff] %vm684, %v8695
        %8704 = vst.msk [vmem:[%s674 + $0x8] sm:$0xff] %vm684, %v8696
        %8705 = vst.msk [vmem:[%s674 + $0x10] sm:$0xff] %vm684, %v8697
        %8706 = vst.msk [vmem:[%s674 + $0x18] sm:$0xff] %vm684, %v8698
        %8707 = vst.msk [vmem:[%s674 + $0x20] sm:$0xff] %vm684, %v8699
        %8708 = vst.msk [vmem:[%s674 + $0x28] sm:$0xff] %vm684, %v8700
        %8709 = vst.msk [vmem:[%s674 + $0x30] sm:$0xff] %vm684, %v8701
        %8710 = vst.msk [vmem:[%s674 + $0x38] sm:$0xff] %vm684, %v8702
        %s8711 = sand.u32 %s408, 1
        %s8712 = scalar_lea.sflag [#allocation4], %s8711
        %s8713 = sand.u32 %s408, 1
        %s8714 = smul.addr %s8713, 64
        %s8715 = scalar_lea.vmem [#allocation16], %s8714
        // Predicated region
        $region121: #{relpos_encoder_forward.1} parent=87 // pred_check
          %p8716 = pneg %p418
        $region122: #{relpos_encoder_forward.1} parent=87 // pred_check_branch
          %8718 = sbr.rel (%p8716) target = $region124
        $region123: #{relpos_encoder_forward.1} parent=87 // pred_region
          %8720 = vsyncadd %s8712, 0
          %s8721 = smul.addr %s38, 8
          %s8722 = smul.addr %s8721, 8
          %s8723 = scalar_lea.hbm %s17, %s8722
          %s8724 = sshll.u32 %s8715, 4
          %s8725 = int_to_ptr.vmem [resolvable:$true] %s8724
          %s8726 = sshll.u32 %s8723, 4
          %s8727 = int_to_ptr.hbm [resolvable:$true] %s8726
          %8732 = dma.vmem_to_hbm [thread:$0]  %s8725, 1024, %s8727, %s8712, 128, 128, 8
        $region124: #{relpos_encoder_forward.1} parent=87 // pred_fallthru
          _
      $region88: #{relpos_encoder_forward.1} parent=5 // pred_fallthru
        _
      %p8733 = scmp.le.s32.totalorder 2, %s33
      // Predicated region
      $region125: #{relpos_encoder_forward.1} parent=5 // pred_check
        %p8734 = pneg %p8733
      $region126: #{relpos_encoder_forward.1} parent=5 // pred_check_branch
        %8736 = sbr.rel (%p8734) target = $region128
      $region127: #{relpos_encoder_forward.1} parent=5 // pred_region
        %s8737 = ssub.s32 %s33, 2
        // Predicated region
        $region129: #{relpos_encoder_forward.1} parent=127 // pred_check
          %p8738 = pneg %p424
        $region130: #{relpos_encoder_forward.1} parent=127 // pred_check_branch
          %8740 = sbr.rel (%p8738) target = $region132
        $region131: #{relpos_encoder_forward.1} parent=127 // pred_region
          %s8741 = sand.u32 %s409, 1
          %s8742 = scalar_lea.sflag [#allocation4], %s8741
          %s8743 = sand.u32 %s409, 1
          %s8744 = smul.addr %s8743, 64
          %s8745 = scalar_lea.vmem [#allocation16], %s8744
          %8747 = dma.done %s8742, 1024
        $region132: #{relpos_encoder_forward.1} parent=127 // pred_fallthru
          _
      $region128: #{relpos_encoder_forward.1} parent=5 // pred_fallthru
        _
    $region6: #{relpos_encoder_forward.1} parent=1 // loop_footer
      %s37 = sadd.s32 1, %s33
    $region7: #{relpos_encoder_forward.1} parent=1 // loop_footer_branch
      %32 = sbr.rel target = $region3
    $region8: #{relpos_encoder_forward.1} parent=1 // loop_exit
      _
    %8748 = vsyncpa [#allocation3], 1
    %s8749 = scalar_lea.sflag [#allocation3], 1
    %8750 = vsyncpa %s8749, 1
    %8751 = vsyncpa [#allocation6], 1
    %8752 = vsyncpa [#allocation9], 1
    %8753 = vsyncpa [#allocation12], 1
    %8754 = vsyncpa [#allocation15], 1
    %8755 = vsyncpa [#allocation4], 1
    %s8756 = scalar_lea.sflag [#allocation4], 1
    %8757 = vsyncpa %s8756, 1

</llo_original>
